<compile_context>
chip_gen: v6e
topology: v6e:2x2x1
jax: 0.10.0
libtpu: 0.0.40
codegen_flags: <defaults>
</compile_context>

<pallas_src>
import numpy as np
import jax
import jax.numpy as jnp
from jax import lax
from jax.experimental import pallas as pl
from jax.experimental.pallas import tpu as pltpu

EPS = 1e-5
LANE = 128
VMEM_LIMIT = 48 * 1024 * 1024


def _ru(n, m):
    return ((n + m - 1) // m) * m


def _pad1d(v, to):
    return jnp.pad(v, (0, to - v.shape[0]))


def _row_tile(n):
    for cand in (1024, 512, 256, 128, 64, 32, 16, 8):
        if cand <= n and n % cand == 0 and n // cand >= 2:
            return cand
    return n


# ---------------------------------------------------------------------------
# Kernel 1: conv1 (9 in-kernel taps) + bias, streaming BN1 sum / sum-of-squares
# ---------------------------------------------------------------------------
def _conv1_kernel(H, W):
    def kernel(xp_ref, w_ref, b_ref, a_ref, s_ref):
        # xp_ref: (H+2, W+2, Ci) f32 (spatially pre-padded image for batch b)
        # w_ref : (3, 3, Ci, Cm) bf16   b_ref: (1, Cm) f32
        # a_ref : (H, W, Cm) f32 conv output   s_ref: (2, Cm) stats accumulator
        @pl.when(pl.program_id(0) == 0)
        def _init():
            s_ref[...] = jnp.zeros_like(s_ref)

        Cm = a_ref.shape[-1]
        acc = jnp.zeros((H * W, Cm), jnp.float32)
        for dy in range(3):
            for dx in range(3):
                patch = xp_ref[dy:dy + H, dx:dx + W, :].reshape(H * W, -1)
                acc = acc + jnp.dot(patch.astype(jnp.bfloat16), w_ref[dy, dx],
                                    preferred_element_type=jnp.float32)
        a = acc + b_ref[...]
        a_ref[...] = a.reshape(H, W, Cm)
        s_ref[...] += jnp.concatenate(
            [jnp.sum(a, axis=0, keepdims=True),
             jnp.sum(a * a, axis=0, keepdims=True)], axis=0)
    return kernel


# ---------------------------------------------------------------------------
# Kernel 2: BN1 finalize + ReLU, conv2 (9 taps), FiLM, streaming BN2 stats
# ---------------------------------------------------------------------------
def _film_conv2_kernel(H, W, n_total):
    def kernel(ap_ref, mask_ref, s1_ref, bn1_ref, y_ref, fw_ref, fb_ref,
               cp_ref, w2_ref, o_ref, s2_ref, hpad_sc):
        # ap_ref : (H+2, W+2, Cm) f32 spatially pre-padded conv1 output
        # mask   : (H+2, W+2, 1) 1 inside / 0 on the halo
        # s1_ref : (2, Cm) BN1 sum / sumsq   bn1_ref: (2, Cm) gamma/beta
        # y_ref  : (B, 1, F)   fw/fb: (F, Co)   cp_ref: (3, Co) [gW bias, gB bias, conv2 bias]
        # w2_ref : (3, 3, Cm, Co) bf16
        # o_ref  : (H, W, Co) pre-BN2 output   s2_ref: (2, Co) stats accumulator
        b = pl.program_id(0)

        @pl.when(b == 0)
        def _init():
            s2_ref[...] = jnp.zeros_like(s2_ref)

        inv_n = 1.0 / n_total
        mean1 = s1_ref[0:1, :] * inv_n
        var1 = s1_ref[1:2, :] * inv_n - mean1 * mean1
        scale1 = lax.rsqrt(var1 + EPS) * bn1_ref[0:1, :]
        shift1 = bn1_ref[1:2, :] - mean1 * scale1
        # BN1 + ReLU; mask re-zeroes the 1-pixel halo so conv2 sees zero padding.
        hpad_sc[...] = jnp.maximum(ap_ref[...] * scale1 + shift1, 0.0) * mask_ref[...]

        Co = o_ref.shape[-1]
        acc = jnp.zeros((H * W, Co), jnp.float32)
        for dy in range(3):
            for dx in range(3):
                patch = hpad_sc[dy:dy + H, dx:dx + W, :].reshape(H * W, -1)
                acc = acc + jnp.dot(patch.astype(jnp.bfloat16), w2_ref[dy, dx],
                                    preferred_element_type=jnp.float32)
        acc = acc + cp_ref[2:3, :]                     # conv2 bias

        # FiLM row for this batch element (no one-hot broadcast matmul).
        yb = y_ref[b]                                  # (1, F)
        gamma = jnp.dot(yb, fw_ref[...], preferred_element_type=jnp.float32) + cp_ref[0:1, :]
        beta = jnp.dot(yb, fb_ref[...], preferred_element_type=jnp.float32) + cp_ref[1:2, :]
        o = acc * gamma + beta

        o_ref[...] = o.reshape(H, W, Co)
        s2_ref[...] += jnp.concatenate(
            [jnp.sum(o, axis=0, keepdims=True),
             jnp.sum(o * o, axis=0, keepdims=True)], axis=0)
    return kernel


# ---------------------------------------------------------------------------
# Kernel 3: BN2 finalize + ReLU over lane-dense row tiles ("parallel" grid)
# ---------------------------------------------------------------------------
def _bn_relu_kernel(n_total):
    def kernel(o_ref, s_ref, bn_ref, out_ref):
        inv_n = 1.0 / n_total
        mean = s_ref[0:1, :] * inv_n
        var = s_ref[1:2, :] * inv_n - mean * mean
        scale = lax.rsqrt(var + EPS) * bn_ref[0:1, :]
        shift = bn_ref[1:2, :] - mean * scale
        out_ref[...] = jnp.maximum(o_ref[...] * scale + shift, 0.0)
    return kernel


# ---------------------------------------------------------------------------
# Wrapper: layout / zero-padding only (all compute lives in the kernels)
# ---------------------------------------------------------------------------
def expert_controller_film(x_nchw, y, P):
    B, Cin, H, W = x_nchw.shape
    imm = P["w1"].shape[-1]
    C = P["w2"].shape[-1]
    F = y.shape[-1]
    Ci, Cm, Co = _ru(Cin, LANE), _ru(imm, LANE), _ru(C, LANE)
    N = B * H * W

    x = jnp.transpose(x_nchw, (0, 2, 3, 1)).astype(jnp.float32)           # NCHW -> NHWC
    xp = jnp.pad(x, ((0, 0), (1, 1), (1, 1), (0, Ci - Cin)))              # halo + lane pad

    w1 = jnp.pad(P["w1"], ((0, 0), (0, 0), (0, Ci - Cin), (0, Cm - imm))).astype(jnp.bfloat16)
    b1 = _pad1d(P["b1"], Cm).reshape(1, Cm)
    bn1 = jnp.stack([_pad1d(P["bn1_gamma"], Cm), _pad1d(P["bn1_beta"], Cm)])

    w2 = jnp.pad(P["w2"], ((0, 0), (0, 0), (0, Cm - imm), (0, Co - C))).astype(jnp.bfloat16)
    cp = jnp.stack([_pad1d(P["film_w_bias"], Co),
                    _pad1d(P["film_b_bias"], Co),
                    _pad1d(P["b2"], Co)])
    fw = jnp.pad(P["film_w"], ((0, 0), (0, Co - C)))
    fb = jnp.pad(P["film_b"], ((0, 0), (0, Co - C)))
    bn2 = jnp.stack([_pad1d(P["bn2_gamma"], Co), _pad1d(P["bn2_beta"], Co)])
    y3 = y.astype(jnp.float32).reshape(B, 1, F)
    mask = jnp.pad(jnp.ones((H, W, 1), jnp.float32), ((1, 1), (1, 1), (0, 0)))

    seq_params = pltpu.CompilerParams(dimension_semantics=("arbitrary",),
                                      vmem_limit_bytes=VMEM_LIMIT)

    # --- K1: conv1 + BN1 statistics ---------------------------------------
    a, s1 = pl.pallas_call(
        _conv1_kernel(H, W),
        out_shape=(jax.ShapeDtypeStruct((B, H, W, Cm), jnp.float32),
                   jax.ShapeDtypeStruct((2, Cm), jnp.float32)),
        grid=(B,),
        in_specs=[pl.BlockSpec((None, H + 2, W + 2, Ci), lambda b: (b, 0, 0, 0)),
                  pl.BlockSpec((3, 3, Ci, Cm), lambda b: (0, 0, 0, 0)),
                  pl.BlockSpec((1, Cm), lambda b: (0, 0))],
        out_specs=(pl.BlockSpec((None, H, W, Cm), lambda b: (b, 0, 0, 0)),
                   pl.BlockSpec((2, Cm), lambda b: (0, 0))),
        compiler_params=seq_params,
    )(xp, w1, b1)

    ap = jnp.pad(a, ((0, 0), (1, 1), (1, 1), (0, 0)))   # spatial halo for conv2

    # --- K2: BN1+ReLU, conv2, FiLM, BN2 statistics --------------------------
    o, s2 = pl.pallas_call(
        _film_conv2_kernel(H, W, float(N)),
        out_shape=(jax.ShapeDtypeStruct((B, H, W, Co), jnp.float32),
                   jax.ShapeDtypeStruct((2, Co), jnp.float32)),
        grid=(B,),
        in_specs=[pl.BlockSpec((None, H + 2, W + 2, Cm), lambda b: (b, 0, 0, 0)),
                  pl.BlockSpec((H + 2, W + 2, 1), lambda b: (0, 0, 0)),
                  pl.BlockSpec((2, Cm), lambda b: (0, 0)),
                  pl.BlockSpec((2, Cm), lambda b: (0, 0)),
                  pl.BlockSpec((B, 1, F), lambda b: (0, 0, 0)),
                  pl.BlockSpec((F, Co), lambda b: (0, 0)),
                  pl.BlockSpec((F, Co), lambda b: (0, 0)),
                  pl.BlockSpec((3, Co), lambda b: (0, 0)),
                  pl.BlockSpec((3, 3, Cm, Co), lambda b: (0, 0, 0, 0))],
        out_specs=(pl.BlockSpec((None, H, W, Co), lambda b: (b, 0, 0, 0)),
                   pl.BlockSpec((2, Co), lambda b: (0, 0))),
        scratch_shapes=[pltpu.VMEM((H + 2, W + 2, Cm), jnp.float32)],
        compiler_params=seq_params,
    )(ap, mask, s1, bn1, y3, fw, fb, cp, w2)

    # --- K3: BN2 finalize + ReLU (lane-dense, row-tiled, parallel) ----------
    tile = _row_tile(N)
    out2 = pl.pallas_call(
        _bn_relu_kernel(float(N)),
        out_shape=jax.ShapeDtypeStruct((N, Co), jnp.float32),
        grid=(N // tile,),
        in_specs=[pl.BlockSpec((tile, Co), lambda i: (i, 0)),
                  pl.BlockSpec((2, Co), lambda i: (0, 0)),
                  pl.BlockSpec((2, Co), lambda i: (0, 0))],
        out_specs=pl.BlockSpec((tile, Co), lambda i: (i, 0)),
        compiler_params=pltpu.CompilerParams(dimension_semantics=("parallel",),
                                             vmem_limit_bytes=VMEM_LIMIT),
    )(o.reshape(N, Co), s2, bn2)

    out = out2.reshape(B, H, W, Co)[..., :C]
    return jnp.transpose(out, (0, 3, 1, 2))              # back to NCHW


# ---------------------------------------------------------------------------
# Deterministic parameter init (mirrors __init__ + initialize_parameters)
# ---------------------------------------------------------------------------
def init_params(key, in_features, out_features, in_channels, imm_channels):
    ks = jax.random.split(key, 6)
    w1 = 0.1 * jax.random.normal(ks[0], (3, 3, in_channels, imm_channels), jnp.float32)  # HWIO
    b1 = 0.1 * jax.random.normal(ks[1], (imm_channels,), jnp.float32)
    w2 = 0.1 * jax.random.normal(ks[2], (3, 3, imm_channels, out_features), jnp.float32)
    b2 = 0.1 * jax.random.normal(ks[3], (out_features,), jnp.float32)
    # Linear layers: N(0,1) rows, row-normalized, zero bias (initialize_parameters)
    fwr = jax.random.normal(ks[4], (out_features, in_features), jnp.float32)
    fwr = fwr / jnp.sqrt(jnp.sum(fwr ** 2, axis=1, keepdims=True))
    fbr = jax.random.normal(ks[5], (out_features, in_features), jnp.float32)
    fbr = fbr / jnp.sqrt(jnp.sum(fbr ** 2, axis=1, keepdims=True))
    return dict(
        w1=w1, b1=b1, w2=w2, b2=b2,
        film_w=fwr.T, film_w_bias=jnp.zeros((out_features,), jnp.float32),
        film_b=fbr.T, film_b_bias=jnp.zeros((out_features,), jnp.float32),
        bn1_gamma=jnp.ones((imm_channels,), jnp.float32),
        bn1_beta=jnp.zeros((imm_channels,), jnp.float32),
        bn2_gamma=jnp.ones((out_features,), jnp.float32),
        bn2_beta=jnp.zeros((out_features,), jnp.float32),
    )


# ---------------------------------------------------------------------------
# Pure-JAX reference (same math, XLA conv) for a correctness check
# ---------------------------------------------------------------------------
def _bn_train(x_nhwc, gamma, beta):
    mean = jnp.mean(x_nhwc, axis=(0, 1, 2), keepdims=True)
    var = jnp.mean((x_nhwc - mean) ** 2, axis=(0, 1, 2), keepdims=True)
    return (x_nhwc - mean) * lax.rsqrt(var + EPS) * gamma + beta


def reference(x_nchw, y, P):
    x = jnp.transpose(x_nchw, (0, 2, 3, 1)).astype(jnp.float32)
    dn = ("NHWC", "HWIO", "NHWC")
    h = lax.conv_general_dilated(x, P["w1"], (1, 1), "SAME", dimension_numbers=dn) + P["b1"]
    h = jnp.maximum(_bn_train(h, P["bn1_gamma"], P["bn1_beta"]), 0.0)
    h2 = lax.conv_general_dilated(h, P["w2"], (1, 1), "SAME", dimension_numbers=dn) + P["b2"]
    gamma = y @ P["film_w"] + P["film_w_bias"]
    beta = y @ P["film_b"] + P["film_b_bias"]
    o = h2 * gamma[:, None, None, :] + beta[:, None, None, :]
    o = jnp.maximum(_bn_train(o, P["bn2_gamma"], P["bn2_beta"]), 0.0)
    return jnp.transpose(o, (0, 3, 1, 2))


if __name__ == "__main__":
    B, Cin, H, W = 2, 4, 16, 16
    in_features, out_features, imm_channels = 32, 16, 16

    key = jax.random.PRNGKey(0)
    kx, ky, kp = jax.random.split(key, 3)
    x = jax.random.normal(kx, (B, Cin, H, W), jnp.float32)   # NCHW, like PyTorch
    y = jax.random.normal(ky, (B, in_features), jnp.float32)
    P = init_params(kp, in_features, out_features, Cin, imm_channels)

    out = jax.jit(expert_controller_film)(x, y, P)
    out = jax.block_until_ready(out)

    ref = reference(x, y, P)
    np.testing.assert_allclose(np.asarray(out), np.asarray(ref), rtol=2e-2, atol=2e-2)
    print("KERNEL_OK")
</pallas_src>

<mosaic_0001>
module attributes {stable_mosaic.version = 11 : i64} {
  func.func @kernel(%arg0: i32, %arg1: memref<1x18x18x128xf32, #tpu.memory_space<vmem>>, %arg2: memref<3x3x128x128xbf16, #tpu.memory_space<vmem>>, %arg3: memref<1x128xf32, #tpu.memory_space<vmem>>, %arg4: memref<1x16x16x128xf32, #tpu.memory_space<vmem>>, %arg5: memref<2x128xf32, #tpu.memory_space<vmem>>) attributes {dimension_semantics = [#tpu.dimension_semantics<arbitrary>], iteration_bounds = array<i64: 2>, scalar_prefetch = 0 : i64, scratch_operands = 0 : i64, tpu.core_type = #tpu.core_type<tc>, window_params = [{transform_indices = @transform_0, window_bounds = array<i64: 1, 18, 18, 128>}, {pipeline_mode = #tpu.pipeline_mode<synchronous>, transform_indices = @transform_1, window_bounds = array<i64: 3, 3, 128, 128>}, {pipeline_mode = #tpu.pipeline_mode<synchronous>, transform_indices = @transform_2, window_bounds = array<i64: 1, 128>}, {transform_indices = @transform_3, window_bounds = array<i64: 1, 16, 16, 128>}, {pipeline_mode = #tpu.pipeline_mode<synchronous>, transform_indices = @transform_4, window_bounds = array<i64: 2, 128>}]} {
    %c0_i32 = arith.constant 0 : i32
    %0 = arith.cmpi eq, %arg0, %c0_i32 : i32
    %1 = arith.extui %0 : i1 to i32
    %c0_i32_0 = arith.constant 0 : i32
    %2 = arith.cmpi ne, %1, %c0_i32_0 : i32
    scf.if %2 {
      %cst_91 = arith.constant 0.000000e+00 : f32
      %92 = vector.broadcast %cst_91 : f32 to vector<2x128xf32>
      %c0_92 = arith.constant 0 : index
      %c0_93 = arith.constant 0 : index
      %93 = vector.load %arg5[%c0_92, %c0_93] : memref<2x128xf32, #tpu.memory_space<vmem>>, vector<2x128xf32>
      tpu.vector_store %arg5[%c0_92, %c0_93], %92 {strides = array<i32>} : memref<2x128xf32, #tpu.memory_space<vmem>>, vector<2x128xf32>,
    } else {
    }
    %cst = arith.constant 0.000000e+00 : f32
    %3 = vector.broadcast %cst : f32 to vector<256x128xf32>
    %c0 = arith.constant 0 : index
    %c0_1 = arith.constant 0 : index
    %c0_2 = arith.constant 0 : index
    %c0_3 = arith.constant 0 : index
    %4 = vector.load %arg1[%c0, %c0_1, %c0_2, %c0_3] : memref<1x18x18x128xf32, #tpu.memory_space<vmem>>, vector<1x16x16x128xf32>
    %5 = vector.shape_cast %4 : vector<1x16x16x128xf32> to vector<16x16x128xf32>
    %6 = vector.shape_cast %5 : vector<16x16x128xf32> to vector<256x128xf32>
    %7 = arith.truncf %6 : vector<256x128xf32> to vector<256x128xbf16>
    %c0_4 = arith.constant 0 : index
    %c0_5 = arith.constant 0 : index
    %c0_6 = arith.constant 0 : index
    %c0_7 = arith.constant 0 : index
    %8 = vector.load %arg2[%c0_4, %c0_5, %c0_6, %c0_7] : memref<3x3x128x128xbf16, #tpu.memory_space<vmem>>, vector<1x1x128x128xbf16>
    %9 = vector.shape_cast %8 : vector<1x1x128x128xbf16> to vector<128x128xbf16>
    %cst_8 = arith.constant dense<0.000000e+00> : vector<256x128xf32>
    %10 = tpu.matmul %7, %9, %cst_8 {dimension_numbers = #tpu.dot_dimension_numbers<[1], [0], [0], [1], [0, 0, 1, 1], [], []>} : vector<256x128xbf16>, vector<128x128xbf16>, vector<256x128xf32> -> vector<256x128xf32>
    %11 = arith.addf %3, %10 : vector<256x128xf32>
    %c0_9 = arith.constant 0 : index
    %c0_10 = arith.constant 0 : index
    %c1 = arith.constant 1 : index
    %c0_11 = arith.constant 0 : index
    %12 = vector.load %arg1[%c0_9, %c0_10, %c1, %c0_11] : memref<1x18x18x128xf32, #tpu.memory_space<vmem>>, vector<1x16x16x128xf32>
    %13 = vector.shape_cast %12 : vector<1x16x16x128xf32> to vector<16x16x128xf32>
    %14 = vector.shape_cast %13 : vector<16x16x128xf32> to vector<256x128xf32>
    %15 = arith.truncf %14 : vector<256x128xf32> to vector<256x128xbf16>
    %c0_12 = arith.constant 0 : index
    %c1_13 = arith.constant 1 : index
    %c0_14 = arith.constant 0 : index
    %c0_15 = arith.constant 0 : index
    %16 = vector.load %arg2[%c0_12, %c1_13, %c0_14, %c0_15] : memref<3x3x128x128xbf16, #tpu.memory_space<vmem>>, vector<1x1x128x128xbf16>
    %17 = vector.shape_cast %16 : vector<1x1x128x128xbf16> to vector<128x128xbf16>
    %cst_16 = arith.constant dense<0.000000e+00> : vector<256x128xf32>
    %18 = tpu.matmul %15, %17, %cst_16 {dimension_numbers = #tpu.dot_dimension_numbers<[1], [0], [0], [1], [0, 0, 1, 1], [], []>} : vector<256x128xbf16>, vector<128x128xbf16>, vector<256x128xf32> -> vector<256x128xf32>
    %19 = arith.addf %11, %18 : vector<256x128xf32>
    %c0_17 = arith.constant 0 : index
    %c0_18 = arith.constant 0 : index
    %c2 = arith.constant 2 : index
    %c0_19 = arith.constant 0 : index
    %20 = vector.load %arg1[%c0_17, %c0_18, %c2, %c0_19] : memref<1x18x18x128xf32, #tpu.memory_space<vmem>>, vector<1x16x16x128xf32>
    %21 = vector.shape_cast %20 : vector<1x16x16x128xf32> to vector<16x16x128xf32>
    %22 = vector.shape_cast %21 : vector<16x16x128xf32> to vector<256x128xf32>
    %23 = arith.truncf %22 : vector<256x128xf32> to vector<256x128xbf16>
    %c0_20 = arith.constant 0 : index
    %c2_21 = arith.constant 2 : index
    %c0_22 = arith.constant 0 : index
    %c0_23 = arith.constant 0 : index
    %24 = vector.load %arg2[%c0_20, %c2_21, %c0_22, %c0_23] : memref<3x3x128x128xbf16, #tpu.memory_space<vmem>>, vector<1x1x128x128xbf16>
    %25 = vector.shape_cast %24 : vector<1x1x128x128xbf16> to vector<128x128xbf16>
    %cst_24 = arith.constant dense<0.000000e+00> : vector<256x128xf32>
    %26 = tpu.matmul %23, %25, %cst_24 {dimension_numbers = #tpu.dot_dimension_numbers<[1], [0], [0], [1], [0, 0, 1, 1], [], []>} : vector<256x128xbf16>, vector<128x128xbf16>, vector<256x128xf32> -> vector<256x128xf32>
    %27 = arith.addf %19, %26 : vector<256x128xf32>
    %c0_25 = arith.constant 0 : index
    %c1_26 = arith.constant 1 : index
    %c0_27 = arith.constant 0 : index
    %c0_28 = arith.constant 0 : index
    %28 = vector.load %arg1[%c0_25, %c1_26, %c0_27, %c0_28] : memref<1x18x18x128xf32, #tpu.memory_space<vmem>>, vector<1x16x16x128xf32>
    %29 = vector.shape_cast %28 : vector<1x16x16x128xf32> to vector<16x16x128xf32>
    %30 = vector.shape_cast %29 : vector<16x16x128xf32> to vector<256x128xf32>
    %31 = arith.truncf %30 : vector<256x128xf32> to vector<256x128xbf16>
    %c1_29 = arith.constant 1 : index
    %c0_30 = arith.constant 0 : index
    %c0_31 = arith.constant 0 : index
    %c0_32 = arith.constant 0 : index
    %32 = vector.load %arg2[%c1_29, %c0_30, %c0_31, %c0_32] : memref<3x3x128x128xbf16, #tpu.memory_space<vmem>>, vector<1x1x128x128xbf16>
    %33 = vector.shape_cast %32 : vector<1x1x128x128xbf16> to vector<128x128xbf16>
    %cst_33 = arith.constant dense<0.000000e+00> : vector<256x128xf32>
    %34 = tpu.matmul %31, %33, %cst_33 {dimension_numbers = #tpu.dot_dimension_numbers<[1], [0], [0], [1], [0, 0, 1, 1], [], []>} : vector<256x128xbf16>, vector<128x128xbf16>, vector<256x128xf32> -> vector<256x128xf32>
    %35 = arith.addf %27, %34 : vector<256x128xf32>
    %c0_34 = arith.constant 0 : index
    %c1_35 = arith.constant 1 : index
    %c1_36 = arith.constant 1 : index
    %c0_37 = arith.constant 0 : index
    %36 = vector.load %arg1[%c0_34, %c1_35, %c1_36, %c0_37] : memref<1x18x18x128xf32, #tpu.memory_space<vmem>>, vector<1x16x16x128xf32>
    %37 = vector.shape_cast %36 : vector<1x16x16x128xf32> to vector<16x16x128xf32>
    %38 = vector.shape_cast %37 : vector<16x16x128xf32> to vector<256x128xf32>
    %39 = arith.truncf %38 : vector<256x128xf32> to vector<256x128xbf16>
    %c1_38 = arith.constant 1 : index
    %c1_39 = arith.constant 1 : index
    %c0_40 = arith.constant 0 : index
    %c0_41 = arith.constant 0 : index
    %40 = vector.load %arg2[%c1_38, %c1_39, %c0_40, %c0_41] : memref<3x3x128x128xbf16, #tpu.memory_space<vmem>>, vector<1x1x128x128xbf16>
    %41 = vector.shape_cast %40 : vector<1x1x128x128xbf16> to vector<128x128xbf16>
    %cst_42 = arith.constant dense<0.000000e+00> : vector<256x128xf32>
    %42 = tpu.matmul %39, %41, %cst_42 {dimension_numbers = #tpu.dot_dimension_numbers<[1], [0], [0], [1], [0, 0, 1, 1], [], []>} : vector<256x128xbf16>, vector<128x128xbf16>, vector<256x128xf32> -> vector<256x128xf32>
    %43 = arith.addf %35, %42 : vector<256x128xf32>
    %c0_43 = arith.constant 0 : index
    %c1_44 = arith.constant 1 : index
    %c2_45 = arith.constant 2 : index
    %c0_46 = arith.constant 0 : index
    %44 = vector.load %arg1[%c0_43, %c1_44, %c2_45, %c0_46] : memref<1x18x18x128xf32, #tpu.memory_space<vmem>>, vector<1x16x16x128xf32>
    %45 = vector.shape_cast %44 : vector<1x16x16x128xf32> to vector<16x16x128xf32>
    %46 = vector.shape_cast %45 : vector<16x16x128xf32> to vector<256x128xf32>
    %47 = arith.truncf %46 : vector<256x128xf32> to vector<256x128xbf16>
    %c1_47 = arith.constant 1 : index
    %c2_48 = arith.constant 2 : index
    %c0_49 = arith.constant 0 : index
    %c0_50 = arith.constant 0 : index
    %48 = vector.load %arg2[%c1_47, %c2_48, %c0_49, %c0_50] : memref<3x3x128x128xbf16, #tpu.memory_space<vmem>>, vector<1x1x128x128xbf16>
    %49 = vector.shape_cast %48 : vector<1x1x128x128xbf16> to vector<128x128xbf16>
    %cst_51 = arith.constant dense<0.000000e+00> : vector<256x128xf32>
    %50 = tpu.matmul %47, %49, %cst_51 {dimension_numbers = #tpu.dot_dimension_numbers<[1], [0], [0], [1], [0, 0, 1, 1], [], []>} : vector<256x128xbf16>, vector<128x128xbf16>, vector<256x128xf32> -> vector<256x128xf32>
    %51 = arith.addf %43, %50 : vector<256x128xf32>
    %c0_52 = arith.constant 0 : index
    %c2_53 = arith.constant 2 : index
    %c0_54 = arith.constant 0 : index
    %c0_55 = arith.constant 0 : index
    %52 = vector.load %arg1[%c0_52, %c2_53, %c0_54, %c0_55] : memref<1x18x18x128xf32, #tpu.memory_space<vmem>>, vector<1x16x16x128xf32>
    %53 = vector.shape_cast %52 : vector<1x16x16x128xf32> to vector<16x16x128xf32>
    %54 = vector.shape_cast %53 : vector<16x16x128xf32> to vector<256x128xf32>
    %55 = arith.truncf %54 : vector<256x128xf32> to vector<256x128xbf16>
    %c2_56 = arith.constant 2 : index
    %c0_57 = arith.constant 0 : index
    %c0_58 = arith.constant 0 : index
    %c0_59 = arith.constant 0 : index
    %56 = vector.load %arg2[%c2_56, %c0_57, %c0_58, %c0_59] : memref<3x3x128x128xbf16, #tpu.memory_space<vmem>>, vector<1x1x128x128xbf16>
    %57 = vector.shape_cast %56 : vector<1x1x128x128xbf16> to vector<128x128xbf16>
    %cst_60 = arith.constant dense<0.000000e+00> : vector<256x128xf32>
    %58 = tpu.matmul %55, %57, %cst_60 {dimension_numbers = #tpu.dot_dimension_numbers<[1], [0], [0], [1], [0, 0, 1, 1], [], []>} : vector<256x128xbf16>, vector<128x128xbf16>, vector<256x128xf32> -> vector<256x128xf32>
    %59 = arith.addf %51, %58 : vector<256x128xf32>
    %c0_61 = arith.constant 0 : index
    %c2_62 = arith.constant 2 : index
    %c1_63 = arith.constant 1 : index
    %c0_64 = arith.constant 0 : index
    %60 = vector.load %arg1[%c0_61, %c2_62, %c1_63, %c0_64] : memref<1x18x18x128xf32, #tpu.memory_space<vmem>>, vector<1x16x16x128xf32>
    %61 = vector.shape_cast %60 : vector<1x16x16x128xf32> to vector<16x16x128xf32>
    %62 = vector.shape_cast %61 : vector<16x16x128xf32> to vector<256x128xf32>
    %63 = arith.truncf %62 : vector<256x128xf32> to vector<256x128xbf16>
    %c2_65 = arith.constant 2 : index
    %c1_66 = arith.constant 1 : index
    %c0_67 = arith.constant 0 : index
    %c0_68 = arith.constant 0 : index
    %64 = vector.load %arg2[%c2_65, %c1_66, %c0_67, %c0_68] : memref<3x3x128x128xbf16, #tpu.memory_space<vmem>>, vector<1x1x128x128xbf16>
    %65 = vector.shape_cast %64 : vector<1x1x128x128xbf16> to vector<128x128xbf16>
    %cst_69 = arith.constant dense<0.000000e+00> : vector<256x128xf32>
    %66 = tpu.matmul %63, %65, %cst_69 {dimension_numbers = #tpu.dot_dimension_numbers<[1], [0], [0], [1], [0, 0, 1, 1], [], []>} : vector<256x128xbf16>, vector<128x128xbf16>, vector<256x128xf32> -> vector<256x128xf32>
    %67 = arith.addf %59, %66 : vector<256x128xf32>
    %c0_70 = arith.constant 0 : index
    %c2_71 = arith.constant 2 : index
    %c2_72 = arith.constant 2 : index
    %c0_73 = arith.constant 0 : index
    %68 = vector.load %arg1[%c0_70, %c2_71, %c2_72, %c0_73] : memref<1x18x18x128xf32, #tpu.memory_space<vmem>>, vector<1x16x16x128xf32>
    %69 = vector.shape_cast %68 : vector<1x16x16x128xf32> to vector<16x16x128xf32>
    %70 = vector.shape_cast %69 : vector<16x16x128xf32> to vector<256x128xf32>
    %71 = arith.truncf %70 : vector<256x128xf32> to vector<256x128xbf16>
    %c2_74 = arith.constant 2 : index
    %c2_75 = arith.constant 2 : index
    %c0_76 = arith.constant 0 : index
    %c0_77 = arith.constant 0 : index
    %72 = vector.load %arg2[%c2_74, %c2_75, %c0_76, %c0_77] : memref<3x3x128x128xbf16, #tpu.memory_space<vmem>>, vector<1x1x128x128xbf16>
    %73 = vector.shape_cast %72 : vector<1x1x128x128xbf16> to vector<128x128xbf16>
    %cst_78 = arith.constant dense<0.000000e+00> : vector<256x128xf32>
    %74 = tpu.matmul %71, %73, %cst_78 {dimension_numbers = #tpu.dot_dimension_numbers<[1], [0], [0], [1], [0, 0, 1, 1], [], []>} : vector<256x128xbf16>, vector<128x128xbf16>, vector<256x128xf32> -> vector<256x128xf32>
    %75 = arith.addf %67, %74 : vector<256x128xf32>
    %c0_79 = arith.constant 0 : index
    %c0_80 = arith.constant 0 : index
    %76 = vector.load %arg3[%c0_79, %c0_80] : memref<1x128xf32, #tpu.memory_space<vmem>>, vector<1x128xf32>
    %77 = vector.broadcast %76 : vector<1x128xf32> to vector<256x128xf32>
    %78 = arith.addf %75, %77 : vector<256x128xf32>
    %79 = vector.shape_cast %78 : vector<256x128xf32> to vector<16x16x128xf32>
    %c0_81 = arith.constant 0 : index
    %c0_82 = arith.constant 0 : index
    %c0_83 = arith.constant 0 : index
    %c0_84 = arith.constant 0 : index
    %80 = vector.load %arg4[%c0_81, %c0_82, %c0_83, %c0_84] : memref<1x16x16x128xf32, #tpu.memory_space<vmem>>, vector<1x16x16x128xf32>
    %81 = vector.shape_cast %80 : vector<1x16x16x128xf32> to vector<16x16x128xf32>
    %82 = vector.shape_cast %79 : vector<16x16x128xf32> to vector<1x16x16x128xf32>
    tpu.vector_store %arg4[%c0_81, %c0_82, %c0_83, %c0_84], %82 {strides = array<i32>} : memref<1x16x16x128xf32, #tpu.memory_space<vmem>>, vector<1x16x16x128xf32>,
    %c0_85 = arith.constant 0 : index
    %c0_86 = arith.constant 0 : index
    %83 = vector.load %arg5[%c0_85, %c0_86] : memref<2x128xf32, #tpu.memory_space<vmem>>, vector<2x128xf32>
    %cst_87 = arith.constant dense<0.000000e+00> : vector<128xf32>
    %84 = vector.multi_reduction <add>, %78, %cst_87 [0] : vector<256x128xf32> to vector<128xf32>
    %85 = vector.shape_cast %84 : vector<128xf32> to vector<1x128xf32>
    %86 = arith.mulf %78, %78 : vector<256x128xf32>
    %cst_88 = arith.constant dense<0.000000e+00> : vector<128xf32>
    %87 = vector.multi_reduction <add>, %86, %cst_88 [0] : vector<256x128xf32> to vector<128xf32>
    %88 = vector.shape_cast %87 : vector<128xf32> to vector<1x128xf32>
    %89 = tpu.concatenate %85, %88 in 0 : vector<1x128xf32>, vector<1x128xf32> -> vector<2x128xf32>
    %90 = arith.addf %83, %89 : vector<2x128xf32>
    %c0_89 = arith.constant 0 : index
    %c0_90 = arith.constant 0 : index
    %91 = vector.load %arg5[%c0_89, %c0_90] : memref<2x128xf32, #tpu.memory_space<vmem>>, vector<2x128xf32>
    tpu.vector_store %arg5[%c0_89, %c0_90], %90 {strides = array<i32>} : memref<2x128xf32, #tpu.memory_space<vmem>>, vector<2x128xf32>,
    return
  }
  func.func @transform_0(%arg0: i32) -> (i32, i32, i32, i32) {
    %c0_i32 = arith.constant 0 : i32
    %c0_i32_0 = arith.constant 0 : i32
    %c0_i32_1 = arith.constant 0 : i32
    %c0_i32_2 = arith.constant 0 : i32
    return %arg0, %c0_i32, %c0_i32_0, %c0_i32_1 : i32, i32, i32, i32
  }
  func.func @transform_1(%arg0: i32) -> (i32, i32, i32, i32) {
    %c0_i32 = arith.constant 0 : i32
    %c0_i32_0 = arith.constant 0 : i32
    %c0_i32_1 = arith.constant 0 : i32
    %c0_i32_2 = arith.constant 0 : i32
    %c0_i32_3 = arith.constant 0 : i32
    return %c0_i32, %c0_i32_0, %c0_i32_1, %c0_i32_2 : i32, i32, i32, i32
  }
  func.func @transform_2(%arg0: i32) -> (i32, i32) {
    %c0_i32 = arith.constant 0 : i32
    %c0_i32_0 = arith.constant 0 : i32
    %c0_i32_1 = arith.constant 0 : i32
    return %c0_i32, %c0_i32_0 : i32, i32
  }
  func.func @transform_3(%arg0: i32) -> (i32, i32, i32, i32) {
    %c0_i32 = arith.constant 0 : i32
    %c0_i32_0 = arith.constant 0 : i32
    %c0_i32_1 = arith.constant 0 : i32
    %c0_i32_2 = arith.constant 0 : i32
    return %arg0, %c0_i32, %c0_i32_0, %c0_i32_1 : i32, i32, i32, i32
  }
  func.func @transform_4(%arg0: i32) -> (i32, i32) {
    %c0_i32 = arith.constant 0 : i32
    %c0_i32_0 = arith.constant 0 : i32
    %c0_i32_1 = arith.constant 0 : i32
    return %c0_i32, %c0_i32_0 : i32, i32
  }
}

module attributes {stable_mosaic.version = 11 : i64} {
  func.func @kernel(%arg0: i32, %arg1: memref<1x18x18x128xf32, #tpu.memory_space<vmem>>, %arg2: memref<18x18x1xf32, #tpu.memory_space<vmem>>, %arg3: memref<2x128xf32, #tpu.memory_space<vmem>>, %arg4: memref<2x128xf32, #tpu.memory_space<vmem>>, %arg5: memref<2x1x32xf32, #tpu.memory_space<vmem>>, %arg6: memref<32x128xf32, #tpu.memory_space<vmem>>, %arg7: memref<32x128xf32, #tpu.memory_space<vmem>>, %arg8: memref<3x128xf32, #tpu.memory_space<vmem>>, %arg9: memref<3x3x128x128xbf16, #tpu.memory_space<vmem>>, %arg10: memref<1x16x16x128xf32, #tpu.memory_space<vmem>>, %arg11: memref<2x128xf32, #tpu.memory_space<vmem>>, %arg12: memref<18x18x128xf32, #tpu.memory_space<vmem>>) attributes {dimension_semantics = [#tpu.dimension_semantics<arbitrary>], iteration_bounds = array<i64: 2>, scalar_prefetch = 0 : i64, scratch_operands = 1 : i64, tpu.core_type = #tpu.core_type<tc>, window_params = [{transform_indices = @transform_0, window_bounds = array<i64: 1, 18, 18, 128>}, {pipeline_mode = #tpu.pipeline_mode<synchronous>, transform_indices = @transform_1, window_bounds = array<i64: 18, 18, 1>}, {pipeline_mode = #tpu.pipeline_mode<synchronous>, transform_indices = @transform_2, window_bounds = array<i64: 2, 128>}, {pipeline_mode = #tpu.pipeline_mode<synchronous>, transform_indices = @transform_3, window_bounds = array<i64: 2, 128>}, {pipeline_mode = #tpu.pipeline_mode<synchronous>, transform_indices = @transform_4, window_bounds = array<i64: 2, 1, 32>}, {pipeline_mode = #tpu.pipeline_mode<synchronous>, transform_indices = @transform_5, window_bounds = array<i64: 32, 128>}, {pipeline_mode = #tpu.pipeline_mode<synchronous>, transform_indices = @transform_6, window_bounds = array<i64: 32, 128>}, {pipeline_mode = #tpu.pipeline_mode<synchronous>, transform_indices = @transform_7, window_bounds = array<i64: 3, 128>}, {pipeline_mode = #tpu.pipeline_mode<synchronous>, transform_indices = @transform_8, window_bounds = array<i64: 3, 3, 128, 128>}, {transform_indices = @transform_9, window_bounds = array<i64: 1, 16, 16, 128>}, {pipeline_mode = #tpu.pipeline_mode<synchronous>, transform_indices = @transform_10, window_bounds = array<i64: 2, 128>}]} {
    %c0_i32 = arith.constant 0 : i32
    %0 = arith.cmpi eq, %arg0, %c0_i32 : i32
    %1 = arith.extui %0 : i1 to i32
    %c0_i32_0 = arith.constant 0 : i32
    %2 = arith.cmpi ne, %1, %c0_i32_0 : i32
    scf.if %2 {
      %cst_116 = arith.constant 0.000000e+00 : f32
      %128 = vector.broadcast %cst_116 : f32 to vector<2x128xf32>
      %c0_117 = arith.constant 0 : index
      %c0_118 = arith.constant 0 : index
      %129 = vector.load %arg11[%c0_117, %c0_118] : memref<2x128xf32, #tpu.memory_space<vmem>>, vector<2x128xf32>
      tpu.vector_store %arg11[%c0_117, %c0_118], %128 {strides = array<i32>} : memref<2x128xf32, #tpu.memory_space<vmem>>, vector<2x128xf32>,
    } else {
    }
    %c0 = arith.constant 0 : index
    %c0_1 = arith.constant 0 : index
    %3 = vector.load %arg3[%c0, %c0_1] : memref<2x128xf32, #tpu.memory_space<vmem>>, vector<1x128xf32>
    %cst = arith.constant 0.001953125 : f32
    %4 = vector.broadcast %cst : f32 to vector<1x128xf32>
    %5 = arith.mulf %3, %4 : vector<1x128xf32>
    %c1 = arith.constant 1 : index
    %c0_2 = arith.constant 0 : index
    %6 = vector.load %arg3[%c1, %c0_2] : memref<2x128xf32, #tpu.memory_space<vmem>>, vector<1x128xf32>
    %cst_3 = arith.constant 0.001953125 : f32
    %7 = vector.broadcast %cst_3 : f32 to vector<1x128xf32>
    %8 = arith.mulf %6, %7 : vector<1x128xf32>
    %9 = arith.mulf %5, %5 : vector<1x128xf32>
    %10 = arith.subf %8, %9 : vector<1x128xf32>
    %cst_4 = arith.constant 9.99999974E-6 : f32
    %11 = vector.broadcast %cst_4 : f32 to vector<1x128xf32>
    %12 = arith.addf %10, %11 : vector<1x128xf32>
    %13 = math.rsqrt %12 : vector<1x128xf32>
    %c0_5 = arith.constant 0 : index
    %c0_6 = arith.constant 0 : index
    %14 = vector.load %arg4[%c0_5, %c0_6] : memref<2x128xf32, #tpu.memory_space<vmem>>, vector<1x128xf32>
    %15 = arith.mulf %13, %14 : vector<1x128xf32>
    %c1_7 = arith.constant 1 : index
    %c0_8 = arith.constant 0 : index
    %16 = vector.load %arg4[%c1_7, %c0_8] : memref<2x128xf32, #tpu.memory_space<vmem>>, vector<1x128xf32>
    %17 = arith.mulf %5, %15 : vector<1x128xf32>
    %18 = arith.subf %16, %17 : vector<1x128xf32>
    %c0_9 = arith.constant 0 : index
    %c0_10 = arith.constant 0 : index
    %c0_11 = arith.constant 0 : index
    %c0_12 = arith.constant 0 : index
    %19 = vector.load %arg1[%c0_9, %c0_10, %c0_11, %c0_12] : memref<1x18x18x128xf32, #tpu.memory_space<vmem>>, vector<1x18x18x128xf32>
    %20 = vector.shape_cast %19 : vector<1x18x18x128xf32> to vector<18x18x128xf32>
    %21 = vector.shape_cast %15 : vector<1x128xf32> to vector<1x1x128xf32>
    %22 = vector.broadcast %21 : vector<1x1x128xf32> to vector<18x18x128xf32>
    %23 = arith.mulf %20, %22 : vector<18x18x128xf32>
    %24 = vector.shape_cast %18 : vector<1x128xf32> to vector<1x1x128xf32>
    %25 = vector.broadcast %24 : vector<1x1x128xf32> to vector<18x18x128xf32>
    %26 = arith.addf %23, %25 : vector<18x18x128xf32>
    %cst_13 = arith.constant 0.000000e+00 : f32
    %27 = vector.broadcast %cst_13 : f32 to vector<18x18x128xf32>
    %28 = arith.maximumf %26, %27 : vector<18x18x128xf32>
    %c0_14 = arith.constant 0 : index
    %c0_15 = arith.constant 0 : index
    %c0_16 = arith.constant 0 : index
    %29 = vector.load %arg2[%c0_14, %c0_15, %c0_16] : memref<18x18x1xf32, #tpu.memory_space<vmem>>, vector<18x18x1xf32>
    %30 = vector.broadcast %29 : vector<18x18x1xf32> to vector<18x18x128xf32>
    %31 = arith.mulf %28, %30 : vector<18x18x128xf32>
    %c0_17 = arith.constant 0 : index
    %c0_18 = arith.constant 0 : index
    %c0_19 = arith.constant 0 : index
    %32 = vector.load %arg12[%c0_17, %c0_18, %c0_19] : memref<18x18x128xf32, #tpu.memory_space<vmem>>, vector<18x18x128xf32>
    tpu.vector_store %arg12[%c0_17, %c0_18, %c0_19], %31 {strides = array<i32>} : memref<18x18x128xf32, #tpu.memory_space<vmem>>, vector<18x18x128xf32>,
    %cst_20 = arith.constant 0.000000e+00 : f32
    %33 = vector.broadcast %cst_20 : f32 to vector<256x128xf32>
    %c0_21 = arith.constant 0 : index
    %c0_22 = arith.constant 0 : index
    %c0_23 = arith.constant 0 : index
    %34 = vector.load %arg12[%c0_21, %c0_22, %c0_23] : memref<18x18x128xf32, #tpu.memory_space<vmem>>, vector<16x16x128xf32>
    %35 = vector.shape_cast %34 : vector<16x16x128xf32> to vector<256x128xf32>
    %36 = arith.truncf %35 : vector<256x128xf32> to vector<256x128xbf16>
    %c0_24 = arith.constant 0 : index
    %c0_25 = arith.constant 0 : index
    %c0_26 = arith.constant 0 : index
    %c0_27 = arith.constant 0 : index
    %37 = vector.load %arg9[%c0_24, %c0_25, %c0_26, %c0_27] : memref<3x3x128x128xbf16, #tpu.memory_space<vmem>>, vector<1x1x128x128xbf16>
    %38 = vector.shape_cast %37 : vector<1x1x128x128xbf16> to vector<128x128xbf16>
    %cst_28 = arith.constant dense<0.000000e+00> : vector<256x128xf32>
    %39 = tpu.matmul %36, %38, %cst_28 {dimension_numbers = #tpu.dot_dimension_numbers<[1], [0], [0], [1], [0, 0, 1, 1], [], []>} : vector<256x128xbf16>, vector<128x128xbf16>, vector<256x128xf32> -> vector<256x128xf32>
    %40 = arith.addf %33, %39 : vector<256x128xf32>
    %c0_29 = arith.constant 0 : index
    %c1_30 = arith.constant 1 : index
    %c0_31 = arith.constant 0 : index
    %41 = vector.load %arg12[%c0_29, %c1_30, %c0_31] : memref<18x18x128xf32, #tpu.memory_space<vmem>>, vector<16x16x128xf32>
    %42 = vector.shape_cast %41 : vector<16x16x128xf32> to vector<256x128xf32>
    %43 = arith.truncf %42 : vector<256x128xf32> to vector<256x128xbf16>
    %c0_32 = arith.constant 0 : index
    %c1_33 = arith.constant 1 : index
    %c0_34 = arith.constant 0 : index
    %c0_35 = arith.constant 0 : index
    %44 = vector.load %arg9[%c0_32, %c1_33, %c0_34, %c0_35] : memref<3x3x128x128xbf16, #tpu.memory_space<vmem>>, vector<1x1x128x128xbf16>
    %45 = vector.shape_cast %44 : vector<1x1x128x128xbf16> to vector<128x128xbf16>
    %cst_36 = arith.constant dense<0.000000e+00> : vector<256x128xf32>
    %46 = tpu.matmul %43, %45, %cst_36 {dimension_numbers = #tpu.dot_dimension_numbers<[1], [0], [0], [1], [0, 0, 1, 1], [], []>} : vector<256x128xbf16>, vector<128x128xbf16>, vector<256x128xf32> -> vector<256x128xf32>
    %47 = arith.addf %40, %46 : vector<256x128xf32>
    %c0_37 = arith.constant 0 : index
    %c2 = arith.constant 2 : index
    %c0_38 = arith.constant 0 : index
    %48 = vector.load %arg12[%c0_37, %c2, %c0_38] : memref<18x18x128xf32, #tpu.memory_space<vmem>>, vector<16x16x128xf32>
    %49 = vector.shape_cast %48 : vector<16x16x128xf32> to vector<256x128xf32>
    %50 = arith.truncf %49 : vector<256x128xf32> to vector<256x128xbf16>
    %c0_39 = arith.constant 0 : index
    %c2_40 = arith.constant 2 : index
    %c0_41 = arith.constant 0 : index
    %c0_42 = arith.constant 0 : index
    %51 = vector.load %arg9[%c0_39, %c2_40, %c0_41, %c0_42] : memref<3x3x128x128xbf16, #tpu.memory_space<vmem>>, vector<1x1x128x128xbf16>
    %52 = vector.shape_cast %51 : vector<1x1x128x128xbf16> to vector<128x128xbf16>
    %cst_43 = arith.constant dense<0.000000e+00> : vector<256x128xf32>
    %53 = tpu.matmul %50, %52, %cst_43 {dimension_numbers = #tpu.dot_dimension_numbers<[1], [0], [0], [1], [0, 0, 1, 1], [], []>} : vector<256x128xbf16>, vector<128x128xbf16>, vector<256x128xf32> -> vector<256x128xf32>
    %54 = arith.addf %47, %53 : vector<256x128xf32>
    %c1_44 = arith.constant 1 : index
    %c0_45 = arith.constant 0 : index
    %c0_46 = arith.constant 0 : index
    %55 = vector.load %arg12[%c1_44, %c0_45, %c0_46] : memref<18x18x128xf32, #tpu.memory_space<vmem>>, vector<16x16x128xf32>
    %56 = vector.shape_cast %55 : vector<16x16x128xf32> to vector<256x128xf32>
    %57 = arith.truncf %56 : vector<256x128xf32> to vector<256x128xbf16>
    %c1_47 = arith.constant 1 : index
    %c0_48 = arith.constant 0 : index
    %c0_49 = arith.constant 0 : index
    %c0_50 = arith.constant 0 : index
    %58 = vector.load %arg9[%c1_47, %c0_48, %c0_49, %c0_50] : memref<3x3x128x128xbf16, #tpu.memory_space<vmem>>, vector<1x1x128x128xbf16>
    %59 = vector.shape_cast %58 : vector<1x1x128x128xbf16> to vector<128x128xbf16>
    %cst_51 = arith.constant dense<0.000000e+00> : vector<256x128xf32>
    %60 = tpu.matmul %57, %59, %cst_51 {dimension_numbers = #tpu.dot_dimension_numbers<[1], [0], [0], [1], [0, 0, 1, 1], [], []>} : vector<256x128xbf16>, vector<128x128xbf16>, vector<256x128xf32> -> vector<256x128xf32>
    %61 = arith.addf %54, %60 : vector<256x128xf32>
    %c1_52 = arith.constant 1 : index
    %c1_53 = arith.constant 1 : index
    %c0_54 = arith.constant 0 : index
    %62 = vector.load %arg12[%c1_52, %c1_53, %c0_54] : memref<18x18x128xf32, #tpu.memory_space<vmem>>, vector<16x16x128xf32>
    %63 = vector.shape_cast %62 : vector<16x16x128xf32> to vector<256x128xf32>
    %64 = arith.truncf %63 : vector<256x128xf32> to vector<256x128xbf16>
    %c1_55 = arith.constant 1 : index
    %c1_56 = arith.constant 1 : index
    %c0_57 = arith.constant 0 : index
    %c0_58 = arith.constant 0 : index
    %65 = vector.load %arg9[%c1_55, %c1_56, %c0_57, %c0_58] : memref<3x3x128x128xbf16, #tpu.memory_space<vmem>>, vector<1x1x128x128xbf16>
    %66 = vector.shape_cast %65 : vector<1x1x128x128xbf16> to vector<128x128xbf16>
    %cst_59 = arith.constant dense<0.000000e+00> : vector<256x128xf32>
    %67 = tpu.matmul %64, %66, %cst_59 {dimension_numbers = #tpu.dot_dimension_numbers<[1], [0], [0], [1], [0, 0, 1, 1], [], []>} : vector<256x128xbf16>, vector<128x128xbf16>, vector<256x128xf32> -> vector<256x128xf32>
    %68 = arith.addf %61, %67 : vector<256x128xf32>
    %c1_60 = arith.constant 1 : index
    %c2_61 = arith.constant 2 : index
    %c0_62 = arith.constant 0 : index
    %69 = vector.load %arg12[%c1_60, %c2_61, %c0_62] : memref<18x18x128xf32, #tpu.memory_space<vmem>>, vector<16x16x128xf32>
    %70 = vector.shape_cast %69 : vector<16x16x128xf32> to vector<256x128xf32>
    %71 = arith.truncf %70 : vector<256x128xf32> to vector<256x128xbf16>
    %c1_63 = arith.constant 1 : index
    %c2_64 = arith.constant 2 : index
    %c0_65 = arith.constant 0 : index
    %c0_66 = arith.constant 0 : index
    %72 = vector.load %arg9[%c1_63, %c2_64, %c0_65, %c0_66] : memref<3x3x128x128xbf16, #tpu.memory_space<vmem>>, vector<1x1x128x128xbf16>
    %73 = vector.shape_cast %72 : vector<1x1x128x128xbf16> to vector<128x128xbf16>
    %cst_67 = arith.constant dense<0.000000e+00> : vector<256x128xf32>
    %74 = tpu.matmul %71, %73, %cst_67 {dimension_numbers = #tpu.dot_dimension_numbers<[1], [0], [0], [1], [0, 0, 1, 1], [], []>} : vector<256x128xbf16>, vector<128x128xbf16>, vector<256x128xf32> -> vector<256x128xf32>
    %75 = arith.addf %68, %74 : vector<256x128xf32>
    %c2_68 = arith.constant 2 : index
    %c0_69 = arith.constant 0 : index
    %c0_70 = arith.constant 0 : index
    %76 = vector.load %arg12[%c2_68, %c0_69, %c0_70] : memref<18x18x128xf32, #tpu.memory_space<vmem>>, vector<16x16x128xf32>
    %77 = vector.shape_cast %76 : vector<16x16x128xf32> to vector<256x128xf32>
    %78 = arith.truncf %77 : vector<256x128xf32> to vector<256x128xbf16>
    %c2_71 = arith.constant 2 : index
    %c0_72 = arith.constant 0 : index
    %c0_73 = arith.constant 0 : index
    %c0_74 = arith.constant 0 : index
    %79 = vector.load %arg9[%c2_71, %c0_72, %c0_73, %c0_74] : memref<3x3x128x128xbf16, #tpu.memory_space<vmem>>, vector<1x1x128x128xbf16>
    %80 = vector.shape_cast %79 : vector<1x1x128x128xbf16> to vector<128x128xbf16>
    %cst_75 = arith.constant dense<0.000000e+00> : vector<256x128xf32>
    %81 = tpu.matmul %78, %80, %cst_75 {dimension_numbers = #tpu.dot_dimension_numbers<[1], [0], [0], [1], [0, 0, 1, 1], [], []>} : vector<256x128xbf16>, vector<128x128xbf16>, vector<256x128xf32> -> vector<256x128xf32>
    %82 = arith.addf %75, %81 : vector<256x128xf32>
    %c2_76 = arith.constant 2 : index
    %c1_77 = arith.constant 1 : index
    %c0_78 = arith.constant 0 : index
    %83 = vector.load %arg12[%c2_76, %c1_77, %c0_78] : memref<18x18x128xf32, #tpu.memory_space<vmem>>, vector<16x16x128xf32>
    %84 = vector.shape_cast %83 : vector<16x16x128xf32> to vector<256x128xf32>
    %85 = arith.truncf %84 : vector<256x128xf32> to vector<256x128xbf16>
    %c2_79 = arith.constant 2 : index
    %c1_80 = arith.constant 1 : index
    %c0_81 = arith.constant 0 : index
    %c0_82 = arith.constant 0 : index
    %86 = vector.load %arg9[%c2_79, %c1_80, %c0_81, %c0_82] : memref<3x3x128x128xbf16, #tpu.memory_space<vmem>>, vector<1x1x128x128xbf16>
    %87 = vector.shape_cast %86 : vector<1x1x128x128xbf16> to vector<128x128xbf16>
    %cst_83 = arith.constant dense<0.000000e+00> : vector<256x128xf32>
    %88 = tpu.matmul %85, %87, %cst_83 {dimension_numbers = #tpu.dot_dimension_numbers<[1], [0], [0], [1], [0, 0, 1, 1], [], []>} : vector<256x128xbf16>, vector<128x128xbf16>, vector<256x128xf32> -> vector<256x128xf32>
    %89 = arith.addf %82, %88 : vector<256x128xf32>
    %c2_84 = arith.constant 2 : index
    %c2_85 = arith.constant 2 : index
    %c0_86 = arith.constant 0 : index
    %90 = vector.load %arg12[%c2_84, %c2_85, %c0_86] : memref<18x18x128xf32, #tpu.memory_space<vmem>>, vector<16x16x128xf32>
    %91 = vector.shape_cast %90 : vector<16x16x128xf32> to vector<256x128xf32>
    %92 = arith.truncf %91 : vector<256x128xf32> to vector<256x128xbf16>
    %c2_87 = arith.constant 2 : index
    %c2_88 = arith.constant 2 : index
    %c0_89 = arith.constant 0 : index
    %c0_90 = arith.constant 0 : index
    %93 = vector.load %arg9[%c2_87, %c2_88, %c0_89, %c0_90] : memref<3x3x128x128xbf16, #tpu.memory_space<vmem>>, vector<1x1x128x128xbf16>
    %94 = vector.shape_cast %93 : vector<1x1x128x128xbf16> to vector<128x128xbf16>
    %cst_91 = arith.constant dense<0.000000e+00> : vector<256x128xf32>
    %95 = tpu.matmul %92, %94, %cst_91 {dimension_numbers = #tpu.dot_dimension_numbers<[1], [0], [0], [1], [0, 0, 1, 1], [], []>} : vector<256x128xbf16>, vector<128x128xbf16>, vector<256x128xf32> -> vector<256x128xf32>
    %96 = arith.addf %89, %95 : vector<256x128xf32>
    %c2_92 = arith.constant 2 : index
    %c0_93 = arith.constant 0 : index
    %97 = vector.load %arg8[%c2_92, %c0_93] : memref<3x128xf32, #tpu.memory_space<vmem>>, vector<1x128xf32>
    %98 = vector.broadcast %97 : vector<1x128xf32> to vector<256x128xf32>
    %99 = arith.addf %96, %98 : vector<256x128xf32>
    %100 = arith.index_cast %arg0 : i32 to index
    %c0_94 = arith.constant 0 : index
    %c0_95 = arith.constant 0 : index
    %101 = vector.load %arg5[%100, %c0_94, %c0_95] : memref<2x1x32xf32, #tpu.memory_space<vmem>>, vector<1x1x32xf32>
    %102 = vector.shape_cast %101 : vector<1x1x32xf32> to vector<1x32xf32>
    %c0_96 = arith.constant 0 : index
    %c0_97 = arith.constant 0 : index
    %103 = vector.load %arg6[%c0_96, %c0_97] : memref<32x128xf32, #tpu.memory_space<vmem>>, vector<32x128xf32>
    %cst_98 = arith.constant dense<0.000000e+00> : vector<1x128xf32>
    %104 = tpu.matmul %102, %103, %cst_98 {dimension_numbers = #tpu.dot_dimension_numbers<[1], [0], [0], [1], [0, 0, 1, 1], [], []>} : vector<1x32xf32>, vector<32x128xf32>, vector<1x128xf32> -> vector<1x128xf32>
    %c0_99 = arith.constant 0 : index
    %c0_100 = arith.constant 0 : index
    %105 = vector.load %arg8[%c0_99, %c0_100] : memref<3x128xf32, #tpu.memory_space<vmem>>, vector<1x128xf32>
    %106 = arith.addf %104, %105 : vector<1x128xf32>
    %c0_101 = arith.constant 0 : index
    %c0_102 = arith.constant 0 : index
    %107 = vector.load %arg7[%c0_101, %c0_102] : memref<32x128xf32, #tpu.memory_space<vmem>>, vector<32x128xf32>
    %cst_103 = arith.constant dense<0.000000e+00> : vector<1x128xf32>
    %108 = tpu.matmul %102, %107, %cst_103 {dimension_numbers = #tpu.dot_dimension_numbers<[1], [0], [0], [1], [0, 0, 1, 1], [], []>} : vector<1x32xf32>, vector<32x128xf32>, vector<1x128xf32> -> vector<1x128xf32>
    %c1_104 = arith.constant 1 : index
    %c0_105 = arith.constant 0 : index
    %109 = vector.load %arg8[%c1_104, %c0_105] : memref<3x128xf32, #tpu.memory_space<vmem>>, vector<1x128xf32>
    %110 = arith.addf %108, %109 : vector<1x128xf32>
    %111 = vector.broadcast %106 : vector<1x128xf32> to vector<256x128xf32>
    %112 = arith.mulf %99, %111 : vector<256x128xf32>
    %113 = vector.broadcast %110 : vector<1x128xf32> to vector<256x128xf32>
    %114 = arith.addf %112, %113 : vector<256x128xf32>
    %115 = vector.shape_cast %114 : vector<256x128xf32> to vector<16x16x128xf32>
    %c0_106 = arith.constant 0 : index
    %c0_107 = arith.constant 0 : index
    %c0_108 = arith.constant 0 : index
    %c0_109 = arith.constant 0 : index
    %116 = vector.load %arg10[%c0_106, %c0_107, %c0_108, %c0_109] : memref<1x16x16x128xf32, #tpu.memory_space<vmem>>, vector<1x16x16x128xf32>
    %117 = vector.shape_cast %116 : vector<1x16x16x128xf32> to vector<16x16x128xf32>
    %118 = vector.shape_cast %115 : vector<16x16x128xf32> to vector<1x16x16x128xf32>
    tpu.vector_store %arg10[%c0_106, %c0_107, %c0_108, %c0_109], %118 {strides = array<i32>} : memref<1x16x16x128xf32, #tpu.memory_space<vmem>>, vector<1x16x16x128xf32>,
    %c0_110 = arith.constant 0 : index
    %c0_111 = arith.constant 0 : index
    %119 = vector.load %arg11[%c0_110, %c0_111] : memref<2x128xf32, #tpu.memory_space<vmem>>, vector<2x128xf32>
    %cst_112 = arith.constant dense<0.000000e+00> : vector<128xf32>
    %120 = vector.multi_reduction <add>, %114, %cst_112 [0] : vector<256x128xf32> to vector<128xf32>
    %121 = vector.shape_cast %120 : vector<128xf32> to vector<1x128xf32>
    %122 = arith.mulf %114, %114 : vector<256x128xf32>
    %cst_113 = arith.constant dense<0.000000e+00> : vector<128xf32>
    %123 = vector.multi_reduction <add>, %122, %cst_113 [0] : vector<256x128xf32> to vector<128xf32>
    %124 = vector.shape_cast %123 : vector<128xf32> to vector<1x128xf32>
    %125 = tpu.concatenate %121, %124 in 0 : vector<1x128xf32>, vector<1x128xf32> -> vector<2x128xf32>
    %126 = arith.addf %119, %125 : vector<2x128xf32>
    %c0_114 = arith.constant 0 : index
    %c0_115 = arith.constant 0 : index
    %127 = vector.load %arg11[%c0_114, %c0_115] : memref<2x128xf32, #tpu.memory_space<vmem>>, vector<2x128xf32>
    tpu.vector_store %arg11[%c0_114, %c0_115], %126 {strides = array<i32>} : memref<2x128xf32, #tpu.memory_space<vmem>>, vector<2x128xf32>,
    return
  }
  func.func @transform_0(%arg0: i32) -> (i32, i32, i32, i32) {
    %c0_i32 = arith.constant 0 : i32
    %c0_i32_0 = arith.constant 0 : i32
    %c0_i32_1 = arith.constant 0 : i32
    %c0_i32_2 = arith.constant 0 : i32
    return %arg0, %c0_i32, %c0_i32_0, %c0_i32_1 : i32, i32, i32, i32
  }
  func.func @transform_1(%arg0: i32) -> (i32, i32, i32) {
    %c0_i32 = arith.constant 0 : i32
    %c0_i32_0 = arith.constant 0 : i32
    %c0_i32_1 = arith.constant 0 : i32
    %c0_i32_2 = arith.constant 0 : i32
    return %c0_i32, %c0_i32_0, %c0_i32_1 : i32, i32, i32
  }
  func.func @transform_2(%arg0: i32) -> (i32, i32) {
    %c0_i32 = arith.constant 0 : i32
    %c0_i32_0 = arith.constant 0 : i32
    %c0_i32_1 = arith.constant 0 : i32
    return %c0_i32, %c0_i32_0 : i32, i32
  }
  func.func @transform_3(%arg0: i32) -> (i32, i32) {
    %c0_i32 = arith.constant 0 : i32
    %c0_i32_0 = arith.constant 0 : i32
    %c0_i32_1 = arith.constant 0 : i32
    return %c0_i32, %c0_i32_0 : i32, i32
  }
  func.func @transform_4(%arg0: i32) -> (i32, i32, i32) {
    %c0_i32 = arith.constant 0 : i32
    %c0_i32_0 = arith.constant 0 : i32
    %c0_i32_1 = arith.constant 0 : i32
    %c0_i32_2 = arith.constant 0 : i32
    return %c0_i32, %c0_i32_0, %c0_i32_1 : i32, i32, i32
  }
  func.func @transform_5(%arg0: i32) -> (i32, i32) {
    %c0_i32 = arith.constant 0 : i32
    %c0_i32_0 = arith.constant 0 : i32
    %c0_i32_1 = arith.constant 0 : i32
    return %c0_i32, %c0_i32_0 : i32, i32
  }
  func.func @transform_6(%arg0: i32) -> (i32, i32) {
    %c0_i32 = arith.constant 0 : i32
    %c0_i32_0 = arith.constant 0 : i32
    %c0_i32_1 = arith.constant 0 : i32
    return %c0_i32, %c0_i32_0 : i32, i32
  }
  func.func @transform_7(%arg0: i32) -> (i32, i32) {
    %c0_i32 = arith.constant 0 : i32
    %c0_i32_0 = arith.constant 0 : i32
    %c0_i32_1 = arith.constant 0 : i32
    return %c0_i32, %c0_i32_0 : i32, i32
  }
  func.func @transform_8(%arg0: i32) -> (i32, i32, i32, i32) {
    %c0_i32 = arith.constant 0 : i32
    %c0_i32_0 = arith.constant 0 : i32
    %c0_i32_1 = arith.constant 0 : i32
    %c0_i32_2 = arith.constant 0 : i32
    %c0_i32_3 = arith.constant 0 : i32
    return %c0_i32, %c0_i32_0, %c0_i32_1, %c0_i32_2 : i32, i32, i32, i32
  }
  func.func @transform_9(%arg0: i32) -> (i32, i32, i32, i32) {
    %c0_i32 = arith.constant 0 : i32
    %c0_i32_0 = arith.constant 0 : i32
    %c0_i32_1 = arith.constant 0 : i32
    %c0_i32_2 = arith.constant 0 : i32
    return %arg0, %c0_i32, %c0_i32_0, %c0_i32_1 : i32, i32, i32, i32
  }
  func.func @transform_10(%arg0: i32) -> (i32, i32) {
    %c0_i32 = arith.constant 0 : i32
    %c0_i32_0 = arith.constant 0 : i32
    %c0_i32_1 = arith.constant 0 : i32
    return %c0_i32, %c0_i32_0 : i32, i32
  }
}

module attributes {stable_mosaic.version = 11 : i64} {
  func.func @kernel(%arg0: i32, %arg1: memref<256x128xf32, #tpu.memory_space<vmem>>, %arg2: memref<2x128xf32, #tpu.memory_space<vmem>>, %arg3: memref<2x128xf32, #tpu.memory_space<vmem>>, %arg4: memref<256x128xf32, #tpu.memory_space<vmem>>) attributes {dimension_semantics = [#tpu.dimension_semantics<parallel>], iteration_bounds = array<i64: 2>, scalar_prefetch = 0 : i64, scratch_operands = 0 : i64, tpu.core_type = #tpu.core_type<tc>, window_params = [{transform_indices = @transform_0, window_bounds = array<i64: 256, 128>}, {pipeline_mode = #tpu.pipeline_mode<synchronous>, transform_indices = @transform_1, window_bounds = array<i64: 2, 128>}, {pipeline_mode = #tpu.pipeline_mode<synchronous>, transform_indices = @transform_2, window_bounds = array<i64: 2, 128>}, {transform_indices = @transform_3, window_bounds = array<i64: 256, 128>}]} {
    %c0 = arith.constant 0 : index
    %c0_0 = arith.constant 0 : index
    %0 = vector.load %arg2[%c0, %c0_0] : memref<2x128xf32, #tpu.memory_space<vmem>>, vector<1x128xf32>
    %cst = arith.constant 0.001953125 : f32
    %1 = vector.broadcast %cst : f32 to vector<1x128xf32>
    %2 = arith.mulf %0, %1 : vector<1x128xf32>
    %c1 = arith.constant 1 : index
    %c0_1 = arith.constant 0 : index
    %3 = vector.load %arg2[%c1, %c0_1] : memref<2x128xf32, #tpu.memory_space<vmem>>, vector<1x128xf32>
    %cst_2 = arith.constant 0.001953125 : f32
    %4 = vector.broadcast %cst_2 : f32 to vector<1x128xf32>
    %5 = arith.mulf %3, %4 : vector<1x128xf32>
    %6 = arith.mulf %2, %2 : vector<1x128xf32>
    %7 = arith.subf %5, %6 : vector<1x128xf32>
    %cst_3 = arith.constant 9.99999974E-6 : f32
    %8 = vector.broadcast %cst_3 : f32 to vector<1x128xf32>
    %9 = arith.addf %7, %8 : vector<1x128xf32>
    %10 = math.rsqrt %9 : vector<1x128xf32>
    %c0_4 = arith.constant 0 : index
    %c0_5 = arith.constant 0 : index
    %11 = vector.load %arg3[%c0_4, %c0_5] : memref<2x128xf32, #tpu.memory_space<vmem>>, vector<1x128xf32>
    %12 = arith.mulf %10, %11 : vector<1x128xf32>
    %c1_6 = arith.constant 1 : index
    %c0_7 = arith.constant 0 : index
    %13 = vector.load %arg3[%c1_6, %c0_7] : memref<2x128xf32, #tpu.memory_space<vmem>>, vector<1x128xf32>
    %14 = arith.mulf %2, %12 : vector<1x128xf32>
    %15 = arith.subf %13, %14 : vector<1x128xf32>
    %c0_8 = arith.constant 0 : index
    %c0_9 = arith.constant 0 : index
    %16 = vector.load %arg1[%c0_8, %c0_9] : memref<256x128xf32, #tpu.memory_space<vmem>>, vector<256x128xf32>
    %17 = vector.broadcast %12 : vector<1x128xf32> to vector<256x128xf32>
    %18 = arith.mulf %16, %17 : vector<256x128xf32>
    %19 = vector.broadcast %15 : vector<1x128xf32> to vector<256x128xf32>
    %20 = arith.addf %18, %19 : vector<256x128xf32>
    %cst_10 = arith.constant 0.000000e+00 : f32
    %21 = vector.broadcast %cst_10 : f32 to vector<256x128xf32>
    %22 = arith.maximumf %20, %21 : vector<256x128xf32>
    %c0_11 = arith.constant 0 : index
    %c0_12 = arith.constant 0 : index
    %23 = vector.load %arg4[%c0_11, %c0_12] : memref<256x128xf32, #tpu.memory_space<vmem>>, vector<256x128xf32>
    tpu.vector_store %arg4[%c0_11, %c0_12], %22 {strides = array<i32>} : memref<256x128xf32, #tpu.memory_space<vmem>>, vector<256x128xf32>,
    return
  }
  func.func @transform_0(%arg0: i32) -> (i32, i32) {
    %c0_i32 = arith.constant 0 : i32
    %c0_i32_0 = arith.constant 0 : i32
    return %arg0, %c0_i32 : i32, i32
  }
  func.func @transform_1(%arg0: i32) -> (i32, i32) {
    %c0_i32 = arith.constant 0 : i32
    %c0_i32_0 = arith.constant 0 : i32
    %c0_i32_1 = arith.constant 0 : i32
    return %c0_i32, %c0_i32_0 : i32, i32
  }
  func.func @transform_2(%arg0: i32) -> (i32, i32) {
    %c0_i32 = arith.constant 0 : i32
    %c0_i32_0 = arith.constant 0 : i32
    %c0_i32_1 = arith.constant 0 : i32
    return %c0_i32, %c0_i32_0 : i32, i32
  }
  func.func @transform_3(%arg0: i32) -> (i32, i32) {
    %c0_i32 = arith.constant 0 : i32
    %c0_i32_0 = arith.constant 0 : i32
    return %arg0, %c0_i32 : i32, i32
  }
}

</mosaic_0001>

<llo_original>
// kernel: expert_controller_film.5
$region0: #{expert_controller_film.5}
  #allocation0 [shape = 'u32[]', space=smem, size = 0x4, offset = 0x4, fixed_abs, tag = 'smem constant byte address 0x4 - core index']
  #allocation1 [shape = 'u32[144,128]{1,0:T(1,128)}', space=vmem, size = 0x12000, scoped, tag = 'internal scratch']
  %s0 = inlined_call_operand.vmem [shape: f32[512,128], index: 0, kind: input, shape index: {}]
  %s1 = inlined_call_operand.vmem [shape: f32[2,128], index: 1, kind: input, shape index: {}]
  %s2 = inlined_call_operand.vmem [shape: f32[2,128], index: 2, kind: input, shape index: {}]
  %s3 = inlined_call_operand.vmem [shape: f32[512,128], index: 3, kind: output, shape index: {}]
  %s4 = sld [smem:[#allocation0]]
  $region45: #{expert_controller_film.5} parent=0
    _
  %s6 = ssub.s32 1, %s4
  %s7 = scalar_select 0, %s6, %s4
  loop: start=0, step=1, limit=4
  $region2: #{expert_controller_film.5} parent=0 // loop_pre_header
    _
  $region3: #{expert_controller_film.5} parent=0 // loop_header
    %s9 = sphi 0, %s13
    %p10 = scmp.ge.s32.totalorder %s9, 4
    %s19 = sphi 0, %s21
    %s22 = sphi 0, %s19
    %s23 = sphi 0, %s22
    %s39 = sphi 0, %s23
    %s43 = sphi 0, %s43
    %s45 = sphi 0, %s43
    %s46 = sphi 0, %s45
    %s60 = sphi 0, %s46
    %s64 = sphi 0, %s64
    %s66 = sphi 0, %s64
    %s67 = sphi 0, %s66
    %s81 = sphi 0, %s67
    %s87 = sphi 0, %s89
    %s90 = sphi 0, %s87
    %s91 = sphi 0, %s90
    %s107 = sphi 0, %s91
  $region4: #{expert_controller_film.5} parent=0 // loop_header_branch
    %12 = sbr.rel (%p10) target = $region8
  $region5: #{expert_controller_film.5} parent=0 // loop_body
    %s14 = ssub.s32 %s9, 1
    %s15 = ssub.s32 %s9, 2
    %s16 = sadd.s32 %s9, 1
    %s17 = ssub.s32 %s9, %s16
    %p18 = scmp.eq.s32.totalorder %s17, 0
    %s20 = sadd.s32 %s19, 1
    %s21 = scalar_select %p18, %s19, %s20
    %p24 = pneg %p18
    %p25 = scmp.eq.s32.totalorder %s9, 1
    %p26 = por %p24, %p25
    %p27 = scmp.ne.s32.totalorder %s19, %s22
    %p28 = scmp.eq.s32.totalorder %s9, 0
    %p29 = por %p27, %p28
    %p30 = scmp.ne.s32.totalorder %s19, %s22
    %p31 = scmp.eq.s32.totalorder %s14, 1
    %p32 = por %p30, %p31
    %p33 = scmp.ne.s32.totalorder %s22, %s23
    %p34 = scmp.eq.s32.totalorder %s14, 0
    %p35 = por %p33, %p34
    %p36 = scmp.ne.s32.totalorder %s22, %s23
    %p37 = scmp.eq.s32.totalorder %s15, 1
    %p38 = por %p36, %p37
    %p40 = scmp.ne.s32.totalorder %s23, %s39
    %p41 = scmp.eq.s32.totalorder %s15, 0
    %p42 = por %p40, %p41
    %s44 = sadd.s32 %s43, 1
    %p47 = scmp.eq.s32.totalorder %s9, 1
    %p48 = scmp.ne.s32.totalorder %s43, %s45
    %p49 = scmp.eq.s32.totalorder %s9, 0
    %p50 = por %p48, %p49
    %p51 = scmp.ne.s32.totalorder %s43, %s45
    %p52 = scmp.eq.s32.totalorder %s14, 1
    %p53 = por %p51, %p52
    %p54 = scmp.ne.s32.totalorder %s45, %s46
    %p55 = scmp.eq.s32.totalorder %s14, 0
    %p56 = por %p54, %p55
    %p57 = scmp.ne.s32.totalorder %s45, %s46
    %p58 = scmp.eq.s32.totalorder %s15, 1
    %p59 = por %p57, %p58
    %p61 = scmp.ne.s32.totalorder %s46, %s60
    %p62 = scmp.eq.s32.totalorder %s15, 0
    %p63 = por %p61, %p62
    %s65 = sadd.s32 %s64, 1
    %p68 = scmp.eq.s32.totalorder %s9, 1
    %p69 = scmp.ne.s32.totalorder %s64, %s66
    %p70 = scmp.eq.s32.totalorder %s9, 0
    %p71 = por %p69, %p70
    %p72 = scmp.ne.s32.totalorder %s64, %s66
    %p73 = scmp.eq.s32.totalorder %s14, 1
    %p74 = por %p72, %p73
    %p75 = scmp.ne.s32.totalorder %s66, %s67
    %p76 = scmp.eq.s32.totalorder %s14, 0
    %p77 = por %p75, %p76
    %p78 = scmp.ne.s32.totalorder %s66, %s67
    %p79 = scmp.eq.s32.totalorder %s15, 1
    %p80 = por %p78, %p79
    %p82 = scmp.ne.s32.totalorder %s67, %s81
    %p83 = scmp.eq.s32.totalorder %s15, 0
    %p84 = por %p82, %p83
    %s85 = ssub.s32 %s9, %s16
    %p86 = scmp.eq.s32.totalorder %s85, 0
    %s88 = sadd.s32 %s87, 1
    %s89 = scalar_select %p86, %s87, %s88
    %p92 = pneg %p86
    %p93 = scmp.eq.s32.totalorder %s9, 1
    %p94 = por %p92, %p93
    %p95 = scmp.ne.s32.totalorder %s87, %s90
    %p96 = scmp.eq.s32.totalorder %s9, 0
    %p97 = por %p95, %p96
    %p98 = scmp.ne.s32.totalorder %s87, %s90
    %p99 = scmp.eq.s32.totalorder %s14, 1
    %p100 = por %p98, %p99
    %p101 = scmp.ne.s32.totalorder %s90, %s91
    %p102 = scmp.eq.s32.totalorder %s14, 0
    %p103 = por %p101, %p102
    %p104 = scmp.ne.s32.totalorder %s90, %s91
    %p105 = scmp.eq.s32.totalorder %s15, 1
    %p106 = por %p104, %p105
    %p108 = scmp.ne.s32.totalorder %s91, %s107
    %p109 = scmp.eq.s32.totalorder %s15, 0
    %p110 = por %p108, %p109
    %p111 = scmp.le.s32.totalorder 1, %s9
    %p112 = scmp.lt.s32.totalorder %s9, 3
    %p113 = pnand %p111, %p112
    %p114 = pneg %p113
    // Predicated region
    $region9: #{expert_controller_film.5} parent=5 // pred_check
      _
    $region10: #{expert_controller_film.5} parent=5 // pred_check_branch
      %116 = sbr.rel (%p113) target = $region12
    $region11: #{expert_controller_film.5} parent=5 // pred_region
      %s117 = ssub.s32 %s9, 1
      // Predicated region
      $region13: #{expert_controller_film.5} parent=11 // pred_check
        %p118 = pneg %p56
      $region14: #{expert_controller_film.5} parent=11 // pred_check_branch
        %120 = sbr.rel (%p118) target = $region16
      $region15: #{expert_controller_film.5} parent=11 // pred_region
        _
      $region16: #{expert_controller_film.5} parent=11 // pred_fallthru
        _
      // Predicated region
      $region17: #{expert_controller_film.5} parent=11 // pred_check
        %p121 = pneg %p77
      $region18: #{expert_controller_film.5} parent=11 // pred_check_branch
        %123 = sbr.rel (%p121) target = $region20
      $region19: #{expert_controller_film.5} parent=11 // pred_region
        _
      $region20: #{expert_controller_film.5} parent=11 // pred_fallthru
        _
    $region12: #{expert_controller_film.5} parent=5 // pred_fallthru
      _
    %p124 = scmp.lt.s32.totalorder %s9, 2
    // Predicated region
    $region21: #{expert_controller_film.5} parent=5 // pred_check
      %p125 = pneg %p124
    $region22: #{expert_controller_film.5} parent=5 // pred_check_branch
      %127 = sbr.rel (%p125) target = $region24
    $region23: #{expert_controller_film.5} parent=5 // pred_region
      // Predicated region
      $region25: #{expert_controller_film.5} parent=23 // pred_check
        %p128 = pneg %p29
      $region26: #{expert_controller_film.5} parent=23 // pred_check_branch
        %130 = sbr.rel (%p128) target = $region28
      $region27: #{expert_controller_film.5} parent=23 // pred_region
        %s131 = smul.u32 32, %s9
        %p132 = scmp.lt.s32.totalorder %s131, 63
        %s133 = scalar_select %p132, %s131, 63
        %s134 = smul.addr %s133, 8
        %s135 = scalar_lea.vmem %s0, %s134
        %s136 = smul.u32 32, %s9
      $region28: #{expert_controller_film.5} parent=23 // pred_fallthru
        _
    $region24: #{expert_controller_film.5} parent=5 // pred_fallthru
      _
    %p137 = scmp.le.s32.totalorder 1, %s9
    %p138 = scmp.lt.s32.totalorder %s9, 3
    %p139 = pnand %p137, %p138
    %p140 = pneg %p139
    // Predicated region
    $region29: #{expert_controller_film.5} parent=5 // pred_check
      _
    $region30: #{expert_controller_film.5} parent=5 // pred_check_branch
      %142 = sbr.rel (%p139) target = $region32
    $region31: #{expert_controller_film.5} parent=5 // pred_region
      %s143 = ssub.s32 %s9, 1
      %s144 = smul.u32 32, %s14
      %p145 = scmp.lt.s32.totalorder %s144, 63
      %s146 = scalar_select %p145, %s144, 63
      %s147 = smul.addr %s146, 8
      %s148 = scalar_lea.vmem %s0, %s147
      %p149 = pneg %p35
      %p150 = pneg %p32
      %p151 = pneg %p56
      %p152 = pneg %p53
      %p153 = pneg %p77
      %p154 = pneg %p74
      %p155 = pneg %p103
      %p156 = pneg %p100
      %s157 = smul.u32 32, %s14
      %p158 = scmp.lt.s32.totalorder %s157, 63
      %s159 = scalar_select %p158, %s157, 63
      %s160 = smul.addr %s159, 8
      %s161 = scalar_lea.vmem %s3, %s160
      %s162 = smul.u32 32, %s14
      %p163 = scmp.lt.s32.totalorder %s162, 63
      %s164 = scalar_select %p163, %s162, 63
      %s165 = smul.addr %s164, 8
      %s166 = scalar_lea.vmem %s0, %s165
      %s167 = smul.u32 32, %s14
      %s168 = smul.u32 32, %s14
      %p169 = scmp.lt.s32.totalorder %s168, 63
      %s170 = scalar_select %p169, %s168, 63
      %s171 = smul.addr %s170, 8
      %s172 = scalar_lea.vmem %s3, %s171
      %s173 = smul.u32 32, %s14
      %v174 = vld [vmem:[%s1] sm:$0x1]
      %v175 = vmul.f32 %v174, 0.001953125
      %v176 = vld [vmem:[%s1 + $0x1] sm:$0x1]
      %v177 = vmul.f32 %v176, 0.001953125
      %v178 = vmul.f32 %v175, %v175
      %v179 = vsub.f32 %v177, %v178
      %v180 = vadd.f32 %v179, 1e-05
      %v181 = vrsqrt.pop %v180
      %v182 = vld [vmem:[%s2] sm:$0x1]
      %v183 = vmul.f32 %v181, %v182
      %v184 = vld [vmem:[%s2 + $0x1] sm:$0x1]
      %v185 = vmul.f32 %v175, %v183
      %v186 = vsub.f32 %v184, %v185
      %v187 = vld [vmem:[%s166] sm:$0xff]
      %v188 = vld [vmem:[%s166 + $0x8] sm:$0xff]
      %v189 = vld [vmem:[%s166 + $0x10] sm:$0xff]
      %v190 = vld [vmem:[%s166 + $0x18] sm:$0xff]
      %v191 = vld [vmem:[%s166 + $0x20] sm:$0xff]
      %v192 = vld [vmem:[%s166 + $0x28] sm:$0xff]
      %v193 = vld [vmem:[%s166 + $0x30] sm:$0xff]
      %v194 = vld [vmem:[%s166 + $0x38] sm:$0xff]
      %v195 = vld [vmem:[%s166 + $0x40] sm:$0xff]
      %v196 = vld [vmem:[%s166 + $0x48] sm:$0xff]
      %v197 = vld [vmem:[%s166 + $0x50] sm:$0xff]
      %v198 = vld [vmem:[%s166 + $0x58] sm:$0xff]
      %v199 = vld [vmem:[%s166 + $0x60] sm:$0xff]
      %v200 = vld [vmem:[%s166 + $0x68] sm:$0xff]
      %v201 = vld [vmem:[%s166 + $0x70] sm:$0xff]
      %v202 = vld [vmem:[%s166 + $0x78] sm:$0xff]
      %v203 = vld [vmem:[%s166 + $0x80] sm:$0xff]
      %v204 = vld [vmem:[%s166 + $0x88] sm:$0xff]
      %v205 = vld [vmem:[%s166 + $0x90] sm:$0xff]
      %v206 = vld [vmem:[%s166 + $0x98] sm:$0xff]
      %v207 = vld [vmem:[%s166 + $0xa0] sm:$0xff]
      %v208 = vld [vmem:[%s166 + $0xa8] sm:$0xff]
      %v209 = vld [vmem:[%s166 + $0xb0] sm:$0xff]
      %v210 = vld [vmem:[%s166 + $0xb8] sm:$0xff]
      %v211 = vld [vmem:[%s166 + $0xc0] sm:$0xff]
      %v212 = vld [vmem:[%s166 + $0xc8] sm:$0xff]
      %v213 = vld [vmem:[%s166 + $0xd0] sm:$0xff]
      %v214 = vld [vmem:[%s166 + $0xd8] sm:$0xff]
      %v215 = vld [vmem:[%s166 + $0xe0] sm:$0xff]
      %v216 = vld [vmem:[%s166 + $0xe8] sm:$0xff]
      %v217 = vld [vmem:[%s166 + $0xf0] sm:$0xff]
      %v218 = vld [vmem:[%s166 + $0xf8] sm:$0xff]
      %v219 = vlaneseq
      %v220 = vshrl.u32 %v219, 7
      %v221 = vsub.s32 0, %v220
      %v222 = vrot.slane %v183, %v221
      %v223 = vmul.f32 %v187, %v222
      %v224 = vmul.f32 %v188, %v222
      %v225 = vmul.f32 %v189, %v222
      %v226 = vmul.f32 %v190, %v222
      %v227 = vmul.f32 %v191, %v222
      %v228 = vmul.f32 %v192, %v222
      %v229 = vmul.f32 %v193, %v222
      %v230 = vmul.f32 %v194, %v222
      %v231 = vmul.f32 %v195, %v222
      %v232 = vmul.f32 %v196, %v222
      %v233 = vmul.f32 %v197, %v222
      %v234 = vmul.f32 %v198, %v222
      %v235 = vmul.f32 %v199, %v222
      %v236 = vmul.f32 %v200, %v222
      %v237 = vmul.f32 %v201, %v222
      %v238 = vmul.f32 %v202, %v222
      %v239 = vmul.f32 %v203, %v222
      %v240 = vmul.f32 %v204, %v222
      %v241 = vmul.f32 %v205, %v222
      %v242 = vmul.f32 %v206, %v222
      %v243 = vmul.f32 %v207, %v222
      %v244 = vmul.f32 %v208, %v222
      %v245 = vmul.f32 %v209, %v222
      %v246 = vmul.f32 %v210, %v222
      %v247 = vmul.f32 %v211, %v222
      %v248 = vmul.f32 %v212, %v222
      %v249 = vmul.f32 %v213, %v222
      %v250 = vmul.f32 %v214, %v222
      %v251 = vmul.f32 %v215, %v222
      %v252 = vmul.f32 %v216, %v222
      %v253 = vmul.f32 %v217, %v222
      %v254 = vmul.f32 %v218, %v222
      %v255 = vlaneseq
      %v256 = vshrl.u32 %v255, 7
      %v257 = vsub.s32 0, %v256
      %v258 = vrot.slane %v186, %v257
      %v259 = vadd.f32 %v223, %v258
      %v260 = vadd.f32 %v224, %v258
      %v261 = vadd.f32 %v225, %v258
      %v262 = vadd.f32 %v226, %v258
      %v263 = vadd.f32 %v227, %v258
      %v264 = vadd.f32 %v228, %v258
      %v265 = vadd.f32 %v229, %v258
      %v266 = vadd.f32 %v230, %v258
      %v267 = vadd.f32 %v231, %v258
      %v268 = vadd.f32 %v232, %v258
      %v269 = vadd.f32 %v233, %v258
      %v270 = vadd.f32 %v234, %v258
      %v271 = vadd.f32 %v235, %v258
      %v272 = vadd.f32 %v236, %v258
      %v273 = vadd.f32 %v237, %v258
      %v274 = vadd.f32 %v238, %v258
      %v275 = vadd.f32 %v239, %v258
      %v276 = vadd.f32 %v240, %v258
      %v277 = vadd.f32 %v241, %v258
      %v278 = vadd.f32 %v242, %v258
      %v279 = vadd.f32 %v243, %v258
      %v280 = vadd.f32 %v244, %v258
      %v281 = vadd.f32 %v245, %v258
      %v282 = vadd.f32 %v246, %v258
      %v283 = vadd.f32 %v247, %v258
      %v284 = vadd.f32 %v248, %v258
      %v285 = vadd.f32 %v249, %v258
      %v286 = vadd.f32 %v250, %v258
      %v287 = vadd.f32 %v251, %v258
      %v288 = vadd.f32 %v252, %v258
      %v289 = vadd.f32 %v253, %v258
      %v290 = vadd.f32 %v254, %v258
      %v291 = vmax.f32 %v259, 0.0
      %v292 = vmax.f32 %v260, 0.0
      %v293 = vmax.f32 %v261, 0.0
      %v294 = vmax.f32 %v262, 0.0
      %v295 = vmax.f32 %v263, 0.0
      %v296 = vmax.f32 %v264, 0.0
      %v297 = vmax.f32 %v265, 0.0
      %v298 = vmax.f32 %v266, 0.0
      %v299 = vmax.f32 %v267, 0.0
      %v300 = vmax.f32 %v268, 0.0
      %v301 = vmax.f32 %v269, 0.0
      %v302 = vmax.f32 %v270, 0.0
      %v303 = vmax.f32 %v271, 0.0
      %v304 = vmax.f32 %v272, 0.0
      %v305 = vmax.f32 %v273, 0.0
      %v306 = vmax.f32 %v274, 0.0
      %v307 = vmax.f32 %v275, 0.0
      %v308 = vmax.f32 %v276, 0.0
      %v309 = vmax.f32 %v277, 0.0
      %v310 = vmax.f32 %v278, 0.0
      %v311 = vmax.f32 %v279, 0.0
      %v312 = vmax.f32 %v280, 0.0
      %v313 = vmax.f32 %v281, 0.0
      %v314 = vmax.f32 %v282, 0.0
      %v315 = vmax.f32 %v283, 0.0
      %v316 = vmax.f32 %v284, 0.0
      %v317 = vmax.f32 %v285, 0.0
      %v318 = vmax.f32 %v286, 0.0
      %v319 = vmax.f32 %v287, 0.0
      %v320 = vmax.f32 %v288, 0.0
      %v321 = vmax.f32 %v289, 0.0
      %v322 = vmax.f32 %v290, 0.0
      %323 = vst [vmem:[%s172] sm:$0xff] %v291
      %324 = vst [vmem:[%s172 + $0x8] sm:$0xff] %v292
      %325 = vst [vmem:[%s172 + $0x10] sm:$0xff] %v293
      %326 = vst [vmem:[%s172 + $0x18] sm:$0xff] %v294
      %327 = vst [vmem:[%s172 + $0x20] sm:$0xff] %v295
      %328 = vst [vmem:[%s172 + $0x28] sm:$0xff] %v296
      %329 = vst [vmem:[%s172 + $0x30] sm:$0xff] %v297
      %330 = vst [vmem:[%s172 + $0x38] sm:$0xff] %v298
      %331 = vst [vmem:[%s172 + $0x40] sm:$0xff] %v299
      %332 = vst [vmem:[%s172 + $0x48] sm:$0xff] %v300
      %333 = vst [vmem:[%s172 + $0x50] sm:$0xff] %v301
      %334 = vst [vmem:[%s172 + $0x58] sm:$0xff] %v302
      %335 = vst [vmem:[%s172 + $0x60] sm:$0xff] %v303
      %336 = vst [vmem:[%s172 + $0x68] sm:$0xff] %v304
      %337 = vst [vmem:[%s172 + $0x70] sm:$0xff] %v305
      %338 = vst [vmem:[%s172 + $0x78] sm:$0xff] %v306
      %339 = vst [vmem:[%s172 + $0x80] sm:$0xff] %v307
      %340 = vst [vmem:[%s172 + $0x88] sm:$0xff] %v308
      %341 = vst [vmem:[%s172 + $0x90] sm:$0xff] %v309
      %342 = vst [vmem:[%s172 + $0x98] sm:$0xff] %v310
      %343 = vst [vmem:[%s172 + $0xa0] sm:$0xff] %v311
      %344 = vst [vmem:[%s172 + $0xa8] sm:$0xff] %v312
      %345 = vst [vmem:[%s172 + $0xb0] sm:$0xff] %v313
      %346 = vst [vmem:[%s172 + $0xb8] sm:$0xff] %v314
      %347 = vst [vmem:[%s172 + $0xc0] sm:$0xff] %v315
      %348 = vst [vmem:[%s172 + $0xc8] sm:$0xff] %v316
      %349 = vst [vmem:[%s172 + $0xd0] sm:$0xff] %v317
      %350 = vst [vmem:[%s172 + $0xd8] sm:$0xff] %v318
      %351 = vst [vmem:[%s172 + $0xe0] sm:$0xff] %v319
      %352 = vst [vmem:[%s172 + $0xe8] sm:$0xff] %v320
      %353 = vst [vmem:[%s172 + $0xf0] sm:$0xff] %v321
      %354 = vst [vmem:[%s172 + $0xf8] sm:$0xff] %v322
      %s355 = smul.u32 32, %s14
      %p356 = scmp.lt.s32.totalorder %s355, 63
      %s357 = scalar_select %p356, %s355, 63
      %s358 = smul.addr %s357, 8
      %s359 = scalar_lea.vmem %s3, %s358
      // Predicated region
      $region33: #{expert_controller_film.5} parent=31 // pred_check
        %p360 = pneg %p100
      $region34: #{expert_controller_film.5} parent=31 // pred_check_branch
        %362 = sbr.rel (%p360) target = $region36
      $region35: #{expert_controller_film.5} parent=31 // pred_region
        %s363 = smul.u32 32, %s14
      $region36: #{expert_controller_film.5} parent=31 // pred_fallthru
        _
    $region32: #{expert_controller_film.5} parent=5 // pred_fallthru
      _
    %p364 = scmp.le.s32.totalorder 2, %s9
    // Predicated region
    $region37: #{expert_controller_film.5} parent=5 // pred_check
      %p365 = pneg %p364
    $region38: #{expert_controller_film.5} parent=5 // pred_check_branch
      %367 = sbr.rel (%p365) target = $region40
    $region39: #{expert_controller_film.5} parent=5 // pred_region
      %s368 = ssub.s32 %s9, 2
      // Predicated region
      $region41: #{expert_controller_film.5} parent=39 // pred_check
        %p369 = pneg %p106
      $region42: #{expert_controller_film.5} parent=39 // pred_check_branch
        %371 = sbr.rel (%p369) target = $region44
      $region43: #{expert_controller_film.5} parent=39 // pred_region
        %s372 = smul.u32 32, %s15
        %p373 = scmp.lt.s32.totalorder %s372, 63
        %s374 = scalar_select %p373, %s372, 63
        %s375 = smul.addr %s374, 8
        %s376 = scalar_lea.vmem %s3, %s375
      $region44: #{expert_controller_film.5} parent=39 // pred_fallthru
        _
    $region40: #{expert_controller_film.5} parent=5 // pred_fallthru
      _
  $region6: #{expert_controller_film.5} parent=0 // loop_footer
    %s13 = sadd.s32 1, %s9
  $region7: #{expert_controller_film.5} parent=0 // loop_footer_branch
    %8 = sbr.rel target = $region3
  $region8: #{expert_controller_film.5} parent=0 // loop_exit
    _

// kernel: expert_controller_film.3
$region0: #{expert_controller_film.3}
  #allocation0 [shape = 'u32[]', space=smem, size = 0x4, offset = 0x4, fixed_abs, tag = 'smem constant byte address 0x4 - core index']
  #allocation1 [shape = 'u32[144,128]{1,0:T(1,128)}', space=vmem, size = 0x12000, scoped, tag = 'internal scratch']
  %s0 = inlined_call_operand.vmem [shape: f32[2,18,18,128], index: 0, kind: input, shape index: {}]
  %s1 = inlined_call_operand.vmem [shape: bf16[3,3,128,128], index: 1, kind: input, shape index: {}]
  %s2 = inlined_call_operand.vmem [shape: f32[1,128], index: 2, kind: input, shape index: {}]
  %s3 = inlined_call_operand.vmem [shape: f32[2,16,16,128], index: 3, kind: output, shape index: {0}]
  %s4 = inlined_call_operand.vmem [shape: f32[2,128], index: 4, kind: output, shape index: {1}]
  %5 = xla_tuple %s3, %s4
  %s6 = sld [smem:[#allocation0]]
  $region57: #{expert_controller_film.3} parent=0
    _
  %s8 = ssub.s32 1, %s6
  %s9 = scalar_select 0, %s8, %s6
  loop: start=0, step=1, limit=4
  $region2: #{expert_controller_film.3} parent=0 // loop_pre_header
    _
  $region3: #{expert_controller_film.3} parent=0 // loop_header
    %s11 = sphi 0, %s15
    %p12 = scmp.ge.s32.totalorder %s11, 4
    %s21 = sphi 0, %s23
    %s24 = sphi 0, %s21
    %s25 = sphi 0, %s24
    %s41 = sphi 0, %s25
    %s45 = sphi 0, %s45
    %s47 = sphi 0, %s45
    %s48 = sphi 0, %s47
    %s62 = sphi 0, %s48
    %s66 = sphi 0, %s66
    %s68 = sphi 0, %s66
    %s69 = sphi 0, %s68
    %s83 = sphi 0, %s69
    %s89 = sphi 0, %s91
    %s92 = sphi 0, %s89
    %s93 = sphi 0, %s92
    %s109 = sphi 0, %s93
    %s113 = sphi 0, %s113
    %s115 = sphi 0, %s113
    %s116 = sphi 0, %s115
    %s130 = sphi 0, %s116
  $region4: #{expert_controller_film.3} parent=0 // loop_header_branch
    %14 = sbr.rel (%p12) target = $region8
  $region5: #{expert_controller_film.3} parent=0 // loop_body
    %s16 = ssub.s32 %s11, 1
    %s17 = ssub.s32 %s11, 2
    %s18 = sadd.s32 %s11, 1
    %s19 = ssub.s32 %s11, %s18
    %p20 = scmp.eq.s32.totalorder %s19, 0
    %s22 = sadd.s32 %s21, 1
    %s23 = scalar_select %p20, %s21, %s22
    %p26 = pneg %p20
    %p27 = scmp.eq.s32.totalorder %s11, 1
    %p28 = por %p26, %p27
    %p29 = scmp.ne.s32.totalorder %s21, %s24
    %p30 = scmp.eq.s32.totalorder %s11, 0
    %p31 = por %p29, %p30
    %p32 = scmp.ne.s32.totalorder %s21, %s24
    %p33 = scmp.eq.s32.totalorder %s16, 1
    %p34 = por %p32, %p33
    %p35 = scmp.ne.s32.totalorder %s24, %s25
    %p36 = scmp.eq.s32.totalorder %s16, 0
    %p37 = por %p35, %p36
    %p38 = scmp.ne.s32.totalorder %s24, %s25
    %p39 = scmp.eq.s32.totalorder %s17, 1
    %p40 = por %p38, %p39
    %p42 = scmp.ne.s32.totalorder %s25, %s41
    %p43 = scmp.eq.s32.totalorder %s17, 0
    %p44 = por %p42, %p43
    %s46 = sadd.s32 %s45, 1
    %p49 = scmp.eq.s32.totalorder %s11, 1
    %p50 = scmp.ne.s32.totalorder %s45, %s47
    %p51 = scmp.eq.s32.totalorder %s11, 0
    %p52 = por %p50, %p51
    %p53 = scmp.ne.s32.totalorder %s45, %s47
    %p54 = scmp.eq.s32.totalorder %s16, 1
    %p55 = por %p53, %p54
    %p56 = scmp.ne.s32.totalorder %s47, %s48
    %p57 = scmp.eq.s32.totalorder %s16, 0
    %p58 = por %p56, %p57
    %p59 = scmp.ne.s32.totalorder %s47, %s48
    %p60 = scmp.eq.s32.totalorder %s17, 1
    %p61 = por %p59, %p60
    %p63 = scmp.ne.s32.totalorder %s48, %s62
    %p64 = scmp.eq.s32.totalorder %s17, 0
    %p65 = por %p63, %p64
    %s67 = sadd.s32 %s66, 1
    %p70 = scmp.eq.s32.totalorder %s11, 1
    %p71 = scmp.ne.s32.totalorder %s66, %s68
    %p72 = scmp.eq.s32.totalorder %s11, 0
    %p73 = por %p71, %p72
    %p74 = scmp.ne.s32.totalorder %s66, %s68
    %p75 = scmp.eq.s32.totalorder %s16, 1
    %p76 = por %p74, %p75
    %p77 = scmp.ne.s32.totalorder %s68, %s69
    %p78 = scmp.eq.s32.totalorder %s16, 0
    %p79 = por %p77, %p78
    %p80 = scmp.ne.s32.totalorder %s68, %s69
    %p81 = scmp.eq.s32.totalorder %s17, 1
    %p82 = por %p80, %p81
    %p84 = scmp.ne.s32.totalorder %s69, %s83
    %p85 = scmp.eq.s32.totalorder %s17, 0
    %p86 = por %p84, %p85
    %s87 = ssub.s32 %s11, %s18
    %p88 = scmp.eq.s32.totalorder %s87, 0
    %s90 = sadd.s32 %s89, 1
    %s91 = scalar_select %p88, %s89, %s90
    %p94 = pneg %p88
    %p95 = scmp.eq.s32.totalorder %s11, 1
    %p96 = por %p94, %p95
    %p97 = scmp.ne.s32.totalorder %s89, %s92
    %p98 = scmp.eq.s32.totalorder %s11, 0
    %p99 = por %p97, %p98
    %p100 = scmp.ne.s32.totalorder %s89, %s92
    %p101 = scmp.eq.s32.totalorder %s16, 1
    %p102 = por %p100, %p101
    %p103 = scmp.ne.s32.totalorder %s92, %s93
    %p104 = scmp.eq.s32.totalorder %s16, 0
    %p105 = por %p103, %p104
    %p106 = scmp.ne.s32.totalorder %s92, %s93
    %p107 = scmp.eq.s32.totalorder %s17, 1
    %p108 = por %p106, %p107
    %p110 = scmp.ne.s32.totalorder %s93, %s109
    %p111 = scmp.eq.s32.totalorder %s17, 0
    %p112 = por %p110, %p111
    %s114 = sadd.s32 %s113, 1
    %p117 = scmp.eq.s32.totalorder %s11, 1
    %p118 = scmp.ne.s32.totalorder %s113, %s115
    %p119 = scmp.eq.s32.totalorder %s11, 0
    %p120 = por %p118, %p119
    %p121 = scmp.ne.s32.totalorder %s113, %s115
    %p122 = scmp.eq.s32.totalorder %s16, 1
    %p123 = por %p121, %p122
    %p124 = scmp.ne.s32.totalorder %s115, %s116
    %p125 = scmp.eq.s32.totalorder %s16, 0
    %p126 = por %p124, %p125
    %p127 = scmp.ne.s32.totalorder %s115, %s116
    %p128 = scmp.eq.s32.totalorder %s17, 1
    %p129 = por %p127, %p128
    %p131 = scmp.ne.s32.totalorder %s116, %s130
    %p132 = scmp.eq.s32.totalorder %s17, 0
    %p133 = por %p131, %p132
    %p134 = scmp.le.s32.totalorder 1, %s11
    %p135 = scmp.lt.s32.totalorder %s11, 3
    %p136 = pnand %p134, %p135
    %p137 = pneg %p136
    // Predicated region
    $region9: #{expert_controller_film.3} parent=5 // pred_check
      _
    $region10: #{expert_controller_film.3} parent=5 // pred_check_branch
      %139 = sbr.rel (%p136) target = $region12
    $region11: #{expert_controller_film.3} parent=5 // pred_region
      %s140 = ssub.s32 %s11, 1
      // Predicated region
      $region13: #{expert_controller_film.3} parent=11 // pred_check
        %p141 = pneg %p58
      $region14: #{expert_controller_film.3} parent=11 // pred_check_branch
        %143 = sbr.rel (%p141) target = $region16
      $region15: #{expert_controller_film.3} parent=11 // pred_region
        _
      $region16: #{expert_controller_film.3} parent=11 // pred_fallthru
        _
      // Predicated region
      $region17: #{expert_controller_film.3} parent=11 // pred_check
        %p144 = pneg %p79
      $region18: #{expert_controller_film.3} parent=11 // pred_check_branch
        %146 = sbr.rel (%p144) target = $region20
      $region19: #{expert_controller_film.3} parent=11 // pred_region
        _
      $region20: #{expert_controller_film.3} parent=11 // pred_fallthru
        _
    $region12: #{expert_controller_film.3} parent=5 // pred_fallthru
      _
    %p147 = scmp.lt.s32.totalorder %s11, 2
    // Predicated region
    $region21: #{expert_controller_film.3} parent=5 // pred_check
      %p148 = pneg %p147
    $region22: #{expert_controller_film.3} parent=5 // pred_check_branch
      %150 = sbr.rel (%p148) target = $region24
    $region23: #{expert_controller_film.3} parent=5 // pred_region
      // Predicated region
      $region25: #{expert_controller_film.3} parent=23 // pred_check
        %p151 = pneg %p31
      $region26: #{expert_controller_film.3} parent=23 // pred_check_branch
        %153 = sbr.rel (%p151) target = $region28
      $region27: #{expert_controller_film.3} parent=23 // pred_region
        %p154 = scmp.lt.s32.totalorder %s11, 1
        %s155 = scalar_select %p154, %s11, 1
        %s156 = smul.addr %s155, 54
        %s157 = smul.addr %s156, 8
        %s158 = scalar_lea.vmem %s0, %s157
      $region28: #{expert_controller_film.3} parent=23 // pred_fallthru
        _
    $region24: #{expert_controller_film.3} parent=5 // pred_fallthru
      _
    %p159 = scmp.le.s32.totalorder 1, %s11
    %p160 = scmp.lt.s32.totalorder %s11, 3
    %p161 = pnand %p159, %p160
    %p162 = pneg %p161
    // Predicated region
    $region29: #{expert_controller_film.3} parent=5 // pred_check
      _
    $region30: #{expert_controller_film.3} parent=5 // pred_check_branch
      %164 = sbr.rel (%p161) target = $region32
    $region31: #{expert_controller_film.3} parent=5 // pred_region
      %s165 = ssub.s32 %s11, 1
      %p166 = scmp.lt.s32.totalorder %s16, 1
      %s167 = scalar_select %p166, %s16, 1
      %s168 = smul.addr %s167, 54
      %s169 = smul.addr %s168, 8
      %s170 = scalar_lea.vmem %s0, %s169
      %p171 = pneg %p37
      %p172 = pneg %p34
      %p173 = pneg %p58
      %p174 = pneg %p55
      %p175 = pneg %p79
      %p176 = pneg %p76
      %p177 = pneg %p105
      %p178 = pneg %p102
      %p179 = scmp.lt.s32.totalorder %s16, 1
      %s180 = scalar_select %p179, %s16, 1
      %s181 = smul.addr %s180, 32
      %s182 = smul.addr %s181, 8
      %s183 = scalar_lea.vmem %s3, %s182
      %p184 = pneg %p126
      %p185 = pneg %p123
      %p186 = scmp.lt.s32.totalorder %s16, 1
      %s187 = scalar_select %p186, %s16, 1
      %s188 = smul.addr %s187, 54
      %s189 = smul.addr %s188, 8
      %s190 = scalar_lea.vmem %s0, %s189
      %p191 = scmp.lt.s32.totalorder %s16, 1
      %s192 = scalar_select %p191, %s16, 1
      %s193 = smul.addr %s192, 32
      %s194 = smul.addr %s193, 8
      %s195 = scalar_lea.vmem %s3, %s194
      %p197 = scmp.eq.s32.totalorder %s16, 0
      // Predicated region
      $region33: #{expert_controller_film.3} parent=31 // pred_check
        %p198 = pneg %p197
      $region34: #{expert_controller_film.3} parent=31 // pred_check_branch
        %200 = sbr.rel (%p198) target = $region36
      $region35: #{expert_controller_film.3} parent=31 // pred_region
        %201 = vst [vmem:[%s4] sm:$0x3] 0.0
      $region36: #{expert_controller_film.3} parent=31 // pred_fallthru
        _
      %v202 = vld [vmem:[%s190] sm:$0xff]
      %v203 = vld [vmem:[%s190 + $0x8] sm:$0xff]
      %v204 = vld [vmem:[%s190 + $0x18] sm:$0xff]
      %v205 = vld [vmem:[%s190 + $0x20] sm:$0xff]
      %v206 = vld [vmem:[%s190 + $0x30] sm:$0xff]
      %v207 = vld [vmem:[%s190 + $0x38] sm:$0xff]
      %v208 = vld [vmem:[%s190 + $0x48] sm:$0xff]
      %v209 = vld [vmem:[%s190 + $0x50] sm:$0xff]
      %v210 = vld [vmem:[%s190 + $0x60] sm:$0xff]
      %v211 = vld [vmem:[%s190 + $0x68] sm:$0xff]
      %v212 = vld [vmem:[%s190 + $0x78] sm:$0xff]
      %v213 = vld [vmem:[%s190 + $0x80] sm:$0xff]
      %v214 = vld [vmem:[%s190 + $0x90] sm:$0xff]
      %v215 = vld [vmem:[%s190 + $0x98] sm:$0xff]
      %v216 = vld [vmem:[%s190 + $0xa8] sm:$0xff]
      %v217 = vld [vmem:[%s190 + $0xb0] sm:$0xff]
      %v218 = vld [vmem:[%s190 + $0xc0] sm:$0xff]
      %v219 = vld [vmem:[%s190 + $0xc8] sm:$0xff]
      %v220 = vld [vmem:[%s190 + $0xd8] sm:$0xff]
      %v221 = vld [vmem:[%s190 + $0xe0] sm:$0xff]
      %v222 = vld [vmem:[%s190 + $0xf0] sm:$0xff]
      %v223 = vld [vmem:[%s190 + $0xf8] sm:$0xff]
      %v224 = vld [vmem:[%s190 + $0x108] sm:$0xff]
      %v225 = vld [vmem:[%s190 + $0x110] sm:$0xff]
      %v226 = vld [vmem:[%s190 + $0x120] sm:$0xff]
      %v227 = vld [vmem:[%s190 + $0x128] sm:$0xff]
      %v228 = vld [vmem:[%s190 + $0x138] sm:$0xff]
      %v229 = vld [vmem:[%s190 + $0x140] sm:$0xff]
      %v230 = vld [vmem:[%s190 + $0x150] sm:$0xff]
      %v231 = vld [vmem:[%s190 + $0x158] sm:$0xff]
      %v232 = vld [vmem:[%s190 + $0x168] sm:$0xff]
      %v233 = vld [vmem:[%s190 + $0x170] sm:$0xff]
      %v234 = vpack.c.bf16 %v203, %v202
      %v235 = vpack.c.bf16 %v205, %v204
      %v236 = vpack.c.bf16 %v207, %v206
      %v237 = vpack.c.bf16 %v209, %v208
      %v238 = vpack.c.bf16 %v211, %v210
      %v239 = vpack.c.bf16 %v213, %v212
      %v240 = vpack.c.bf16 %v215, %v214
      %v241 = vpack.c.bf16 %v217, %v216
      %v242 = vpack.c.bf16 %v219, %v218
      %v243 = vpack.c.bf16 %v221, %v220
      %v244 = vpack.c.bf16 %v223, %v222
      %v245 = vpack.c.bf16 %v225, %v224
      %v246 = vpack.c.bf16 %v227, %v226
      %v247 = vpack.c.bf16 %v229, %v228
      %v248 = vpack.c.bf16 %v231, %v230
      %v249 = vpack.c.bf16 %v233, %v232
      %v250 = vld [vmem:[%s1] sm:$0xf]
      %v251 = vld [vmem:[%s1 + $0x4] sm:$0xf]
      %v252 = vld [vmem:[%s1 + $0x8] sm:$0xf]
      %v253 = vld [vmem:[%s1 + $0xc] sm:$0xf]
      %v254 = vld [vmem:[%s1 + $0x10] sm:$0xf]
      %v255 = vld [vmem:[%s1 + $0x14] sm:$0xf]
      %v256 = vld [vmem:[%s1 + $0x18] sm:$0xf]
      %v257 = vld [vmem:[%s1 + $0x1c] sm:$0xf]
      %v258 = vld [vmem:[%s1 + $0x20] sm:$0xf]
      %v259 = vld [vmem:[%s1 + $0x24] sm:$0xf]
      %v260 = vld [vmem:[%s1 + $0x28] sm:$0xf]
      %v261 = vld [vmem:[%s1 + $0x2c] sm:$0xf]
      %v262 = vld [vmem:[%s1 + $0x30] sm:$0xf]
      %v263 = vld [vmem:[%s1 + $0x34] sm:$0xf]
      %v264 = vld [vmem:[%s1 + $0x38] sm:$0xf]
      %v265 = vld [vmem:[%s1 + $0x3c] sm:$0xf]
      %v266 = vld [vmem:[%s190 + $0x1] sm:$0xff]
      %v267 = vld [vmem:[%s190 + $0x9] sm:$0xff]
      %v268 = vld [vmem:[%s190 + $0x19] sm:$0xff]
      %v269 = vld [vmem:[%s190 + $0x21] sm:$0xff]
      %v270 = vld [vmem:[%s190 + $0x31] sm:$0xff]
      %v271 = vld [vmem:[%s190 + $0x39] sm:$0xff]
      %v272 = vld [vmem:[%s190 + $0x49] sm:$0xff]
      %v273 = vld [vmem:[%s190 + $0x51] sm:$0xff]
      %v274 = vld [vmem:[%s190 + $0x61] sm:$0xff]
      %v275 = vld [vmem:[%s190 + $0x69] sm:$0xff]
      %v276 = vld [vmem:[%s190 + $0x79] sm:$0xff]
      %v277 = vld [vmem:[%s190 + $0x81] sm:$0xff]
      %v278 = vld [vmem:[%s190 + $0x91] sm:$0xff]
      %v279 = vld [vmem:[%s190 + $0x99] sm:$0xff]
      %v280 = vld [vmem:[%s190 + $0xa9] sm:$0xff]
      %v281 = vld [vmem:[%s190 + $0xb1] sm:$0xff]
      %v282 = vld [vmem:[%s190 + $0xc1] sm:$0xff]
      %v283 = vld [vmem:[%s190 + $0xc9] sm:$0xff]
      %v284 = vld [vmem:[%s190 + $0xd9] sm:$0xff]
      %v285 = vld [vmem:[%s190 + $0xe1] sm:$0xff]
      %v286 = vld [vmem:[%s190 + $0xf1] sm:$0xff]
      %v287 = vld [vmem:[%s190 + $0xf9] sm:$0xff]
      %v288 = vld [vmem:[%s190 + $0x109] sm:$0xff]
      %v289 = vld [vmem:[%s190 + $0x111] sm:$0xff]
      %v290 = vld [vmem:[%s190 + $0x121] sm:$0xff]
      %v291 = vld [vmem:[%s190 + $0x129] sm:$0xff]
      %v292 = vld [vmem:[%s190 + $0x139] sm:$0xff]
      %v293 = vld [vmem:[%s190 + $0x141] sm:$0xff]
      %v294 = vld [vmem:[%s190 + $0x151] sm:$0xff]
      %v295 = vld [vmem:[%s190 + $0x159] sm:$0xff]
      %v296 = vld [vmem:[%s190 + $0x169] sm:$0xff]
      %v297 = vld [vmem:[%s190 + $0x171] sm:$0xff]
      %v298 = vpack.c.bf16 %v267, %v266
      %v299 = vpack.c.bf16 %v269, %v268
      %v300 = vpack.c.bf16 %v271, %v270
      %v301 = vpack.c.bf16 %v273, %v272
      %v302 = vpack.c.bf16 %v275, %v274
      %v303 = vpack.c.bf16 %v277, %v276
      %v304 = vpack.c.bf16 %v279, %v278
      %v305 = vpack.c.bf16 %v281, %v280
      %v306 = vpack.c.bf16 %v283, %v282
      %v307 = vpack.c.bf16 %v285, %v284
      %v308 = vpack.c.bf16 %v287, %v286
      %v309 = vpack.c.bf16 %v289, %v288
      %v310 = vpack.c.bf16 %v291, %v290
      %v311 = vpack.c.bf16 %v293, %v292
      %v312 = vpack.c.bf16 %v295, %v294
      %v313 = vpack.c.bf16 %v297, %v296
      %s314 = scalar_lea.vmem %s1, 64
      %v315 = vld [vmem:[%s314] sm:$0xf]
      %v316 = vld [vmem:[%s314 + $0x4] sm:$0xf]
      %v317 = vld [vmem:[%s314 + $0x8] sm:$0xf]
      %v318 = vld [vmem:[%s314 + $0xc] sm:$0xf]
      %v319 = vld [vmem:[%s314 + $0x10] sm:$0xf]
      %v320 = vld [vmem:[%s314 + $0x14] sm:$0xf]
      %v321 = vld [vmem:[%s314 + $0x18] sm:$0xf]
      %v322 = vld [vmem:[%s314 + $0x1c] sm:$0xf]
      %v323 = vld [vmem:[%s314 + $0x20] sm:$0xf]
      %v324 = vld [vmem:[%s314 + $0x24] sm:$0xf]
      %v325 = vld [vmem:[%s314 + $0x28] sm:$0xf]
      %v326 = vld [vmem:[%s314 + $0x2c] sm:$0xf]
      %v327 = vld [vmem:[%s314 + $0x30] sm:$0xf]
      %v328 = vld [vmem:[%s314 + $0x34] sm:$0xf]
      %v329 = vld [vmem:[%s314 + $0x38] sm:$0xf]
      %v330 = vld [vmem:[%s314 + $0x3c] sm:$0xf]
      %v347 = vunpack.c.l.b16 %v315
      %v348 = vunpack.c.l.b16 %v316
      %v349 = vunpack.c.l.b16 %v317
      %v350 = vunpack.c.l.b16 %v318
      %v351 = vunpack.c.l.b16 %v319
      %v352 = vunpack.c.l.b16 %v320
      %v353 = vunpack.c.l.b16 %v321
      %v354 = vunpack.c.l.b16 %v322
      %v355 = vunpack.c.l.b16 %v323
      %v356 = vunpack.c.l.b16 %v324
      %v357 = vunpack.c.l.b16 %v325
      %v358 = vunpack.c.l.b16 %v326
      %v359 = vunpack.c.l.b16 %v327
      %v360 = vunpack.c.l.b16 %v328
      %v361 = vunpack.c.l.b16 %v329
      %v362 = vunpack.c.l.b16 %v330
      %v363 = vpack.c.b16 %v348, %v347
      %v364 = vpack.c.b16 %v350, %v349
      %v365 = vpack.c.b16 %v352, %v351
      %v366 = vpack.c.b16 %v354, %v353
      %v367 = vpack.c.b16 %v356, %v355
      %v368 = vpack.c.b16 %v358, %v357
      %v369 = vpack.c.b16 %v360, %v359
      %v370 = vpack.c.b16 %v362, %v361
      %379 = vmatprep.subr.bf16.mxu0 0
      %380 = vmatpush1.bf16.msra.mxu0 %v370
      %381 = vmatprep.subr.bf16.mxu0 0
      %382 = vmatpush1.bf16.msra.mxu0 %v369
      %383 = vmatprep.subr.bf16.mxu0 0
      %384 = vmatpush1.bf16.msra.mxu0 %v368
      %385 = vmatprep.subr.bf16.mxu0 0
      %386 = vmatpush1.bf16.msra.mxu0 %v367
      %387 = vmatprep.subr.bf16.mxu0 0
      %388 = vmatpush1.bf16.msra.mxu0 %v366
      %389 = vmatprep.subr.bf16.mxu0 0
      %390 = vmatpush1.bf16.msra.mxu0 %v365
      %391 = vmatprep.subr.bf16.mxu0 0
      %392 = vmatpush1.bf16.msra.mxu0 %v364
      %393 = vmatprep.subr.bf16.mxu0 0
      %394 = vmatpush1.bf16.msra.mxu0 %v363
      %395 = vmatprep.subr.bf16.mxu0 0
      %396 = vmatpush2.bf16.msra.mxu0 0
      %397 = vmatprep.subr.bf16.mxu0 0
      %398 = vmatpush2.bf16.msra.mxu0 0
      %399 = vmatprep.subr.bf16.mxu0 0
      %400 = vmatpush2.bf16.msra.mxu0 0
      %401 = vmatprep.subr.bf16.mxu0 0
      %402 = vmatpush2.bf16.msra.mxu0 0
      %403 = vmatprep.subr.bf16.mxu0 0
      %404 = vmatpush2.bf16.msra.mxu0 0
      %405 = vmatprep.subr.bf16.mxu0 0
      %406 = vmatpush2.bf16.msra.mxu0 0
      %407 = vmatprep.subr.bf16.mxu0 0
      %408 = vmatpush2.bf16.msra.mxu0 0
      %409 = vmatprep.subr.bf16.mxu0 0
      %410 = vmatpush2.bf16.msra.mxu0 0
      %411 = vmatprep.mubr.bf16.mxu0 0
      %412 = vmatmul.mubr.bf16.gmra.mxu0 %v298
      %v413 = vpop.f32.mrf.mxu0
      %v414 = vadd.f32 0.0, %v413
      %v415 = vpop.f32.mrf.mxu0
      %v416 = vpop.f32.mrf.mxu0
      %v417 = vadd.f32 0.0, %v416
      %v418 = vpop.f32.mrf.mxu0
      %419 = vmatprep.mubr.bf16.mxu0 0
      %420 = vmatmul.mubr.bf16.gmra.mxu0 %v299
      %v421 = vpop.f32.mrf.mxu0
      %v422 = vadd.f32 0.0, %v421
      %v423 = vpop.f32.mrf.mxu0
      %v424 = vpop.f32.mrf.mxu0
      %v425 = vadd.f32 0.0, %v424
      %v426 = vpop.f32.mrf.mxu0
      %427 = vmatprep.mubr.bf16.mxu0 0
      %428 = vmatmul.mubr.bf16.gmra.mxu0 %v300
      %v429 = vpop.f32.mrf.mxu0
      %v430 = vadd.f32 0.0, %v429
      %v431 = vpop.f32.mrf.mxu0
      %v432 = vpop.f32.mrf.mxu0
      %v433 = vadd.f32 0.0, %v432
      %v434 = vpop.f32.mrf.mxu0
      %435 = vmatprep.mubr.bf16.mxu0 0
      %436 = vmatmul.mubr.bf16.gmra.mxu0 %v301
      %v437 = vpop.f32.mrf.mxu0
      %v438 = vadd.f32 0.0, %v437
      %v439 = vpop.f32.mrf.mxu0
      %v440 = vpop.f32.mrf.mxu0
      %v441 = vadd.f32 0.0, %v440
      %v442 = vpop.f32.mrf.mxu0
      %443 = vmatprep.mubr.bf16.mxu0 0
      %444 = vmatmul.mubr.bf16.gmra.mxu0 %v302
      %v445 = vpop.f32.mrf.mxu0
      %v446 = vadd.f32 0.0, %v445
      %v447 = vpop.f32.mrf.mxu0
      %v448 = vpop.f32.mrf.mxu0
      %v449 = vadd.f32 0.0, %v448
      %v450 = vpop.f32.mrf.mxu0
      %451 = vmatprep.mubr.bf16.mxu0 0
      %452 = vmatmul.mubr.bf16.gmra.mxu0 %v303
      %v453 = vpop.f32.mrf.mxu0
      %v454 = vadd.f32 0.0, %v453
      %v455 = vpop.f32.mrf.mxu0
      %v456 = vpop.f32.mrf.mxu0
      %v457 = vadd.f32 0.0, %v456
      %v458 = vpop.f32.mrf.mxu0
      %459 = vmatprep.mubr.bf16.mxu0 0
      %460 = vmatmul.mubr.bf16.gmra.mxu0 %v304
      %v461 = vpop.f32.mrf.mxu0
      %v462 = vadd.f32 0.0, %v461
      %v463 = vpop.f32.mrf.mxu0
      %v464 = vpop.f32.mrf.mxu0
      %v465 = vadd.f32 0.0, %v464
      %v466 = vpop.f32.mrf.mxu0
      %467 = vmatprep.mubr.bf16.mxu0 0
      %468 = vmatmul.mubr.bf16.gmra.mxu0 %v305
      %v469 = vpop.f32.mrf.mxu0
      %v470 = vadd.f32 0.0, %v469
      %v471 = vpop.f32.mrf.mxu0
      %v472 = vpop.f32.mrf.mxu0
      %v473 = vadd.f32 0.0, %v472
      %v474 = vpop.f32.mrf.mxu0
      %475 = vmatprep.mubr.bf16.mxu0 0
      %476 = vmatmul.mubr.bf16.gmra.mxu0 %v306
      %v477 = vpop.f32.mrf.mxu0
      %v478 = vadd.f32 0.0, %v477
      %v479 = vpop.f32.mrf.mxu0
      %v480 = vpop.f32.mrf.mxu0
      %v481 = vadd.f32 0.0, %v480
      %v482 = vpop.f32.mrf.mxu0
      %483 = vmatprep.mubr.bf16.mxu0 0
      %484 = vmatmul.mubr.bf16.gmra.mxu0 %v307
      %v485 = vpop.f32.mrf.mxu0
      %v486 = vadd.f32 0.0, %v485
      %v487 = vpop.f32.mrf.mxu0
      %v488 = vpop.f32.mrf.mxu0
      %v489 = vadd.f32 0.0, %v488
      %v490 = vpop.f32.mrf.mxu0
      %491 = vmatprep.mubr.bf16.mxu0 0
      %492 = vmatmul.mubr.bf16.gmra.mxu0 %v308
      %v493 = vpop.f32.mrf.mxu0
      %v494 = vadd.f32 0.0, %v493
      %v495 = vpop.f32.mrf.mxu0
      %v496 = vpop.f32.mrf.mxu0
      %v497 = vadd.f32 0.0, %v496
      %v498 = vpop.f32.mrf.mxu0
      %499 = vmatprep.mubr.bf16.mxu0 0
      %500 = vmatmul.mubr.bf16.gmra.mxu0 %v309
      %v501 = vpop.f32.mrf.mxu0
      %v502 = vadd.f32 0.0, %v501
      %v503 = vpop.f32.mrf.mxu0
      %v504 = vpop.f32.mrf.mxu0
      %v505 = vadd.f32 0.0, %v504
      %v506 = vpop.f32.mrf.mxu0
      %507 = vmatprep.mubr.bf16.mxu0 0
      %508 = vmatmul.mubr.bf16.gmra.mxu0 %v310
      %v509 = vpop.f32.mrf.mxu0
      %v510 = vadd.f32 0.0, %v509
      %v511 = vpop.f32.mrf.mxu0
      %v512 = vpop.f32.mrf.mxu0
      %v513 = vadd.f32 0.0, %v512
      %v514 = vpop.f32.mrf.mxu0
      %515 = vmatprep.mubr.bf16.mxu0 0
      %516 = vmatmul.mubr.bf16.gmra.mxu0 %v311
      %v517 = vpop.f32.mrf.mxu0
      %v518 = vadd.f32 0.0, %v517
      %v519 = vpop.f32.mrf.mxu0
      %v520 = vpop.f32.mrf.mxu0
      %v521 = vadd.f32 0.0, %v520
      %v522 = vpop.f32.mrf.mxu0
      %523 = vmatprep.mubr.bf16.mxu0 0
      %524 = vmatmul.mubr.bf16.gmra.mxu0 %v312
      %v525 = vpop.f32.mrf.mxu0
      %v526 = vadd.f32 0.0, %v525
      %v527 = vpop.f32.mrf.mxu0
      %v528 = vpop.f32.mrf.mxu0
      %v529 = vadd.f32 0.0, %v528
      %v530 = vpop.f32.mrf.mxu0
      %531 = vmatprep.mubr.bf16.mxu0 0
      %532 = vmatmul.mubr.bf16.gmra.mxu0 %v313
      %v533 = vpop.f32.mrf.mxu0
      %v534 = vadd.f32 0.0, %v533
      %v535 = vpop.f32.mrf.mxu0
      %v536 = vpop.f32.mrf.mxu0
      %v537 = vadd.f32 0.0, %v536
      %v538 = vpop.f32.mrf.mxu0
      %539 = vdwg.mxu0
      %v556 = vunpack.c.l.b16 %v250
      %v557 = vunpack.c.l.b16 %v251
      %v558 = vunpack.c.l.b16 %v252
      %v559 = vunpack.c.l.b16 %v253
      %v560 = vunpack.c.l.b16 %v254
      %v561 = vunpack.c.l.b16 %v255
      %v562 = vunpack.c.l.b16 %v256
      %v563 = vunpack.c.l.b16 %v257
      %v564 = vunpack.c.l.b16 %v258
      %v565 = vunpack.c.l.b16 %v259
      %v566 = vunpack.c.l.b16 %v260
      %v567 = vunpack.c.l.b16 %v261
      %v568 = vunpack.c.l.b16 %v262
      %v569 = vunpack.c.l.b16 %v263
      %v570 = vunpack.c.l.b16 %v264
      %v571 = vunpack.c.l.b16 %v265
      %v572 = vpack.c.b16 %v557, %v556
      %v573 = vpack.c.b16 %v559, %v558
      %v574 = vpack.c.b16 %v561, %v560
      %v575 = vpack.c.b16 %v563, %v562
      %v576 = vpack.c.b16 %v565, %v564
      %v577 = vpack.c.b16 %v567, %v566
      %v578 = vpack.c.b16 %v569, %v568
      %v579 = vpack.c.b16 %v571, %v570
      %588 = vmatprep.subr.bf16.mxu0 0
      %589 = vmatpush1.bf16.msra.mxu0 %v579
      %590 = vmatprep.subr.bf16.mxu0 0
      %591 = vmatpush1.bf16.msra.mxu0 %v578
      %592 = vmatprep.subr.bf16.mxu0 0
      %593 = vmatpush1.bf16.msra.mxu0 %v577
      %594 = vmatprep.subr.bf16.mxu0 0
      %595 = vmatpush1.bf16.msra.mxu0 %v576
      %596 = vmatprep.subr.bf16.mxu0 0
      %597 = vmatpush1.bf16.msra.mxu0 %v575
      %598 = vmatprep.subr.bf16.mxu0 0
      %599 = vmatpush1.bf16.msra.mxu0 %v574
      %600 = vmatprep.subr.bf16.mxu0 0
      %601 = vmatpush1.bf16.msra.mxu0 %v573
      %602 = vmatprep.subr.bf16.mxu0 0
      %603 = vmatpush1.bf16.msra.mxu0 %v572
      %604 = vmatprep.subr.bf16.mxu0 0
      %605 = vmatpush2.bf16.msra.mxu0 0
      %606 = vmatprep.subr.bf16.mxu0 0
      %607 = vmatpush2.bf16.msra.mxu0 0
      %608 = vmatprep.subr.bf16.mxu0 0
      %609 = vmatpush2.bf16.msra.mxu0 0
      %610 = vmatprep.subr.bf16.mxu0 0
      %611 = vmatpush2.bf16.msra.mxu0 0
      %612 = vmatprep.subr.bf16.mxu0 0
      %613 = vmatpush2.bf16.msra.mxu0 0
      %614 = vmatprep.subr.bf16.mxu0 0
      %615 = vmatpush2.bf16.msra.mxu0 0
      %616 = vmatprep.subr.bf16.mxu0 0
      %617 = vmatpush2.bf16.msra.mxu0 0
      %618 = vmatprep.subr.bf16.mxu0 0
      %619 = vmatpush2.bf16.msra.mxu0 0
      %620 = vmatprep.mubr.bf16.mxu0 0
      %621 = vmatmul.mubr.bf16.gmra.mxu0 %v234
      %v622 = vpop.f32.mrf.mxu0
      %v623 = vadd.f32 %v414, %v622
      %v624 = vpop.f32.mrf.mxu0
      %v625 = vpop.f32.mrf.mxu0
      %v626 = vadd.f32 %v417, %v625
      %v627 = vpop.f32.mrf.mxu0
      %628 = vmatprep.mubr.bf16.mxu0 0
      %629 = vmatmul.mubr.bf16.gmra.mxu0 %v235
      %v630 = vpop.f32.mrf.mxu0
      %v631 = vadd.f32 %v422, %v630
      %v632 = vpop.f32.mrf.mxu0
      %v633 = vpop.f32.mrf.mxu0
      %v634 = vadd.f32 %v425, %v633
      %v635 = vpop.f32.mrf.mxu0
      %636 = vmatprep.mubr.bf16.mxu0 0
      %637 = vmatmul.mubr.bf16.gmra.mxu0 %v236
      %v638 = vpop.f32.mrf.mxu0
      %v639 = vadd.f32 %v430, %v638
      %v640 = vpop.f32.mrf.mxu0
      %v641 = vpop.f32.mrf.mxu0
      %v642 = vadd.f32 %v433, %v641
      %v643 = vpop.f32.mrf.mxu0
      %644 = vmatprep.mubr.bf16.mxu0 0
      %645 = vmatmul.mubr.bf16.gmra.mxu0 %v237
      %v646 = vpop.f32.mrf.mxu0
      %v647 = vadd.f32 %v438, %v646
      %v648 = vpop.f32.mrf.mxu0
      %v649 = vpop.f32.mrf.mxu0
      %v650 = vadd.f32 %v441, %v649
      %v651 = vpop.f32.mrf.mxu0
      %652 = vmatprep.mubr.bf16.mxu0 0
      %653 = vmatmul.mubr.bf16.gmra.mxu0 %v238
      %v654 = vpop.f32.mrf.mxu0
      %v655 = vadd.f32 %v446, %v654
      %v656 = vpop.f32.mrf.mxu0
      %v657 = vpop.f32.mrf.mxu0
      %v658 = vadd.f32 %v449, %v657
      %v659 = vpop.f32.mrf.mxu0
      %660 = vmatprep.mubr.bf16.mxu0 0
      %661 = vmatmul.mubr.bf16.gmra.mxu0 %v239
      %v662 = vpop.f32.mrf.mxu0
      %v663 = vadd.f32 %v454, %v662
      %v664 = vpop.f32.mrf.mxu0
      %v665 = vpop.f32.mrf.mxu0
      %v666 = vadd.f32 %v457, %v665
      %v667 = vpop.f32.mrf.mxu0
      %668 = vmatprep.mubr.bf16.mxu0 0
      %669 = vmatmul.mubr.bf16.gmra.mxu0 %v240
      %v670 = vpop.f32.mrf.mxu0
      %v671 = vadd.f32 %v462, %v670
      %v672 = vpop.f32.mrf.mxu0
      %v673 = vpop.f32.mrf.mxu0
      %v674 = vadd.f32 %v465, %v673
      %v675 = vpop.f32.mrf.mxu0
      %676 = vmatprep.mubr.bf16.mxu0 0
      %677 = vmatmul.mubr.bf16.gmra.mxu0 %v241
      %v678 = vpop.f32.mrf.mxu0
      %v679 = vadd.f32 %v470, %v678
      %v680 = vpop.f32.mrf.mxu0
      %v681 = vpop.f32.mrf.mxu0
      %v682 = vadd.f32 %v473, %v681
      %v683 = vpop.f32.mrf.mxu0
      %684 = vmatprep.mubr.bf16.mxu0 0
      %685 = vmatmul.mubr.bf16.gmra.mxu0 %v242
      %v686 = vpop.f32.mrf.mxu0
      %v687 = vadd.f32 %v478, %v686
      %v688 = vpop.f32.mrf.mxu0
      %v689 = vpop.f32.mrf.mxu0
      %v690 = vadd.f32 %v481, %v689
      %v691 = vpop.f32.mrf.mxu0
      %692 = vmatprep.mubr.bf16.mxu0 0
      %693 = vmatmul.mubr.bf16.gmra.mxu0 %v243
      %v694 = vpop.f32.mrf.mxu0
      %v695 = vadd.f32 %v486, %v694
      %v696 = vpop.f32.mrf.mxu0
      %v697 = vpop.f32.mrf.mxu0
      %v698 = vadd.f32 %v489, %v697
      %v699 = vpop.f32.mrf.mxu0
      %700 = vmatprep.mubr.bf16.mxu0 0
      %701 = vmatmul.mubr.bf16.gmra.mxu0 %v244
      %v702 = vpop.f32.mrf.mxu0
      %v703 = vadd.f32 %v494, %v702
      %v704 = vpop.f32.mrf.mxu0
      %v705 = vpop.f32.mrf.mxu0
      %v706 = vadd.f32 %v497, %v705
      %v707 = vpop.f32.mrf.mxu0
      %708 = vmatprep.mubr.bf16.mxu0 0
      %709 = vmatmul.mubr.bf16.gmra.mxu0 %v245
      %v710 = vpop.f32.mrf.mxu0
      %v711 = vadd.f32 %v502, %v710
      %v712 = vpop.f32.mrf.mxu0
      %v713 = vpop.f32.mrf.mxu0
      %v714 = vadd.f32 %v505, %v713
      %v715 = vpop.f32.mrf.mxu0
      %716 = vmatprep.mubr.bf16.mxu0 0
      %717 = vmatmul.mubr.bf16.gmra.mxu0 %v246
      %v718 = vpop.f32.mrf.mxu0
      %v719 = vadd.f32 %v510, %v718
      %v720 = vpop.f32.mrf.mxu0
      %v721 = vpop.f32.mrf.mxu0
      %v722 = vadd.f32 %v513, %v721
      %v723 = vpop.f32.mrf.mxu0
      %724 = vmatprep.mubr.bf16.mxu0 0
      %725 = vmatmul.mubr.bf16.gmra.mxu0 %v247
      %v726 = vpop.f32.mrf.mxu0
      %v727 = vadd.f32 %v518, %v726
      %v728 = vpop.f32.mrf.mxu0
      %v729 = vpop.f32.mrf.mxu0
      %v730 = vadd.f32 %v521, %v729
      %v731 = vpop.f32.mrf.mxu0
      %732 = vmatprep.mubr.bf16.mxu0 0
      %733 = vmatmul.mubr.bf16.gmra.mxu0 %v248
      %v734 = vpop.f32.mrf.mxu0
      %v735 = vadd.f32 %v526, %v734
      %v736 = vpop.f32.mrf.mxu0
      %v737 = vpop.f32.mrf.mxu0
      %v738 = vadd.f32 %v529, %v737
      %v739 = vpop.f32.mrf.mxu0
      %740 = vmatprep.mubr.bf16.mxu0 0
      %741 = vmatmul.mubr.bf16.gmra.mxu0 %v249
      %v742 = vpop.f32.mrf.mxu0
      %v743 = vadd.f32 %v534, %v742
      %v744 = vpop.f32.mrf.mxu0
      %v745 = vpop.f32.mrf.mxu0
      %v746 = vadd.f32 %v537, %v745
      %v747 = vpop.f32.mrf.mxu0
      %748 = vdwg.mxu0
      %v749 = vld [vmem:[%s190 + $0x2] sm:$0xff]
      %v750 = vld [vmem:[%s190 + $0xa] sm:$0xff]
      %v751 = vld [vmem:[%s190 + $0x1a] sm:$0xff]
      %v752 = vld [vmem:[%s190 + $0x22] sm:$0xff]
      %v753 = vld [vmem:[%s190 + $0x32] sm:$0xff]
      %v754 = vld [vmem:[%s190 + $0x3a] sm:$0xff]
      %v755 = vld [vmem:[%s190 + $0x4a] sm:$0xff]
      %v756 = vld [vmem:[%s190 + $0x52] sm:$0xff]
      %v757 = vld [vmem:[%s190 + $0x62] sm:$0xff]
      %v758 = vld [vmem:[%s190 + $0x6a] sm:$0xff]
      %v759 = vld [vmem:[%s190 + $0x7a] sm:$0xff]
      %v760 = vld [vmem:[%s190 + $0x82] sm:$0xff]
      %v761 = vld [vmem:[%s190 + $0x92] sm:$0xff]
      %v762 = vld [vmem:[%s190 + $0x9a] sm:$0xff]
      %v763 = vld [vmem:[%s190 + $0xaa] sm:$0xff]
      %v764 = vld [vmem:[%s190 + $0xb2] sm:$0xff]
      %v765 = vld [vmem:[%s190 + $0xc2] sm:$0xff]
      %v766 = vld [vmem:[%s190 + $0xca] sm:$0xff]
      %v767 = vld [vmem:[%s190 + $0xda] sm:$0xff]
      %v768 = vld [vmem:[%s190 + $0xe2] sm:$0xff]
      %v769 = vld [vmem:[%s190 + $0xf2] sm:$0xff]
      %v770 = vld [vmem:[%s190 + $0xfa] sm:$0xff]
      %v771 = vld [vmem:[%s190 + $0x10a] sm:$0xff]
      %v772 = vld [vmem:[%s190 + $0x112] sm:$0xff]
      %v773 = vld [vmem:[%s190 + $0x122] sm:$0xff]
      %v774 = vld [vmem:[%s190 + $0x12a] sm:$0xff]
      %v775 = vld [vmem:[%s190 + $0x13a] sm:$0xff]
      %v776 = vld [vmem:[%s190 + $0x142] sm:$0xff]
      %v777 = vld [vmem:[%s190 + $0x152] sm:$0xff]
      %v778 = vld [vmem:[%s190 + $0x15a] sm:$0xff]
      %v779 = vld [vmem:[%s190 + $0x16a] sm:$0xff]
      %v780 = vld [vmem:[%s190 + $0x172] sm:$0xff]
      %v781 = vpack.c.bf16 %v750, %v749
      %v782 = vpack.c.bf16 %v752, %v751
      %v783 = vpack.c.bf16 %v754, %v753
      %v784 = vpack.c.bf16 %v756, %v755
      %v785 = vpack.c.bf16 %v758, %v757
      %v786 = vpack.c.bf16 %v760, %v759
      %v787 = vpack.c.bf16 %v762, %v761
      %v788 = vpack.c.bf16 %v764, %v763
      %v789 = vpack.c.bf16 %v766, %v765
      %v790 = vpack.c.bf16 %v768, %v767
      %v791 = vpack.c.bf16 %v770, %v769
      %v792 = vpack.c.bf16 %v772, %v771
      %v793 = vpack.c.bf16 %v774, %v773
      %v794 = vpack.c.bf16 %v776, %v775
      %v795 = vpack.c.bf16 %v778, %v777
      %v796 = vpack.c.bf16 %v780, %v779
      %s797 = scalar_lea.vmem %s1, 128
      %v798 = vld [vmem:[%s797] sm:$0xf]
      %v799 = vld [vmem:[%s797 + $0x4] sm:$0xf]
      %v800 = vld [vmem:[%s797 + $0x8] sm:$0xf]
      %v801 = vld [vmem:[%s797 + $0xc] sm:$0xf]
      %v802 = vld [vmem:[%s797 + $0x10] sm:$0xf]
      %v803 = vld [vmem:[%s797 + $0x14] sm:$0xf]
      %v804 = vld [vmem:[%s797 + $0x18] sm:$0xf]
      %v805 = vld [vmem:[%s797 + $0x1c] sm:$0xf]
      %v806 = vld [vmem:[%s797 + $0x20] sm:$0xf]
      %v807 = vld [vmem:[%s797 + $0x24] sm:$0xf]
      %v808 = vld [vmem:[%s797 + $0x28] sm:$0xf]
      %v809 = vld [vmem:[%s797 + $0x2c] sm:$0xf]
      %v810 = vld [vmem:[%s797 + $0x30] sm:$0xf]
      %v811 = vld [vmem:[%s797 + $0x34] sm:$0xf]
      %v812 = vld [vmem:[%s797 + $0x38] sm:$0xf]
      %v813 = vld [vmem:[%s797 + $0x3c] sm:$0xf]
      %v830 = vunpack.c.l.b16 %v798
      %v831 = vunpack.c.l.b16 %v799
      %v832 = vunpack.c.l.b16 %v800
      %v833 = vunpack.c.l.b16 %v801
      %v834 = vunpack.c.l.b16 %v802
      %v835 = vunpack.c.l.b16 %v803
      %v836 = vunpack.c.l.b16 %v804
      %v837 = vunpack.c.l.b16 %v805
      %v838 = vunpack.c.l.b16 %v806
      %v839 = vunpack.c.l.b16 %v807
      %v840 = vunpack.c.l.b16 %v808
      %v841 = vunpack.c.l.b16 %v809
      %v842 = vunpack.c.l.b16 %v810
      %v843 = vunpack.c.l.b16 %v811
      %v844 = vunpack.c.l.b16 %v812
      %v845 = vunpack.c.l.b16 %v813
      %v846 = vpack.c.b16 %v831, %v830
      %v847 = vpack.c.b16 %v833, %v832
      %v848 = vpack.c.b16 %v835, %v834
      %v849 = vpack.c.b16 %v837, %v836
      %v850 = vpack.c.b16 %v839, %v838
      %v851 = vpack.c.b16 %v841, %v840
      %v852 = vpack.c.b16 %v843, %v842
      %v853 = vpack.c.b16 %v845, %v844
      %862 = vmatprep.subr.bf16.mxu0 0
      %863 = vmatpush1.bf16.msra.mxu0 %v853
      %864 = vmatprep.subr.bf16.mxu0 0
      %865 = vmatpush1.bf16.msra.mxu0 %v852
      %866 = vmatprep.subr.bf16.mxu0 0
      %867 = vmatpush1.bf16.msra.mxu0 %v851
      %868 = vmatprep.subr.bf16.mxu0 0
      %869 = vmatpush1.bf16.msra.mxu0 %v850
      %870 = vmatprep.subr.bf16.mxu0 0
      %871 = vmatpush1.bf16.msra.mxu0 %v849
      %872 = vmatprep.subr.bf16.mxu0 0
      %873 = vmatpush1.bf16.msra.mxu0 %v848
      %874 = vmatprep.subr.bf16.mxu0 0
      %875 = vmatpush1.bf16.msra.mxu0 %v847
      %876 = vmatprep.subr.bf16.mxu0 0
      %877 = vmatpush1.bf16.msra.mxu0 %v846
      %878 = vmatprep.subr.bf16.mxu0 0
      %879 = vmatpush2.bf16.msra.mxu0 0
      %880 = vmatprep.subr.bf16.mxu0 0
      %881 = vmatpush2.bf16.msra.mxu0 0
      %882 = vmatprep.subr.bf16.mxu0 0
      %883 = vmatpush2.bf16.msra.mxu0 0
      %884 = vmatprep.subr.bf16.mxu0 0
      %885 = vmatpush2.bf16.msra.mxu0 0
      %886 = vmatprep.subr.bf16.mxu0 0
      %887 = vmatpush2.bf16.msra.mxu0 0
      %888 = vmatprep.subr.bf16.mxu0 0
      %889 = vmatpush2.bf16.msra.mxu0 0
      %890 = vmatprep.subr.bf16.mxu0 0
      %891 = vmatpush2.bf16.msra.mxu0 0
      %892 = vmatprep.subr.bf16.mxu0 0
      %893 = vmatpush2.bf16.msra.mxu0 0
      %894 = vmatprep.mubr.bf16.mxu0 0
      %895 = vmatmul.mubr.bf16.gmra.mxu0 %v781
      %v896 = vpop.f32.mrf.mxu0
      %v897 = vadd.f32 0.0, %v896
      %v898 = vpop.f32.mrf.mxu0
      %v899 = vpop.f32.mrf.mxu0
      %v900 = vadd.f32 0.0, %v899
      %v901 = vpop.f32.mrf.mxu0
      %902 = vmatprep.mubr.bf16.mxu0 0
      %903 = vmatmul.mubr.bf16.gmra.mxu0 %v782
      %v904 = vpop.f32.mrf.mxu0
      %v905 = vadd.f32 0.0, %v904
      %v906 = vpop.f32.mrf.mxu0
      %v907 = vpop.f32.mrf.mxu0
      %v908 = vadd.f32 0.0, %v907
      %v909 = vpop.f32.mrf.mxu0
      %910 = vmatprep.mubr.bf16.mxu0 0
      %911 = vmatmul.mubr.bf16.gmra.mxu0 %v783
      %v912 = vpop.f32.mrf.mxu0
      %v913 = vadd.f32 0.0, %v912
      %v914 = vpop.f32.mrf.mxu0
      %v915 = vpop.f32.mrf.mxu0
      %v916 = vadd.f32 0.0, %v915
      %v917 = vpop.f32.mrf.mxu0
      %918 = vmatprep.mubr.bf16.mxu0 0
      %919 = vmatmul.mubr.bf16.gmra.mxu0 %v784
      %v920 = vpop.f32.mrf.mxu0
      %v921 = vadd.f32 0.0, %v920
      %v922 = vpop.f32.mrf.mxu0
      %v923 = vpop.f32.mrf.mxu0
      %v924 = vadd.f32 0.0, %v923
      %v925 = vpop.f32.mrf.mxu0
      %926 = vmatprep.mubr.bf16.mxu0 0
      %927 = vmatmul.mubr.bf16.gmra.mxu0 %v785
      %v928 = vpop.f32.mrf.mxu0
      %v929 = vadd.f32 0.0, %v928
      %v930 = vpop.f32.mrf.mxu0
      %v931 = vpop.f32.mrf.mxu0
      %v932 = vadd.f32 0.0, %v931
      %v933 = vpop.f32.mrf.mxu0
      %934 = vmatprep.mubr.bf16.mxu0 0
      %935 = vmatmul.mubr.bf16.gmra.mxu0 %v786
      %v936 = vpop.f32.mrf.mxu0
      %v937 = vadd.f32 0.0, %v936
      %v938 = vpop.f32.mrf.mxu0
      %v939 = vpop.f32.mrf.mxu0
      %v940 = vadd.f32 0.0, %v939
      %v941 = vpop.f32.mrf.mxu0
      %942 = vmatprep.mubr.bf16.mxu0 0
      %943 = vmatmul.mubr.bf16.gmra.mxu0 %v787
      %v944 = vpop.f32.mrf.mxu0
      %v945 = vadd.f32 0.0, %v944
      %v946 = vpop.f32.mrf.mxu0
      %v947 = vpop.f32.mrf.mxu0
      %v948 = vadd.f32 0.0, %v947
      %v949 = vpop.f32.mrf.mxu0
      %950 = vmatprep.mubr.bf16.mxu0 0
      %951 = vmatmul.mubr.bf16.gmra.mxu0 %v788
      %v952 = vpop.f32.mrf.mxu0
      %v953 = vadd.f32 0.0, %v952
      %v954 = vpop.f32.mrf.mxu0
      %v955 = vpop.f32.mrf.mxu0
      %v956 = vadd.f32 0.0, %v955
      %v957 = vpop.f32.mrf.mxu0
      %958 = vmatprep.mubr.bf16.mxu0 0
      %959 = vmatmul.mubr.bf16.gmra.mxu0 %v789
      %v960 = vpop.f32.mrf.mxu0
      %v961 = vadd.f32 0.0, %v960
      %v962 = vpop.f32.mrf.mxu0
      %v963 = vpop.f32.mrf.mxu0
      %v964 = vadd.f32 0.0, %v963
      %v965 = vpop.f32.mrf.mxu0
      %966 = vmatprep.mubr.bf16.mxu0 0
      %967 = vmatmul.mubr.bf16.gmra.mxu0 %v790
      %v968 = vpop.f32.mrf.mxu0
      %v969 = vadd.f32 0.0, %v968
      %v970 = vpop.f32.mrf.mxu0
      %v971 = vpop.f32.mrf.mxu0
      %v972 = vadd.f32 0.0, %v971
      %v973 = vpop.f32.mrf.mxu0
      %974 = vmatprep.mubr.bf16.mxu0 0
      %975 = vmatmul.mubr.bf16.gmra.mxu0 %v791
      %v976 = vpop.f32.mrf.mxu0
      %v977 = vadd.f32 0.0, %v976
      %v978 = vpop.f32.mrf.mxu0
      %v979 = vpop.f32.mrf.mxu0
      %v980 = vadd.f32 0.0, %v979
      %v981 = vpop.f32.mrf.mxu0
      %982 = vmatprep.mubr.bf16.mxu0 0
      %983 = vmatmul.mubr.bf16.gmra.mxu0 %v792
      %v984 = vpop.f32.mrf.mxu0
      %v985 = vadd.f32 0.0, %v984
      %v986 = vpop.f32.mrf.mxu0
      %v987 = vpop.f32.mrf.mxu0
      %v988 = vadd.f32 0.0, %v987
      %v989 = vpop.f32.mrf.mxu0
      %990 = vmatprep.mubr.bf16.mxu0 0
      %991 = vmatmul.mubr.bf16.gmra.mxu0 %v793
      %v992 = vpop.f32.mrf.mxu0
      %v993 = vadd.f32 0.0, %v992
      %v994 = vpop.f32.mrf.mxu0
      %v995 = vpop.f32.mrf.mxu0
      %v996 = vadd.f32 0.0, %v995
      %v997 = vpop.f32.mrf.mxu0
      %998 = vmatprep.mubr.bf16.mxu0 0
      %999 = vmatmul.mubr.bf16.gmra.mxu0 %v794
      %v1000 = vpop.f32.mrf.mxu0
      %v1001 = vadd.f32 0.0, %v1000
      %v1002 = vpop.f32.mrf.mxu0
      %v1003 = vpop.f32.mrf.mxu0
      %v1004 = vadd.f32 0.0, %v1003
      %v1005 = vpop.f32.mrf.mxu0
      %1006 = vmatprep.mubr.bf16.mxu0 0
      %1007 = vmatmul.mubr.bf16.gmra.mxu0 %v795
      %v1008 = vpop.f32.mrf.mxu0
      %v1009 = vadd.f32 0.0, %v1008
      %v1010 = vpop.f32.mrf.mxu0
      %v1011 = vpop.f32.mrf.mxu0
      %v1012 = vadd.f32 0.0, %v1011
      %v1013 = vpop.f32.mrf.mxu0
      %1014 = vmatprep.mubr.bf16.mxu0 0
      %1015 = vmatmul.mubr.bf16.gmra.mxu0 %v796
      %v1016 = vpop.f32.mrf.mxu0
      %v1017 = vadd.f32 0.0, %v1016
      %v1018 = vpop.f32.mrf.mxu0
      %v1019 = vpop.f32.mrf.mxu0
      %v1020 = vadd.f32 0.0, %v1019
      %v1021 = vpop.f32.mrf.mxu0
      %1022 = vdwg.mxu0
      %v1023 = vadd.f32 %v623, %v897
      %v1024 = vadd.f32 %v626, %v900
      %v1025 = vadd.f32 %v631, %v905
      %v1026 = vadd.f32 %v634, %v908
      %v1027 = vadd.f32 %v639, %v913
      %v1028 = vadd.f32 %v642, %v916
      %v1029 = vadd.f32 %v647, %v921
      %v1030 = vadd.f32 %v650, %v924
      %v1031 = vadd.f32 %v655, %v929
      %v1032 = vadd.f32 %v658, %v932
      %v1033 = vadd.f32 %v663, %v937
      %v1034 = vadd.f32 %v666, %v940
      %v1035 = vadd.f32 %v671, %v945
      %v1036 = vadd.f32 %v674, %v948
      %v1037 = vadd.f32 %v679, %v953
      %v1038 = vadd.f32 %v682, %v956
      %v1039 = vadd.f32 %v687, %v961
      %v1040 = vadd.f32 %v690, %v964
      %v1041 = vadd.f32 %v695, %v969
      %v1042 = vadd.f32 %v698, %v972
      %v1043 = vadd.f32 %v703, %v977
      %v1044 = vadd.f32 %v706, %v980
      %v1045 = vadd.f32 %v711, %v985
      %v1046 = vadd.f32 %v714, %v988
      %v1047 = vadd.f32 %v719, %v993
      %v1048 = vadd.f32 %v722, %v996
      %v1049 = vadd.f32 %v727, %v1001
      %v1050 = vadd.f32 %v730, %v1004
      %v1051 = vadd.f32 %v735, %v1009
      %v1052 = vadd.f32 %v738, %v1012
      %v1053 = vadd.f32 %v743, %v1017
      %v1054 = vadd.f32 %v746, %v1020
      %s1055 = scalar_lea.vmem %s190, 24
      %v1056 = vld [vmem:[%s1055] sm:$0xff]
      %v1057 = vld [vmem:[%s1055 + $0x8] sm:$0xff]
      %v1058 = vld [vmem:[%s1055 + $0x18] sm:$0xff]
      %v1059 = vld [vmem:[%s1055 + $0x20] sm:$0xff]
      %v1060 = vld [vmem:[%s1055 + $0x30] sm:$0xff]
      %v1061 = vld [vmem:[%s1055 + $0x38] sm:$0xff]
      %v1062 = vld [vmem:[%s1055 + $0x48] sm:$0xff]
      %v1063 = vld [vmem:[%s1055 + $0x50] sm:$0xff]
      %v1064 = vld [vmem:[%s1055 + $0x60] sm:$0xff]
      %v1065 = vld [vmem:[%s1055 + $0x68] sm:$0xff]
      %v1066 = vld [vmem:[%s1055 + $0x78] sm:$0xff]
      %v1067 = vld [vmem:[%s1055 + $0x80] sm:$0xff]
      %v1068 = vld [vmem:[%s1055 + $0x90] sm:$0xff]
      %v1069 = vld [vmem:[%s1055 + $0x98] sm:$0xff]
      %v1070 = vld [vmem:[%s1055 + $0xa8] sm:$0xff]
      %v1071 = vld [vmem:[%s1055 + $0xb0] sm:$0xff]
      %v1072 = vld [vmem:[%s1055 + $0xc0] sm:$0xff]
      %v1073 = vld [vmem:[%s1055 + $0xc8] sm:$0xff]
      %v1074 = vld [vmem:[%s1055 + $0xd8] sm:$0xff]
      %v1075 = vld [vmem:[%s1055 + $0xe0] sm:$0xff]
      %v1076 = vld [vmem:[%s1055 + $0xf0] sm:$0xff]
      %v1077 = vld [vmem:[%s1055 + $0xf8] sm:$0xff]
      %v1078 = vld [vmem:[%s1055 + $0x108] sm:$0xff]
      %v1079 = vld [vmem:[%s1055 + $0x110] sm:$0xff]
      %v1080 = vld [vmem:[%s1055 + $0x120] sm:$0xff]
      %v1081 = vld [vmem:[%s1055 + $0x128] sm:$0xff]
      %v1082 = vld [vmem:[%s1055 + $0x138] sm:$0xff]
      %v1083 = vld [vmem:[%s1055 + $0x140] sm:$0xff]
      %v1084 = vld [vmem:[%s1055 + $0x150] sm:$0xff]
      %v1085 = vld [vmem:[%s1055 + $0x158] sm:$0xff]
      %v1086 = vld [vmem:[%s1055 + $0x168] sm:$0xff]
      %v1087 = vld [vmem:[%s1055 + $0x170] sm:$0xff]
      %v1088 = vpack.c.bf16 %v1057, %v1056
      %v1089 = vpack.c.bf16 %v1059, %v1058
      %v1090 = vpack.c.bf16 %v1061, %v1060
      %v1091 = vpack.c.bf16 %v1063, %v1062
      %v1092 = vpack.c.bf16 %v1065, %v1064
      %v1093 = vpack.c.bf16 %v1067, %v1066
      %v1094 = vpack.c.bf16 %v1069, %v1068
      %v1095 = vpack.c.bf16 %v1071, %v1070
      %v1096 = vpack.c.bf16 %v1073, %v1072
      %v1097 = vpack.c.bf16 %v1075, %v1074
      %v1098 = vpack.c.bf16 %v1077, %v1076
      %v1099 = vpack.c.bf16 %v1079, %v1078
      %v1100 = vpack.c.bf16 %v1081, %v1080
      %v1101 = vpack.c.bf16 %v1083, %v1082
      %v1102 = vpack.c.bf16 %v1085, %v1084
      %v1103 = vpack.c.bf16 %v1087, %v1086
      %s1104 = scalar_lea.vmem %s1, 192
      %v1105 = vld [vmem:[%s1104] sm:$0xf]
      %v1106 = vld [vmem:[%s1104 + $0x4] sm:$0xf]
      %v1107 = vld [vmem:[%s1104 + $0x8] sm:$0xf]
      %v1108 = vld [vmem:[%s1104 + $0xc] sm:$0xf]
      %v1109 = vld [vmem:[%s1104 + $0x10] sm:$0xf]
      %v1110 = vld [vmem:[%s1104 + $0x14] sm:$0xf]
      %v1111 = vld [vmem:[%s1104 + $0x18] sm:$0xf]
      %v1112 = vld [vmem:[%s1104 + $0x1c] sm:$0xf]
      %v1113 = vld [vmem:[%s1104 + $0x20] sm:$0xf]
      %v1114 = vld [vmem:[%s1104 + $0x24] sm:$0xf]
      %v1115 = vld [vmem:[%s1104 + $0x28] sm:$0xf]
      %v1116 = vld [vmem:[%s1104 + $0x2c] sm:$0xf]
      %v1117 = vld [vmem:[%s1104 + $0x30] sm:$0xf]
      %v1118 = vld [vmem:[%s1104 + $0x34] sm:$0xf]
      %v1119 = vld [vmem:[%s1104 + $0x38] sm:$0xf]
      %v1120 = vld [vmem:[%s1104 + $0x3c] sm:$0xf]
      %v1137 = vunpack.c.l.b16 %v1105
      %v1138 = vunpack.c.l.b16 %v1106
      %v1139 = vunpack.c.l.b16 %v1107
      %v1140 = vunpack.c.l.b16 %v1108
      %v1141 = vunpack.c.l.b16 %v1109
      %v1142 = vunpack.c.l.b16 %v1110
      %v1143 = vunpack.c.l.b16 %v1111
      %v1144 = vunpack.c.l.b16 %v1112
      %v1145 = vunpack.c.l.b16 %v1113
      %v1146 = vunpack.c.l.b16 %v1114
      %v1147 = vunpack.c.l.b16 %v1115
      %v1148 = vunpack.c.l.b16 %v1116
      %v1149 = vunpack.c.l.b16 %v1117
      %v1150 = vunpack.c.l.b16 %v1118
      %v1151 = vunpack.c.l.b16 %v1119
      %v1152 = vunpack.c.l.b16 %v1120
      %v1153 = vpack.c.b16 %v1138, %v1137
      %v1154 = vpack.c.b16 %v1140, %v1139
      %v1155 = vpack.c.b16 %v1142, %v1141
      %v1156 = vpack.c.b16 %v1144, %v1143
      %v1157 = vpack.c.b16 %v1146, %v1145
      %v1158 = vpack.c.b16 %v1148, %v1147
      %v1159 = vpack.c.b16 %v1150, %v1149
      %v1160 = vpack.c.b16 %v1152, %v1151
      %1169 = vmatprep.subr.bf16.mxu0 0
      %1170 = vmatpush1.bf16.msra.mxu0 %v1160
      %1171 = vmatprep.subr.bf16.mxu0 0
      %1172 = vmatpush1.bf16.msra.mxu0 %v1159
      %1173 = vmatprep.subr.bf16.mxu0 0
      %1174 = vmatpush1.bf16.msra.mxu0 %v1158
      %1175 = vmatprep.subr.bf16.mxu0 0
      %1176 = vmatpush1.bf16.msra.mxu0 %v1157
      %1177 = vmatprep.subr.bf16.mxu0 0
      %1178 = vmatpush1.bf16.msra.mxu0 %v1156
      %1179 = vmatprep.subr.bf16.mxu0 0
      %1180 = vmatpush1.bf16.msra.mxu0 %v1155
      %1181 = vmatprep.subr.bf16.mxu0 0
      %1182 = vmatpush1.bf16.msra.mxu0 %v1154
      %1183 = vmatprep.subr.bf16.mxu0 0
      %1184 = vmatpush1.bf16.msra.mxu0 %v1153
      %1185 = vmatprep.subr.bf16.mxu0 0
      %1186 = vmatpush2.bf16.msra.mxu0 0
      %1187 = vmatprep.subr.bf16.mxu0 0
      %1188 = vmatpush2.bf16.msra.mxu0 0
      %1189 = vmatprep.subr.bf16.mxu0 0
      %1190 = vmatpush2.bf16.msra.mxu0 0
      %1191 = vmatprep.subr.bf16.mxu0 0
      %1192 = vmatpush2.bf16.msra.mxu0 0
      %1193 = vmatprep.subr.bf16.mxu0 0
      %1194 = vmatpush2.bf16.msra.mxu0 0
      %1195 = vmatprep.subr.bf16.mxu0 0
      %1196 = vmatpush2.bf16.msra.mxu0 0
      %1197 = vmatprep.subr.bf16.mxu0 0
      %1198 = vmatpush2.bf16.msra.mxu0 0
      %1199 = vmatprep.subr.bf16.mxu0 0
      %1200 = vmatpush2.bf16.msra.mxu0 0
      %1201 = vmatprep.mubr.bf16.mxu0 0
      %1202 = vmatmul.mubr.bf16.gmra.mxu0 %v1088
      %v1203 = vpop.f32.mrf.mxu0
      %v1204 = vadd.f32 0.0, %v1203
      %v1205 = vpop.f32.mrf.mxu0
      %v1206 = vpop.f32.mrf.mxu0
      %v1207 = vadd.f32 0.0, %v1206
      %v1208 = vpop.f32.mrf.mxu0
      %1209 = vmatprep.mubr.bf16.mxu0 0
      %1210 = vmatmul.mubr.bf16.gmra.mxu0 %v1089
      %v1211 = vpop.f32.mrf.mxu0
      %v1212 = vadd.f32 0.0, %v1211
      %v1213 = vpop.f32.mrf.mxu0
      %v1214 = vpop.f32.mrf.mxu0
      %v1215 = vadd.f32 0.0, %v1214
      %v1216 = vpop.f32.mrf.mxu0
      %1217 = vmatprep.mubr.bf16.mxu0 0
      %1218 = vmatmul.mubr.bf16.gmra.mxu0 %v1090
      %v1219 = vpop.f32.mrf.mxu0
      %v1220 = vadd.f32 0.0, %v1219
      %v1221 = vpop.f32.mrf.mxu0
      %v1222 = vpop.f32.mrf.mxu0
      %v1223 = vadd.f32 0.0, %v1222
      %v1224 = vpop.f32.mrf.mxu0
      %1225 = vmatprep.mubr.bf16.mxu0 0
      %1226 = vmatmul.mubr.bf16.gmra.mxu0 %v1091
      %v1227 = vpop.f32.mrf.mxu0
      %v1228 = vadd.f32 0.0, %v1227
      %v1229 = vpop.f32.mrf.mxu0
      %v1230 = vpop.f32.mrf.mxu0
      %v1231 = vadd.f32 0.0, %v1230
      %v1232 = vpop.f32.mrf.mxu0
      %1233 = vmatprep.mubr.bf16.mxu0 0
      %1234 = vmatmul.mubr.bf16.gmra.mxu0 %v1092
      %v1235 = vpop.f32.mrf.mxu0
      %v1236 = vadd.f32 0.0, %v1235
      %v1237 = vpop.f32.mrf.mxu0
      %v1238 = vpop.f32.mrf.mxu0
      %v1239 = vadd.f32 0.0, %v1238
      %v1240 = vpop.f32.mrf.mxu0
      %1241 = vmatprep.mubr.bf16.mxu0 0
      %1242 = vmatmul.mubr.bf16.gmra.mxu0 %v1093
      %v1243 = vpop.f32.mrf.mxu0
      %v1244 = vadd.f32 0.0, %v1243
      %v1245 = vpop.f32.mrf.mxu0
      %v1246 = vpop.f32.mrf.mxu0
      %v1247 = vadd.f32 0.0, %v1246
      %v1248 = vpop.f32.mrf.mxu0
      %1249 = vmatprep.mubr.bf16.mxu0 0
      %1250 = vmatmul.mubr.bf16.gmra.mxu0 %v1094
      %v1251 = vpop.f32.mrf.mxu0
      %v1252 = vadd.f32 0.0, %v1251
      %v1253 = vpop.f32.mrf.mxu0
      %v1254 = vpop.f32.mrf.mxu0
      %v1255 = vadd.f32 0.0, %v1254
      %v1256 = vpop.f32.mrf.mxu0
      %1257 = vmatprep.mubr.bf16.mxu0 0
      %1258 = vmatmul.mubr.bf16.gmra.mxu0 %v1095
      %v1259 = vpop.f32.mrf.mxu0
      %v1260 = vadd.f32 0.0, %v1259
      %v1261 = vpop.f32.mrf.mxu0
      %v1262 = vpop.f32.mrf.mxu0
      %v1263 = vadd.f32 0.0, %v1262
      %v1264 = vpop.f32.mrf.mxu0
      %1265 = vmatprep.mubr.bf16.mxu0 0
      %1266 = vmatmul.mubr.bf16.gmra.mxu0 %v1096
      %v1267 = vpop.f32.mrf.mxu0
      %v1268 = vadd.f32 0.0, %v1267
      %v1269 = vpop.f32.mrf.mxu0
      %v1270 = vpop.f32.mrf.mxu0
      %v1271 = vadd.f32 0.0, %v1270
      %v1272 = vpop.f32.mrf.mxu0
      %1273 = vmatprep.mubr.bf16.mxu0 0
      %1274 = vmatmul.mubr.bf16.gmra.mxu0 %v1097
      %v1275 = vpop.f32.mrf.mxu0
      %v1276 = vadd.f32 0.0, %v1275
      %v1277 = vpop.f32.mrf.mxu0
      %v1278 = vpop.f32.mrf.mxu0
      %v1279 = vadd.f32 0.0, %v1278
      %v1280 = vpop.f32.mrf.mxu0
      %1281 = vmatprep.mubr.bf16.mxu0 0
      %1282 = vmatmul.mubr.bf16.gmra.mxu0 %v1098
      %v1283 = vpop.f32.mrf.mxu0
      %v1284 = vadd.f32 0.0, %v1283
      %v1285 = vpop.f32.mrf.mxu0
      %v1286 = vpop.f32.mrf.mxu0
      %v1287 = vadd.f32 0.0, %v1286
      %v1288 = vpop.f32.mrf.mxu0
      %1289 = vmatprep.mubr.bf16.mxu0 0
      %1290 = vmatmul.mubr.bf16.gmra.mxu0 %v1099
      %v1291 = vpop.f32.mrf.mxu0
      %v1292 = vadd.f32 0.0, %v1291
      %v1293 = vpop.f32.mrf.mxu0
      %v1294 = vpop.f32.mrf.mxu0
      %v1295 = vadd.f32 0.0, %v1294
      %v1296 = vpop.f32.mrf.mxu0
      %1297 = vmatprep.mubr.bf16.mxu0 0
      %1298 = vmatmul.mubr.bf16.gmra.mxu0 %v1100
      %v1299 = vpop.f32.mrf.mxu0
      %v1300 = vadd.f32 0.0, %v1299
      %v1301 = vpop.f32.mrf.mxu0
      %v1302 = vpop.f32.mrf.mxu0
      %v1303 = vadd.f32 0.0, %v1302
      %v1304 = vpop.f32.mrf.mxu0
      %1305 = vmatprep.mubr.bf16.mxu0 0
      %1306 = vmatmul.mubr.bf16.gmra.mxu0 %v1101
      %v1307 = vpop.f32.mrf.mxu0
      %v1308 = vadd.f32 0.0, %v1307
      %v1309 = vpop.f32.mrf.mxu0
      %v1310 = vpop.f32.mrf.mxu0
      %v1311 = vadd.f32 0.0, %v1310
      %v1312 = vpop.f32.mrf.mxu0
      %1313 = vmatprep.mubr.bf16.mxu0 0
      %1314 = vmatmul.mubr.bf16.gmra.mxu0 %v1102
      %v1315 = vpop.f32.mrf.mxu0
      %v1316 = vadd.f32 0.0, %v1315
      %v1317 = vpop.f32.mrf.mxu0
      %v1318 = vpop.f32.mrf.mxu0
      %v1319 = vadd.f32 0.0, %v1318
      %v1320 = vpop.f32.mrf.mxu0
      %1321 = vmatprep.mubr.bf16.mxu0 0
      %1322 = vmatmul.mubr.bf16.gmra.mxu0 %v1103
      %v1323 = vpop.f32.mrf.mxu0
      %v1324 = vadd.f32 0.0, %v1323
      %v1325 = vpop.f32.mrf.mxu0
      %v1326 = vpop.f32.mrf.mxu0
      %v1327 = vadd.f32 0.0, %v1326
      %v1328 = vpop.f32.mrf.mxu0
      %1329 = vdwg.mxu0
      %v1330 = vadd.f32 %v1023, %v1204
      %v1331 = vadd.f32 %v1024, %v1207
      %v1332 = vadd.f32 %v1025, %v1212
      %v1333 = vadd.f32 %v1026, %v1215
      %v1334 = vadd.f32 %v1027, %v1220
      %v1335 = vadd.f32 %v1028, %v1223
      %v1336 = vadd.f32 %v1029, %v1228
      %v1337 = vadd.f32 %v1030, %v1231
      %v1338 = vadd.f32 %v1031, %v1236
      %v1339 = vadd.f32 %v1032, %v1239
      %v1340 = vadd.f32 %v1033, %v1244
      %v1341 = vadd.f32 %v1034, %v1247
      %v1342 = vadd.f32 %v1035, %v1252
      %v1343 = vadd.f32 %v1036, %v1255
      %v1344 = vadd.f32 %v1037, %v1260
      %v1345 = vadd.f32 %v1038, %v1263
      %v1346 = vadd.f32 %v1039, %v1268
      %v1347 = vadd.f32 %v1040, %v1271
      %v1348 = vadd.f32 %v1041, %v1276
      %v1349 = vadd.f32 %v1042, %v1279
      %v1350 = vadd.f32 %v1043, %v1284
      %v1351 = vadd.f32 %v1044, %v1287
      %v1352 = vadd.f32 %v1045, %v1292
      %v1353 = vadd.f32 %v1046, %v1295
      %v1354 = vadd.f32 %v1047, %v1300
      %v1355 = vadd.f32 %v1048, %v1303
      %v1356 = vadd.f32 %v1049, %v1308
      %v1357 = vadd.f32 %v1050, %v1311
      %v1358 = vadd.f32 %v1051, %v1316
      %v1359 = vadd.f32 %v1052, %v1319
      %v1360 = vadd.f32 %v1053, %v1324
      %v1361 = vadd.f32 %v1054, %v1327
      %v1362 = vld [vmem:[%s1055 + $0x1] sm:$0xff]
      %v1363 = vld [vmem:[%s1055 + $0x9] sm:$0xff]
      %v1364 = vld [vmem:[%s1055 + $0x19] sm:$0xff]
      %v1365 = vld [vmem:[%s1055 + $0x21] sm:$0xff]
      %v1366 = vld [vmem:[%s1055 + $0x31] sm:$0xff]
      %v1367 = vld [vmem:[%s1055 + $0x39] sm:$0xff]
      %v1368 = vld [vmem:[%s1055 + $0x49] sm:$0xff]
      %v1369 = vld [vmem:[%s1055 + $0x51] sm:$0xff]
      %v1370 = vld [vmem:[%s1055 + $0x61] sm:$0xff]
      %v1371 = vld [vmem:[%s1055 + $0x69] sm:$0xff]
      %v1372 = vld [vmem:[%s1055 + $0x79] sm:$0xff]
      %v1373 = vld [vmem:[%s1055 + $0x81] sm:$0xff]
      %v1374 = vld [vmem:[%s1055 + $0x91] sm:$0xff]
      %v1375 = vld [vmem:[%s1055 + $0x99] sm:$0xff]
      %v1376 = vld [vmem:[%s1055 + $0xa9] sm:$0xff]
      %v1377 = vld [vmem:[%s1055 + $0xb1] sm:$0xff]
      %v1378 = vld [vmem:[%s1055 + $0xc1] sm:$0xff]
      %v1379 = vld [vmem:[%s1055 + $0xc9] sm:$0xff]
      %v1380 = vld [vmem:[%s1055 + $0xd9] sm:$0xff]
      %v1381 = vld [vmem:[%s1055 + $0xe1] sm:$0xff]
      %v1382 = vld [vmem:[%s1055 + $0xf1] sm:$0xff]
      %v1383 = vld [vmem:[%s1055 + $0xf9] sm:$0xff]
      %v1384 = vld [vmem:[%s1055 + $0x109] sm:$0xff]
      %v1385 = vld [vmem:[%s1055 + $0x111] sm:$0xff]
      %v1386 = vld [vmem:[%s1055 + $0x121] sm:$0xff]
      %v1387 = vld [vmem:[%s1055 + $0x129] sm:$0xff]
      %v1388 = vld [vmem:[%s1055 + $0x139] sm:$0xff]
      %v1389 = vld [vmem:[%s1055 + $0x141] sm:$0xff]
      %v1390 = vld [vmem:[%s1055 + $0x151] sm:$0xff]
      %v1391 = vld [vmem:[%s1055 + $0x159] sm:$0xff]
      %v1392 = vld [vmem:[%s1055 + $0x169] sm:$0xff]
      %v1393 = vld [vmem:[%s1055 + $0x171] sm:$0xff]
      %v1394 = vpack.c.bf16 %v1363, %v1362
      %v1395 = vpack.c.bf16 %v1365, %v1364
      %v1396 = vpack.c.bf16 %v1367, %v1366
      %v1397 = vpack.c.bf16 %v1369, %v1368
      %v1398 = vpack.c.bf16 %v1371, %v1370
      %v1399 = vpack.c.bf16 %v1373, %v1372
      %v1400 = vpack.c.bf16 %v1375, %v1374
      %v1401 = vpack.c.bf16 %v1377, %v1376
      %v1402 = vpack.c.bf16 %v1379, %v1378
      %v1403 = vpack.c.bf16 %v1381, %v1380
      %v1404 = vpack.c.bf16 %v1383, %v1382
      %v1405 = vpack.c.bf16 %v1385, %v1384
      %v1406 = vpack.c.bf16 %v1387, %v1386
      %v1407 = vpack.c.bf16 %v1389, %v1388
      %v1408 = vpack.c.bf16 %v1391, %v1390
      %v1409 = vpack.c.bf16 %v1393, %v1392
      %s1410 = scalar_lea.vmem %s1, 256
      %v1411 = vld [vmem:[%s1410] sm:$0xf]
      %v1412 = vld [vmem:[%s1410 + $0x4] sm:$0xf]
      %v1413 = vld [vmem:[%s1410 + $0x8] sm:$0xf]
      %v1414 = vld [vmem:[%s1410 + $0xc] sm:$0xf]
      %v1415 = vld [vmem:[%s1410 + $0x10] sm:$0xf]
      %v1416 = vld [vmem:[%s1410 + $0x14] sm:$0xf]
      %v1417 = vld [vmem:[%s1410 + $0x18] sm:$0xf]
      %v1418 = vld [vmem:[%s1410 + $0x1c] sm:$0xf]
      %v1419 = vld [vmem:[%s1410 + $0x20] sm:$0xf]
      %v1420 = vld [vmem:[%s1410 + $0x24] sm:$0xf]
      %v1421 = vld [vmem:[%s1410 + $0x28] sm:$0xf]
      %v1422 = vld [vmem:[%s1410 + $0x2c] sm:$0xf]
      %v1423 = vld [vmem:[%s1410 + $0x30] sm:$0xf]
      %v1424 = vld [vmem:[%s1410 + $0x34] sm:$0xf]
      %v1425 = vld [vmem:[%s1410 + $0x38] sm:$0xf]
      %v1426 = vld [vmem:[%s1410 + $0x3c] sm:$0xf]
      %v1443 = vunpack.c.l.b16 %v1411
      %v1444 = vunpack.c.l.b16 %v1412
      %v1445 = vunpack.c.l.b16 %v1413
      %v1446 = vunpack.c.l.b16 %v1414
      %v1447 = vunpack.c.l.b16 %v1415
      %v1448 = vunpack.c.l.b16 %v1416
      %v1449 = vunpack.c.l.b16 %v1417
      %v1450 = vunpack.c.l.b16 %v1418
      %v1451 = vunpack.c.l.b16 %v1419
      %v1452 = vunpack.c.l.b16 %v1420
      %v1453 = vunpack.c.l.b16 %v1421
      %v1454 = vunpack.c.l.b16 %v1422
      %v1455 = vunpack.c.l.b16 %v1423
      %v1456 = vunpack.c.l.b16 %v1424
      %v1457 = vunpack.c.l.b16 %v1425
      %v1458 = vunpack.c.l.b16 %v1426
      %v1459 = vpack.c.b16 %v1444, %v1443
      %v1460 = vpack.c.b16 %v1446, %v1445
      %v1461 = vpack.c.b16 %v1448, %v1447
      %v1462 = vpack.c.b16 %v1450, %v1449
      %v1463 = vpack.c.b16 %v1452, %v1451
      %v1464 = vpack.c.b16 %v1454, %v1453
      %v1465 = vpack.c.b16 %v1456, %v1455
      %v1466 = vpack.c.b16 %v1458, %v1457
      %1475 = vmatprep.subr.bf16.mxu0 0
      %1476 = vmatpush1.bf16.msra.mxu0 %v1466
      %1477 = vmatprep.subr.bf16.mxu0 0
      %1478 = vmatpush1.bf16.msra.mxu0 %v1465
      %1479 = vmatprep.subr.bf16.mxu0 0
      %1480 = vmatpush1.bf16.msra.mxu0 %v1464
      %1481 = vmatprep.subr.bf16.mxu0 0
      %1482 = vmatpush1.bf16.msra.mxu0 %v1463
      %1483 = vmatprep.subr.bf16.mxu0 0
      %1484 = vmatpush1.bf16.msra.mxu0 %v1462
      %1485 = vmatprep.subr.bf16.mxu0 0
      %1486 = vmatpush1.bf16.msra.mxu0 %v1461
      %1487 = vmatprep.subr.bf16.mxu0 0
      %1488 = vmatpush1.bf16.msra.mxu0 %v1460
      %1489 = vmatprep.subr.bf16.mxu0 0
      %1490 = vmatpush1.bf16.msra.mxu0 %v1459
      %1491 = vmatprep.subr.bf16.mxu0 0
      %1492 = vmatpush2.bf16.msra.mxu0 0
      %1493 = vmatprep.subr.bf16.mxu0 0
      %1494 = vmatpush2.bf16.msra.mxu0 0
      %1495 = vmatprep.subr.bf16.mxu0 0
      %1496 = vmatpush2.bf16.msra.mxu0 0
      %1497 = vmatprep.subr.bf16.mxu0 0
      %1498 = vmatpush2.bf16.msra.mxu0 0
      %1499 = vmatprep.subr.bf16.mxu0 0
      %1500 = vmatpush2.bf16.msra.mxu0 0
      %1501 = vmatprep.subr.bf16.mxu0 0
      %1502 = vmatpush2.bf16.msra.mxu0 0
      %1503 = vmatprep.subr.bf16.mxu0 0
      %1504 = vmatpush2.bf16.msra.mxu0 0
      %1505 = vmatprep.subr.bf16.mxu0 0
      %1506 = vmatpush2.bf16.msra.mxu0 0
      %1507 = vmatprep.mubr.bf16.mxu0 0
      %1508 = vmatmul.mubr.bf16.gmra.mxu0 %v1394
      %v1509 = vpop.f32.mrf.mxu0
      %v1510 = vadd.f32 0.0, %v1509
      %v1511 = vpop.f32.mrf.mxu0
      %v1512 = vpop.f32.mrf.mxu0
      %v1513 = vadd.f32 0.0, %v1512
      %v1514 = vpop.f32.mrf.mxu0
      %1515 = vmatprep.mubr.bf16.mxu0 0
      %1516 = vmatmul.mubr.bf16.gmra.mxu0 %v1395
      %v1517 = vpop.f32.mrf.mxu0
      %v1518 = vadd.f32 0.0, %v1517
      %v1519 = vpop.f32.mrf.mxu0
      %v1520 = vpop.f32.mrf.mxu0
      %v1521 = vadd.f32 0.0, %v1520
      %v1522 = vpop.f32.mrf.mxu0
      %1523 = vmatprep.mubr.bf16.mxu0 0
      %1524 = vmatmul.mubr.bf16.gmra.mxu0 %v1396
      %v1525 = vpop.f32.mrf.mxu0
      %v1526 = vadd.f32 0.0, %v1525
      %v1527 = vpop.f32.mrf.mxu0
      %v1528 = vpop.f32.mrf.mxu0
      %v1529 = vadd.f32 0.0, %v1528
      %v1530 = vpop.f32.mrf.mxu0
      %1531 = vmatprep.mubr.bf16.mxu0 0
      %1532 = vmatmul.mubr.bf16.gmra.mxu0 %v1397
      %v1533 = vpop.f32.mrf.mxu0
      %v1534 = vadd.f32 0.0, %v1533
      %v1535 = vpop.f32.mrf.mxu0
      %v1536 = vpop.f32.mrf.mxu0
      %v1537 = vadd.f32 0.0, %v1536
      %v1538 = vpop.f32.mrf.mxu0
      %1539 = vmatprep.mubr.bf16.mxu0 0
      %1540 = vmatmul.mubr.bf16.gmra.mxu0 %v1398
      %v1541 = vpop.f32.mrf.mxu0
      %v1542 = vadd.f32 0.0, %v1541
      %v1543 = vpop.f32.mrf.mxu0
      %v1544 = vpop.f32.mrf.mxu0
      %v1545 = vadd.f32 0.0, %v1544
      %v1546 = vpop.f32.mrf.mxu0
      %1547 = vmatprep.mubr.bf16.mxu0 0
      %1548 = vmatmul.mubr.bf16.gmra.mxu0 %v1399
      %v1549 = vpop.f32.mrf.mxu0
      %v1550 = vadd.f32 0.0, %v1549
      %v1551 = vpop.f32.mrf.mxu0
      %v1552 = vpop.f32.mrf.mxu0
      %v1553 = vadd.f32 0.0, %v1552
      %v1554 = vpop.f32.mrf.mxu0
      %1555 = vmatprep.mubr.bf16.mxu0 0
      %1556 = vmatmul.mubr.bf16.gmra.mxu0 %v1400
      %v1557 = vpop.f32.mrf.mxu0
      %v1558 = vadd.f32 0.0, %v1557
      %v1559 = vpop.f32.mrf.mxu0
      %v1560 = vpop.f32.mrf.mxu0
      %v1561 = vadd.f32 0.0, %v1560
      %v1562 = vpop.f32.mrf.mxu0
      %1563 = vmatprep.mubr.bf16.mxu0 0
      %1564 = vmatmul.mubr.bf16.gmra.mxu0 %v1401
      %v1565 = vpop.f32.mrf.mxu0
      %v1566 = vadd.f32 0.0, %v1565
      %v1567 = vpop.f32.mrf.mxu0
      %v1568 = vpop.f32.mrf.mxu0
      %v1569 = vadd.f32 0.0, %v1568
      %v1570 = vpop.f32.mrf.mxu0
      %1571 = vmatprep.mubr.bf16.mxu0 0
      %1572 = vmatmul.mubr.bf16.gmra.mxu0 %v1402
      %v1573 = vpop.f32.mrf.mxu0
      %v1574 = vadd.f32 0.0, %v1573
      %v1575 = vpop.f32.mrf.mxu0
      %v1576 = vpop.f32.mrf.mxu0
      %v1577 = vadd.f32 0.0, %v1576
      %v1578 = vpop.f32.mrf.mxu0
      %1579 = vmatprep.mubr.bf16.mxu0 0
      %1580 = vmatmul.mubr.bf16.gmra.mxu0 %v1403
      %v1581 = vpop.f32.mrf.mxu0
      %v1582 = vadd.f32 0.0, %v1581
      %v1583 = vpop.f32.mrf.mxu0
      %v1584 = vpop.f32.mrf.mxu0
      %v1585 = vadd.f32 0.0, %v1584
      %v1586 = vpop.f32.mrf.mxu0
      %1587 = vmatprep.mubr.bf16.mxu0 0
      %1588 = vmatmul.mubr.bf16.gmra.mxu0 %v1404
      %v1589 = vpop.f32.mrf.mxu0
      %v1590 = vadd.f32 0.0, %v1589
      %v1591 = vpop.f32.mrf.mxu0
      %v1592 = vpop.f32.mrf.mxu0
      %v1593 = vadd.f32 0.0, %v1592
      %v1594 = vpop.f32.mrf.mxu0
      %1595 = vmatprep.mubr.bf16.mxu0 0
      %1596 = vmatmul.mubr.bf16.gmra.mxu0 %v1405
      %v1597 = vpop.f32.mrf.mxu0
      %v1598 = vadd.f32 0.0, %v1597
      %v1599 = vpop.f32.mrf.mxu0
      %v1600 = vpop.f32.mrf.mxu0
      %v1601 = vadd.f32 0.0, %v1600
      %v1602 = vpop.f32.mrf.mxu0
      %1603 = vmatprep.mubr.bf16.mxu0 0
      %1604 = vmatmul.mubr.bf16.gmra.mxu0 %v1406
      %v1605 = vpop.f32.mrf.mxu0
      %v1606 = vadd.f32 0.0, %v1605
      %v1607 = vpop.f32.mrf.mxu0
      %v1608 = vpop.f32.mrf.mxu0
      %v1609 = vadd.f32 0.0, %v1608
      %v1610 = vpop.f32.mrf.mxu0
      %1611 = vmatprep.mubr.bf16.mxu0 0
      %1612 = vmatmul.mubr.bf16.gmra.mxu0 %v1407
      %v1613 = vpop.f32.mrf.mxu0
      %v1614 = vadd.f32 0.0, %v1613
      %v1615 = vpop.f32.mrf.mxu0
      %v1616 = vpop.f32.mrf.mxu0
      %v1617 = vadd.f32 0.0, %v1616
      %v1618 = vpop.f32.mrf.mxu0
      %1619 = vmatprep.mubr.bf16.mxu0 0
      %1620 = vmatmul.mubr.bf16.gmra.mxu0 %v1408
      %v1621 = vpop.f32.mrf.mxu0
      %v1622 = vadd.f32 0.0, %v1621
      %v1623 = vpop.f32.mrf.mxu0
      %v1624 = vpop.f32.mrf.mxu0
      %v1625 = vadd.f32 0.0, %v1624
      %v1626 = vpop.f32.mrf.mxu0
      %1627 = vmatprep.mubr.bf16.mxu0 0
      %1628 = vmatmul.mubr.bf16.gmra.mxu0 %v1409
      %v1629 = vpop.f32.mrf.mxu0
      %v1630 = vadd.f32 0.0, %v1629
      %v1631 = vpop.f32.mrf.mxu0
      %v1632 = vpop.f32.mrf.mxu0
      %v1633 = vadd.f32 0.0, %v1632
      %v1634 = vpop.f32.mrf.mxu0
      %1635 = vdwg.mxu0
      %v1636 = vadd.f32 %v1330, %v1510
      %v1637 = vadd.f32 %v1331, %v1513
      %v1638 = vadd.f32 %v1332, %v1518
      %v1639 = vadd.f32 %v1333, %v1521
      %v1640 = vadd.f32 %v1334, %v1526
      %v1641 = vadd.f32 %v1335, %v1529
      %v1642 = vadd.f32 %v1336, %v1534
      %v1643 = vadd.f32 %v1337, %v1537
      %v1644 = vadd.f32 %v1338, %v1542
      %v1645 = vadd.f32 %v1339, %v1545
      %v1646 = vadd.f32 %v1340, %v1550
      %v1647 = vadd.f32 %v1341, %v1553
      %v1648 = vadd.f32 %v1342, %v1558
      %v1649 = vadd.f32 %v1343, %v1561
      %v1650 = vadd.f32 %v1344, %v1566
      %v1651 = vadd.f32 %v1345, %v1569
      %v1652 = vadd.f32 %v1346, %v1574
      %v1653 = vadd.f32 %v1347, %v1577
      %v1654 = vadd.f32 %v1348, %v1582
      %v1655 = vadd.f32 %v1349, %v1585
      %v1656 = vadd.f32 %v1350, %v1590
      %v1657 = vadd.f32 %v1351, %v1593
      %v1658 = vadd.f32 %v1352, %v1598
      %v1659 = vadd.f32 %v1353, %v1601
      %v1660 = vadd.f32 %v1354, %v1606
      %v1661 = vadd.f32 %v1355, %v1609
      %v1662 = vadd.f32 %v1356, %v1614
      %v1663 = vadd.f32 %v1357, %v1617
      %v1664 = vadd.f32 %v1358, %v1622
      %v1665 = vadd.f32 %v1359, %v1625
      %v1666 = vadd.f32 %v1360, %v1630
      %v1667 = vadd.f32 %v1361, %v1633
      %v1668 = vld [vmem:[%s1055 + $0x2] sm:$0xff]
      %v1669 = vld [vmem:[%s1055 + $0xa] sm:$0xff]
      %v1670 = vld [vmem:[%s1055 + $0x1a] sm:$0xff]
      %v1671 = vld [vmem:[%s1055 + $0x22] sm:$0xff]
      %v1672 = vld [vmem:[%s1055 + $0x32] sm:$0xff]
      %v1673 = vld [vmem:[%s1055 + $0x3a] sm:$0xff]
      %v1674 = vld [vmem:[%s1055 + $0x4a] sm:$0xff]
      %v1675 = vld [vmem:[%s1055 + $0x52] sm:$0xff]
      %v1676 = vld [vmem:[%s1055 + $0x62] sm:$0xff]
      %v1677 = vld [vmem:[%s1055 + $0x6a] sm:$0xff]
      %v1678 = vld [vmem:[%s1055 + $0x7a] sm:$0xff]
      %v1679 = vld [vmem:[%s1055 + $0x82] sm:$0xff]
      %v1680 = vld [vmem:[%s1055 + $0x92] sm:$0xff]
      %v1681 = vld [vmem:[%s1055 + $0x9a] sm:$0xff]
      %v1682 = vld [vmem:[%s1055 + $0xaa] sm:$0xff]
      %v1683 = vld [vmem:[%s1055 + $0xb2] sm:$0xff]
      %v1684 = vld [vmem:[%s1055 + $0xc2] sm:$0xff]
      %v1685 = vld [vmem:[%s1055 + $0xca] sm:$0xff]
      %v1686 = vld [vmem:[%s1055 + $0xda] sm:$0xff]
      %v1687 = vld [vmem:[%s1055 + $0xe2] sm:$0xff]
      %v1688 = vld [vmem:[%s1055 + $0xf2] sm:$0xff]
      %v1689 = vld [vmem:[%s1055 + $0xfa] sm:$0xff]
      %v1690 = vld [vmem:[%s1055 + $0x10a] sm:$0xff]
      %v1691 = vld [vmem:[%s1055 + $0x112] sm:$0xff]
      %v1692 = vld [vmem:[%s1055 + $0x122] sm:$0xff]
      %v1693 = vld [vmem:[%s1055 + $0x12a] sm:$0xff]
      %v1694 = vld [vmem:[%s1055 + $0x13a] sm:$0xff]
      %v1695 = vld [vmem:[%s1055 + $0x142] sm:$0xff]
      %v1696 = vld [vmem:[%s1055 + $0x152] sm:$0xff]
      %v1697 = vld [vmem:[%s1055 + $0x15a] sm:$0xff]
      %v1698 = vld [vmem:[%s1055 + $0x16a] sm:$0xff]
      %v1699 = vld [vmem:[%s1055 + $0x172] sm:$0xff]
      %v1700 = vpack.c.bf16 %v1669, %v1668
      %v1701 = vpack.c.bf16 %v1671, %v1670
      %v1702 = vpack.c.bf16 %v1673, %v1672
      %v1703 = vpack.c.bf16 %v1675, %v1674
      %v1704 = vpack.c.bf16 %v1677, %v1676
      %v1705 = vpack.c.bf16 %v1679, %v1678
      %v1706 = vpack.c.bf16 %v1681, %v1680
      %v1707 = vpack.c.bf16 %v1683, %v1682
      %v1708 = vpack.c.bf16 %v1685, %v1684
      %v1709 = vpack.c.bf16 %v1687, %v1686
      %v1710 = vpack.c.bf16 %v1689, %v1688
      %v1711 = vpack.c.bf16 %v1691, %v1690
      %v1712 = vpack.c.bf16 %v1693, %v1692
      %v1713 = vpack.c.bf16 %v1695, %v1694
      %v1714 = vpack.c.bf16 %v1697, %v1696
      %v1715 = vpack.c.bf16 %v1699, %v1698
      %s1716 = scalar_lea.vmem %s1, 320
      %v1717 = vld [vmem:[%s1716] sm:$0xf]
      %v1718 = vld [vmem:[%s1716 + $0x4] sm:$0xf]
      %v1719 = vld [vmem:[%s1716 + $0x8] sm:$0xf]
      %v1720 = vld [vmem:[%s1716 + $0xc] sm:$0xf]
      %v1721 = vld [vmem:[%s1716 + $0x10] sm:$0xf]
      %v1722 = vld [vmem:[%s1716 + $0x14] sm:$0xf]
      %v1723 = vld [vmem:[%s1716 + $0x18] sm:$0xf]
      %v1724 = vld [vmem:[%s1716 + $0x1c] sm:$0xf]
      %v1725 = vld [vmem:[%s1716 + $0x20] sm:$0xf]
      %v1726 = vld [vmem:[%s1716 + $0x24] sm:$0xf]
      %v1727 = vld [vmem:[%s1716 + $0x28] sm:$0xf]
      %v1728 = vld [vmem:[%s1716 + $0x2c] sm:$0xf]
      %v1729 = vld [vmem:[%s1716 + $0x30] sm:$0xf]
      %v1730 = vld [vmem:[%s1716 + $0x34] sm:$0xf]
      %v1731 = vld [vmem:[%s1716 + $0x38] sm:$0xf]
      %v1732 = vld [vmem:[%s1716 + $0x3c] sm:$0xf]
      %v1749 = vunpack.c.l.b16 %v1717
      %v1750 = vunpack.c.l.b16 %v1718
      %v1751 = vunpack.c.l.b16 %v1719
      %v1752 = vunpack.c.l.b16 %v1720
      %v1753 = vunpack.c.l.b16 %v1721
      %v1754 = vunpack.c.l.b16 %v1722
      %v1755 = vunpack.c.l.b16 %v1723
      %v1756 = vunpack.c.l.b16 %v1724
      %v1757 = vunpack.c.l.b16 %v1725
      %v1758 = vunpack.c.l.b16 %v1726
      %v1759 = vunpack.c.l.b16 %v1727
      %v1760 = vunpack.c.l.b16 %v1728
      %v1761 = vunpack.c.l.b16 %v1729
      %v1762 = vunpack.c.l.b16 %v1730
      %v1763 = vunpack.c.l.b16 %v1731
      %v1764 = vunpack.c.l.b16 %v1732
      %v1765 = vpack.c.b16 %v1750, %v1749
      %v1766 = vpack.c.b16 %v1752, %v1751
      %v1767 = vpack.c.b16 %v1754, %v1753
      %v1768 = vpack.c.b16 %v1756, %v1755
      %v1769 = vpack.c.b16 %v1758, %v1757
      %v1770 = vpack.c.b16 %v1760, %v1759
      %v1771 = vpack.c.b16 %v1762, %v1761
      %v1772 = vpack.c.b16 %v1764, %v1763
      %1781 = vmatprep.subr.bf16.mxu0 0
      %1782 = vmatpush1.bf16.msra.mxu0 %v1772
      %1783 = vmatprep.subr.bf16.mxu0 0
      %1784 = vmatpush1.bf16.msra.mxu0 %v1771
      %1785 = vmatprep.subr.bf16.mxu0 0
      %1786 = vmatpush1.bf16.msra.mxu0 %v1770
      %1787 = vmatprep.subr.bf16.mxu0 0
      %1788 = vmatpush1.bf16.msra.mxu0 %v1769
      %1789 = vmatprep.subr.bf16.mxu0 0
      %1790 = vmatpush1.bf16.msra.mxu0 %v1768
      %1791 = vmatprep.subr.bf16.mxu0 0
      %1792 = vmatpush1.bf16.msra.mxu0 %v1767
      %1793 = vmatprep.subr.bf16.mxu0 0
      %1794 = vmatpush1.bf16.msra.mxu0 %v1766
      %1795 = vmatprep.subr.bf16.mxu0 0
      %1796 = vmatpush1.bf16.msra.mxu0 %v1765
      %1797 = vmatprep.subr.bf16.mxu0 0
      %1798 = vmatpush2.bf16.msra.mxu0 0
      %1799 = vmatprep.subr.bf16.mxu0 0
      %1800 = vmatpush2.bf16.msra.mxu0 0
      %1801 = vmatprep.subr.bf16.mxu0 0
      %1802 = vmatpush2.bf16.msra.mxu0 0
      %1803 = vmatprep.subr.bf16.mxu0 0
      %1804 = vmatpush2.bf16.msra.mxu0 0
      %1805 = vmatprep.subr.bf16.mxu0 0
      %1806 = vmatpush2.bf16.msra.mxu0 0
      %1807 = vmatprep.subr.bf16.mxu0 0
      %1808 = vmatpush2.bf16.msra.mxu0 0
      %1809 = vmatprep.subr.bf16.mxu0 0
      %1810 = vmatpush2.bf16.msra.mxu0 0
      %1811 = vmatprep.subr.bf16.mxu0 0
      %1812 = vmatpush2.bf16.msra.mxu0 0
      %1813 = vmatprep.mubr.bf16.mxu0 0
      %1814 = vmatmul.mubr.bf16.gmra.mxu0 %v1700
      %v1815 = vpop.f32.mrf.mxu0
      %v1816 = vadd.f32 0.0, %v1815
      %v1817 = vpop.f32.mrf.mxu0
      %v1818 = vpop.f32.mrf.mxu0
      %v1819 = vadd.f32 0.0, %v1818
      %v1820 = vpop.f32.mrf.mxu0
      %1821 = vmatprep.mubr.bf16.mxu0 0
      %1822 = vmatmul.mubr.bf16.gmra.mxu0 %v1701
      %v1823 = vpop.f32.mrf.mxu0
      %v1824 = vadd.f32 0.0, %v1823
      %v1825 = vpop.f32.mrf.mxu0
      %v1826 = vpop.f32.mrf.mxu0
      %v1827 = vadd.f32 0.0, %v1826
      %v1828 = vpop.f32.mrf.mxu0
      %1829 = vmatprep.mubr.bf16.mxu0 0
      %1830 = vmatmul.mubr.bf16.gmra.mxu0 %v1702
      %v1831 = vpop.f32.mrf.mxu0
      %v1832 = vadd.f32 0.0, %v1831
      %v1833 = vpop.f32.mrf.mxu0
      %v1834 = vpop.f32.mrf.mxu0
      %v1835 = vadd.f32 0.0, %v1834
      %v1836 = vpop.f32.mrf.mxu0
      %1837 = vmatprep.mubr.bf16.mxu0 0
      %1838 = vmatmul.mubr.bf16.gmra.mxu0 %v1703
      %v1839 = vpop.f32.mrf.mxu0
      %v1840 = vadd.f32 0.0, %v1839
      %v1841 = vpop.f32.mrf.mxu0
      %v1842 = vpop.f32.mrf.mxu0
      %v1843 = vadd.f32 0.0, %v1842
      %v1844 = vpop.f32.mrf.mxu0
      %1845 = vmatprep.mubr.bf16.mxu0 0
      %1846 = vmatmul.mubr.bf16.gmra.mxu0 %v1704
      %v1847 = vpop.f32.mrf.mxu0
      %v1848 = vadd.f32 0.0, %v1847
      %v1849 = vpop.f32.mrf.mxu0
      %v1850 = vpop.f32.mrf.mxu0
      %v1851 = vadd.f32 0.0, %v1850
      %v1852 = vpop.f32.mrf.mxu0
      %1853 = vmatprep.mubr.bf16.mxu0 0
      %1854 = vmatmul.mubr.bf16.gmra.mxu0 %v1705
      %v1855 = vpop.f32.mrf.mxu0
      %v1856 = vadd.f32 0.0, %v1855
      %v1857 = vpop.f32.mrf.mxu0
      %v1858 = vpop.f32.mrf.mxu0
      %v1859 = vadd.f32 0.0, %v1858
      %v1860 = vpop.f32.mrf.mxu0
      %1861 = vmatprep.mubr.bf16.mxu0 0
      %1862 = vmatmul.mubr.bf16.gmra.mxu0 %v1706
      %v1863 = vpop.f32.mrf.mxu0
      %v1864 = vadd.f32 0.0, %v1863
      %v1865 = vpop.f32.mrf.mxu0
      %v1866 = vpop.f32.mrf.mxu0
      %v1867 = vadd.f32 0.0, %v1866
      %v1868 = vpop.f32.mrf.mxu0
      %1869 = vmatprep.mubr.bf16.mxu0 0
      %1870 = vmatmul.mubr.bf16.gmra.mxu0 %v1707
      %v1871 = vpop.f32.mrf.mxu0
      %v1872 = vadd.f32 0.0, %v1871
      %v1873 = vpop.f32.mrf.mxu0
      %v1874 = vpop.f32.mrf.mxu0
      %v1875 = vadd.f32 0.0, %v1874
      %v1876 = vpop.f32.mrf.mxu0
      %1877 = vmatprep.mubr.bf16.mxu0 0
      %1878 = vmatmul.mubr.bf16.gmra.mxu0 %v1708
      %v1879 = vpop.f32.mrf.mxu0
      %v1880 = vadd.f32 0.0, %v1879
      %v1881 = vpop.f32.mrf.mxu0
      %v1882 = vpop.f32.mrf.mxu0
      %v1883 = vadd.f32 0.0, %v1882
      %v1884 = vpop.f32.mrf.mxu0
      %1885 = vmatprep.mubr.bf16.mxu0 0
      %1886 = vmatmul.mubr.bf16.gmra.mxu0 %v1709
      %v1887 = vpop.f32.mrf.mxu0
      %v1888 = vadd.f32 0.0, %v1887
      %v1889 = vpop.f32.mrf.mxu0
      %v1890 = vpop.f32.mrf.mxu0
      %v1891 = vadd.f32 0.0, %v1890
      %v1892 = vpop.f32.mrf.mxu0
      %1893 = vmatprep.mubr.bf16.mxu0 0
      %1894 = vmatmul.mubr.bf16.gmra.mxu0 %v1710
      %v1895 = vpop.f32.mrf.mxu0
      %v1896 = vadd.f32 0.0, %v1895
      %v1897 = vpop.f32.mrf.mxu0
      %v1898 = vpop.f32.mrf.mxu0
      %v1899 = vadd.f32 0.0, %v1898
      %v1900 = vpop.f32.mrf.mxu0
      %1901 = vmatprep.mubr.bf16.mxu0 0
      %1902 = vmatmul.mubr.bf16.gmra.mxu0 %v1711
      %v1903 = vpop.f32.mrf.mxu0
      %v1904 = vadd.f32 0.0, %v1903
      %v1905 = vpop.f32.mrf.mxu0
      %v1906 = vpop.f32.mrf.mxu0
      %v1907 = vadd.f32 0.0, %v1906
      %v1908 = vpop.f32.mrf.mxu0
      %1909 = vmatprep.mubr.bf16.mxu0 0
      %1910 = vmatmul.mubr.bf16.gmra.mxu0 %v1712
      %v1911 = vpop.f32.mrf.mxu0
      %v1912 = vadd.f32 0.0, %v1911
      %v1913 = vpop.f32.mrf.mxu0
      %v1914 = vpop.f32.mrf.mxu0
      %v1915 = vadd.f32 0.0, %v1914
      %v1916 = vpop.f32.mrf.mxu0
      %1917 = vmatprep.mubr.bf16.mxu0 0
      %1918 = vmatmul.mubr.bf16.gmra.mxu0 %v1713
      %v1919 = vpop.f32.mrf.mxu0
      %v1920 = vadd.f32 0.0, %v1919
      %v1921 = vpop.f32.mrf.mxu0
      %v1922 = vpop.f32.mrf.mxu0
      %v1923 = vadd.f32 0.0, %v1922
      %v1924 = vpop.f32.mrf.mxu0
      %1925 = vmatprep.mubr.bf16.mxu0 0
      %1926 = vmatmul.mubr.bf16.gmra.mxu0 %v1714
      %v1927 = vpop.f32.mrf.mxu0
      %v1928 = vadd.f32 0.0, %v1927
      %v1929 = vpop.f32.mrf.mxu0
      %v1930 = vpop.f32.mrf.mxu0
      %v1931 = vadd.f32 0.0, %v1930
      %v1932 = vpop.f32.mrf.mxu0
      %1933 = vmatprep.mubr.bf16.mxu0 0
      %1934 = vmatmul.mubr.bf16.gmra.mxu0 %v1715
      %v1935 = vpop.f32.mrf.mxu0
      %v1936 = vadd.f32 0.0, %v1935
      %v1937 = vpop.f32.mrf.mxu0
      %v1938 = vpop.f32.mrf.mxu0
      %v1939 = vadd.f32 0.0, %v1938
      %v1940 = vpop.f32.mrf.mxu0
      %1941 = vdwg.mxu0
      %v1942 = vadd.f32 %v1636, %v1816
      %v1943 = vadd.f32 %v1637, %v1819
      %v1944 = vadd.f32 %v1638, %v1824
      %v1945 = vadd.f32 %v1639, %v1827
      %v1946 = vadd.f32 %v1640, %v1832
      %v1947 = vadd.f32 %v1641, %v1835
      %v1948 = vadd.f32 %v1642, %v1840
      %v1949 = vadd.f32 %v1643, %v1843
      %v1950 = vadd.f32 %v1644, %v1848
      %v1951 = vadd.f32 %v1645, %v1851
      %v1952 = vadd.f32 %v1646, %v1856
      %v1953 = vadd.f32 %v1647, %v1859
      %v1954 = vadd.f32 %v1648, %v1864
      %v1955 = vadd.f32 %v1649, %v1867
      %v1956 = vadd.f32 %v1650, %v1872
      %v1957 = vadd.f32 %v1651, %v1875
      %v1958 = vadd.f32 %v1652, %v1880
      %v1959 = vadd.f32 %v1653, %v1883
      %v1960 = vadd.f32 %v1654, %v1888
      %v1961 = vadd.f32 %v1655, %v1891
      %v1962 = vadd.f32 %v1656, %v1896
      %v1963 = vadd.f32 %v1657, %v1899
      %v1964 = vadd.f32 %v1658, %v1904
      %v1965 = vadd.f32 %v1659, %v1907
      %v1966 = vadd.f32 %v1660, %v1912
      %v1967 = vadd.f32 %v1661, %v1915
      %v1968 = vadd.f32 %v1662, %v1920
      %v1969 = vadd.f32 %v1663, %v1923
      %v1970 = vadd.f32 %v1664, %v1928
      %v1971 = vadd.f32 %v1665, %v1931
      %v1972 = vadd.f32 %v1666, %v1936
      %v1973 = vadd.f32 %v1667, %v1939
      %s1974 = scalar_lea.vmem %s190, 48
      %v1975 = vld [vmem:[%s1974] sm:$0xff]
      %v1976 = vld [vmem:[%s1974 + $0x8] sm:$0xff]
      %v1977 = vld [vmem:[%s1974 + $0x18] sm:$0xff]
      %v1978 = vld [vmem:[%s1974 + $0x20] sm:$0xff]
      %v1979 = vld [vmem:[%s1974 + $0x30] sm:$0xff]
      %v1980 = vld [vmem:[%s1974 + $0x38] sm:$0xff]
      %v1981 = vld [vmem:[%s1974 + $0x48] sm:$0xff]
      %v1982 = vld [vmem:[%s1974 + $0x50] sm:$0xff]
      %v1983 = vld [vmem:[%s1974 + $0x60] sm:$0xff]
      %v1984 = vld [vmem:[%s1974 + $0x68] sm:$0xff]
      %v1985 = vld [vmem:[%s1974 + $0x78] sm:$0xff]
      %v1986 = vld [vmem:[%s1974 + $0x80] sm:$0xff]
      %v1987 = vld [vmem:[%s1974 + $0x90] sm:$0xff]
      %v1988 = vld [vmem:[%s1974 + $0x98] sm:$0xff]
      %v1989 = vld [vmem:[%s1974 + $0xa8] sm:$0xff]
      %v1990 = vld [vmem:[%s1974 + $0xb0] sm:$0xff]
      %v1991 = vld [vmem:[%s1974 + $0xc0] sm:$0xff]
      %v1992 = vld [vmem:[%s1974 + $0xc8] sm:$0xff]
      %v1993 = vld [vmem:[%s1974 + $0xd8] sm:$0xff]
      %v1994 = vld [vmem:[%s1974 + $0xe0] sm:$0xff]
      %v1995 = vld [vmem:[%s1974 + $0xf0] sm:$0xff]
      %v1996 = vld [vmem:[%s1974 + $0xf8] sm:$0xff]
      %v1997 = vld [vmem:[%s1974 + $0x108] sm:$0xff]
      %v1998 = vld [vmem:[%s1974 + $0x110] sm:$0xff]
      %v1999 = vld [vmem:[%s1974 + $0x120] sm:$0xff]
      %v2000 = vld [vmem:[%s1974 + $0x128] sm:$0xff]
      %v2001 = vld [vmem:[%s1974 + $0x138] sm:$0xff]
      %v2002 = vld [vmem:[%s1974 + $0x140] sm:$0xff]
      %v2003 = vld [vmem:[%s1974 + $0x150] sm:$0xff]
      %v2004 = vld [vmem:[%s1974 + $0x158] sm:$0xff]
      %v2005 = vld [vmem:[%s1974 + $0x168] sm:$0xff]
      %v2006 = vld [vmem:[%s1974 + $0x170] sm:$0xff]
      %v2007 = vpack.c.bf16 %v1976, %v1975
      %v2008 = vpack.c.bf16 %v1978, %v1977
      %v2009 = vpack.c.bf16 %v1980, %v1979
      %v2010 = vpack.c.bf16 %v1982, %v1981
      %v2011 = vpack.c.bf16 %v1984, %v1983
      %v2012 = vpack.c.bf16 %v1986, %v1985
      %v2013 = vpack.c.bf16 %v1988, %v1987
      %v2014 = vpack.c.bf16 %v1990, %v1989
      %v2015 = vpack.c.bf16 %v1992, %v1991
      %v2016 = vpack.c.bf16 %v1994, %v1993
      %v2017 = vpack.c.bf16 %v1996, %v1995
      %v2018 = vpack.c.bf16 %v1998, %v1997
      %v2019 = vpack.c.bf16 %v2000, %v1999
      %v2020 = vpack.c.bf16 %v2002, %v2001
      %v2021 = vpack.c.bf16 %v2004, %v2003
      %v2022 = vpack.c.bf16 %v2006, %v2005
      %s2023 = scalar_lea.vmem %s1, 384
      %v2024 = vld [vmem:[%s2023] sm:$0xf]
      %v2025 = vld [vmem:[%s2023 + $0x4] sm:$0xf]
      %v2026 = vld [vmem:[%s2023 + $0x8] sm:$0xf]
      %v2027 = vld [vmem:[%s2023 + $0xc] sm:$0xf]
      %v2028 = vld [vmem:[%s2023 + $0x10] sm:$0xf]
      %v2029 = vld [vmem:[%s2023 + $0x14] sm:$0xf]
      %v2030 = vld [vmem:[%s2023 + $0x18] sm:$0xf]
      %v2031 = vld [vmem:[%s2023 + $0x1c] sm:$0xf]
      %v2032 = vld [vmem:[%s2023 + $0x20] sm:$0xf]
      %v2033 = vld [vmem:[%s2023 + $0x24] sm:$0xf]
      %v2034 = vld [vmem:[%s2023 + $0x28] sm:$0xf]
      %v2035 = vld [vmem:[%s2023 + $0x2c] sm:$0xf]
      %v2036 = vld [vmem:[%s2023 + $0x30] sm:$0xf]
      %v2037 = vld [vmem:[%s2023 + $0x34] sm:$0xf]
      %v2038 = vld [vmem:[%s2023 + $0x38] sm:$0xf]
      %v2039 = vld [vmem:[%s2023 + $0x3c] sm:$0xf]
      %v2056 = vunpack.c.l.b16 %v2024
      %v2057 = vunpack.c.l.b16 %v2025
      %v2058 = vunpack.c.l.b16 %v2026
      %v2059 = vunpack.c.l.b16 %v2027
      %v2060 = vunpack.c.l.b16 %v2028
      %v2061 = vunpack.c.l.b16 %v2029
      %v2062 = vunpack.c.l.b16 %v2030
      %v2063 = vunpack.c.l.b16 %v2031
      %v2064 = vunpack.c.l.b16 %v2032
      %v2065 = vunpack.c.l.b16 %v2033
      %v2066 = vunpack.c.l.b16 %v2034
      %v2067 = vunpack.c.l.b16 %v2035
      %v2068 = vunpack.c.l.b16 %v2036
      %v2069 = vunpack.c.l.b16 %v2037
      %v2070 = vunpack.c.l.b16 %v2038
      %v2071 = vunpack.c.l.b16 %v2039
      %v2072 = vpack.c.b16 %v2057, %v2056
      %v2073 = vpack.c.b16 %v2059, %v2058
      %v2074 = vpack.c.b16 %v2061, %v2060
      %v2075 = vpack.c.b16 %v2063, %v2062
      %v2076 = vpack.c.b16 %v2065, %v2064
      %v2077 = vpack.c.b16 %v2067, %v2066
      %v2078 = vpack.c.b16 %v2069, %v2068
      %v2079 = vpack.c.b16 %v2071, %v2070
      %2088 = vmatprep.subr.bf16.mxu0 0
      %2089 = vmatpush1.bf16.msra.mxu0 %v2079
      %2090 = vmatprep.subr.bf16.mxu0 0
      %2091 = vmatpush1.bf16.msra.mxu0 %v2078
      %2092 = vmatprep.subr.bf16.mxu0 0
      %2093 = vmatpush1.bf16.msra.mxu0 %v2077
      %2094 = vmatprep.subr.bf16.mxu0 0
      %2095 = vmatpush1.bf16.msra.mxu0 %v2076
      %2096 = vmatprep.subr.bf16.mxu0 0
      %2097 = vmatpush1.bf16.msra.mxu0 %v2075
      %2098 = vmatprep.subr.bf16.mxu0 0
      %2099 = vmatpush1.bf16.msra.mxu0 %v2074
      %2100 = vmatprep.subr.bf16.mxu0 0
      %2101 = vmatpush1.bf16.msra.mxu0 %v2073
      %2102 = vmatprep.subr.bf16.mxu0 0
      %2103 = vmatpush1.bf16.msra.mxu0 %v2072
      %2104 = vmatprep.subr.bf16.mxu0 0
      %2105 = vmatpush2.bf16.msra.mxu0 0
      %2106 = vmatprep.subr.bf16.mxu0 0
      %2107 = vmatpush2.bf16.msra.mxu0 0
      %2108 = vmatprep.subr.bf16.mxu0 0
      %2109 = vmatpush2.bf16.msra.mxu0 0
      %2110 = vmatprep.subr.bf16.mxu0 0
      %2111 = vmatpush2.bf16.msra.mxu0 0
      %2112 = vmatprep.subr.bf16.mxu0 0
      %2113 = vmatpush2.bf16.msra.mxu0 0
      %2114 = vmatprep.subr.bf16.mxu0 0
      %2115 = vmatpush2.bf16.msra.mxu0 0
      %2116 = vmatprep.subr.bf16.mxu0 0
      %2117 = vmatpush2.bf16.msra.mxu0 0
      %2118 = vmatprep.subr.bf16.mxu0 0
      %2119 = vmatpush2.bf16.msra.mxu0 0
      %2120 = vmatprep.mubr.bf16.mxu0 0
      %2121 = vmatmul.mubr.bf16.gmra.mxu0 %v2007
      %v2122 = vpop.f32.mrf.mxu0
      %v2123 = vadd.f32 0.0, %v2122
      %v2124 = vpop.f32.mrf.mxu0
      %v2125 = vpop.f32.mrf.mxu0
      %v2126 = vadd.f32 0.0, %v2125
      %v2127 = vpop.f32.mrf.mxu0
      %2128 = vmatprep.mubr.bf16.mxu0 0
      %2129 = vmatmul.mubr.bf16.gmra.mxu0 %v2008
      %v2130 = vpop.f32.mrf.mxu0
      %v2131 = vadd.f32 0.0, %v2130
      %v2132 = vpop.f32.mrf.mxu0
      %v2133 = vpop.f32.mrf.mxu0
      %v2134 = vadd.f32 0.0, %v2133
      %v2135 = vpop.f32.mrf.mxu0
      %2136 = vmatprep.mubr.bf16.mxu0 0
      %2137 = vmatmul.mubr.bf16.gmra.mxu0 %v2009
      %v2138 = vpop.f32.mrf.mxu0
      %v2139 = vadd.f32 0.0, %v2138
      %v2140 = vpop.f32.mrf.mxu0
      %v2141 = vpop.f32.mrf.mxu0
      %v2142 = vadd.f32 0.0, %v2141
      %v2143 = vpop.f32.mrf.mxu0
      %2144 = vmatprep.mubr.bf16.mxu0 0
      %2145 = vmatmul.mubr.bf16.gmra.mxu0 %v2010
      %v2146 = vpop.f32.mrf.mxu0
      %v2147 = vadd.f32 0.0, %v2146
      %v2148 = vpop.f32.mrf.mxu0
      %v2149 = vpop.f32.mrf.mxu0
      %v2150 = vadd.f32 0.0, %v2149
      %v2151 = vpop.f32.mrf.mxu0
      %2152 = vmatprep.mubr.bf16.mxu0 0
      %2153 = vmatmul.mubr.bf16.gmra.mxu0 %v2011
      %v2154 = vpop.f32.mrf.mxu0
      %v2155 = vadd.f32 0.0, %v2154
      %v2156 = vpop.f32.mrf.mxu0
      %v2157 = vpop.f32.mrf.mxu0
      %v2158 = vadd.f32 0.0, %v2157
      %v2159 = vpop.f32.mrf.mxu0
      %2160 = vmatprep.mubr.bf16.mxu0 0
      %2161 = vmatmul.mubr.bf16.gmra.mxu0 %v2012
      %v2162 = vpop.f32.mrf.mxu0
      %v2163 = vadd.f32 0.0, %v2162
      %v2164 = vpop.f32.mrf.mxu0
      %v2165 = vpop.f32.mrf.mxu0
      %v2166 = vadd.f32 0.0, %v2165
      %v2167 = vpop.f32.mrf.mxu0
      %2168 = vmatprep.mubr.bf16.mxu0 0
      %2169 = vmatmul.mubr.bf16.gmra.mxu0 %v2013
      %v2170 = vpop.f32.mrf.mxu0
      %v2171 = vadd.f32 0.0, %v2170
      %v2172 = vpop.f32.mrf.mxu0
      %v2173 = vpop.f32.mrf.mxu0
      %v2174 = vadd.f32 0.0, %v2173
      %v2175 = vpop.f32.mrf.mxu0
      %2176 = vmatprep.mubr.bf16.mxu0 0
      %2177 = vmatmul.mubr.bf16.gmra.mxu0 %v2014
      %v2178 = vpop.f32.mrf.mxu0
      %v2179 = vadd.f32 0.0, %v2178
      %v2180 = vpop.f32.mrf.mxu0
      %v2181 = vpop.f32.mrf.mxu0
      %v2182 = vadd.f32 0.0, %v2181
      %v2183 = vpop.f32.mrf.mxu0
      %2184 = vmatprep.mubr.bf16.mxu0 0
      %2185 = vmatmul.mubr.bf16.gmra.mxu0 %v2015
      %v2186 = vpop.f32.mrf.mxu0
      %v2187 = vadd.f32 0.0, %v2186
      %v2188 = vpop.f32.mrf.mxu0
      %v2189 = vpop.f32.mrf.mxu0
      %v2190 = vadd.f32 0.0, %v2189
      %v2191 = vpop.f32.mrf.mxu0
      %2192 = vmatprep.mubr.bf16.mxu0 0
      %2193 = vmatmul.mubr.bf16.gmra.mxu0 %v2016
      %v2194 = vpop.f32.mrf.mxu0
      %v2195 = vadd.f32 0.0, %v2194
      %v2196 = vpop.f32.mrf.mxu0
      %v2197 = vpop.f32.mrf.mxu0
      %v2198 = vadd.f32 0.0, %v2197
      %v2199 = vpop.f32.mrf.mxu0
      %2200 = vmatprep.mubr.bf16.mxu0 0
      %2201 = vmatmul.mubr.bf16.gmra.mxu0 %v2017
      %v2202 = vpop.f32.mrf.mxu0
      %v2203 = vadd.f32 0.0, %v2202
      %v2204 = vpop.f32.mrf.mxu0
      %v2205 = vpop.f32.mrf.mxu0
      %v2206 = vadd.f32 0.0, %v2205
      %v2207 = vpop.f32.mrf.mxu0
      %2208 = vmatprep.mubr.bf16.mxu0 0
      %2209 = vmatmul.mubr.bf16.gmra.mxu0 %v2018
      %v2210 = vpop.f32.mrf.mxu0
      %v2211 = vadd.f32 0.0, %v2210
      %v2212 = vpop.f32.mrf.mxu0
      %v2213 = vpop.f32.mrf.mxu0
      %v2214 = vadd.f32 0.0, %v2213
      %v2215 = vpop.f32.mrf.mxu0
      %2216 = vmatprep.mubr.bf16.mxu0 0
      %2217 = vmatmul.mubr.bf16.gmra.mxu0 %v2019
      %v2218 = vpop.f32.mrf.mxu0
      %v2219 = vadd.f32 0.0, %v2218
      %v2220 = vpop.f32.mrf.mxu0
      %v2221 = vpop.f32.mrf.mxu0
      %v2222 = vadd.f32 0.0, %v2221
      %v2223 = vpop.f32.mrf.mxu0
      %2224 = vmatprep.mubr.bf16.mxu0 0
      %2225 = vmatmul.mubr.bf16.gmra.mxu0 %v2020
      %v2226 = vpop.f32.mrf.mxu0
      %v2227 = vadd.f32 0.0, %v2226
      %v2228 = vpop.f32.mrf.mxu0
      %v2229 = vpop.f32.mrf.mxu0
      %v2230 = vadd.f32 0.0, %v2229
      %v2231 = vpop.f32.mrf.mxu0
      %2232 = vmatprep.mubr.bf16.mxu0 0
      %2233 = vmatmul.mubr.bf16.gmra.mxu0 %v2021
      %v2234 = vpop.f32.mrf.mxu0
      %v2235 = vadd.f32 0.0, %v2234
      %v2236 = vpop.f32.mrf.mxu0
      %v2237 = vpop.f32.mrf.mxu0
      %v2238 = vadd.f32 0.0, %v2237
      %v2239 = vpop.f32.mrf.mxu0
      %2240 = vmatprep.mubr.bf16.mxu0 0
      %2241 = vmatmul.mubr.bf16.gmra.mxu0 %v2022
      %v2242 = vpop.f32.mrf.mxu0
      %v2243 = vadd.f32 0.0, %v2242
      %v2244 = vpop.f32.mrf.mxu0
      %v2245 = vpop.f32.mrf.mxu0
      %v2246 = vadd.f32 0.0, %v2245
      %v2247 = vpop.f32.mrf.mxu0
      %2248 = vdwg.mxu0
      %v2249 = vadd.f32 %v1942, %v2123
      %v2250 = vadd.f32 %v1943, %v2126
      %v2251 = vadd.f32 %v1944, %v2131
      %v2252 = vadd.f32 %v1945, %v2134
      %v2253 = vadd.f32 %v1946, %v2139
      %v2254 = vadd.f32 %v1947, %v2142
      %v2255 = vadd.f32 %v1948, %v2147
      %v2256 = vadd.f32 %v1949, %v2150
      %v2257 = vadd.f32 %v1950, %v2155
      %v2258 = vadd.f32 %v1951, %v2158
      %v2259 = vadd.f32 %v1952, %v2163
      %v2260 = vadd.f32 %v1953, %v2166
      %v2261 = vadd.f32 %v1954, %v2171
      %v2262 = vadd.f32 %v1955, %v2174
      %v2263 = vadd.f32 %v1956, %v2179
      %v2264 = vadd.f32 %v1957, %v2182
      %v2265 = vadd.f32 %v1958, %v2187
      %v2266 = vadd.f32 %v1959, %v2190
      %v2267 = vadd.f32 %v1960, %v2195
      %v2268 = vadd.f32 %v1961, %v2198
      %v2269 = vadd.f32 %v1962, %v2203
      %v2270 = vadd.f32 %v1963, %v2206
      %v2271 = vadd.f32 %v1964, %v2211
      %v2272 = vadd.f32 %v1965, %v2214
      %v2273 = vadd.f32 %v1966, %v2219
      %v2274 = vadd.f32 %v1967, %v2222
      %v2275 = vadd.f32 %v1968, %v2227
      %v2276 = vadd.f32 %v1969, %v2230
      %v2277 = vadd.f32 %v1970, %v2235
      %v2278 = vadd.f32 %v1971, %v2238
      %v2279 = vadd.f32 %v1972, %v2243
      %v2280 = vadd.f32 %v1973, %v2246
      %v2281 = vld [vmem:[%s1974 + $0x1] sm:$0xff]
      %v2282 = vld [vmem:[%s1974 + $0x9] sm:$0xff]
      %v2283 = vld [vmem:[%s1974 + $0x19] sm:$0xff]
      %v2284 = vld [vmem:[%s1974 + $0x21] sm:$0xff]
      %v2285 = vld [vmem:[%s1974 + $0x31] sm:$0xff]
      %v2286 = vld [vmem:[%s1974 + $0x39] sm:$0xff]
      %v2287 = vld [vmem:[%s1974 + $0x49] sm:$0xff]
      %v2288 = vld [vmem:[%s1974 + $0x51] sm:$0xff]
      %v2289 = vld [vmem:[%s1974 + $0x61] sm:$0xff]
      %v2290 = vld [vmem:[%s1974 + $0x69] sm:$0xff]
      %v2291 = vld [vmem:[%s1974 + $0x79] sm:$0xff]
      %v2292 = vld [vmem:[%s1974 + $0x81] sm:$0xff]
      %v2293 = vld [vmem:[%s1974 + $0x91] sm:$0xff]
      %v2294 = vld [vmem:[%s1974 + $0x99] sm:$0xff]
      %v2295 = vld [vmem:[%s1974 + $0xa9] sm:$0xff]
      %v2296 = vld [vmem:[%s1974 + $0xb1] sm:$0xff]
      %v2297 = vld [vmem:[%s1974 + $0xc1] sm:$0xff]
      %v2298 = vld [vmem:[%s1974 + $0xc9] sm:$0xff]
      %v2299 = vld [vmem:[%s1974 + $0xd9] sm:$0xff]
      %v2300 = vld [vmem:[%s1974 + $0xe1] sm:$0xff]
      %v2301 = vld [vmem:[%s1974 + $0xf1] sm:$0xff]
      %v2302 = vld [vmem:[%s1974 + $0xf9] sm:$0xff]
      %v2303 = vld [vmem:[%s1974 + $0x109] sm:$0xff]
      %v2304 = vld [vmem:[%s1974 + $0x111] sm:$0xff]
      %v2305 = vld [vmem:[%s1974 + $0x121] sm:$0xff]
      %v2306 = vld [vmem:[%s1974 + $0x129] sm:$0xff]
      %v2307 = vld [vmem:[%s1974 + $0x139] sm:$0xff]
      %v2308 = vld [vmem:[%s1974 + $0x141] sm:$0xff]
      %v2309 = vld [vmem:[%s1974 + $0x151] sm:$0xff]
      %v2310 = vld [vmem:[%s1974 + $0x159] sm:$0xff]
      %v2311 = vld [vmem:[%s1974 + $0x169] sm:$0xff]
      %v2312 = vld [vmem:[%s1974 + $0x171] sm:$0xff]
      %v2313 = vpack.c.bf16 %v2282, %v2281
      %v2314 = vpack.c.bf16 %v2284, %v2283
      %v2315 = vpack.c.bf16 %v2286, %v2285
      %v2316 = vpack.c.bf16 %v2288, %v2287
      %v2317 = vpack.c.bf16 %v2290, %v2289
      %v2318 = vpack.c.bf16 %v2292, %v2291
      %v2319 = vpack.c.bf16 %v2294, %v2293
      %v2320 = vpack.c.bf16 %v2296, %v2295
      %v2321 = vpack.c.bf16 %v2298, %v2297
      %v2322 = vpack.c.bf16 %v2300, %v2299
      %v2323 = vpack.c.bf16 %v2302, %v2301
      %v2324 = vpack.c.bf16 %v2304, %v2303
      %v2325 = vpack.c.bf16 %v2306, %v2305
      %v2326 = vpack.c.bf16 %v2308, %v2307
      %v2327 = vpack.c.bf16 %v2310, %v2309
      %v2328 = vpack.c.bf16 %v2312, %v2311
      %s2329 = scalar_lea.vmem %s1, 448
      %v2330 = vld [vmem:[%s2329] sm:$0xf]
      %v2331 = vld [vmem:[%s2329 + $0x4] sm:$0xf]
      %v2332 = vld [vmem:[%s2329 + $0x8] sm:$0xf]
      %v2333 = vld [vmem:[%s2329 + $0xc] sm:$0xf]
      %v2334 = vld [vmem:[%s2329 + $0x10] sm:$0xf]
      %v2335 = vld [vmem:[%s2329 + $0x14] sm:$0xf]
      %v2336 = vld [vmem:[%s2329 + $0x18] sm:$0xf]
      %v2337 = vld [vmem:[%s2329 + $0x1c] sm:$0xf]
      %v2338 = vld [vmem:[%s2329 + $0x20] sm:$0xf]
      %v2339 = vld [vmem:[%s2329 + $0x24] sm:$0xf]
      %v2340 = vld [vmem:[%s2329 + $0x28] sm:$0xf]
      %v2341 = vld [vmem:[%s2329 + $0x2c] sm:$0xf]
      %v2342 = vld [vmem:[%s2329 + $0x30] sm:$0xf]
      %v2343 = vld [vmem:[%s2329 + $0x34] sm:$0xf]
      %v2344 = vld [vmem:[%s2329 + $0x38] sm:$0xf]
      %v2345 = vld [vmem:[%s2329 + $0x3c] sm:$0xf]
      %v2362 = vunpack.c.l.b16 %v2330
      %v2363 = vunpack.c.l.b16 %v2331
      %v2364 = vunpack.c.l.b16 %v2332
      %v2365 = vunpack.c.l.b16 %v2333
      %v2366 = vunpack.c.l.b16 %v2334
      %v2367 = vunpack.c.l.b16 %v2335
      %v2368 = vunpack.c.l.b16 %v2336
      %v2369 = vunpack.c.l.b16 %v2337
      %v2370 = vunpack.c.l.b16 %v2338
      %v2371 = vunpack.c.l.b16 %v2339
      %v2372 = vunpack.c.l.b16 %v2340
      %v2373 = vunpack.c.l.b16 %v2341
      %v2374 = vunpack.c.l.b16 %v2342
      %v2375 = vunpack.c.l.b16 %v2343
      %v2376 = vunpack.c.l.b16 %v2344
      %v2377 = vunpack.c.l.b16 %v2345
      %v2378 = vpack.c.b16 %v2363, %v2362
      %v2379 = vpack.c.b16 %v2365, %v2364
      %v2380 = vpack.c.b16 %v2367, %v2366
      %v2381 = vpack.c.b16 %v2369, %v2368
      %v2382 = vpack.c.b16 %v2371, %v2370
      %v2383 = vpack.c.b16 %v2373, %v2372
      %v2384 = vpack.c.b16 %v2375, %v2374
      %v2385 = vpack.c.b16 %v2377, %v2376
      %2394 = vmatprep.subr.bf16.mxu0 0
      %2395 = vmatpush1.bf16.msra.mxu0 %v2385
      %2396 = vmatprep.subr.bf16.mxu0 0
      %2397 = vmatpush1.bf16.msra.mxu0 %v2384
      %2398 = vmatprep.subr.bf16.mxu0 0
      %2399 = vmatpush1.bf16.msra.mxu0 %v2383
      %2400 = vmatprep.subr.bf16.mxu0 0
      %2401 = vmatpush1.bf16.msra.mxu0 %v2382
      %2402 = vmatprep.subr.bf16.mxu0 0
      %2403 = vmatpush1.bf16.msra.mxu0 %v2381
      %2404 = vmatprep.subr.bf16.mxu0 0
      %2405 = vmatpush1.bf16.msra.mxu0 %v2380
      %2406 = vmatprep.subr.bf16.mxu0 0
      %2407 = vmatpush1.bf16.msra.mxu0 %v2379
      %2408 = vmatprep.subr.bf16.mxu0 0
      %2409 = vmatpush1.bf16.msra.mxu0 %v2378
      %2410 = vmatprep.subr.bf16.mxu0 0
      %2411 = vmatpush2.bf16.msra.mxu0 0
      %2412 = vmatprep.subr.bf16.mxu0 0
      %2413 = vmatpush2.bf16.msra.mxu0 0
      %2414 = vmatprep.subr.bf16.mxu0 0
      %2415 = vmatpush2.bf16.msra.mxu0 0
      %2416 = vmatprep.subr.bf16.mxu0 0
      %2417 = vmatpush2.bf16.msra.mxu0 0
      %2418 = vmatprep.subr.bf16.mxu0 0
      %2419 = vmatpush2.bf16.msra.mxu0 0
      %2420 = vmatprep.subr.bf16.mxu0 0
      %2421 = vmatpush2.bf16.msra.mxu0 0
      %2422 = vmatprep.subr.bf16.mxu0 0
      %2423 = vmatpush2.bf16.msra.mxu0 0
      %2424 = vmatprep.subr.bf16.mxu0 0
      %2425 = vmatpush2.bf16.msra.mxu0 0
      %2426 = vmatprep.mubr.bf16.mxu0 0
      %2427 = vmatmul.mubr.bf16.gmra.mxu0 %v2313
      %v2428 = vpop.f32.mrf.mxu0
      %v2429 = vadd.f32 0.0, %v2428
      %v2430 = vpop.f32.mrf.mxu0
      %v2431 = vpop.f32.mrf.mxu0
      %v2432 = vadd.f32 0.0, %v2431
      %v2433 = vpop.f32.mrf.mxu0
      %2434 = vmatprep.mubr.bf16.mxu0 0
      %2435 = vmatmul.mubr.bf16.gmra.mxu0 %v2314
      %v2436 = vpop.f32.mrf.mxu0
      %v2437 = vadd.f32 0.0, %v2436
      %v2438 = vpop.f32.mrf.mxu0
      %v2439 = vpop.f32.mrf.mxu0
      %v2440 = vadd.f32 0.0, %v2439
      %v2441 = vpop.f32.mrf.mxu0
      %2442 = vmatprep.mubr.bf16.mxu0 0
      %2443 = vmatmul.mubr.bf16.gmra.mxu0 %v2315
      %v2444 = vpop.f32.mrf.mxu0
      %v2445 = vadd.f32 0.0, %v2444
      %v2446 = vpop.f32.mrf.mxu0
      %v2447 = vpop.f32.mrf.mxu0
      %v2448 = vadd.f32 0.0, %v2447
      %v2449 = vpop.f32.mrf.mxu0
      %2450 = vmatprep.mubr.bf16.mxu0 0
      %2451 = vmatmul.mubr.bf16.gmra.mxu0 %v2316
      %v2452 = vpop.f32.mrf.mxu0
      %v2453 = vadd.f32 0.0, %v2452
      %v2454 = vpop.f32.mrf.mxu0
      %v2455 = vpop.f32.mrf.mxu0
      %v2456 = vadd.f32 0.0, %v2455
      %v2457 = vpop.f32.mrf.mxu0
      %2458 = vmatprep.mubr.bf16.mxu0 0
      %2459 = vmatmul.mubr.bf16.gmra.mxu0 %v2317
      %v2460 = vpop.f32.mrf.mxu0
      %v2461 = vadd.f32 0.0, %v2460
      %v2462 = vpop.f32.mrf.mxu0
      %v2463 = vpop.f32.mrf.mxu0
      %v2464 = vadd.f32 0.0, %v2463
      %v2465 = vpop.f32.mrf.mxu0
      %2466 = vmatprep.mubr.bf16.mxu0 0
      %2467 = vmatmul.mubr.bf16.gmra.mxu0 %v2318
      %v2468 = vpop.f32.mrf.mxu0
      %v2469 = vadd.f32 0.0, %v2468
      %v2470 = vpop.f32.mrf.mxu0
      %v2471 = vpop.f32.mrf.mxu0
      %v2472 = vadd.f32 0.0, %v2471
      %v2473 = vpop.f32.mrf.mxu0
      %2474 = vmatprep.mubr.bf16.mxu0 0
      %2475 = vmatmul.mubr.bf16.gmra.mxu0 %v2319
      %v2476 = vpop.f32.mrf.mxu0
      %v2477 = vadd.f32 0.0, %v2476
      %v2478 = vpop.f32.mrf.mxu0
      %v2479 = vpop.f32.mrf.mxu0
      %v2480 = vadd.f32 0.0, %v2479
      %v2481 = vpop.f32.mrf.mxu0
      %2482 = vmatprep.mubr.bf16.mxu0 0
      %2483 = vmatmul.mubr.bf16.gmra.mxu0 %v2320
      %v2484 = vpop.f32.mrf.mxu0
      %v2485 = vadd.f32 0.0, %v2484
      %v2486 = vpop.f32.mrf.mxu0
      %v2487 = vpop.f32.mrf.mxu0
      %v2488 = vadd.f32 0.0, %v2487
      %v2489 = vpop.f32.mrf.mxu0
      %2490 = vmatprep.mubr.bf16.mxu0 0
      %2491 = vmatmul.mubr.bf16.gmra.mxu0 %v2321
      %v2492 = vpop.f32.mrf.mxu0
      %v2493 = vadd.f32 0.0, %v2492
      %v2494 = vpop.f32.mrf.mxu0
      %v2495 = vpop.f32.mrf.mxu0
      %v2496 = vadd.f32 0.0, %v2495
      %v2497 = vpop.f32.mrf.mxu0
      %2498 = vmatprep.mubr.bf16.mxu0 0
      %2499 = vmatmul.mubr.bf16.gmra.mxu0 %v2322
      %v2500 = vpop.f32.mrf.mxu0
      %v2501 = vadd.f32 0.0, %v2500
      %v2502 = vpop.f32.mrf.mxu0
      %v2503 = vpop.f32.mrf.mxu0
      %v2504 = vadd.f32 0.0, %v2503
      %v2505 = vpop.f32.mrf.mxu0
      %2506 = vmatprep.mubr.bf16.mxu0 0
      %2507 = vmatmul.mubr.bf16.gmra.mxu0 %v2323
      %v2508 = vpop.f32.mrf.mxu0
      %v2509 = vadd.f32 0.0, %v2508
      %v2510 = vpop.f32.mrf.mxu0
      %v2511 = vpop.f32.mrf.mxu0
      %v2512 = vadd.f32 0.0, %v2511
      %v2513 = vpop.f32.mrf.mxu0
      %2514 = vmatprep.mubr.bf16.mxu0 0
      %2515 = vmatmul.mubr.bf16.gmra.mxu0 %v2324
      %v2516 = vpop.f32.mrf.mxu0
      %v2517 = vadd.f32 0.0, %v2516
      %v2518 = vpop.f32.mrf.mxu0
      %v2519 = vpop.f32.mrf.mxu0
      %v2520 = vadd.f32 0.0, %v2519
      %v2521 = vpop.f32.mrf.mxu0
      %2522 = vmatprep.mubr.bf16.mxu0 0
      %2523 = vmatmul.mubr.bf16.gmra.mxu0 %v2325
      %v2524 = vpop.f32.mrf.mxu0
      %v2525 = vadd.f32 0.0, %v2524
      %v2526 = vpop.f32.mrf.mxu0
      %v2527 = vpop.f32.mrf.mxu0
      %v2528 = vadd.f32 0.0, %v2527
      %v2529 = vpop.f32.mrf.mxu0
      %2530 = vmatprep.mubr.bf16.mxu0 0
      %2531 = vmatmul.mubr.bf16.gmra.mxu0 %v2326
      %v2532 = vpop.f32.mrf.mxu0
      %v2533 = vadd.f32 0.0, %v2532
      %v2534 = vpop.f32.mrf.mxu0
      %v2535 = vpop.f32.mrf.mxu0
      %v2536 = vadd.f32 0.0, %v2535
      %v2537 = vpop.f32.mrf.mxu0
      %2538 = vmatprep.mubr.bf16.mxu0 0
      %2539 = vmatmul.mubr.bf16.gmra.mxu0 %v2327
      %v2540 = vpop.f32.mrf.mxu0
      %v2541 = vadd.f32 0.0, %v2540
      %v2542 = vpop.f32.mrf.mxu0
      %v2543 = vpop.f32.mrf.mxu0
      %v2544 = vadd.f32 0.0, %v2543
      %v2545 = vpop.f32.mrf.mxu0
      %2546 = vmatprep.mubr.bf16.mxu0 0
      %2547 = vmatmul.mubr.bf16.gmra.mxu0 %v2328
      %v2548 = vpop.f32.mrf.mxu0
      %v2549 = vadd.f32 0.0, %v2548
      %v2550 = vpop.f32.mrf.mxu0
      %v2551 = vpop.f32.mrf.mxu0
      %v2552 = vadd.f32 0.0, %v2551
      %v2553 = vpop.f32.mrf.mxu0
      %2554 = vdwg.mxu0
      %v2555 = vadd.f32 %v2249, %v2429
      %v2556 = vadd.f32 %v2250, %v2432
      %v2557 = vadd.f32 %v2251, %v2437
      %v2558 = vadd.f32 %v2252, %v2440
      %v2559 = vadd.f32 %v2253, %v2445
      %v2560 = vadd.f32 %v2254, %v2448
      %v2561 = vadd.f32 %v2255, %v2453
      %v2562 = vadd.f32 %v2256, %v2456
      %v2563 = vadd.f32 %v2257, %v2461
      %v2564 = vadd.f32 %v2258, %v2464
      %v2565 = vadd.f32 %v2259, %v2469
      %v2566 = vadd.f32 %v2260, %v2472
      %v2567 = vadd.f32 %v2261, %v2477
      %v2568 = vadd.f32 %v2262, %v2480
      %v2569 = vadd.f32 %v2263, %v2485
      %v2570 = vadd.f32 %v2264, %v2488
      %v2571 = vadd.f32 %v2265, %v2493
      %v2572 = vadd.f32 %v2266, %v2496
      %v2573 = vadd.f32 %v2267, %v2501
      %v2574 = vadd.f32 %v2268, %v2504
      %v2575 = vadd.f32 %v2269, %v2509
      %v2576 = vadd.f32 %v2270, %v2512
      %v2577 = vadd.f32 %v2271, %v2517
      %v2578 = vadd.f32 %v2272, %v2520
      %v2579 = vadd.f32 %v2273, %v2525
      %v2580 = vadd.f32 %v2274, %v2528
      %v2581 = vadd.f32 %v2275, %v2533
      %v2582 = vadd.f32 %v2276, %v2536
      %v2583 = vadd.f32 %v2277, %v2541
      %v2584 = vadd.f32 %v2278, %v2544
      %v2585 = vadd.f32 %v2279, %v2549
      %v2586 = vadd.f32 %v2280, %v2552
      %v2587 = vld [vmem:[%s1974 + $0x2] sm:$0xff]
      %v2588 = vld [vmem:[%s1974 + $0xa] sm:$0xff]
      %v2589 = vld [vmem:[%s1974 + $0x1a] sm:$0xff]
      %v2590 = vld [vmem:[%s1974 + $0x22] sm:$0xff]
      %v2591 = vld [vmem:[%s1974 + $0x32] sm:$0xff]
      %v2592 = vld [vmem:[%s1974 + $0x3a] sm:$0xff]
      %v2593 = vld [vmem:[%s1974 + $0x4a] sm:$0xff]
      %v2594 = vld [vmem:[%s1974 + $0x52] sm:$0xff]
      %v2595 = vld [vmem:[%s1974 + $0x62] sm:$0xff]
      %v2596 = vld [vmem:[%s1974 + $0x6a] sm:$0xff]
      %v2597 = vld [vmem:[%s1974 + $0x7a] sm:$0xff]
      %v2598 = vld [vmem:[%s1974 + $0x82] sm:$0xff]
      %v2599 = vld [vmem:[%s1974 + $0x92] sm:$0xff]
      %v2600 = vld [vmem:[%s1974 + $0x9a] sm:$0xff]
      %v2601 = vld [vmem:[%s1974 + $0xaa] sm:$0xff]
      %v2602 = vld [vmem:[%s1974 + $0xb2] sm:$0xff]
      %v2603 = vld [vmem:[%s1974 + $0xc2] sm:$0xff]
      %v2604 = vld [vmem:[%s1974 + $0xca] sm:$0xff]
      %v2605 = vld [vmem:[%s1974 + $0xda] sm:$0xff]
      %v2606 = vld [vmem:[%s1974 + $0xe2] sm:$0xff]
      %v2607 = vld [vmem:[%s1974 + $0xf2] sm:$0xff]
      %v2608 = vld [vmem:[%s1974 + $0xfa] sm:$0xff]
      %v2609 = vld [vmem:[%s1974 + $0x10a] sm:$0xff]
      %v2610 = vld [vmem:[%s1974 + $0x112] sm:$0xff]
      %v2611 = vld [vmem:[%s1974 + $0x122] sm:$0xff]
      %v2612 = vld [vmem:[%s1974 + $0x12a] sm:$0xff]
      %v2613 = vld [vmem:[%s1974 + $0x13a] sm:$0xff]
      %v2614 = vld [vmem:[%s1974 + $0x142] sm:$0xff]
      %v2615 = vld [vmem:[%s1974 + $0x152] sm:$0xff]
      %v2616 = vld [vmem:[%s1974 + $0x15a] sm:$0xff]
      %v2617 = vld [vmem:[%s1974 + $0x16a] sm:$0xff]
      %v2618 = vld [vmem:[%s1974 + $0x172] sm:$0xff]
      %v2619 = vpack.c.bf16 %v2588, %v2587
      %v2620 = vpack.c.bf16 %v2590, %v2589
      %v2621 = vpack.c.bf16 %v2592, %v2591
      %v2622 = vpack.c.bf16 %v2594, %v2593
      %v2623 = vpack.c.bf16 %v2596, %v2595
      %v2624 = vpack.c.bf16 %v2598, %v2597
      %v2625 = vpack.c.bf16 %v2600, %v2599
      %v2626 = vpack.c.bf16 %v2602, %v2601
      %v2627 = vpack.c.bf16 %v2604, %v2603
      %v2628 = vpack.c.bf16 %v2606, %v2605
      %v2629 = vpack.c.bf16 %v2608, %v2607
      %v2630 = vpack.c.bf16 %v2610, %v2609
      %v2631 = vpack.c.bf16 %v2612, %v2611
      %v2632 = vpack.c.bf16 %v2614, %v2613
      %v2633 = vpack.c.bf16 %v2616, %v2615
      %v2634 = vpack.c.bf16 %v2618, %v2617
      %s2635 = scalar_lea.vmem %s1, 512
      %v2636 = vld [vmem:[%s2635] sm:$0xf]
      %v2637 = vld [vmem:[%s2635 + $0x4] sm:$0xf]
      %v2638 = vld [vmem:[%s2635 + $0x8] sm:$0xf]
      %v2639 = vld [vmem:[%s2635 + $0xc] sm:$0xf]
      %v2640 = vld [vmem:[%s2635 + $0x10] sm:$0xf]
      %v2641 = vld [vmem:[%s2635 + $0x14] sm:$0xf]
      %v2642 = vld [vmem:[%s2635 + $0x18] sm:$0xf]
      %v2643 = vld [vmem:[%s2635 + $0x1c] sm:$0xf]
      %v2644 = vld [vmem:[%s2635 + $0x20] sm:$0xf]
      %v2645 = vld [vmem:[%s2635 + $0x24] sm:$0xf]
      %v2646 = vld [vmem:[%s2635 + $0x28] sm:$0xf]
      %v2647 = vld [vmem:[%s2635 + $0x2c] sm:$0xf]
      %v2648 = vld [vmem:[%s2635 + $0x30] sm:$0xf]
      %v2649 = vld [vmem:[%s2635 + $0x34] sm:$0xf]
      %v2650 = vld [vmem:[%s2635 + $0x38] sm:$0xf]
      %v2651 = vld [vmem:[%s2635 + $0x3c] sm:$0xf]
      %v2668 = vunpack.c.l.b16 %v2636
      %v2669 = vunpack.c.l.b16 %v2637
      %v2670 = vunpack.c.l.b16 %v2638
      %v2671 = vunpack.c.l.b16 %v2639
      %v2672 = vunpack.c.l.b16 %v2640
      %v2673 = vunpack.c.l.b16 %v2641
      %v2674 = vunpack.c.l.b16 %v2642
      %v2675 = vunpack.c.l.b16 %v2643
      %v2676 = vunpack.c.l.b16 %v2644
      %v2677 = vunpack.c.l.b16 %v2645
      %v2678 = vunpack.c.l.b16 %v2646
      %v2679 = vunpack.c.l.b16 %v2647
      %v2680 = vunpack.c.l.b16 %v2648
      %v2681 = vunpack.c.l.b16 %v2649
      %v2682 = vunpack.c.l.b16 %v2650
      %v2683 = vunpack.c.l.b16 %v2651
      %v2684 = vpack.c.b16 %v2669, %v2668
      %v2685 = vpack.c.b16 %v2671, %v2670
      %v2686 = vpack.c.b16 %v2673, %v2672
      %v2687 = vpack.c.b16 %v2675, %v2674
      %v2688 = vpack.c.b16 %v2677, %v2676
      %v2689 = vpack.c.b16 %v2679, %v2678
      %v2690 = vpack.c.b16 %v2681, %v2680
      %v2691 = vpack.c.b16 %v2683, %v2682
      %2700 = vmatprep.subr.bf16.mxu0 0
      %2701 = vmatpush1.bf16.msra.mxu0 %v2691
      %2702 = vmatprep.subr.bf16.mxu0 0
      %2703 = vmatpush1.bf16.msra.mxu0 %v2690
      %2704 = vmatprep.subr.bf16.mxu0 0
      %2705 = vmatpush1.bf16.msra.mxu0 %v2689
      %2706 = vmatprep.subr.bf16.mxu0 0
      %2707 = vmatpush1.bf16.msra.mxu0 %v2688
      %2708 = vmatprep.subr.bf16.mxu0 0
      %2709 = vmatpush1.bf16.msra.mxu0 %v2687
      %2710 = vmatprep.subr.bf16.mxu0 0
      %2711 = vmatpush1.bf16.msra.mxu0 %v2686
      %2712 = vmatprep.subr.bf16.mxu0 0
      %2713 = vmatpush1.bf16.msra.mxu0 %v2685
      %2714 = vmatprep.subr.bf16.mxu0 0
      %2715 = vmatpush1.bf16.msra.mxu0 %v2684
      %2716 = vmatprep.subr.bf16.mxu0 0
      %2717 = vmatpush2.bf16.msra.mxu0 0
      %2718 = vmatprep.subr.bf16.mxu0 0
      %2719 = vmatpush2.bf16.msra.mxu0 0
      %2720 = vmatprep.subr.bf16.mxu0 0
      %2721 = vmatpush2.bf16.msra.mxu0 0
      %2722 = vmatprep.subr.bf16.mxu0 0
      %2723 = vmatpush2.bf16.msra.mxu0 0
      %2724 = vmatprep.subr.bf16.mxu0 0
      %2725 = vmatpush2.bf16.msra.mxu0 0
      %2726 = vmatprep.subr.bf16.mxu0 0
      %2727 = vmatpush2.bf16.msra.mxu0 0
      %2728 = vmatprep.subr.bf16.mxu0 0
      %2729 = vmatpush2.bf16.msra.mxu0 0
      %2730 = vmatprep.subr.bf16.mxu0 0
      %2731 = vmatpush2.bf16.msra.mxu0 0
      %2732 = vmatprep.mubr.bf16.mxu0 0
      %2733 = vmatmul.mubr.bf16.gmra.mxu0 %v2619
      %v2734 = vpop.f32.mrf.mxu0
      %v2735 = vadd.f32 0.0, %v2734
      %v2736 = vpop.f32.mrf.mxu0
      %v2737 = vpop.f32.mrf.mxu0
      %v2738 = vadd.f32 0.0, %v2737
      %v2739 = vpop.f32.mrf.mxu0
      %2740 = vmatprep.mubr.bf16.mxu0 0
      %2741 = vmatmul.mubr.bf16.gmra.mxu0 %v2620
      %v2742 = vpop.f32.mrf.mxu0
      %v2743 = vadd.f32 0.0, %v2742
      %v2744 = vpop.f32.mrf.mxu0
      %v2745 = vpop.f32.mrf.mxu0
      %v2746 = vadd.f32 0.0, %v2745
      %v2747 = vpop.f32.mrf.mxu0
      %2748 = vmatprep.mubr.bf16.mxu0 0
      %2749 = vmatmul.mubr.bf16.gmra.mxu0 %v2621
      %v2750 = vpop.f32.mrf.mxu0
      %v2751 = vadd.f32 0.0, %v2750
      %v2752 = vpop.f32.mrf.mxu0
      %v2753 = vpop.f32.mrf.mxu0
      %v2754 = vadd.f32 0.0, %v2753
      %v2755 = vpop.f32.mrf.mxu0
      %2756 = vmatprep.mubr.bf16.mxu0 0
      %2757 = vmatmul.mubr.bf16.gmra.mxu0 %v2622
      %v2758 = vpop.f32.mrf.mxu0
      %v2759 = vadd.f32 0.0, %v2758
      %v2760 = vpop.f32.mrf.mxu0
      %v2761 = vpop.f32.mrf.mxu0
      %v2762 = vadd.f32 0.0, %v2761
      %v2763 = vpop.f32.mrf.mxu0
      %2764 = vmatprep.mubr.bf16.mxu0 0
      %2765 = vmatmul.mubr.bf16.gmra.mxu0 %v2623
      %v2766 = vpop.f32.mrf.mxu0
      %v2767 = vadd.f32 0.0, %v2766
      %v2768 = vpop.f32.mrf.mxu0
      %v2769 = vpop.f32.mrf.mxu0
      %v2770 = vadd.f32 0.0, %v2769
      %v2771 = vpop.f32.mrf.mxu0
      %2772 = vmatprep.mubr.bf16.mxu0 0
      %2773 = vmatmul.mubr.bf16.gmra.mxu0 %v2624
      %v2774 = vpop.f32.mrf.mxu0
      %v2775 = vadd.f32 0.0, %v2774
      %v2776 = vpop.f32.mrf.mxu0
      %v2777 = vpop.f32.mrf.mxu0
      %v2778 = vadd.f32 0.0, %v2777
      %v2779 = vpop.f32.mrf.mxu0
      %2780 = vmatprep.mubr.bf16.mxu0 0
      %2781 = vmatmul.mubr.bf16.gmra.mxu0 %v2625
      %v2782 = vpop.f32.mrf.mxu0
      %v2783 = vadd.f32 0.0, %v2782
      %v2784 = vpop.f32.mrf.mxu0
      %v2785 = vpop.f32.mrf.mxu0
      %v2786 = vadd.f32 0.0, %v2785
      %v2787 = vpop.f32.mrf.mxu0
      %2788 = vmatprep.mubr.bf16.mxu0 0
      %2789 = vmatmul.mubr.bf16.gmra.mxu0 %v2626
      %v2790 = vpop.f32.mrf.mxu0
      %v2791 = vadd.f32 0.0, %v2790
      %v2792 = vpop.f32.mrf.mxu0
      %v2793 = vpop.f32.mrf.mxu0
      %v2794 = vadd.f32 0.0, %v2793
      %v2795 = vpop.f32.mrf.mxu0
      %2796 = vmatprep.mubr.bf16.mxu0 0
      %2797 = vmatmul.mubr.bf16.gmra.mxu0 %v2627
      %v2798 = vpop.f32.mrf.mxu0
      %v2799 = vadd.f32 0.0, %v2798
      %v2800 = vpop.f32.mrf.mxu0
      %v2801 = vpop.f32.mrf.mxu0
      %v2802 = vadd.f32 0.0, %v2801
      %v2803 = vpop.f32.mrf.mxu0
      %2804 = vmatprep.mubr.bf16.mxu0 0
      %2805 = vmatmul.mubr.bf16.gmra.mxu0 %v2628
      %v2806 = vpop.f32.mrf.mxu0
      %v2807 = vadd.f32 0.0, %v2806
      %v2808 = vpop.f32.mrf.mxu0
      %v2809 = vpop.f32.mrf.mxu0
      %v2810 = vadd.f32 0.0, %v2809
      %v2811 = vpop.f32.mrf.mxu0
      %2812 = vmatprep.mubr.bf16.mxu0 0
      %2813 = vmatmul.mubr.bf16.gmra.mxu0 %v2629
      %v2814 = vpop.f32.mrf.mxu0
      %v2815 = vadd.f32 0.0, %v2814
      %v2816 = vpop.f32.mrf.mxu0
      %v2817 = vpop.f32.mrf.mxu0
      %v2818 = vadd.f32 0.0, %v2817
      %v2819 = vpop.f32.mrf.mxu0
      %2820 = vmatprep.mubr.bf16.mxu0 0
      %2821 = vmatmul.mubr.bf16.gmra.mxu0 %v2630
      %v2822 = vpop.f32.mrf.mxu0
      %v2823 = vadd.f32 0.0, %v2822
      %v2824 = vpop.f32.mrf.mxu0
      %v2825 = vpop.f32.mrf.mxu0
      %v2826 = vadd.f32 0.0, %v2825
      %v2827 = vpop.f32.mrf.mxu0
      %2828 = vmatprep.mubr.bf16.mxu0 0
      %2829 = vmatmul.mubr.bf16.gmra.mxu0 %v2631
      %v2830 = vpop.f32.mrf.mxu0
      %v2831 = vadd.f32 0.0, %v2830
      %v2832 = vpop.f32.mrf.mxu0
      %v2833 = vpop.f32.mrf.mxu0
      %v2834 = vadd.f32 0.0, %v2833
      %v2835 = vpop.f32.mrf.mxu0
      %2836 = vmatprep.mubr.bf16.mxu0 0
      %2837 = vmatmul.mubr.bf16.gmra.mxu0 %v2632
      %v2838 = vpop.f32.mrf.mxu0
      %v2839 = vadd.f32 0.0, %v2838
      %v2840 = vpop.f32.mrf.mxu0
      %v2841 = vpop.f32.mrf.mxu0
      %v2842 = vadd.f32 0.0, %v2841
      %v2843 = vpop.f32.mrf.mxu0
      %2844 = vmatprep.mubr.bf16.mxu0 0
      %2845 = vmatmul.mubr.bf16.gmra.mxu0 %v2633
      %v2846 = vpop.f32.mrf.mxu0
      %v2847 = vadd.f32 0.0, %v2846
      %v2848 = vpop.f32.mrf.mxu0
      %v2849 = vpop.f32.mrf.mxu0
      %v2850 = vadd.f32 0.0, %v2849
      %v2851 = vpop.f32.mrf.mxu0
      %2852 = vmatprep.mubr.bf16.mxu0 0
      %2853 = vmatmul.mubr.bf16.gmra.mxu0 %v2634
      %v2854 = vpop.f32.mrf.mxu0
      %v2855 = vadd.f32 0.0, %v2854
      %v2856 = vpop.f32.mrf.mxu0
      %v2857 = vpop.f32.mrf.mxu0
      %v2858 = vadd.f32 0.0, %v2857
      %v2859 = vpop.f32.mrf.mxu0
      %2860 = vdwg.mxu0
      %v2861 = vadd.f32 %v2555, %v2735
      %v2862 = vadd.f32 %v2556, %v2738
      %v2863 = vadd.f32 %v2557, %v2743
      %v2864 = vadd.f32 %v2558, %v2746
      %v2865 = vadd.f32 %v2559, %v2751
      %v2866 = vadd.f32 %v2560, %v2754
      %v2867 = vadd.f32 %v2561, %v2759
      %v2868 = vadd.f32 %v2562, %v2762
      %v2869 = vadd.f32 %v2563, %v2767
      %v2870 = vadd.f32 %v2564, %v2770
      %v2871 = vadd.f32 %v2565, %v2775
      %v2872 = vadd.f32 %v2566, %v2778
      %v2873 = vadd.f32 %v2567, %v2783
      %v2874 = vadd.f32 %v2568, %v2786
      %v2875 = vadd.f32 %v2569, %v2791
      %v2876 = vadd.f32 %v2570, %v2794
      %v2877 = vadd.f32 %v2571, %v2799
      %v2878 = vadd.f32 %v2572, %v2802
      %v2879 = vadd.f32 %v2573, %v2807
      %v2880 = vadd.f32 %v2574, %v2810
      %v2881 = vadd.f32 %v2575, %v2815
      %v2882 = vadd.f32 %v2576, %v2818
      %v2883 = vadd.f32 %v2577, %v2823
      %v2884 = vadd.f32 %v2578, %v2826
      %v2885 = vadd.f32 %v2579, %v2831
      %v2886 = vadd.f32 %v2580, %v2834
      %v2887 = vadd.f32 %v2581, %v2839
      %v2888 = vadd.f32 %v2582, %v2842
      %v2889 = vadd.f32 %v2583, %v2847
      %v2890 = vadd.f32 %v2584, %v2850
      %v2891 = vadd.f32 %v2585, %v2855
      %v2892 = vadd.f32 %v2586, %v2858
      %v2893 = vld [vmem:[%s2] sm:$0x1]
      %v2895 = vlaneseq
      %v2896 = vshrl.u32 %v2895, 7
      %v2897 = vsub.s32 0, %v2896
      %v2898 = vrot.slane %v2893, %v2897
      %v2900 = vadd.f32 %v2861, %v2898
      %v2901 = vadd.f32 %v2862, %v2898
      %v2902 = vadd.f32 %v2863, %v2898
      %v2903 = vadd.f32 %v2864, %v2898
      %v2904 = vadd.f32 %v2865, %v2898
      %v2905 = vadd.f32 %v2866, %v2898
      %v2906 = vadd.f32 %v2867, %v2898
      %v2907 = vadd.f32 %v2868, %v2898
      %v2908 = vadd.f32 %v2869, %v2898
      %v2909 = vadd.f32 %v2870, %v2898
      %v2910 = vadd.f32 %v2871, %v2898
      %v2911 = vadd.f32 %v2872, %v2898
      %v2912 = vadd.f32 %v2873, %v2898
      %v2913 = vadd.f32 %v2874, %v2898
      %v2914 = vadd.f32 %v2875, %v2898
      %v2915 = vadd.f32 %v2876, %v2898
      %v2916 = vadd.f32 %v2877, %v2898
      %v2917 = vadd.f32 %v2878, %v2898
      %v2918 = vadd.f32 %v2879, %v2898
      %v2919 = vadd.f32 %v2880, %v2898
      %v2920 = vadd.f32 %v2881, %v2898
      %v2921 = vadd.f32 %v2882, %v2898
      %v2922 = vadd.f32 %v2883, %v2898
      %v2923 = vadd.f32 %v2884, %v2898
      %v2924 = vadd.f32 %v2885, %v2898
      %v2925 = vadd.f32 %v2886, %v2898
      %v2926 = vadd.f32 %v2887, %v2898
      %v2927 = vadd.f32 %v2888, %v2898
      %v2928 = vadd.f32 %v2889, %v2898
      %v2929 = vadd.f32 %v2890, %v2898
      %v2930 = vadd.f32 %v2891, %v2898
      %v2931 = vadd.f32 %v2892, %v2898
      %2932 = vst [vmem:[%s195] sm:$0xff] %v2900
      %2933 = vst [vmem:[%s195 + $0x8] sm:$0xff] %v2901
      %2934 = vst [vmem:[%s195 + $0x10] sm:$0xff] %v2902
      %2935 = vst [vmem:[%s195 + $0x18] sm:$0xff] %v2903
      %2936 = vst [vmem:[%s195 + $0x20] sm:$0xff] %v2904
      %2937 = vst [vmem:[%s195 + $0x28] sm:$0xff] %v2905
      %2938 = vst [vmem:[%s195 + $0x30] sm:$0xff] %v2906
      %2939 = vst [vmem:[%s195 + $0x38] sm:$0xff] %v2907
      %2940 = vst [vmem:[%s195 + $0x40] sm:$0xff] %v2908
      %2941 = vst [vmem:[%s195 + $0x48] sm:$0xff] %v2909
      %2942 = vst [vmem:[%s195 + $0x50] sm:$0xff] %v2910
      %2943 = vst [vmem:[%s195 + $0x58] sm:$0xff] %v2911
      %2944 = vst [vmem:[%s195 + $0x60] sm:$0xff] %v2912
      %2945 = vst [vmem:[%s195 + $0x68] sm:$0xff] %v2913
      %2946 = vst [vmem:[%s195 + $0x70] sm:$0xff] %v2914
      %2947 = vst [vmem:[%s195 + $0x78] sm:$0xff] %v2915
      %2948 = vst [vmem:[%s195 + $0x80] sm:$0xff] %v2916
      %2949 = vst [vmem:[%s195 + $0x88] sm:$0xff] %v2917
      %2950 = vst [vmem:[%s195 + $0x90] sm:$0xff] %v2918
      %2951 = vst [vmem:[%s195 + $0x98] sm:$0xff] %v2919
      %2952 = vst [vmem:[%s195 + $0xa0] sm:$0xff] %v2920
      %2953 = vst [vmem:[%s195 + $0xa8] sm:$0xff] %v2921
      %2954 = vst [vmem:[%s195 + $0xb0] sm:$0xff] %v2922
      %2955 = vst [vmem:[%s195 + $0xb8] sm:$0xff] %v2923
      %2956 = vst [vmem:[%s195 + $0xc0] sm:$0xff] %v2924
      %2957 = vst [vmem:[%s195 + $0xc8] sm:$0xff] %v2925
      %2958 = vst [vmem:[%s195 + $0xd0] sm:$0xff] %v2926
      %2959 = vst [vmem:[%s195 + $0xd8] sm:$0xff] %v2927
      %2960 = vst [vmem:[%s195 + $0xe0] sm:$0xff] %v2928
      %2961 = vst [vmem:[%s195 + $0xe8] sm:$0xff] %v2929
      %2962 = vst [vmem:[%s195 + $0xf0] sm:$0xff] %v2930
      %2963 = vst [vmem:[%s195 + $0xf8] sm:$0xff] %v2931
      %v2964 = vld [vmem:[%s4] sm:$0x3]
      %v2965 = vadd.f32 %v2900, %v2901
      %v2966 = vadd.f32 %v2965, %v2902
      %v2967 = vadd.f32 %v2966, %v2903
      %v2968 = vadd.f32 %v2967, %v2904
      %v2969 = vadd.f32 %v2968, %v2905
      %v2970 = vadd.f32 %v2969, %v2906
      %v2971 = vadd.f32 %v2970, %v2907
      %v2972 = vadd.f32 %v2971, %v2908
      %v2973 = vadd.f32 %v2972, %v2909
      %v2974 = vadd.f32 %v2973, %v2910
      %v2975 = vadd.f32 %v2974, %v2911
      %v2976 = vadd.f32 %v2975, %v2912
      %v2977 = vadd.f32 %v2976, %v2913
      %v2978 = vadd.f32 %v2977, %v2914
      %v2979 = vadd.f32 %v2978, %v2915
      %v2980 = vadd.f32 %v2979, %v2916
      %v2981 = vadd.f32 %v2980, %v2917
      %v2982 = vadd.f32 %v2981, %v2918
      %v2983 = vadd.f32 %v2982, %v2919
      %v2984 = vadd.f32 %v2983, %v2920
      %v2985 = vadd.f32 %v2984, %v2921
      %v2986 = vadd.f32 %v2985, %v2922
      %v2987 = vadd.f32 %v2986, %v2923
      %v2988 = vadd.f32 %v2987, %v2924
      %v2989 = vadd.f32 %v2988, %v2925
      %v2990 = vadd.f32 %v2989, %v2926
      %v2991 = vadd.f32 %v2990, %v2927
      %v2992 = vadd.f32 %v2991, %v2928
      %v2993 = vadd.f32 %v2992, %v2929
      %v2994 = vadd.f32 %v2993, %v2930
      %v2995 = vadd.f32 %v2994, %v2931
      %v2996 = vrot.slane %v2995, 4
      %v2997 = vadd.f32 %v2995, %v2996
      %v2998 = vrot.slane %v2997, 2
      %v2999 = vadd.f32 %v2997, %v2998
      %v3000 = vrot.slane %v2999, 1
      %v3001 = vadd.f32 %v2999, %v3000
      %v3002 = vmul.f32 %v2900, %v2900
      %v3003 = vmul.f32 %v2901, %v2901
      %v3004 = vmul.f32 %v2902, %v2902
      %v3005 = vmul.f32 %v2903, %v2903
      %v3006 = vmul.f32 %v2904, %v2904
      %v3007 = vmul.f32 %v2905, %v2905
      %v3008 = vmul.f32 %v2906, %v2906
      %v3009 = vmul.f32 %v2907, %v2907
      %v3010 = vmul.f32 %v2908, %v2908
      %v3011 = vmul.f32 %v2909, %v2909
      %v3012 = vmul.f32 %v2910, %v2910
      %v3013 = vmul.f32 %v2911, %v2911
      %v3014 = vmul.f32 %v2912, %v2912
      %v3015 = vmul.f32 %v2913, %v2913
      %v3016 = vmul.f32 %v2914, %v2914
      %v3017 = vmul.f32 %v2915, %v2915
      %v3018 = vmul.f32 %v2916, %v2916
      %v3019 = vmul.f32 %v2917, %v2917
      %v3020 = vmul.f32 %v2918, %v2918
      %v3021 = vmul.f32 %v2919, %v2919
      %v3022 = vmul.f32 %v2920, %v2920
      %v3023 = vmul.f32 %v2921, %v2921
      %v3024 = vmul.f32 %v2922, %v2922
      %v3025 = vmul.f32 %v2923, %v2923
      %v3026 = vmul.f32 %v2924, %v2924
      %v3027 = vmul.f32 %v2925, %v2925
      %v3028 = vmul.f32 %v2926, %v2926
      %v3029 = vmul.f32 %v2927, %v2927
      %v3030 = vmul.f32 %v2928, %v2928
      %v3031 = vmul.f32 %v2929, %v2929
      %v3032 = vmul.f32 %v2930, %v2930
      %v3033 = vmul.f32 %v2931, %v2931
      %v3034 = vadd.f32 %v3002, %v3003
      %v3035 = vadd.f32 %v3034, %v3004
      %v3036 = vadd.f32 %v3035, %v3005
      %v3037 = vadd.f32 %v3036, %v3006
      %v3038 = vadd.f32 %v3037, %v3007
      %v3039 = vadd.f32 %v3038, %v3008
      %v3040 = vadd.f32 %v3039, %v3009
      %v3041 = vadd.f32 %v3040, %v3010
      %v3042 = vadd.f32 %v3041, %v3011
      %v3043 = vadd.f32 %v3042, %v3012
      %v3044 = vadd.f32 %v3043, %v3013
      %v3045 = vadd.f32 %v3044, %v3014
      %v3046 = vadd.f32 %v3045, %v3015
      %v3047 = vadd.f32 %v3046, %v3016
      %v3048 = vadd.f32 %v3047, %v3017
      %v3049 = vadd.f32 %v3048, %v3018
      %v3050 = vadd.f32 %v3049, %v3019
      %v3051 = vadd.f32 %v3050, %v3020
      %v3052 = vadd.f32 %v3051, %v3021
      %v3053 = vadd.f32 %v3052, %v3022
      %v3054 = vadd.f32 %v3053, %v3023
      %v3055 = vadd.f32 %v3054, %v3024
      %v3056 = vadd.f32 %v3055, %v3025
      %v3057 = vadd.f32 %v3056, %v3026
      %v3058 = vadd.f32 %v3057, %v3027
      %v3059 = vadd.f32 %v3058, %v3028
      %v3060 = vadd.f32 %v3059, %v3029
      %v3061 = vadd.f32 %v3060, %v3030
      %v3062 = vadd.f32 %v3061, %v3031
      %v3063 = vadd.f32 %v3062, %v3032
      %v3064 = vadd.f32 %v3063, %v3033
      %v3065 = vrot.slane %v3064, 4
      %v3066 = vadd.f32 %v3064, %v3065
      %v3067 = vrot.slane %v3066, 2
      %v3068 = vadd.f32 %v3066, %v3067
      %v3069 = vrot.slane %v3068, 1
      %v3070 = vadd.f32 %v3068, %v3069
      %vm3071 = vcmask 1040384
      %v3072 = vsel %vm3071, %v3001, %v3070
      %v3073 = vadd.f32 %v2964, %v3072
      %3074 = vst [vmem:[%s4] sm:$0x3] %v3073
      %p3075 = scmp.lt.s32.totalorder %s16, 1
      %s3076 = scalar_select %p3075, %s16, 1
      %s3077 = smul.addr %s3076, 32
      %s3078 = smul.addr %s3077, 8
      %s3079 = scalar_lea.vmem %s3, %s3078
      // Predicated region
      $region37: #{expert_controller_film.3} parent=31 // pred_check
        %p3080 = pneg %p102
      $region38: #{expert_controller_film.3} parent=31 // pred_check_branch
        %3082 = sbr.rel (%p3080) target = $region40
      $region39: #{expert_controller_film.3} parent=31 // pred_region
        _
      $region40: #{expert_controller_film.3} parent=31 // pred_fallthru
        _
      // Predicated region
      $region41: #{expert_controller_film.3} parent=31 // pred_check
        %p3083 = pneg %p123
      $region42: #{expert_controller_film.3} parent=31 // pred_check_branch
        %3085 = sbr.rel (%p3083) target = $region44
      $region43: #{expert_controller_film.3} parent=31 // pred_region
        _
      $region44: #{expert_controller_film.3} parent=31 // pred_fallthru
        _
      // Predicated region
      $region45: #{expert_controller_film.3} parent=31 // pred_check
        %p3086 = pneg %p123
      $region46: #{expert_controller_film.3} parent=31 // pred_check_branch
        %3088 = sbr.rel (%p3086) target = $region48
      $region47: #{expert_controller_film.3} parent=31 // pred_region
        _
      $region48: #{expert_controller_film.3} parent=31 // pred_fallthru
        _
    $region32: #{expert_controller_film.3} parent=5 // pred_fallthru
      _
    %p3089 = scmp.le.s32.totalorder 2, %s11
    // Predicated region
    $region49: #{expert_controller_film.3} parent=5 // pred_check
      %p3090 = pneg %p3089
    $region50: #{expert_controller_film.3} parent=5 // pred_check_branch
      %3092 = sbr.rel (%p3090) target = $region52
    $region51: #{expert_controller_film.3} parent=5 // pred_region
      %s3093 = ssub.s32 %s11, 2
      // Predicated region
      $region53: #{expert_controller_film.3} parent=51 // pred_check
        %p3094 = pneg %p108
      $region54: #{expert_controller_film.3} parent=51 // pred_check_branch
        %3096 = sbr.rel (%p3094) target = $region56
      $region55: #{expert_controller_film.3} parent=51 // pred_region
        %p3097 = scmp.lt.s32.totalorder %s17, 1
        %s3098 = scalar_select %p3097, %s17, 1
        %s3099 = smul.addr %s3098, 32
        %s3100 = smul.addr %s3099, 8
        %s3101 = scalar_lea.vmem %s3, %s3100
      $region56: #{expert_controller_film.3} parent=51 // pred_fallthru
        _
    $region52: #{expert_controller_film.3} parent=5 // pred_fallthru
      _
  $region6: #{expert_controller_film.3} parent=0 // loop_footer
    %s15 = sadd.s32 1, %s11
  $region7: #{expert_controller_film.3} parent=0 // loop_footer_branch
    %10 = sbr.rel target = $region3
  $region8: #{expert_controller_film.3} parent=0 // loop_exit
    _

// kernel: expert_controller_film.4
$region0: #{expert_controller_film.4}
  #allocation0 [shape = 'u32[]', space=smem, size = 0x4, offset = 0x4, fixed_abs, tag = 'smem constant byte address 0x4 - core index']
  #allocation1 [shape = 'u32[144,128]{1,0:T(1,128)}', space=vmem, size = 0x12000, scoped, tag = 'internal scratch']
  #allocation2 [shape = 'f32[18,18,128]{2,1,0:T(8,128)}', space=vmem, size = 0x36000, scoped, tag = 'scratch operand']
  %s0 = inlined_call_operand.vmem [shape: f32[2,18,18,128], index: 0, kind: input, shape index: {}]
  %s1 = inlined_call_operand.vmem [shape: f32[18,18,1], index: 1, kind: input, shape index: {}]
  %s2 = inlined_call_operand.vmem [shape: f32[2,128], index: 2, kind: input, shape index: {}]
  %s3 = inlined_call_operand.vmem [shape: f32[2,128], index: 3, kind: input, shape index: {}]
  %s4 = inlined_call_operand.vmem [shape: f32[2,1,32], index: 4, kind: input, shape index: {}]
  %s5 = inlined_call_operand.vmem [shape: f32[32,128], index: 5, kind: input, shape index: {}]
  %s6 = inlined_call_operand.vmem [shape: f32[32,128], index: 6, kind: input, shape index: {}]
  %s7 = inlined_call_operand.vmem [shape: f32[3,128], index: 7, kind: input, shape index: {}]
  %s8 = inlined_call_operand.vmem [shape: bf16[3,3,128,128], index: 8, kind: input, shape index: {}]
  %s9 = inlined_call_operand.vmem [shape: f32[2,16,16,128], index: 9, kind: output, shape index: {0}]
  %s10 = inlined_call_operand.vmem [shape: f32[2,128], index: 10, kind: output, shape index: {1}]
  %11 = xla_tuple %s9, %s10
  %s12 = sld [smem:[#allocation0]]
  $region81: #{expert_controller_film.4} parent=0
    _
  %s14 = ssub.s32 1, %s12
  %s15 = scalar_select 0, %s14, %s12
  loop: start=0, step=1, limit=4
  $region2: #{expert_controller_film.4} parent=0 // loop_pre_header
    _
  $region3: #{expert_controller_film.4} parent=0 // loop_header
    %s17 = sphi 0, %s21
    %p18 = scmp.ge.s32.totalorder %s17, 4
    %s27 = sphi 0, %s29
    %s30 = sphi 0, %s27
    %s31 = sphi 0, %s30
    %s47 = sphi 0, %s31
    %s51 = sphi 0, %s51
    %s53 = sphi 0, %s51
    %s54 = sphi 0, %s53
    %s68 = sphi 0, %s54
    %s72 = sphi 0, %s72
    %s74 = sphi 0, %s72
    %s75 = sphi 0, %s74
    %s89 = sphi 0, %s75
    %s93 = sphi 0, %s93
    %s95 = sphi 0, %s93
    %s96 = sphi 0, %s95
    %s110 = sphi 0, %s96
    %s114 = sphi 0, %s114
    %s116 = sphi 0, %s114
    %s117 = sphi 0, %s116
    %s131 = sphi 0, %s117
    %s135 = sphi 0, %s135
    %s137 = sphi 0, %s135
    %s138 = sphi 0, %s137
    %s152 = sphi 0, %s138
    %s156 = sphi 0, %s156
    %s158 = sphi 0, %s156
    %s159 = sphi 0, %s158
    %s173 = sphi 0, %s159
    %s177 = sphi 0, %s177
    %s179 = sphi 0, %s177
    %s180 = sphi 0, %s179
    %s194 = sphi 0, %s180
    %s198 = sphi 0, %s198
    %s200 = sphi 0, %s198
    %s201 = sphi 0, %s200
    %s215 = sphi 0, %s201
    %s221 = sphi 0, %s223
    %s224 = sphi 0, %s221
    %s225 = sphi 0, %s224
    %s241 = sphi 0, %s225
    %s245 = sphi 0, %s245
    %s247 = sphi 0, %s245
    %s248 = sphi 0, %s247
    %s262 = sphi 0, %s248
  $region4: #{expert_controller_film.4} parent=0 // loop_header_branch
    %20 = sbr.rel (%p18) target = $region8
  $region5: #{expert_controller_film.4} parent=0 // loop_body
    %s22 = ssub.s32 %s17, 1
    %s23 = ssub.s32 %s17, 2
    %s24 = sadd.s32 %s17, 1
    %s25 = ssub.s32 %s17, %s24
    %p26 = scmp.eq.s32.totalorder %s25, 0
    %s28 = sadd.s32 %s27, 1
    %s29 = scalar_select %p26, %s27, %s28
    %p32 = pneg %p26
    %p33 = scmp.eq.s32.totalorder %s17, 1
    %p34 = por %p32, %p33
    %p35 = scmp.ne.s32.totalorder %s27, %s30
    %p36 = scmp.eq.s32.totalorder %s17, 0
    %p37 = por %p35, %p36
    %p38 = scmp.ne.s32.totalorder %s27, %s30
    %p39 = scmp.eq.s32.totalorder %s22, 1
    %p40 = por %p38, %p39
    %p41 = scmp.ne.s32.totalorder %s30, %s31
    %p42 = scmp.eq.s32.totalorder %s22, 0
    %p43 = por %p41, %p42
    %p44 = scmp.ne.s32.totalorder %s30, %s31
    %p45 = scmp.eq.s32.totalorder %s23, 1
    %p46 = por %p44, %p45
    %p48 = scmp.ne.s32.totalorder %s31, %s47
    %p49 = scmp.eq.s32.totalorder %s23, 0
    %p50 = por %p48, %p49
    %s52 = sadd.s32 %s51, 1
    %p55 = scmp.eq.s32.totalorder %s17, 1
    %p56 = scmp.ne.s32.totalorder %s51, %s53
    %p57 = scmp.eq.s32.totalorder %s17, 0
    %p58 = por %p56, %p57
    %p59 = scmp.ne.s32.totalorder %s51, %s53
    %p60 = scmp.eq.s32.totalorder %s22, 1
    %p61 = por %p59, %p60
    %p62 = scmp.ne.s32.totalorder %s53, %s54
    %p63 = scmp.eq.s32.totalorder %s22, 0
    %p64 = por %p62, %p63
    %p65 = scmp.ne.s32.totalorder %s53, %s54
    %p66 = scmp.eq.s32.totalorder %s23, 1
    %p67 = por %p65, %p66
    %p69 = scmp.ne.s32.totalorder %s54, %s68
    %p70 = scmp.eq.s32.totalorder %s23, 0
    %p71 = por %p69, %p70
    %s73 = sadd.s32 %s72, 1
    %p76 = scmp.eq.s32.totalorder %s17, 1
    %p77 = scmp.ne.s32.totalorder %s72, %s74
    %p78 = scmp.eq.s32.totalorder %s17, 0
    %p79 = por %p77, %p78
    %p80 = scmp.ne.s32.totalorder %s72, %s74
    %p81 = scmp.eq.s32.totalorder %s22, 1
    %p82 = por %p80, %p81
    %p83 = scmp.ne.s32.totalorder %s74, %s75
    %p84 = scmp.eq.s32.totalorder %s22, 0
    %p85 = por %p83, %p84
    %p86 = scmp.ne.s32.totalorder %s74, %s75
    %p87 = scmp.eq.s32.totalorder %s23, 1
    %p88 = por %p86, %p87
    %p90 = scmp.ne.s32.totalorder %s75, %s89
    %p91 = scmp.eq.s32.totalorder %s23, 0
    %p92 = por %p90, %p91
    %s94 = sadd.s32 %s93, 1
    %p97 = scmp.eq.s32.totalorder %s17, 1
    %p98 = scmp.ne.s32.totalorder %s93, %s95
    %p99 = scmp.eq.s32.totalorder %s17, 0
    %p100 = por %p98, %p99
    %p101 = scmp.ne.s32.totalorder %s93, %s95
    %p102 = scmp.eq.s32.totalorder %s22, 1
    %p103 = por %p101, %p102
    %p104 = scmp.ne.s32.totalorder %s95, %s96
    %p105 = scmp.eq.s32.totalorder %s22, 0
    %p106 = por %p104, %p105
    %p107 = scmp.ne.s32.totalorder %s95, %s96
    %p108 = scmp.eq.s32.totalorder %s23, 1
    %p109 = por %p107, %p108
    %p111 = scmp.ne.s32.totalorder %s96, %s110
    %p112 = scmp.eq.s32.totalorder %s23, 0
    %p113 = por %p111, %p112
    %s115 = sadd.s32 %s114, 1
    %p118 = scmp.eq.s32.totalorder %s17, 1
    %p119 = scmp.ne.s32.totalorder %s114, %s116
    %p120 = scmp.eq.s32.totalorder %s17, 0
    %p121 = por %p119, %p120
    %p122 = scmp.ne.s32.totalorder %s114, %s116
    %p123 = scmp.eq.s32.totalorder %s22, 1
    %p124 = por %p122, %p123
    %p125 = scmp.ne.s32.totalorder %s116, %s117
    %p126 = scmp.eq.s32.totalorder %s22, 0
    %p127 = por %p125, %p126
    %p128 = scmp.ne.s32.totalorder %s116, %s117
    %p129 = scmp.eq.s32.totalorder %s23, 1
    %p130 = por %p128, %p129
    %p132 = scmp.ne.s32.totalorder %s117, %s131
    %p133 = scmp.eq.s32.totalorder %s23, 0
    %p134 = por %p132, %p133
    %s136 = sadd.s32 %s135, 1
    %p139 = scmp.eq.s32.totalorder %s17, 1
    %p140 = scmp.ne.s32.totalorder %s135, %s137
    %p141 = scmp.eq.s32.totalorder %s17, 0
    %p142 = por %p140, %p141
    %p143 = scmp.ne.s32.totalorder %s135, %s137
    %p144 = scmp.eq.s32.totalorder %s22, 1
    %p145 = por %p143, %p144
    %p146 = scmp.ne.s32.totalorder %s137, %s138
    %p147 = scmp.eq.s32.totalorder %s22, 0
    %p148 = por %p146, %p147
    %p149 = scmp.ne.s32.totalorder %s137, %s138
    %p150 = scmp.eq.s32.totalorder %s23, 1
    %p151 = por %p149, %p150
    %p153 = scmp.ne.s32.totalorder %s138, %s152
    %p154 = scmp.eq.s32.totalorder %s23, 0
    %p155 = por %p153, %p154
    %s157 = sadd.s32 %s156, 1
    %p160 = scmp.eq.s32.totalorder %s17, 1
    %p161 = scmp.ne.s32.totalorder %s156, %s158
    %p162 = scmp.eq.s32.totalorder %s17, 0
    %p163 = por %p161, %p162
    %p164 = scmp.ne.s32.totalorder %s156, %s158
    %p165 = scmp.eq.s32.totalorder %s22, 1
    %p166 = por %p164, %p165
    %p167 = scmp.ne.s32.totalorder %s158, %s159
    %p168 = scmp.eq.s32.totalorder %s22, 0
    %p169 = por %p167, %p168
    %p170 = scmp.ne.s32.totalorder %s158, %s159
    %p171 = scmp.eq.s32.totalorder %s23, 1
    %p172 = por %p170, %p171
    %p174 = scmp.ne.s32.totalorder %s159, %s173
    %p175 = scmp.eq.s32.totalorder %s23, 0
    %p176 = por %p174, %p175
    %s178 = sadd.s32 %s177, 1
    %p181 = scmp.eq.s32.totalorder %s17, 1
    %p182 = scmp.ne.s32.totalorder %s177, %s179
    %p183 = scmp.eq.s32.totalorder %s17, 0
    %p184 = por %p182, %p183
    %p185 = scmp.ne.s32.totalorder %s177, %s179
    %p186 = scmp.eq.s32.totalorder %s22, 1
    %p187 = por %p185, %p186
    %p188 = scmp.ne.s32.totalorder %s179, %s180
    %p189 = scmp.eq.s32.totalorder %s22, 0
    %p190 = por %p188, %p189
    %p191 = scmp.ne.s32.totalorder %s179, %s180
    %p192 = scmp.eq.s32.totalorder %s23, 1
    %p193 = por %p191, %p192
    %p195 = scmp.ne.s32.totalorder %s180, %s194
    %p196 = scmp.eq.s32.totalorder %s23, 0
    %p197 = por %p195, %p196
    %s199 = sadd.s32 %s198, 1
    %p202 = scmp.eq.s32.totalorder %s17, 1
    %p203 = scmp.ne.s32.totalorder %s198, %s200
    %p204 = scmp.eq.s32.totalorder %s17, 0
    %p205 = por %p203, %p204
    %p206 = scmp.ne.s32.totalorder %s198, %s200
    %p207 = scmp.eq.s32.totalorder %s22, 1
    %p208 = por %p206, %p207
    %p209 = scmp.ne.s32.totalorder %s200, %s201
    %p210 = scmp.eq.s32.totalorder %s22, 0
    %p211 = por %p209, %p210
    %p212 = scmp.ne.s32.totalorder %s200, %s201
    %p213 = scmp.eq.s32.totalorder %s23, 1
    %p214 = por %p212, %p213
    %p216 = scmp.ne.s32.totalorder %s201, %s215
    %p217 = scmp.eq.s32.totalorder %s23, 0
    %p218 = por %p216, %p217
    %s219 = ssub.s32 %s17, %s24
    %p220 = scmp.eq.s32.totalorder %s219, 0
    %s222 = sadd.s32 %s221, 1
    %s223 = scalar_select %p220, %s221, %s222
    %p226 = pneg %p220
    %p227 = scmp.eq.s32.totalorder %s17, 1
    %p228 = por %p226, %p227
    %p229 = scmp.ne.s32.totalorder %s221, %s224
    %p230 = scmp.eq.s32.totalorder %s17, 0
    %p231 = por %p229, %p230
    %p232 = scmp.ne.s32.totalorder %s221, %s224
    %p233 = scmp.eq.s32.totalorder %s22, 1
    %p234 = por %p232, %p233
    %p235 = scmp.ne.s32.totalorder %s224, %s225
    %p236 = scmp.eq.s32.totalorder %s22, 0
    %p237 = por %p235, %p236
    %p238 = scmp.ne.s32.totalorder %s224, %s225
    %p239 = scmp.eq.s32.totalorder %s23, 1
    %p240 = por %p238, %p239
    %p242 = scmp.ne.s32.totalorder %s225, %s241
    %p243 = scmp.eq.s32.totalorder %s23, 0
    %p244 = por %p242, %p243
    %s246 = sadd.s32 %s245, 1
    %p249 = scmp.eq.s32.totalorder %s17, 1
    %p250 = scmp.ne.s32.totalorder %s245, %s247
    %p251 = scmp.eq.s32.totalorder %s17, 0
    %p252 = por %p250, %p251
    %p253 = scmp.ne.s32.totalorder %s245, %s247
    %p254 = scmp.eq.s32.totalorder %s22, 1
    %p255 = por %p253, %p254
    %p256 = scmp.ne.s32.totalorder %s247, %s248
    %p257 = scmp.eq.s32.totalorder %s22, 0
    %p258 = por %p256, %p257
    %p259 = scmp.ne.s32.totalorder %s247, %s248
    %p260 = scmp.eq.s32.totalorder %s23, 1
    %p261 = por %p259, %p260
    %p263 = scmp.ne.s32.totalorder %s248, %s262
    %p264 = scmp.eq.s32.totalorder %s23, 0
    %p265 = por %p263, %p264
    %p266 = scmp.le.s32.totalorder 1, %s17
    %p267 = scmp.lt.s32.totalorder %s17, 3
    %p268 = pnand %p266, %p267
    %p269 = pneg %p268
    // Predicated region
    $region9: #{expert_controller_film.4} parent=5 // pred_check
      _
    $region10: #{expert_controller_film.4} parent=5 // pred_check_branch
      %271 = sbr.rel (%p268) target = $region12
    $region11: #{expert_controller_film.4} parent=5 // pred_region
      %s272 = ssub.s32 %s17, 1
      // Predicated region
      $region13: #{expert_controller_film.4} parent=11 // pred_check
        %p273 = pneg %p64
      $region14: #{expert_controller_film.4} parent=11 // pred_check_branch
        %275 = sbr.rel (%p273) target = $region16
      $region15: #{expert_controller_film.4} parent=11 // pred_region
        _
      $region16: #{expert_controller_film.4} parent=11 // pred_fallthru
        _
      // Predicated region
      $region17: #{expert_controller_film.4} parent=11 // pred_check
        %p276 = pneg %p85
      $region18: #{expert_controller_film.4} parent=11 // pred_check_branch
        %278 = sbr.rel (%p276) target = $region20
      $region19: #{expert_controller_film.4} parent=11 // pred_region
        _
      $region20: #{expert_controller_film.4} parent=11 // pred_fallthru
        _
      // Predicated region
      $region21: #{expert_controller_film.4} parent=11 // pred_check
        %p279 = pneg %p106
      $region22: #{expert_controller_film.4} parent=11 // pred_check_branch
        %281 = sbr.rel (%p279) target = $region24
      $region23: #{expert_controller_film.4} parent=11 // pred_region
        _
      $region24: #{expert_controller_film.4} parent=11 // pred_fallthru
        _
      // Predicated region
      $region25: #{expert_controller_film.4} parent=11 // pred_check
        %p282 = pneg %p127
      $region26: #{expert_controller_film.4} parent=11 // pred_check_branch
        %284 = sbr.rel (%p282) target = $region28
      $region27: #{expert_controller_film.4} parent=11 // pred_region
        _
      $region28: #{expert_controller_film.4} parent=11 // pred_fallthru
        _
      // Predicated region
      $region29: #{expert_controller_film.4} parent=11 // pred_check
        %p285 = pneg %p148
      $region30: #{expert_controller_film.4} parent=11 // pred_check_branch
        %287 = sbr.rel (%p285) target = $region32
      $region31: #{expert_controller_film.4} parent=11 // pred_region
        _
      $region32: #{expert_controller_film.4} parent=11 // pred_fallthru
        _
      // Predicated region
      $region33: #{expert_controller_film.4} parent=11 // pred_check
        %p288 = pneg %p169
      $region34: #{expert_controller_film.4} parent=11 // pred_check_branch
        %290 = sbr.rel (%p288) target = $region36
      $region35: #{expert_controller_film.4} parent=11 // pred_region
        _
      $region36: #{expert_controller_film.4} parent=11 // pred_fallthru
        _
      // Predicated region
      $region37: #{expert_controller_film.4} parent=11 // pred_check
        %p291 = pneg %p190
      $region38: #{expert_controller_film.4} parent=11 // pred_check_branch
        %293 = sbr.rel (%p291) target = $region40
      $region39: #{expert_controller_film.4} parent=11 // pred_region
        _
      $region40: #{expert_controller_film.4} parent=11 // pred_fallthru
        _
      // Predicated region
      $region41: #{expert_controller_film.4} parent=11 // pred_check
        %p294 = pneg %p211
      $region42: #{expert_controller_film.4} parent=11 // pred_check_branch
        %296 = sbr.rel (%p294) target = $region44
      $region43: #{expert_controller_film.4} parent=11 // pred_region
        _
      $region44: #{expert_controller_film.4} parent=11 // pred_fallthru
        _
    $region12: #{expert_controller_film.4} parent=5 // pred_fallthru
      _
    %p297 = scmp.lt.s32.totalorder %s17, 2
    // Predicated region
    $region45: #{expert_controller_film.4} parent=5 // pred_check
      %p298 = pneg %p297
    $region46: #{expert_controller_film.4} parent=5 // pred_check_branch
      %300 = sbr.rel (%p298) target = $region48
    $region47: #{expert_controller_film.4} parent=5 // pred_region
      // Predicated region
      $region49: #{expert_controller_film.4} parent=47 // pred_check
        %p301 = pneg %p37
      $region50: #{expert_controller_film.4} parent=47 // pred_check_branch
        %303 = sbr.rel (%p301) target = $region52
      $region51: #{expert_controller_film.4} parent=47 // pred_region
        %p304 = scmp.lt.s32.totalorder %s17, 1
        %s305 = scalar_select %p304, %s17, 1
        %s306 = smul.addr %s305, 54
        %s307 = smul.addr %s306, 8
        %s308 = scalar_lea.vmem %s0, %s307
      $region52: #{expert_controller_film.4} parent=47 // pred_fallthru
        _
    $region48: #{expert_controller_film.4} parent=5 // pred_fallthru
      _
    %p309 = scmp.le.s32.totalorder 1, %s17
    %p310 = scmp.lt.s32.totalorder %s17, 3
    %p311 = pnand %p309, %p310
    %p312 = pneg %p311
    // Predicated region
    $region53: #{expert_controller_film.4} parent=5 // pred_check
      _
    $region54: #{expert_controller_film.4} parent=5 // pred_check_branch
      %314 = sbr.rel (%p311) target = $region56
    $region55: #{expert_controller_film.4} parent=5 // pred_region
      %s315 = ssub.s32 %s17, 1
      %p316 = scmp.lt.s32.totalorder %s22, 1
      %s317 = scalar_select %p316, %s22, 1
      %s318 = smul.addr %s317, 54
      %s319 = smul.addr %s318, 8
      %s320 = scalar_lea.vmem %s0, %s319
      %p321 = pneg %p43
      %p322 = pneg %p40
      %p323 = pneg %p64
      %p324 = pneg %p61
      %p325 = pneg %p85
      %p326 = pneg %p82
      %p327 = pneg %p106
      %p328 = pneg %p103
      %p329 = pneg %p127
      %p330 = pneg %p124
      %p331 = pneg %p148
      %p332 = pneg %p145
      %p333 = pneg %p169
      %p334 = pneg %p166
      %p335 = pneg %p190
      %p336 = pneg %p187
      %p337 = pneg %p211
      %p338 = pneg %p208
      %p339 = pneg %p237
      %p340 = pneg %p234
      %p341 = scmp.lt.s32.totalorder %s22, 1
      %s342 = scalar_select %p341, %s22, 1
      %s343 = smul.addr %s342, 32
      %s344 = smul.addr %s343, 8
      %s345 = scalar_lea.vmem %s9, %s344
      %p346 = pneg %p258
      %p347 = pneg %p255
      %p348 = scmp.lt.s32.totalorder %s22, 1
      %s349 = scalar_select %p348, %s22, 1
      %s350 = smul.addr %s349, 54
      %s351 = smul.addr %s350, 8
      %s352 = scalar_lea.vmem %s0, %s351
      %p353 = scmp.lt.s32.totalorder %s22, 1
      %s354 = scalar_select %p353, %s22, 1
      %s355 = smul.addr %s354, 32
      %s356 = smul.addr %s355, 8
      %s357 = scalar_lea.vmem %s9, %s356
      %p359 = scmp.eq.s32.totalorder %s22, 0
      // Predicated region
      $region57: #{expert_controller_film.4} parent=55 // pred_check
        %p360 = pneg %p359
      $region58: #{expert_controller_film.4} parent=55 // pred_check_branch
        %362 = sbr.rel (%p360) target = $region60
      $region59: #{expert_controller_film.4} parent=55 // pred_region
        %363 = vst [vmem:[%s10] sm:$0x3] 0.0
      $region60: #{expert_controller_film.4} parent=55 // pred_fallthru
        _
      %v364 = vld [vmem:[%s2] sm:$0x1]
      %v365 = vmul.f32 %v364, 0.001953125
      %v366 = vld [vmem:[%s2 + $0x1] sm:$0x1]
      %v367 = vmul.f32 %v366, 0.001953125
      %v368 = vmul.f32 %v365, %v365
      %v369 = vsub.f32 %v367, %v368
      %v370 = vadd.f32 %v369, 1e-05
      %v371 = vrsqrt.pop %v370
      %v372 = vld [vmem:[%s3] sm:$0x1]
      %v373 = vmul.f32 %v371, %v372
      %v374 = vld [vmem:[%s3 + $0x1] sm:$0x1]
      %v375 = vmul.f32 %v365, %v373
      %v376 = vsub.f32 %v374, %v375
      %v377 = vld [vmem:[%s352] sm:$0xff]
      %v378 = vld [vmem:[%s352 + $0x8] sm:$0xff]
      %v379 = vld [vmem:[%s352 + $0x10] sm:$0x3]
      %v380 = vld [vmem:[%s352 + $0x18] sm:$0xff]
      %v381 = vld [vmem:[%s352 + $0x20] sm:$0xff]
      %v382 = vld [vmem:[%s352 + $0x28] sm:$0x3]
      %v383 = vld [vmem:[%s352 + $0x30] sm:$0xff]
      %v384 = vld [vmem:[%s352 + $0x38] sm:$0xff]
      %v385 = vld [vmem:[%s352 + $0x40] sm:$0x3]
      %v386 = vld [vmem:[%s352 + $0x48] sm:$0xff]
      %v387 = vld [vmem:[%s352 + $0x50] sm:$0xff]
      %v388 = vld [vmem:[%s352 + $0x58] sm:$0x3]
      %v389 = vld [vmem:[%s352 + $0x60] sm:$0xff]
      %v390 = vld [vmem:[%s352 + $0x68] sm:$0xff]
      %v391 = vld [vmem:[%s352 + $0x70] sm:$0x3]
      %v392 = vld [vmem:[%s352 + $0x78] sm:$0xff]
      %v393 = vld [vmem:[%s352 + $0x80] sm:$0xff]
      %v394 = vld [vmem:[%s352 + $0x88] sm:$0x3]
      %v395 = vld [vmem:[%s352 + $0x90] sm:$0xff]
      %v396 = vld [vmem:[%s352 + $0x98] sm:$0xff]
      %v397 = vld [vmem:[%s352 + $0xa0] sm:$0x3]
      %v398 = vld [vmem:[%s352 + $0xa8] sm:$0xff]
      %v399 = vld [vmem:[%s352 + $0xb0] sm:$0xff]
      %v400 = vld [vmem:[%s352 + $0xb8] sm:$0x3]
      %v401 = vld [vmem:[%s352 + $0xc0] sm:$0xff]
      %v402 = vld [vmem:[%s352 + $0xc8] sm:$0xff]
      %v403 = vld [vmem:[%s352 + $0xd0] sm:$0x3]
      %v404 = vld [vmem:[%s352 + $0xd8] sm:$0xff]
      %v405 = vld [vmem:[%s352 + $0xe0] sm:$0xff]
      %v406 = vld [vmem:[%s352 + $0xe8] sm:$0x3]
      %v407 = vld [vmem:[%s352 + $0xf0] sm:$0xff]
      %v408 = vld [vmem:[%s352 + $0xf8] sm:$0xff]
      %v409 = vld [vmem:[%s352 + $0x100] sm:$0x3]
      %v410 = vld [vmem:[%s352 + $0x108] sm:$0xff]
      %v411 = vld [vmem:[%s352 + $0x110] sm:$0xff]
      %v412 = vld [vmem:[%s352 + $0x118] sm:$0x3]
      %v413 = vld [vmem:[%s352 + $0x120] sm:$0xff]
      %v414 = vld [vmem:[%s352 + $0x128] sm:$0xff]
      %v415 = vld [vmem:[%s352 + $0x130] sm:$0x3]
      %v416 = vld [vmem:[%s352 + $0x138] sm:$0xff]
      %v417 = vld [vmem:[%s352 + $0x140] sm:$0xff]
      %v418 = vld [vmem:[%s352 + $0x148] sm:$0x3]
      %v419 = vld [vmem:[%s352 + $0x150] sm:$0xff]
      %v420 = vld [vmem:[%s352 + $0x158] sm:$0xff]
      %v421 = vld [vmem:[%s352 + $0x160] sm:$0x3]
      %v422 = vld [vmem:[%s352 + $0x168] sm:$0xff]
      %v423 = vld [vmem:[%s352 + $0x170] sm:$0xff]
      %v424 = vld [vmem:[%s352 + $0x178] sm:$0x3]
      %v425 = vld [vmem:[%s352 + $0x180] sm:$0xff]
      %v426 = vld [vmem:[%s352 + $0x188] sm:$0xff]
      %v427 = vld [vmem:[%s352 + $0x190] sm:$0x3]
      %v428 = vld [vmem:[%s352 + $0x198] sm:$0xff]
      %v429 = vld [vmem:[%s352 + $0x1a0] sm:$0xff]
      %v430 = vld [vmem:[%s352 + $0x1a8] sm:$0x3]
      %v431 = vlaneseq
      %v432 = vshrl.u32 %v431, 7
      %v433 = vsub.s32 0, %v432
      %v434 = vrot.slane %v373, %v433
      %v435 = vmul.f32 %v377, %v434
      %v436 = vmul.f32 %v378, %v434
      %v437 = vmul.f32 %v379, %v434
      %v438 = vmul.f32 %v380, %v434
      %v439 = vmul.f32 %v381, %v434
      %v440 = vmul.f32 %v382, %v434
      %v441 = vmul.f32 %v383, %v434
      %v442 = vmul.f32 %v384, %v434
      %v443 = vmul.f32 %v385, %v434
      %v444 = vmul.f32 %v386, %v434
      %v445 = vmul.f32 %v387, %v434
      %v446 = vmul.f32 %v388, %v434
      %v447 = vmul.f32 %v389, %v434
      %v448 = vmul.f32 %v390, %v434
      %v449 = vmul.f32 %v391, %v434
      %v450 = vmul.f32 %v392, %v434
      %v451 = vmul.f32 %v393, %v434
      %v452 = vmul.f32 %v394, %v434
      %v453 = vmul.f32 %v395, %v434
      %v454 = vmul.f32 %v396, %v434
      %v455 = vmul.f32 %v397, %v434
      %v456 = vmul.f32 %v398, %v434
      %v457 = vmul.f32 %v399, %v434
      %v458 = vmul.f32 %v400, %v434
      %v459 = vmul.f32 %v401, %v434
      %v460 = vmul.f32 %v402, %v434
      %v461 = vmul.f32 %v403, %v434
      %v462 = vmul.f32 %v404, %v434
      %v463 = vmul.f32 %v405, %v434
      %v464 = vmul.f32 %v406, %v434
      %v465 = vmul.f32 %v407, %v434
      %v466 = vmul.f32 %v408, %v434
      %v467 = vmul.f32 %v409, %v434
      %v468 = vmul.f32 %v410, %v434
      %v469 = vmul.f32 %v411, %v434
      %v470 = vmul.f32 %v412, %v434
      %v471 = vmul.f32 %v413, %v434
      %v472 = vmul.f32 %v414, %v434
      %v473 = vmul.f32 %v415, %v434
      %v474 = vmul.f32 %v416, %v434
      %v475 = vmul.f32 %v417, %v434
      %v476 = vmul.f32 %v418, %v434
      %v477 = vmul.f32 %v419, %v434
      %v478 = vmul.f32 %v420, %v434
      %v479 = vmul.f32 %v421, %v434
      %v480 = vmul.f32 %v422, %v434
      %v481 = vmul.f32 %v423, %v434
      %v482 = vmul.f32 %v424, %v434
      %v483 = vmul.f32 %v425, %v434
      %v484 = vmul.f32 %v426, %v434
      %v485 = vmul.f32 %v427, %v434
      %v486 = vmul.f32 %v428, %v434
      %v487 = vmul.f32 %v429, %v434
      %v488 = vmul.f32 %v430, %v434
      %v489 = vlaneseq
      %v490 = vshrl.u32 %v489, 7
      %v491 = vsub.s32 0, %v490
      %v492 = vrot.slane %v376, %v491
      %v493 = vadd.f32 %v435, %v492
      %v494 = vadd.f32 %v436, %v492
      %v495 = vadd.f32 %v437, %v492
      %v496 = vadd.f32 %v438, %v492
      %v497 = vadd.f32 %v439, %v492
      %v498 = vadd.f32 %v440, %v492
      %v499 = vadd.f32 %v441, %v492
      %v500 = vadd.f32 %v442, %v492
      %v501 = vadd.f32 %v443, %v492
      %v502 = vadd.f32 %v444, %v492
      %v503 = vadd.f32 %v445, %v492
      %v504 = vadd.f32 %v446, %v492
      %v505 = vadd.f32 %v447, %v492
      %v506 = vadd.f32 %v448, %v492
      %v507 = vadd.f32 %v449, %v492
      %v508 = vadd.f32 %v450, %v492
      %v509 = vadd.f32 %v451, %v492
      %v510 = vadd.f32 %v452, %v492
      %v511 = vadd.f32 %v453, %v492
      %v512 = vadd.f32 %v454, %v492
      %v513 = vadd.f32 %v455, %v492
      %v514 = vadd.f32 %v456, %v492
      %v515 = vadd.f32 %v457, %v492
      %v516 = vadd.f32 %v458, %v492
      %v517 = vadd.f32 %v459, %v492
      %v518 = vadd.f32 %v460, %v492
      %v519 = vadd.f32 %v461, %v492
      %v520 = vadd.f32 %v462, %v492
      %v521 = vadd.f32 %v463, %v492
      %v522 = vadd.f32 %v464, %v492
      %v523 = vadd.f32 %v465, %v492
      %v524 = vadd.f32 %v466, %v492
      %v525 = vadd.f32 %v467, %v492
      %v526 = vadd.f32 %v468, %v492
      %v527 = vadd.f32 %v469, %v492
      %v528 = vadd.f32 %v470, %v492
      %v529 = vadd.f32 %v471, %v492
      %v530 = vadd.f32 %v472, %v492
      %v531 = vadd.f32 %v473, %v492
      %v532 = vadd.f32 %v474, %v492
      %v533 = vadd.f32 %v475, %v492
      %v534 = vadd.f32 %v476, %v492
      %v535 = vadd.f32 %v477, %v492
      %v536 = vadd.f32 %v478, %v492
      %v537 = vadd.f32 %v479, %v492
      %v538 = vadd.f32 %v480, %v492
      %v539 = vadd.f32 %v481, %v492
      %v540 = vadd.f32 %v482, %v492
      %v541 = vadd.f32 %v483, %v492
      %v542 = vadd.f32 %v484, %v492
      %v543 = vadd.f32 %v485, %v492
      %v544 = vadd.f32 %v486, %v492
      %v545 = vadd.f32 %v487, %v492
      %v546 = vadd.f32 %v488, %v492
      %v547 = vmax.f32 %v493, 0.0
      %v548 = vmax.f32 %v494, 0.0
      %v549 = vmax.f32 %v495, 0.0
      %v550 = vmax.f32 %v496, 0.0
      %v551 = vmax.f32 %v497, 0.0
      %v552 = vmax.f32 %v498, 0.0
      %v553 = vmax.f32 %v499, 0.0
      %v554 = vmax.f32 %v500, 0.0
      %v555 = vmax.f32 %v501, 0.0
      %v556 = vmax.f32 %v502, 0.0
      %v557 = vmax.f32 %v503, 0.0
      %v558 = vmax.f32 %v504, 0.0
      %v559 = vmax.f32 %v505, 0.0
      %v560 = vmax.f32 %v506, 0.0
      %v561 = vmax.f32 %v507, 0.0
      %v562 = vmax.f32 %v508, 0.0
      %v563 = vmax.f32 %v509, 0.0
      %v564 = vmax.f32 %v510, 0.0
      %v565 = vmax.f32 %v511, 0.0
      %v566 = vmax.f32 %v512, 0.0
      %v567 = vmax.f32 %v513, 0.0
      %v568 = vmax.f32 %v514, 0.0
      %v569 = vmax.f32 %v515, 0.0
      %v570 = vmax.f32 %v516, 0.0
      %v571 = vmax.f32 %v517, 0.0
      %v572 = vmax.f32 %v518, 0.0
      %v573 = vmax.f32 %v519, 0.0
      %v574 = vmax.f32 %v520, 0.0
      %v575 = vmax.f32 %v521, 0.0
      %v576 = vmax.f32 %v522, 0.0
      %v577 = vmax.f32 %v523, 0.0
      %v578 = vmax.f32 %v524, 0.0
      %v579 = vmax.f32 %v525, 0.0
      %v580 = vmax.f32 %v526, 0.0
      %v581 = vmax.f32 %v527, 0.0
      %v582 = vmax.f32 %v528, 0.0
      %v583 = vmax.f32 %v529, 0.0
      %v584 = vmax.f32 %v530, 0.0
      %v585 = vmax.f32 %v531, 0.0
      %v586 = vmax.f32 %v532, 0.0
      %v587 = vmax.f32 %v533, 0.0
      %v588 = vmax.f32 %v534, 0.0
      %v589 = vmax.f32 %v535, 0.0
      %v590 = vmax.f32 %v536, 0.0
      %v591 = vmax.f32 %v537, 0.0
      %v592 = vmax.f32 %v538, 0.0
      %v593 = vmax.f32 %v539, 0.0
      %v594 = vmax.f32 %v540, 0.0
      %v595 = vmax.f32 %v541, 0.0
      %v596 = vmax.f32 %v542, 0.0
      %v597 = vmax.f32 %v543, 0.0
      %v598 = vmax.f32 %v544, 0.0
      %v599 = vmax.f32 %v545, 0.0
      %v600 = vmax.f32 %v546, 0.0
      %v601 = vld [vmem:[%s1] sm:$0xff]
      %v602 = vld [vmem:[%s1 + $0x8] sm:$0xff]
      %v603 = vld [vmem:[%s1 + $0x10] sm:$0x3]
      %v604 = vld [vmem:[%s1 + $0x18] sm:$0xff]
      %v605 = vld [vmem:[%s1 + $0x20] sm:$0xff]
      %v606 = vld [vmem:[%s1 + $0x28] sm:$0x3]
      %v607 = vld [vmem:[%s1 + $0x30] sm:$0xff]
      %v608 = vld [vmem:[%s1 + $0x38] sm:$0xff]
      %v609 = vld [vmem:[%s1 + $0x40] sm:$0x3]
      %v610 = vld [vmem:[%s1 + $0x48] sm:$0xff]
      %v611 = vld [vmem:[%s1 + $0x50] sm:$0xff]
      %v612 = vld [vmem:[%s1 + $0x58] sm:$0x3]
      %v613 = vld [vmem:[%s1 + $0x60] sm:$0xff]
      %v614 = vld [vmem:[%s1 + $0x68] sm:$0xff]
      %v615 = vld [vmem:[%s1 + $0x70] sm:$0x3]
      %v616 = vld [vmem:[%s1 + $0x78] sm:$0xff]
      %v617 = vld [vmem:[%s1 + $0x80] sm:$0xff]
      %v618 = vld [vmem:[%s1 + $0x88] sm:$0x3]
      %v619 = vld [vmem:[%s1 + $0x90] sm:$0xff]
      %v620 = vld [vmem:[%s1 + $0x98] sm:$0xff]
      %v621 = vld [vmem:[%s1 + $0xa0] sm:$0x3]
      %v622 = vld [vmem:[%s1 + $0xa8] sm:$0xff]
      %v623 = vld [vmem:[%s1 + $0xb0] sm:$0xff]
      %v624 = vld [vmem:[%s1 + $0xb8] sm:$0x3]
      %v625 = vld [vmem:[%s1 + $0xc0] sm:$0xff]
      %v626 = vld [vmem:[%s1 + $0xc8] sm:$0xff]
      %v627 = vld [vmem:[%s1 + $0xd0] sm:$0x3]
      %v628 = vld [vmem:[%s1 + $0xd8] sm:$0xff]
      %v629 = vld [vmem:[%s1 + $0xe0] sm:$0xff]
      %v630 = vld [vmem:[%s1 + $0xe8] sm:$0x3]
      %v631 = vld [vmem:[%s1 + $0xf0] sm:$0xff]
      %v632 = vld [vmem:[%s1 + $0xf8] sm:$0xff]
      %v633 = vld [vmem:[%s1 + $0x100] sm:$0x3]
      %v634 = vld [vmem:[%s1 + $0x108] sm:$0xff]
      %v635 = vld [vmem:[%s1 + $0x110] sm:$0xff]
      %v636 = vld [vmem:[%s1 + $0x118] sm:$0x3]
      %v637 = vld [vmem:[%s1 + $0x120] sm:$0xff]
      %v638 = vld [vmem:[%s1 + $0x128] sm:$0xff]
      %v639 = vld [vmem:[%s1 + $0x130] sm:$0x3]
      %v640 = vld [vmem:[%s1 + $0x138] sm:$0xff]
      %v641 = vld [vmem:[%s1 + $0x140] sm:$0xff]
      %v642 = vld [vmem:[%s1 + $0x148] sm:$0x3]
      %v643 = vld [vmem:[%s1 + $0x150] sm:$0xff]
      %v644 = vld [vmem:[%s1 + $0x158] sm:$0xff]
      %v645 = vld [vmem:[%s1 + $0x160] sm:$0x3]
      %v646 = vld [vmem:[%s1 + $0x168] sm:$0xff]
      %v647 = vld [vmem:[%s1 + $0x170] sm:$0xff]
      %v648 = vld [vmem:[%s1 + $0x178] sm:$0x3]
      %v649 = vld [vmem:[%s1 + $0x180] sm:$0xff]
      %v650 = vld [vmem:[%s1 + $0x188] sm:$0xff]
      %v651 = vld [vmem:[%s1 + $0x190] sm:$0x3]
      %v652 = vld [vmem:[%s1 + $0x198] sm:$0xff]
      %v653 = vld [vmem:[%s1 + $0x1a0] sm:$0xff]
      %v654 = vld [vmem:[%s1 + $0x1a8] sm:$0x3]
      %656 = vset.pattern.permute.xlu0 0
      %657 = vperm.xlu0 %656, %v601
      %v658 = vpop.permute.xlu0 %657
      %661 = vset.pattern.permute.xlu0 0
      %662 = vperm.xlu0 %661, %v602
      %v663 = vpop.permute.xlu0 %662
      %666 = vset.pattern.permute.xlu0 0
      %667 = vperm.xlu0 %666, %v603
      %v668 = vpop.permute.xlu0 %667
      %671 = vset.pattern.permute.xlu0 0
      %672 = vperm.xlu0 %671, %v604
      %v673 = vpop.permute.xlu0 %672
      %676 = vset.pattern.permute.xlu0 0
      %677 = vperm.xlu0 %676, %v605
      %v678 = vpop.permute.xlu0 %677
      %681 = vset.pattern.permute.xlu0 0
      %682 = vperm.xlu0 %681, %v606
      %v683 = vpop.permute.xlu0 %682
      %686 = vset.pattern.permute.xlu0 0
      %687 = vperm.xlu0 %686, %v607
      %v688 = vpop.permute.xlu0 %687
      %691 = vset.pattern.permute.xlu0 0
      %692 = vperm.xlu0 %691, %v608
      %v693 = vpop.permute.xlu0 %692
      %696 = vset.pattern.permute.xlu0 0
      %697 = vperm.xlu0 %696, %v609
      %v698 = vpop.permute.xlu0 %697
      %701 = vset.pattern.permute.xlu0 0
      %702 = vperm.xlu0 %701, %v610
      %v703 = vpop.permute.xlu0 %702
      %706 = vset.pattern.permute.xlu0 0
      %707 = vperm.xlu0 %706, %v611
      %v708 = vpop.permute.xlu0 %707
      %711 = vset.pattern.permute.xlu0 0
      %712 = vperm.xlu0 %711, %v612
      %v713 = vpop.permute.xlu0 %712
      %716 = vset.pattern.permute.xlu0 0
      %717 = vperm.xlu0 %716, %v613
      %v718 = vpop.permute.xlu0 %717
      %721 = vset.pattern.permute.xlu0 0
      %722 = vperm.xlu0 %721, %v614
      %v723 = vpop.permute.xlu0 %722
      %726 = vset.pattern.permute.xlu0 0
      %727 = vperm.xlu0 %726, %v615
      %v728 = vpop.permute.xlu0 %727
      %731 = vset.pattern.permute.xlu0 0
      %732 = vperm.xlu0 %731, %v616
      %v733 = vpop.permute.xlu0 %732
      %736 = vset.pattern.permute.xlu0 0
      %737 = vperm.xlu0 %736, %v617
      %v738 = vpop.permute.xlu0 %737
      %741 = vset.pattern.permute.xlu0 0
      %742 = vperm.xlu0 %741, %v618
      %v743 = vpop.permute.xlu0 %742
      %746 = vset.pattern.permute.xlu0 0
      %747 = vperm.xlu0 %746, %v619
      %v748 = vpop.permute.xlu0 %747
      %751 = vset.pattern.permute.xlu0 0
      %752 = vperm.xlu0 %751, %v620
      %v753 = vpop.permute.xlu0 %752
      %756 = vset.pattern.permute.xlu0 0
      %757 = vperm.xlu0 %756, %v621
      %v758 = vpop.permute.xlu0 %757
      %761 = vset.pattern.permute.xlu0 0
      %762 = vperm.xlu0 %761, %v622
      %v763 = vpop.permute.xlu0 %762
      %766 = vset.pattern.permute.xlu0 0
      %767 = vperm.xlu0 %766, %v623
      %v768 = vpop.permute.xlu0 %767
      %771 = vset.pattern.permute.xlu0 0
      %772 = vperm.xlu0 %771, %v624
      %v773 = vpop.permute.xlu0 %772
      %776 = vset.pattern.permute.xlu0 0
      %777 = vperm.xlu0 %776, %v625
      %v778 = vpop.permute.xlu0 %777
      %781 = vset.pattern.permute.xlu0 0
      %782 = vperm.xlu0 %781, %v626
      %v783 = vpop.permute.xlu0 %782
      %786 = vset.pattern.permute.xlu0 0
      %787 = vperm.xlu0 %786, %v627
      %v788 = vpop.permute.xlu0 %787
      %791 = vset.pattern.permute.xlu0 0
      %792 = vperm.xlu0 %791, %v628
      %v793 = vpop.permute.xlu0 %792
      %796 = vset.pattern.permute.xlu0 0
      %797 = vperm.xlu0 %796, %v629
      %v798 = vpop.permute.xlu0 %797
      %801 = vset.pattern.permute.xlu0 0
      %802 = vperm.xlu0 %801, %v630
      %v803 = vpop.permute.xlu0 %802
      %806 = vset.pattern.permute.xlu0 0
      %807 = vperm.xlu0 %806, %v631
      %v808 = vpop.permute.xlu0 %807
      %811 = vset.pattern.permute.xlu0 0
      %812 = vperm.xlu0 %811, %v632
      %v813 = vpop.permute.xlu0 %812
      %816 = vset.pattern.permute.xlu0 0
      %817 = vperm.xlu0 %816, %v633
      %v818 = vpop.permute.xlu0 %817
      %821 = vset.pattern.permute.xlu0 0
      %822 = vperm.xlu0 %821, %v634
      %v823 = vpop.permute.xlu0 %822
      %826 = vset.pattern.permute.xlu0 0
      %827 = vperm.xlu0 %826, %v635
      %v828 = vpop.permute.xlu0 %827
      %831 = vset.pattern.permute.xlu0 0
      %832 = vperm.xlu0 %831, %v636
      %v833 = vpop.permute.xlu0 %832
      %836 = vset.pattern.permute.xlu0 0
      %837 = vperm.xlu0 %836, %v637
      %v838 = vpop.permute.xlu0 %837
      %841 = vset.pattern.permute.xlu0 0
      %842 = vperm.xlu0 %841, %v638
      %v843 = vpop.permute.xlu0 %842
      %846 = vset.pattern.permute.xlu0 0
      %847 = vperm.xlu0 %846, %v639
      %v848 = vpop.permute.xlu0 %847
      %851 = vset.pattern.permute.xlu0 0
      %852 = vperm.xlu0 %851, %v640
      %v853 = vpop.permute.xlu0 %852
      %856 = vset.pattern.permute.xlu0 0
      %857 = vperm.xlu0 %856, %v641
      %v858 = vpop.permute.xlu0 %857
      %861 = vset.pattern.permute.xlu0 0
      %862 = vperm.xlu0 %861, %v642
      %v863 = vpop.permute.xlu0 %862
      %866 = vset.pattern.permute.xlu0 0
      %867 = vperm.xlu0 %866, %v643
      %v868 = vpop.permute.xlu0 %867
      %871 = vset.pattern.permute.xlu0 0
      %872 = vperm.xlu0 %871, %v644
      %v873 = vpop.permute.xlu0 %872
      %876 = vset.pattern.permute.xlu0 0
      %877 = vperm.xlu0 %876, %v645
      %v878 = vpop.permute.xlu0 %877
      %881 = vset.pattern.permute.xlu0 0
      %882 = vperm.xlu0 %881, %v646
      %v883 = vpop.permute.xlu0 %882
      %886 = vset.pattern.permute.xlu0 0
      %887 = vperm.xlu0 %886, %v647
      %v888 = vpop.permute.xlu0 %887
      %891 = vset.pattern.permute.xlu0 0
      %892 = vperm.xlu0 %891, %v648
      %v893 = vpop.permute.xlu0 %892
      %896 = vset.pattern.permute.xlu0 0
      %897 = vperm.xlu0 %896, %v649
      %v898 = vpop.permute.xlu0 %897
      %901 = vset.pattern.permute.xlu0 0
      %902 = vperm.xlu0 %901, %v650
      %v903 = vpop.permute.xlu0 %902
      %906 = vset.pattern.permute.xlu0 0
      %907 = vperm.xlu0 %906, %v651
      %v908 = vpop.permute.xlu0 %907
      %911 = vset.pattern.permute.xlu0 0
      %912 = vperm.xlu0 %911, %v652
      %v913 = vpop.permute.xlu0 %912
      %916 = vset.pattern.permute.xlu0 0
      %917 = vperm.xlu0 %916, %v653
      %v918 = vpop.permute.xlu0 %917
      %921 = vset.pattern.permute.xlu0 0
      %922 = vperm.xlu0 %921, %v654
      %v923 = vpop.permute.xlu0 %922
      %v925 = vmul.f32 %v547, %v658
      %v926 = vmul.f32 %v548, %v663
      %v927 = vmul.f32 %v549, %v668
      %v928 = vmul.f32 %v550, %v673
      %v929 = vmul.f32 %v551, %v678
      %v930 = vmul.f32 %v552, %v683
      %v931 = vmul.f32 %v553, %v688
      %v932 = vmul.f32 %v554, %v693
      %v933 = vmul.f32 %v555, %v698
      %v934 = vmul.f32 %v556, %v703
      %v935 = vmul.f32 %v557, %v708
      %v936 = vmul.f32 %v558, %v713
      %v937 = vmul.f32 %v559, %v718
      %v938 = vmul.f32 %v560, %v723
      %v939 = vmul.f32 %v561, %v728
      %v940 = vmul.f32 %v562, %v733
      %v941 = vmul.f32 %v563, %v738
      %v942 = vmul.f32 %v564, %v743
      %v943 = vmul.f32 %v565, %v748
      %v944 = vmul.f32 %v566, %v753
      %v945 = vmul.f32 %v567, %v758
      %v946 = vmul.f32 %v568, %v763
      %v947 = vmul.f32 %v569, %v768
      %v948 = vmul.f32 %v570, %v773
      %v949 = vmul.f32 %v571, %v778
      %v950 = vmul.f32 %v572, %v783
      %v951 = vmul.f32 %v573, %v788
      %v952 = vmul.f32 %v574, %v793
      %v953 = vmul.f32 %v575, %v798
      %v954 = vmul.f32 %v576, %v803
      %v955 = vmul.f32 %v577, %v808
      %v956 = vmul.f32 %v578, %v813
      %v957 = vmul.f32 %v579, %v818
      %v958 = vmul.f32 %v580, %v823
      %v959 = vmul.f32 %v581, %v828
      %v960 = vmul.f32 %v582, %v833
      %v961 = vmul.f32 %v583, %v838
      %v962 = vmul.f32 %v584, %v843
      %v963 = vmul.f32 %v585, %v848
      %v964 = vmul.f32 %v586, %v853
      %v965 = vmul.f32 %v587, %v858
      %v966 = vmul.f32 %v588, %v863
      %v967 = vmul.f32 %v589, %v868
      %v968 = vmul.f32 %v590, %v873
      %v969 = vmul.f32 %v591, %v878
      %v970 = vmul.f32 %v592, %v883
      %v971 = vmul.f32 %v593, %v888
      %v972 = vmul.f32 %v594, %v893
      %v973 = vmul.f32 %v595, %v898
      %v974 = vmul.f32 %v596, %v903
      %v975 = vmul.f32 %v597, %v908
      %v976 = vmul.f32 %v598, %v913
      %v977 = vmul.f32 %v599, %v918
      %v978 = vmul.f32 %v600, %v923
      %979 = vst [vmem:[#allocation2] sm:$0xff] %v925
      %980 = vst [vmem:[#allocation2 + $0x8] sm:$0xff] %v926
      %981 = vst [vmem:[#allocation2 + $0x10] sm:$0x3] %v927
      %982 = vst [vmem:[#allocation2 + $0x18] sm:$0xff] %v928
      %983 = vst [vmem:[#allocation2 + $0x20] sm:$0xff] %v929
      %984 = vst [vmem:[#allocation2 + $0x28] sm:$0x3] %v930
      %985 = vst [vmem:[#allocation2 + $0x30] sm:$0xff] %v931
      %986 = vst [vmem:[#allocation2 + $0x38] sm:$0xff] %v932
      %987 = vst [vmem:[#allocation2 + $0x40] sm:$0x3] %v933
      %988 = vst [vmem:[#allocation2 + $0x48] sm:$0xff] %v934
      %989 = vst [vmem:[#allocation2 + $0x50] sm:$0xff] %v935
      %990 = vst [vmem:[#allocation2 + $0x58] sm:$0x3] %v936
      %991 = vst [vmem:[#allocation2 + $0x60] sm:$0xff] %v937
      %992 = vst [vmem:[#allocation2 + $0x68] sm:$0xff] %v938
      %993 = vst [vmem:[#allocation2 + $0x70] sm:$0x3] %v939
      %994 = vst [vmem:[#allocation2 + $0x78] sm:$0xff] %v940
      %995 = vst [vmem:[#allocation2 + $0x80] sm:$0xff] %v941
      %996 = vst [vmem:[#allocation2 + $0x88] sm:$0x3] %v942
      %997 = vst [vmem:[#allocation2 + $0x90] sm:$0xff] %v943
      %998 = vst [vmem:[#allocation2 + $0x98] sm:$0xff] %v944
      %999 = vst [vmem:[#allocation2 + $0xa0] sm:$0x3] %v945
      %1000 = vst [vmem:[#allocation2 + $0xa8] sm:$0xff] %v946
      %1001 = vst [vmem:[#allocation2 + $0xb0] sm:$0xff] %v947
      %1002 = vst [vmem:[#allocation2 + $0xb8] sm:$0x3] %v948
      %1003 = vst [vmem:[#allocation2 + $0xc0] sm:$0xff] %v949
      %1004 = vst [vmem:[#allocation2 + $0xc8] sm:$0xff] %v950
      %1005 = vst [vmem:[#allocation2 + $0xd0] sm:$0x3] %v951
      %1006 = vst [vmem:[#allocation2 + $0xd8] sm:$0xff] %v952
      %1007 = vst [vmem:[#allocation2 + $0xe0] sm:$0xff] %v953
      %1008 = vst [vmem:[#allocation2 + $0xe8] sm:$0x3] %v954
      %1009 = vst [vmem:[#allocation2 + $0xf0] sm:$0xff] %v955
      %1010 = vst [vmem:[#allocation2 + $0xf8] sm:$0xff] %v956
      %1011 = vst [vmem:[#allocation2 + $0x100] sm:$0x3] %v957
      %1012 = vst [vmem:[#allocation2 + $0x108] sm:$0xff] %v958
      %1013 = vst [vmem:[#allocation2 + $0x110] sm:$0xff] %v959
      %1014 = vst [vmem:[#allocation2 + $0x118] sm:$0x3] %v960
      %1015 = vst [vmem:[#allocation2 + $0x120] sm:$0xff] %v961
      %1016 = vst [vmem:[#allocation2 + $0x128] sm:$0xff] %v962
      %1017 = vst [vmem:[#allocation2 + $0x130] sm:$0x3] %v963
      %1018 = vst [vmem:[#allocation2 + $0x138] sm:$0xff] %v964
      %1019 = vst [vmem:[#allocation2 + $0x140] sm:$0xff] %v965
      %1020 = vst [vmem:[#allocation2 + $0x148] sm:$0x3] %v966
      %1021 = vst [vmem:[#allocation2 + $0x150] sm:$0xff] %v967
      %1022 = vst [vmem:[#allocation2 + $0x158] sm:$0xff] %v968
      %1023 = vst [vmem:[#allocation2 + $0x160] sm:$0x3] %v969
      %1024 = vst [vmem:[#allocation2 + $0x168] sm:$0xff] %v970
      %1025 = vst [vmem:[#allocation2 + $0x170] sm:$0xff] %v971
      %1026 = vst [vmem:[#allocation2 + $0x178] sm:$0x3] %v972
      %1027 = vst [vmem:[#allocation2 + $0x180] sm:$0xff] %v973
      %1028 = vst [vmem:[#allocation2 + $0x188] sm:$0xff] %v974
      %1029 = vst [vmem:[#allocation2 + $0x190] sm:$0x3] %v975
      %1030 = vst [vmem:[#allocation2 + $0x198] sm:$0xff] %v976
      %1031 = vst [vmem:[#allocation2 + $0x1a0] sm:$0xff] %v977
      %1032 = vst [vmem:[#allocation2 + $0x1a8] sm:$0x3] %v978
      %v1033 = vld [vmem:[#allocation2] sm:$0xff]
      %v1034 = vld [vmem:[#allocation2 + $0x8] sm:$0xff]
      %v1035 = vld [vmem:[#allocation2 + $0x18] sm:$0xff]
      %v1036 = vld [vmem:[#allocation2 + $0x20] sm:$0xff]
      %v1037 = vld [vmem:[#allocation2 + $0x30] sm:$0xff]
      %v1038 = vld [vmem:[#allocation2 + $0x38] sm:$0xff]
      %v1039 = vld [vmem:[#allocation2 + $0x48] sm:$0xff]
      %v1040 = vld [vmem:[#allocation2 + $0x50] sm:$0xff]
      %v1041 = vld [vmem:[#allocation2 + $0x60] sm:$0xff]
      %v1042 = vld [vmem:[#allocation2 + $0x68] sm:$0xff]
      %v1043 = vld [vmem:[#allocation2 + $0x78] sm:$0xff]
      %v1044 = vld [vmem:[#allocation2 + $0x80] sm:$0xff]
      %v1045 = vld [vmem:[#allocation2 + $0x90] sm:$0xff]
      %v1046 = vld [vmem:[#allocation2 + $0x98] sm:$0xff]
      %v1047 = vld [vmem:[#allocation2 + $0xa8] sm:$0xff]
      %v1048 = vld [vmem:[#allocation2 + $0xb0] sm:$0xff]
      %v1049 = vld [vmem:[#allocation2 + $0xc0] sm:$0xff]
      %v1050 = vld [vmem:[#allocation2 + $0xc8] sm:$0xff]
      %v1051 = vld [vmem:[#allocation2 + $0xd8] sm:$0xff]
      %v1052 = vld [vmem:[#allocation2 + $0xe0] sm:$0xff]
      %v1053 = vld [vmem:[#allocation2 + $0xf0] sm:$0xff]
      %v1054 = vld [vmem:[#allocation2 + $0xf8] sm:$0xff]
      %v1055 = vld [vmem:[#allocation2 + $0x108] sm:$0xff]
      %v1056 = vld [vmem:[#allocation2 + $0x110] sm:$0xff]
      %v1057 = vld [vmem:[#allocation2 + $0x120] sm:$0xff]
      %v1058 = vld [vmem:[#allocation2 + $0x128] sm:$0xff]
      %v1059 = vld [vmem:[#allocation2 + $0x138] sm:$0xff]
      %v1060 = vld [vmem:[#allocation2 + $0x140] sm:$0xff]
      %v1061 = vld [vmem:[#allocation2 + $0x150] sm:$0xff]
      %v1062 = vld [vmem:[#allocation2 + $0x158] sm:$0xff]
      %v1063 = vld [vmem:[#allocation2 + $0x168] sm:$0xff]
      %v1064 = vld [vmem:[#allocation2 + $0x170] sm:$0xff]
      %v1065 = vpack.c.bf16 %v1034, %v1033
      %v1066 = vpack.c.bf16 %v1036, %v1035
      %v1067 = vpack.c.bf16 %v1038, %v1037
      %v1068 = vpack.c.bf16 %v1040, %v1039
      %v1069 = vpack.c.bf16 %v1042, %v1041
      %v1070 = vpack.c.bf16 %v1044, %v1043
      %v1071 = vpack.c.bf16 %v1046, %v1045
      %v1072 = vpack.c.bf16 %v1048, %v1047
      %v1073 = vpack.c.bf16 %v1050, %v1049
      %v1074 = vpack.c.bf16 %v1052, %v1051
      %v1075 = vpack.c.bf16 %v1054, %v1053
      %v1076 = vpack.c.bf16 %v1056, %v1055
      %v1077 = vpack.c.bf16 %v1058, %v1057
      %v1078 = vpack.c.bf16 %v1060, %v1059
      %v1079 = vpack.c.bf16 %v1062, %v1061
      %v1080 = vpack.c.bf16 %v1064, %v1063
      %v1081 = vld [vmem:[%s8] sm:$0xf]
      %v1082 = vld [vmem:[%s8 + $0x4] sm:$0xf]
      %v1083 = vld [vmem:[%s8 + $0x8] sm:$0xf]
      %v1084 = vld [vmem:[%s8 + $0xc] sm:$0xf]
      %v1085 = vld [vmem:[%s8 + $0x10] sm:$0xf]
      %v1086 = vld [vmem:[%s8 + $0x14] sm:$0xf]
      %v1087 = vld [vmem:[%s8 + $0x18] sm:$0xf]
      %v1088 = vld [vmem:[%s8 + $0x1c] sm:$0xf]
      %v1089 = vld [vmem:[%s8 + $0x20] sm:$0xf]
      %v1090 = vld [vmem:[%s8 + $0x24] sm:$0xf]
      %v1091 = vld [vmem:[%s8 + $0x28] sm:$0xf]
      %v1092 = vld [vmem:[%s8 + $0x2c] sm:$0xf]
      %v1093 = vld [vmem:[%s8 + $0x30] sm:$0xf]
      %v1094 = vld [vmem:[%s8 + $0x34] sm:$0xf]
      %v1095 = vld [vmem:[%s8 + $0x38] sm:$0xf]
      %v1096 = vld [vmem:[%s8 + $0x3c] sm:$0xf]
      %v1097 = vld [vmem:[#allocation2 + $0x1] sm:$0xff]
      %v1098 = vld [vmem:[#allocation2 + $0x9] sm:$0xff]
      %v1099 = vld [vmem:[#allocation2 + $0x19] sm:$0xff]
      %v1100 = vld [vmem:[#allocation2 + $0x21] sm:$0xff]
      %v1101 = vld [vmem:[#allocation2 + $0x31] sm:$0xff]
      %v1102 = vld [vmem:[#allocation2 + $0x39] sm:$0xff]
      %v1103 = vld [vmem:[#allocation2 + $0x49] sm:$0xff]
      %v1104 = vld [vmem:[#allocation2 + $0x51] sm:$0xff]
      %v1105 = vld [vmem:[#allocation2 + $0x61] sm:$0xff]
      %v1106 = vld [vmem:[#allocation2 + $0x69] sm:$0xff]
      %v1107 = vld [vmem:[#allocation2 + $0x79] sm:$0xff]
      %v1108 = vld [vmem:[#allocation2 + $0x81] sm:$0xff]
      %v1109 = vld [vmem:[#allocation2 + $0x91] sm:$0xff]
      %v1110 = vld [vmem:[#allocation2 + $0x99] sm:$0xff]
      %v1111 = vld [vmem:[#allocation2 + $0xa9] sm:$0xff]
      %v1112 = vld [vmem:[#allocation2 + $0xb1] sm:$0xff]
      %v1113 = vld [vmem:[#allocation2 + $0xc1] sm:$0xff]
      %v1114 = vld [vmem:[#allocation2 + $0xc9] sm:$0xff]
      %v1115 = vld [vmem:[#allocation2 + $0xd9] sm:$0xff]
      %v1116 = vld [vmem:[#allocation2 + $0xe1] sm:$0xff]
      %v1117 = vld [vmem:[#allocation2 + $0xf1] sm:$0xff]
      %v1118 = vld [vmem:[#allocation2 + $0xf9] sm:$0xff]
      %v1119 = vld [vmem:[#allocation2 + $0x109] sm:$0xff]
      %v1120 = vld [vmem:[#allocation2 + $0x111] sm:$0xff]
      %v1121 = vld [vmem:[#allocation2 + $0x121] sm:$0xff]
      %v1122 = vld [vmem:[#allocation2 + $0x129] sm:$0xff]
      %v1123 = vld [vmem:[#allocation2 + $0x139] sm:$0xff]
      %v1124 = vld [vmem:[#allocation2 + $0x141] sm:$0xff]
      %v1125 = vld [vmem:[#allocation2 + $0x151] sm:$0xff]
      %v1126 = vld [vmem:[#allocation2 + $0x159] sm:$0xff]
      %v1127 = vld [vmem:[#allocation2 + $0x169] sm:$0xff]
      %v1128 = vld [vmem:[#allocation2 + $0x171] sm:$0xff]
      %v1129 = vpack.c.bf16 %v1098, %v1097
      %v1130 = vpack.c.bf16 %v1100, %v1099
      %v1131 = vpack.c.bf16 %v1102, %v1101
      %v1132 = vpack.c.bf16 %v1104, %v1103
      %v1133 = vpack.c.bf16 %v1106, %v1105
      %v1134 = vpack.c.bf16 %v1108, %v1107
      %v1135 = vpack.c.bf16 %v1110, %v1109
      %v1136 = vpack.c.bf16 %v1112, %v1111
      %v1137 = vpack.c.bf16 %v1114, %v1113
      %v1138 = vpack.c.bf16 %v1116, %v1115
      %v1139 = vpack.c.bf16 %v1118, %v1117
      %v1140 = vpack.c.bf16 %v1120, %v1119
      %v1141 = vpack.c.bf16 %v1122, %v1121
      %v1142 = vpack.c.bf16 %v1124, %v1123
      %v1143 = vpack.c.bf16 %v1126, %v1125
      %v1144 = vpack.c.bf16 %v1128, %v1127
      %s1145 = scalar_lea.vmem %s8, 64
      %v1146 = vld [vmem:[%s1145] sm:$0xf]
      %v1147 = vld [vmem:[%s1145 + $0x4] sm:$0xf]
      %v1148 = vld [vmem:[%s1145 + $0x8] sm:$0xf]
      %v1149 = vld [vmem:[%s1145 + $0xc] sm:$0xf]
      %v1150 = vld [vmem:[%s1145 + $0x10] sm:$0xf]
      %v1151 = vld [vmem:[%s1145 + $0x14] sm:$0xf]
      %v1152 = vld [vmem:[%s1145 + $0x18] sm:$0xf]
      %v1153 = vld [vmem:[%s1145 + $0x1c] sm:$0xf]
      %v1154 = vld [vmem:[%s1145 + $0x20] sm:$0xf]
      %v1155 = vld [vmem:[%s1145 + $0x24] sm:$0xf]
      %v1156 = vld [vmem:[%s1145 + $0x28] sm:$0xf]
      %v1157 = vld [vmem:[%s1145 + $0x2c] sm:$0xf]
      %v1158 = vld [vmem:[%s1145 + $0x30] sm:$0xf]
      %v1159 = vld [vmem:[%s1145 + $0x34] sm:$0xf]
      %v1160 = vld [vmem:[%s1145 + $0x38] sm:$0xf]
      %v1161 = vld [vmem:[%s1145 + $0x3c] sm:$0xf]
      %v1178 = vunpack.c.l.b16 %v1146
      %v1179 = vunpack.c.l.b16 %v1147
      %v1180 = vunpack.c.l.b16 %v1148
      %v1181 = vunpack.c.l.b16 %v1149
      %v1182 = vunpack.c.l.b16 %v1150
      %v1183 = vunpack.c.l.b16 %v1151
      %v1184 = vunpack.c.l.b16 %v1152
      %v1185 = vunpack.c.l.b16 %v1153
      %v1186 = vunpack.c.l.b16 %v1154
      %v1187 = vunpack.c.l.b16 %v1155
      %v1188 = vunpack.c.l.b16 %v1156
      %v1189 = vunpack.c.l.b16 %v1157
      %v1190 = vunpack.c.l.b16 %v1158
      %v1191 = vunpack.c.l.b16 %v1159
      %v1192 = vunpack.c.l.b16 %v1160
      %v1193 = vunpack.c.l.b16 %v1161
      %v1194 = vpack.c.b16 %v1179, %v1178
      %v1195 = vpack.c.b16 %v1181, %v1180
      %v1196 = vpack.c.b16 %v1183, %v1182
      %v1197 = vpack.c.b16 %v1185, %v1184
      %v1198 = vpack.c.b16 %v1187, %v1186
      %v1199 = vpack.c.b16 %v1189, %v1188
      %v1200 = vpack.c.b16 %v1191, %v1190
      %v1201 = vpack.c.b16 %v1193, %v1192
      %1210 = vmatprep.subr.bf16.mxu0 0
      %1211 = vmatpush1.bf16.msra.mxu0 %v1201
      %1212 = vmatprep.subr.bf16.mxu0 0
      %1213 = vmatpush1.bf16.msra.mxu0 %v1200
      %1214 = vmatprep.subr.bf16.mxu0 0
      %1215 = vmatpush1.bf16.msra.mxu0 %v1199
      %1216 = vmatprep.subr.bf16.mxu0 0
      %1217 = vmatpush1.bf16.msra.mxu0 %v1198
      %1218 = vmatprep.subr.bf16.mxu0 0
      %1219 = vmatpush1.bf16.msra.mxu0 %v1197
      %1220 = vmatprep.subr.bf16.mxu0 0
      %1221 = vmatpush1.bf16.msra.mxu0 %v1196
      %1222 = vmatprep.subr.bf16.mxu0 0
      %1223 = vmatpush1.bf16.msra.mxu0 %v1195
      %1224 = vmatprep.subr.bf16.mxu0 0
      %1225 = vmatpush1.bf16.msra.mxu0 %v1194
      %1226 = vmatprep.subr.bf16.mxu0 0
      %1227 = vmatpush2.bf16.msra.mxu0 0
      %1228 = vmatprep.subr.bf16.mxu0 0
      %1229 = vmatpush2.bf16.msra.mxu0 0
      %1230 = vmatprep.subr.bf16.mxu0 0
      %1231 = vmatpush2.bf16.msra.mxu0 0
      %1232 = vmatprep.subr.bf16.mxu0 0
      %1233 = vmatpush2.bf16.msra.mxu0 0
      %1234 = vmatprep.subr.bf16.mxu0 0
      %1235 = vmatpush2.bf16.msra.mxu0 0
      %1236 = vmatprep.subr.bf16.mxu0 0
      %1237 = vmatpush2.bf16.msra.mxu0 0
      %1238 = vmatprep.subr.bf16.mxu0 0
      %1239 = vmatpush2.bf16.msra.mxu0 0
      %1240 = vmatprep.subr.bf16.mxu0 0
      %1241 = vmatpush2.bf16.msra.mxu0 0
      %1242 = vmatprep.mubr.bf16.mxu0 0
      %1243 = vmatmul.mubr.bf16.gmra.mxu0 %v1129
      %v1244 = vpop.f32.mrf.mxu0
      %v1245 = vadd.f32 0.0, %v1244
      %v1246 = vpop.f32.mrf.mxu0
      %v1247 = vpop.f32.mrf.mxu0
      %v1248 = vadd.f32 0.0, %v1247
      %v1249 = vpop.f32.mrf.mxu0
      %1250 = vmatprep.mubr.bf16.mxu0 0
      %1251 = vmatmul.mubr.bf16.gmra.mxu0 %v1130
      %v1252 = vpop.f32.mrf.mxu0
      %v1253 = vadd.f32 0.0, %v1252
      %v1254 = vpop.f32.mrf.mxu0
      %v1255 = vpop.f32.mrf.mxu0
      %v1256 = vadd.f32 0.0, %v1255
      %v1257 = vpop.f32.mrf.mxu0
      %1258 = vmatprep.mubr.bf16.mxu0 0
      %1259 = vmatmul.mubr.bf16.gmra.mxu0 %v1131
      %v1260 = vpop.f32.mrf.mxu0
      %v1261 = vadd.f32 0.0, %v1260
      %v1262 = vpop.f32.mrf.mxu0
      %v1263 = vpop.f32.mrf.mxu0
      %v1264 = vadd.f32 0.0, %v1263
      %v1265 = vpop.f32.mrf.mxu0
      %1266 = vmatprep.mubr.bf16.mxu0 0
      %1267 = vmatmul.mubr.bf16.gmra.mxu0 %v1132
      %v1268 = vpop.f32.mrf.mxu0
      %v1269 = vadd.f32 0.0, %v1268
      %v1270 = vpop.f32.mrf.mxu0
      %v1271 = vpop.f32.mrf.mxu0
      %v1272 = vadd.f32 0.0, %v1271
      %v1273 = vpop.f32.mrf.mxu0
      %1274 = vmatprep.mubr.bf16.mxu0 0
      %1275 = vmatmul.mubr.bf16.gmra.mxu0 %v1133
      %v1276 = vpop.f32.mrf.mxu0
      %v1277 = vadd.f32 0.0, %v1276
      %v1278 = vpop.f32.mrf.mxu0
      %v1279 = vpop.f32.mrf.mxu0
      %v1280 = vadd.f32 0.0, %v1279
      %v1281 = vpop.f32.mrf.mxu0
      %1282 = vmatprep.mubr.bf16.mxu0 0
      %1283 = vmatmul.mubr.bf16.gmra.mxu0 %v1134
      %v1284 = vpop.f32.mrf.mxu0
      %v1285 = vadd.f32 0.0, %v1284
      %v1286 = vpop.f32.mrf.mxu0
      %v1287 = vpop.f32.mrf.mxu0
      %v1288 = vadd.f32 0.0, %v1287
      %v1289 = vpop.f32.mrf.mxu0
      %1290 = vmatprep.mubr.bf16.mxu0 0
      %1291 = vmatmul.mubr.bf16.gmra.mxu0 %v1135
      %v1292 = vpop.f32.mrf.mxu0
      %v1293 = vadd.f32 0.0, %v1292
      %v1294 = vpop.f32.mrf.mxu0
      %v1295 = vpop.f32.mrf.mxu0
      %v1296 = vadd.f32 0.0, %v1295
      %v1297 = vpop.f32.mrf.mxu0
      %1298 = vmatprep.mubr.bf16.mxu0 0
      %1299 = vmatmul.mubr.bf16.gmra.mxu0 %v1136
      %v1300 = vpop.f32.mrf.mxu0
      %v1301 = vadd.f32 0.0, %v1300
      %v1302 = vpop.f32.mrf.mxu0
      %v1303 = vpop.f32.mrf.mxu0
      %v1304 = vadd.f32 0.0, %v1303
      %v1305 = vpop.f32.mrf.mxu0
      %1306 = vmatprep.mubr.bf16.mxu0 0
      %1307 = vmatmul.mubr.bf16.gmra.mxu0 %v1137
      %v1308 = vpop.f32.mrf.mxu0
      %v1309 = vadd.f32 0.0, %v1308
      %v1310 = vpop.f32.mrf.mxu0
      %v1311 = vpop.f32.mrf.mxu0
      %v1312 = vadd.f32 0.0, %v1311
      %v1313 = vpop.f32.mrf.mxu0
      %1314 = vmatprep.mubr.bf16.mxu0 0
      %1315 = vmatmul.mubr.bf16.gmra.mxu0 %v1138
      %v1316 = vpop.f32.mrf.mxu0
      %v1317 = vadd.f32 0.0, %v1316
      %v1318 = vpop.f32.mrf.mxu0
      %v1319 = vpop.f32.mrf.mxu0
      %v1320 = vadd.f32 0.0, %v1319
      %v1321 = vpop.f32.mrf.mxu0
      %1322 = vmatprep.mubr.bf16.mxu0 0
      %1323 = vmatmul.mubr.bf16.gmra.mxu0 %v1139
      %v1324 = vpop.f32.mrf.mxu0
      %v1325 = vadd.f32 0.0, %v1324
      %v1326 = vpop.f32.mrf.mxu0
      %v1327 = vpop.f32.mrf.mxu0
      %v1328 = vadd.f32 0.0, %v1327
      %v1329 = vpop.f32.mrf.mxu0
      %1330 = vmatprep.mubr.bf16.mxu0 0
      %1331 = vmatmul.mubr.bf16.gmra.mxu0 %v1140
      %v1332 = vpop.f32.mrf.mxu0
      %v1333 = vadd.f32 0.0, %v1332
      %v1334 = vpop.f32.mrf.mxu0
      %v1335 = vpop.f32.mrf.mxu0
      %v1336 = vadd.f32 0.0, %v1335
      %v1337 = vpop.f32.mrf.mxu0
      %1338 = vmatprep.mubr.bf16.mxu0 0
      %1339 = vmatmul.mubr.bf16.gmra.mxu0 %v1141
      %v1340 = vpop.f32.mrf.mxu0
      %v1341 = vadd.f32 0.0, %v1340
      %v1342 = vpop.f32.mrf.mxu0
      %v1343 = vpop.f32.mrf.mxu0
      %v1344 = vadd.f32 0.0, %v1343
      %v1345 = vpop.f32.mrf.mxu0
      %1346 = vmatprep.mubr.bf16.mxu0 0
      %1347 = vmatmul.mubr.bf16.gmra.mxu0 %v1142
      %v1348 = vpop.f32.mrf.mxu0
      %v1349 = vadd.f32 0.0, %v1348
      %v1350 = vpop.f32.mrf.mxu0
      %v1351 = vpop.f32.mrf.mxu0
      %v1352 = vadd.f32 0.0, %v1351
      %v1353 = vpop.f32.mrf.mxu0
      %1354 = vmatprep.mubr.bf16.mxu0 0
      %1355 = vmatmul.mubr.bf16.gmra.mxu0 %v1143
      %v1356 = vpop.f32.mrf.mxu0
      %v1357 = vadd.f32 0.0, %v1356
      %v1358 = vpop.f32.mrf.mxu0
      %v1359 = vpop.f32.mrf.mxu0
      %v1360 = vadd.f32 0.0, %v1359
      %v1361 = vpop.f32.mrf.mxu0
      %1362 = vmatprep.mubr.bf16.mxu0 0
      %1363 = vmatmul.mubr.bf16.gmra.mxu0 %v1144
      %v1364 = vpop.f32.mrf.mxu0
      %v1365 = vadd.f32 0.0, %v1364
      %v1366 = vpop.f32.mrf.mxu0
      %v1367 = vpop.f32.mrf.mxu0
      %v1368 = vadd.f32 0.0, %v1367
      %v1369 = vpop.f32.mrf.mxu0
      %1370 = vdwg.mxu0
      %v1387 = vunpack.c.l.b16 %v1081
      %v1388 = vunpack.c.l.b16 %v1082
      %v1389 = vunpack.c.l.b16 %v1083
      %v1390 = vunpack.c.l.b16 %v1084
      %v1391 = vunpack.c.l.b16 %v1085
      %v1392 = vunpack.c.l.b16 %v1086
      %v1393 = vunpack.c.l.b16 %v1087
      %v1394 = vunpack.c.l.b16 %v1088
      %v1395 = vunpack.c.l.b16 %v1089
      %v1396 = vunpack.c.l.b16 %v1090
      %v1397 = vunpack.c.l.b16 %v1091
      %v1398 = vunpack.c.l.b16 %v1092
      %v1399 = vunpack.c.l.b16 %v1093
      %v1400 = vunpack.c.l.b16 %v1094
      %v1401 = vunpack.c.l.b16 %v1095
      %v1402 = vunpack.c.l.b16 %v1096
      %v1403 = vpack.c.b16 %v1388, %v1387
      %v1404 = vpack.c.b16 %v1390, %v1389
      %v1405 = vpack.c.b16 %v1392, %v1391
      %v1406 = vpack.c.b16 %v1394, %v1393
      %v1407 = vpack.c.b16 %v1396, %v1395
      %v1408 = vpack.c.b16 %v1398, %v1397
      %v1409 = vpack.c.b16 %v1400, %v1399
      %v1410 = vpack.c.b16 %v1402, %v1401
      %1419 = vmatprep.subr.bf16.mxu0 0
      %1420 = vmatpush1.bf16.msra.mxu0 %v1410
      %1421 = vmatprep.subr.bf16.mxu0 0
      %1422 = vmatpush1.bf16.msra.mxu0 %v1409
      %1423 = vmatprep.subr.bf16.mxu0 0
      %1424 = vmatpush1.bf16.msra.mxu0 %v1408
      %1425 = vmatprep.subr.bf16.mxu0 0
      %1426 = vmatpush1.bf16.msra.mxu0 %v1407
      %1427 = vmatprep.subr.bf16.mxu0 0
      %1428 = vmatpush1.bf16.msra.mxu0 %v1406
      %1429 = vmatprep.subr.bf16.mxu0 0
      %1430 = vmatpush1.bf16.msra.mxu0 %v1405
      %1431 = vmatprep.subr.bf16.mxu0 0
      %1432 = vmatpush1.bf16.msra.mxu0 %v1404
      %1433 = vmatprep.subr.bf16.mxu0 0
      %1434 = vmatpush1.bf16.msra.mxu0 %v1403
      %1435 = vmatprep.subr.bf16.mxu0 0
      %1436 = vmatpush2.bf16.msra.mxu0 0
      %1437 = vmatprep.subr.bf16.mxu0 0
      %1438 = vmatpush2.bf16.msra.mxu0 0
      %1439 = vmatprep.subr.bf16.mxu0 0
      %1440 = vmatpush2.bf16.msra.mxu0 0
      %1441 = vmatprep.subr.bf16.mxu0 0
      %1442 = vmatpush2.bf16.msra.mxu0 0
      %1443 = vmatprep.subr.bf16.mxu0 0
      %1444 = vmatpush2.bf16.msra.mxu0 0
      %1445 = vmatprep.subr.bf16.mxu0 0
      %1446 = vmatpush2.bf16.msra.mxu0 0
      %1447 = vmatprep.subr.bf16.mxu0 0
      %1448 = vmatpush2.bf16.msra.mxu0 0
      %1449 = vmatprep.subr.bf16.mxu0 0
      %1450 = vmatpush2.bf16.msra.mxu0 0
      %1451 = vmatprep.mubr.bf16.mxu0 0
      %1452 = vmatmul.mubr.bf16.gmra.mxu0 %v1065
      %v1453 = vpop.f32.mrf.mxu0
      %v1454 = vadd.f32 %v1245, %v1453
      %v1455 = vpop.f32.mrf.mxu0
      %v1456 = vpop.f32.mrf.mxu0
      %v1457 = vadd.f32 %v1248, %v1456
      %v1458 = vpop.f32.mrf.mxu0
      %1459 = vmatprep.mubr.bf16.mxu0 0
      %1460 = vmatmul.mubr.bf16.gmra.mxu0 %v1066
      %v1461 = vpop.f32.mrf.mxu0
      %v1462 = vadd.f32 %v1253, %v1461
      %v1463 = vpop.f32.mrf.mxu0
      %v1464 = vpop.f32.mrf.mxu0
      %v1465 = vadd.f32 %v1256, %v1464
      %v1466 = vpop.f32.mrf.mxu0
      %1467 = vmatprep.mubr.bf16.mxu0 0
      %1468 = vmatmul.mubr.bf16.gmra.mxu0 %v1067
      %v1469 = vpop.f32.mrf.mxu0
      %v1470 = vadd.f32 %v1261, %v1469
      %v1471 = vpop.f32.mrf.mxu0
      %v1472 = vpop.f32.mrf.mxu0
      %v1473 = vadd.f32 %v1264, %v1472
      %v1474 = vpop.f32.mrf.mxu0
      %1475 = vmatprep.mubr.bf16.mxu0 0
      %1476 = vmatmul.mubr.bf16.gmra.mxu0 %v1068
      %v1477 = vpop.f32.mrf.mxu0
      %v1478 = vadd.f32 %v1269, %v1477
      %v1479 = vpop.f32.mrf.mxu0
      %v1480 = vpop.f32.mrf.mxu0
      %v1481 = vadd.f32 %v1272, %v1480
      %v1482 = vpop.f32.mrf.mxu0
      %1483 = vmatprep.mubr.bf16.mxu0 0
      %1484 = vmatmul.mubr.bf16.gmra.mxu0 %v1069
      %v1485 = vpop.f32.mrf.mxu0
      %v1486 = vadd.f32 %v1277, %v1485
      %v1487 = vpop.f32.mrf.mxu0
      %v1488 = vpop.f32.mrf.mxu0
      %v1489 = vadd.f32 %v1280, %v1488
      %v1490 = vpop.f32.mrf.mxu0
      %1491 = vmatprep.mubr.bf16.mxu0 0
      %1492 = vmatmul.mubr.bf16.gmra.mxu0 %v1070
      %v1493 = vpop.f32.mrf.mxu0
      %v1494 = vadd.f32 %v1285, %v1493
      %v1495 = vpop.f32.mrf.mxu0
      %v1496 = vpop.f32.mrf.mxu0
      %v1497 = vadd.f32 %v1288, %v1496
      %v1498 = vpop.f32.mrf.mxu0
      %1499 = vmatprep.mubr.bf16.mxu0 0
      %1500 = vmatmul.mubr.bf16.gmra.mxu0 %v1071
      %v1501 = vpop.f32.mrf.mxu0
      %v1502 = vadd.f32 %v1293, %v1501
      %v1503 = vpop.f32.mrf.mxu0
      %v1504 = vpop.f32.mrf.mxu0
      %v1505 = vadd.f32 %v1296, %v1504
      %v1506 = vpop.f32.mrf.mxu0
      %1507 = vmatprep.mubr.bf16.mxu0 0
      %1508 = vmatmul.mubr.bf16.gmra.mxu0 %v1072
      %v1509 = vpop.f32.mrf.mxu0
      %v1510 = vadd.f32 %v1301, %v1509
      %v1511 = vpop.f32.mrf.mxu0
      %v1512 = vpop.f32.mrf.mxu0
      %v1513 = vadd.f32 %v1304, %v1512
      %v1514 = vpop.f32.mrf.mxu0
      %1515 = vmatprep.mubr.bf16.mxu0 0
      %1516 = vmatmul.mubr.bf16.gmra.mxu0 %v1073
      %v1517 = vpop.f32.mrf.mxu0
      %v1518 = vadd.f32 %v1309, %v1517
      %v1519 = vpop.f32.mrf.mxu0
      %v1520 = vpop.f32.mrf.mxu0
      %v1521 = vadd.f32 %v1312, %v1520
      %v1522 = vpop.f32.mrf.mxu0
      %1523 = vmatprep.mubr.bf16.mxu0 0
      %1524 = vmatmul.mubr.bf16.gmra.mxu0 %v1074
      %v1525 = vpop.f32.mrf.mxu0
      %v1526 = vadd.f32 %v1317, %v1525
      %v1527 = vpop.f32.mrf.mxu0
      %v1528 = vpop.f32.mrf.mxu0
      %v1529 = vadd.f32 %v1320, %v1528
      %v1530 = vpop.f32.mrf.mxu0
      %1531 = vmatprep.mubr.bf16.mxu0 0
      %1532 = vmatmul.mubr.bf16.gmra.mxu0 %v1075
      %v1533 = vpop.f32.mrf.mxu0
      %v1534 = vadd.f32 %v1325, %v1533
      %v1535 = vpop.f32.mrf.mxu0
      %v1536 = vpop.f32.mrf.mxu0
      %v1537 = vadd.f32 %v1328, %v1536
      %v1538 = vpop.f32.mrf.mxu0
      %1539 = vmatprep.mubr.bf16.mxu0 0
      %1540 = vmatmul.mubr.bf16.gmra.mxu0 %v1076
      %v1541 = vpop.f32.mrf.mxu0
      %v1542 = vadd.f32 %v1333, %v1541
      %v1543 = vpop.f32.mrf.mxu0
      %v1544 = vpop.f32.mrf.mxu0
      %v1545 = vadd.f32 %v1336, %v1544
      %v1546 = vpop.f32.mrf.mxu0
      %1547 = vmatprep.mubr.bf16.mxu0 0
      %1548 = vmatmul.mubr.bf16.gmra.mxu0 %v1077
      %v1549 = vpop.f32.mrf.mxu0
      %v1550 = vadd.f32 %v1341, %v1549
      %v1551 = vpop.f32.mrf.mxu0
      %v1552 = vpop.f32.mrf.mxu0
      %v1553 = vadd.f32 %v1344, %v1552
      %v1554 = vpop.f32.mrf.mxu0
      %1555 = vmatprep.mubr.bf16.mxu0 0
      %1556 = vmatmul.mubr.bf16.gmra.mxu0 %v1078
      %v1557 = vpop.f32.mrf.mxu0
      %v1558 = vadd.f32 %v1349, %v1557
      %v1559 = vpop.f32.mrf.mxu0
      %v1560 = vpop.f32.mrf.mxu0
      %v1561 = vadd.f32 %v1352, %v1560
      %v1562 = vpop.f32.mrf.mxu0
      %1563 = vmatprep.mubr.bf16.mxu0 0
      %1564 = vmatmul.mubr.bf16.gmra.mxu0 %v1079
      %v1565 = vpop.f32.mrf.mxu0
      %v1566 = vadd.f32 %v1357, %v1565
      %v1567 = vpop.f32.mrf.mxu0
      %v1568 = vpop.f32.mrf.mxu0
      %v1569 = vadd.f32 %v1360, %v1568
      %v1570 = vpop.f32.mrf.mxu0
      %1571 = vmatprep.mubr.bf16.mxu0 0
      %1572 = vmatmul.mubr.bf16.gmra.mxu0 %v1080
      %v1573 = vpop.f32.mrf.mxu0
      %v1574 = vadd.f32 %v1365, %v1573
      %v1575 = vpop.f32.mrf.mxu0
      %v1576 = vpop.f32.mrf.mxu0
      %v1577 = vadd.f32 %v1368, %v1576
      %v1578 = vpop.f32.mrf.mxu0
      %1579 = vdwg.mxu0
      %v1580 = vld [vmem:[#allocation2 + $0x2] sm:$0xff]
      %v1581 = vld [vmem:[#allocation2 + $0xa] sm:$0xff]
      %v1582 = vld [vmem:[#allocation2 + $0x1a] sm:$0xff]
      %v1583 = vld [vmem:[#allocation2 + $0x22] sm:$0xff]
      %v1584 = vld [vmem:[#allocation2 + $0x32] sm:$0xff]
      %v1585 = vld [vmem:[#allocation2 + $0x3a] sm:$0xff]
      %v1586 = vld [vmem:[#allocation2 + $0x4a] sm:$0xff]
      %v1587 = vld [vmem:[#allocation2 + $0x52] sm:$0xff]
      %v1588 = vld [vmem:[#allocation2 + $0x62] sm:$0xff]
      %v1589 = vld [vmem:[#allocation2 + $0x6a] sm:$0xff]
      %v1590 = vld [vmem:[#allocation2 + $0x7a] sm:$0xff]
      %v1591 = vld [vmem:[#allocation2 + $0x82] sm:$0xff]
      %v1592 = vld [vmem:[#allocation2 + $0x92] sm:$0xff]
      %v1593 = vld [vmem:[#allocation2 + $0x9a] sm:$0xff]
      %v1594 = vld [vmem:[#allocation2 + $0xaa] sm:$0xff]
      %v1595 = vld [vmem:[#allocation2 + $0xb2] sm:$0xff]
      %v1596 = vld [vmem:[#allocation2 + $0xc2] sm:$0xff]
      %v1597 = vld [vmem:[#allocation2 + $0xca] sm:$0xff]
      %v1598 = vld [vmem:[#allocation2 + $0xda] sm:$0xff]
      %v1599 = vld [vmem:[#allocation2 + $0xe2] sm:$0xff]
      %v1600 = vld [vmem:[#allocation2 + $0xf2] sm:$0xff]
      %v1601 = vld [vmem:[#allocation2 + $0xfa] sm:$0xff]
      %v1602 = vld [vmem:[#allocation2 + $0x10a] sm:$0xff]
      %v1603 = vld [vmem:[#allocation2 + $0x112] sm:$0xff]
      %v1604 = vld [vmem:[#allocation2 + $0x122] sm:$0xff]
      %v1605 = vld [vmem:[#allocation2 + $0x12a] sm:$0xff]
      %v1606 = vld [vmem:[#allocation2 + $0x13a] sm:$0xff]
      %v1607 = vld [vmem:[#allocation2 + $0x142] sm:$0xff]
      %v1608 = vld [vmem:[#allocation2 + $0x152] sm:$0xff]
      %v1609 = vld [vmem:[#allocation2 + $0x15a] sm:$0xff]
      %v1610 = vld [vmem:[#allocation2 + $0x16a] sm:$0xff]
      %v1611 = vld [vmem:[#allocation2 + $0x172] sm:$0xff]
      %v1612 = vpack.c.bf16 %v1581, %v1580
      %v1613 = vpack.c.bf16 %v1583, %v1582
      %v1614 = vpack.c.bf16 %v1585, %v1584
      %v1615 = vpack.c.bf16 %v1587, %v1586
      %v1616 = vpack.c.bf16 %v1589, %v1588
      %v1617 = vpack.c.bf16 %v1591, %v1590
      %v1618 = vpack.c.bf16 %v1593, %v1592
      %v1619 = vpack.c.bf16 %v1595, %v1594
      %v1620 = vpack.c.bf16 %v1597, %v1596
      %v1621 = vpack.c.bf16 %v1599, %v1598
      %v1622 = vpack.c.bf16 %v1601, %v1600
      %v1623 = vpack.c.bf16 %v1603, %v1602
      %v1624 = vpack.c.bf16 %v1605, %v1604
      %v1625 = vpack.c.bf16 %v1607, %v1606
      %v1626 = vpack.c.bf16 %v1609, %v1608
      %v1627 = vpack.c.bf16 %v1611, %v1610
      %s1628 = scalar_lea.vmem %s8, 128
      %v1629 = vld [vmem:[%s1628] sm:$0xf]
      %v1630 = vld [vmem:[%s1628 + $0x4] sm:$0xf]
      %v1631 = vld [vmem:[%s1628 + $0x8] sm:$0xf]
      %v1632 = vld [vmem:[%s1628 + $0xc] sm:$0xf]
      %v1633 = vld [vmem:[%s1628 + $0x10] sm:$0xf]
      %v1634 = vld [vmem:[%s1628 + $0x14] sm:$0xf]
      %v1635 = vld [vmem:[%s1628 + $0x18] sm:$0xf]
      %v1636 = vld [vmem:[%s1628 + $0x1c] sm:$0xf]
      %v1637 = vld [vmem:[%s1628 + $0x20] sm:$0xf]
      %v1638 = vld [vmem:[%s1628 + $0x24] sm:$0xf]
      %v1639 = vld [vmem:[%s1628 + $0x28] sm:$0xf]
      %v1640 = vld [vmem:[%s1628 + $0x2c] sm:$0xf]
      %v1641 = vld [vmem:[%s1628 + $0x30] sm:$0xf]
      %v1642 = vld [vmem:[%s1628 + $0x34] sm:$0xf]
      %v1643 = vld [vmem:[%s1628 + $0x38] sm:$0xf]
      %v1644 = vld [vmem:[%s1628 + $0x3c] sm:$0xf]
      %v1661 = vunpack.c.l.b16 %v1629
      %v1662 = vunpack.c.l.b16 %v1630
      %v1663 = vunpack.c.l.b16 %v1631
      %v1664 = vunpack.c.l.b16 %v1632
      %v1665 = vunpack.c.l.b16 %v1633
      %v1666 = vunpack.c.l.b16 %v1634
      %v1667 = vunpack.c.l.b16 %v1635
      %v1668 = vunpack.c.l.b16 %v1636
      %v1669 = vunpack.c.l.b16 %v1637
      %v1670 = vunpack.c.l.b16 %v1638
      %v1671 = vunpack.c.l.b16 %v1639
      %v1672 = vunpack.c.l.b16 %v1640
      %v1673 = vunpack.c.l.b16 %v1641
      %v1674 = vunpack.c.l.b16 %v1642
      %v1675 = vunpack.c.l.b16 %v1643
      %v1676 = vunpack.c.l.b16 %v1644
      %v1677 = vpack.c.b16 %v1662, %v1661
      %v1678 = vpack.c.b16 %v1664, %v1663
      %v1679 = vpack.c.b16 %v1666, %v1665
      %v1680 = vpack.c.b16 %v1668, %v1667
      %v1681 = vpack.c.b16 %v1670, %v1669
      %v1682 = vpack.c.b16 %v1672, %v1671
      %v1683 = vpack.c.b16 %v1674, %v1673
      %v1684 = vpack.c.b16 %v1676, %v1675
      %1693 = vmatprep.subr.bf16.mxu0 0
      %1694 = vmatpush1.bf16.msra.mxu0 %v1684
      %1695 = vmatprep.subr.bf16.mxu0 0
      %1696 = vmatpush1.bf16.msra.mxu0 %v1683
      %1697 = vmatprep.subr.bf16.mxu0 0
      %1698 = vmatpush1.bf16.msra.mxu0 %v1682
      %1699 = vmatprep.subr.bf16.mxu0 0
      %1700 = vmatpush1.bf16.msra.mxu0 %v1681
      %1701 = vmatprep.subr.bf16.mxu0 0
      %1702 = vmatpush1.bf16.msra.mxu0 %v1680
      %1703 = vmatprep.subr.bf16.mxu0 0
      %1704 = vmatpush1.bf16.msra.mxu0 %v1679
      %1705 = vmatprep.subr.bf16.mxu0 0
      %1706 = vmatpush1.bf16.msra.mxu0 %v1678
      %1707 = vmatprep.subr.bf16.mxu0 0
      %1708 = vmatpush1.bf16.msra.mxu0 %v1677
      %1709 = vmatprep.subr.bf16.mxu0 0
      %1710 = vmatpush2.bf16.msra.mxu0 0
      %1711 = vmatprep.subr.bf16.mxu0 0
      %1712 = vmatpush2.bf16.msra.mxu0 0
      %1713 = vmatprep.subr.bf16.mxu0 0
      %1714 = vmatpush2.bf16.msra.mxu0 0
      %1715 = vmatprep.subr.bf16.mxu0 0
      %1716 = vmatpush2.bf16.msra.mxu0 0
      %1717 = vmatprep.subr.bf16.mxu0 0
      %1718 = vmatpush2.bf16.msra.mxu0 0
      %1719 = vmatprep.subr.bf16.mxu0 0
      %1720 = vmatpush2.bf16.msra.mxu0 0
      %1721 = vmatprep.subr.bf16.mxu0 0
      %1722 = vmatpush2.bf16.msra.mxu0 0
      %1723 = vmatprep.subr.bf16.mxu0 0
      %1724 = vmatpush2.bf16.msra.mxu0 0
      %1725 = vmatprep.mubr.bf16.mxu0 0
      %1726 = vmatmul.mubr.bf16.gmra.mxu0 %v1612
      %v1727 = vpop.f32.mrf.mxu0
      %v1728 = vadd.f32 0.0, %v1727
      %v1729 = vpop.f32.mrf.mxu0
      %v1730 = vpop.f32.mrf.mxu0
      %v1731 = vadd.f32 0.0, %v1730
      %v1732 = vpop.f32.mrf.mxu0
      %1733 = vmatprep.mubr.bf16.mxu0 0
      %1734 = vmatmul.mubr.bf16.gmra.mxu0 %v1613
      %v1735 = vpop.f32.mrf.mxu0
      %v1736 = vadd.f32 0.0, %v1735
      %v1737 = vpop.f32.mrf.mxu0
      %v1738 = vpop.f32.mrf.mxu0
      %v1739 = vadd.f32 0.0, %v1738
      %v1740 = vpop.f32.mrf.mxu0
      %1741 = vmatprep.mubr.bf16.mxu0 0
      %1742 = vmatmul.mubr.bf16.gmra.mxu0 %v1614
      %v1743 = vpop.f32.mrf.mxu0
      %v1744 = vadd.f32 0.0, %v1743
      %v1745 = vpop.f32.mrf.mxu0
      %v1746 = vpop.f32.mrf.mxu0
      %v1747 = vadd.f32 0.0, %v1746
      %v1748 = vpop.f32.mrf.mxu0
      %1749 = vmatprep.mubr.bf16.mxu0 0
      %1750 = vmatmul.mubr.bf16.gmra.mxu0 %v1615
      %v1751 = vpop.f32.mrf.mxu0
      %v1752 = vadd.f32 0.0, %v1751
      %v1753 = vpop.f32.mrf.mxu0
      %v1754 = vpop.f32.mrf.mxu0
      %v1755 = vadd.f32 0.0, %v1754
      %v1756 = vpop.f32.mrf.mxu0
      %1757 = vmatprep.mubr.bf16.mxu0 0
      %1758 = vmatmul.mubr.bf16.gmra.mxu0 %v1616
      %v1759 = vpop.f32.mrf.mxu0
      %v1760 = vadd.f32 0.0, %v1759
      %v1761 = vpop.f32.mrf.mxu0
      %v1762 = vpop.f32.mrf.mxu0
      %v1763 = vadd.f32 0.0, %v1762
      %v1764 = vpop.f32.mrf.mxu0
      %1765 = vmatprep.mubr.bf16.mxu0 0
      %1766 = vmatmul.mubr.bf16.gmra.mxu0 %v1617
      %v1767 = vpop.f32.mrf.mxu0
      %v1768 = vadd.f32 0.0, %v1767
      %v1769 = vpop.f32.mrf.mxu0
      %v1770 = vpop.f32.mrf.mxu0
      %v1771 = vadd.f32 0.0, %v1770
      %v1772 = vpop.f32.mrf.mxu0
      %1773 = vmatprep.mubr.bf16.mxu0 0
      %1774 = vmatmul.mubr.bf16.gmra.mxu0 %v1618
      %v1775 = vpop.f32.mrf.mxu0
      %v1776 = vadd.f32 0.0, %v1775
      %v1777 = vpop.f32.mrf.mxu0
      %v1778 = vpop.f32.mrf.mxu0
      %v1779 = vadd.f32 0.0, %v1778
      %v1780 = vpop.f32.mrf.mxu0
      %1781 = vmatprep.mubr.bf16.mxu0 0
      %1782 = vmatmul.mubr.bf16.gmra.mxu0 %v1619
      %v1783 = vpop.f32.mrf.mxu0
      %v1784 = vadd.f32 0.0, %v1783
      %v1785 = vpop.f32.mrf.mxu0
      %v1786 = vpop.f32.mrf.mxu0
      %v1787 = vadd.f32 0.0, %v1786
      %v1788 = vpop.f32.mrf.mxu0
      %1789 = vmatprep.mubr.bf16.mxu0 0
      %1790 = vmatmul.mubr.bf16.gmra.mxu0 %v1620
      %v1791 = vpop.f32.mrf.mxu0
      %v1792 = vadd.f32 0.0, %v1791
      %v1793 = vpop.f32.mrf.mxu0
      %v1794 = vpop.f32.mrf.mxu0
      %v1795 = vadd.f32 0.0, %v1794
      %v1796 = vpop.f32.mrf.mxu0
      %1797 = vmatprep.mubr.bf16.mxu0 0
      %1798 = vmatmul.mubr.bf16.gmra.mxu0 %v1621
      %v1799 = vpop.f32.mrf.mxu0
      %v1800 = vadd.f32 0.0, %v1799
      %v1801 = vpop.f32.mrf.mxu0
      %v1802 = vpop.f32.mrf.mxu0
      %v1803 = vadd.f32 0.0, %v1802
      %v1804 = vpop.f32.mrf.mxu0
      %1805 = vmatprep.mubr.bf16.mxu0 0
      %1806 = vmatmul.mubr.bf16.gmra.mxu0 %v1622
      %v1807 = vpop.f32.mrf.mxu0
      %v1808 = vadd.f32 0.0, %v1807
      %v1809 = vpop.f32.mrf.mxu0
      %v1810 = vpop.f32.mrf.mxu0
      %v1811 = vadd.f32 0.0, %v1810
      %v1812 = vpop.f32.mrf.mxu0
      %1813 = vmatprep.mubr.bf16.mxu0 0
      %1814 = vmatmul.mubr.bf16.gmra.mxu0 %v1623
      %v1815 = vpop.f32.mrf.mxu0
      %v1816 = vadd.f32 0.0, %v1815
      %v1817 = vpop.f32.mrf.mxu0
      %v1818 = vpop.f32.mrf.mxu0
      %v1819 = vadd.f32 0.0, %v1818
      %v1820 = vpop.f32.mrf.mxu0
      %1821 = vmatprep.mubr.bf16.mxu0 0
      %1822 = vmatmul.mubr.bf16.gmra.mxu0 %v1624
      %v1823 = vpop.f32.mrf.mxu0
      %v1824 = vadd.f32 0.0, %v1823
      %v1825 = vpop.f32.mrf.mxu0
      %v1826 = vpop.f32.mrf.mxu0
      %v1827 = vadd.f32 0.0, %v1826
      %v1828 = vpop.f32.mrf.mxu0
      %1829 = vmatprep.mubr.bf16.mxu0 0
      %1830 = vmatmul.mubr.bf16.gmra.mxu0 %v1625
      %v1831 = vpop.f32.mrf.mxu0
      %v1832 = vadd.f32 0.0, %v1831
      %v1833 = vpop.f32.mrf.mxu0
      %v1834 = vpop.f32.mrf.mxu0
      %v1835 = vadd.f32 0.0, %v1834
      %v1836 = vpop.f32.mrf.mxu0
      %1837 = vmatprep.mubr.bf16.mxu0 0
      %1838 = vmatmul.mubr.bf16.gmra.mxu0 %v1626
      %v1839 = vpop.f32.mrf.mxu0
      %v1840 = vadd.f32 0.0, %v1839
      %v1841 = vpop.f32.mrf.mxu0
      %v1842 = vpop.f32.mrf.mxu0
      %v1843 = vadd.f32 0.0, %v1842
      %v1844 = vpop.f32.mrf.mxu0
      %1845 = vmatprep.mubr.bf16.mxu0 0
      %1846 = vmatmul.mubr.bf16.gmra.mxu0 %v1627
      %v1847 = vpop.f32.mrf.mxu0
      %v1848 = vadd.f32 0.0, %v1847
      %v1849 = vpop.f32.mrf.mxu0
      %v1850 = vpop.f32.mrf.mxu0
      %v1851 = vadd.f32 0.0, %v1850
      %v1852 = vpop.f32.mrf.mxu0
      %1853 = vdwg.mxu0
      %v1854 = vadd.f32 %v1454, %v1728
      %v1855 = vadd.f32 %v1457, %v1731
      %v1856 = vadd.f32 %v1462, %v1736
      %v1857 = vadd.f32 %v1465, %v1739
      %v1858 = vadd.f32 %v1470, %v1744
      %v1859 = vadd.f32 %v1473, %v1747
      %v1860 = vadd.f32 %v1478, %v1752
      %v1861 = vadd.f32 %v1481, %v1755
      %v1862 = vadd.f32 %v1486, %v1760
      %v1863 = vadd.f32 %v1489, %v1763
      %v1864 = vadd.f32 %v1494, %v1768
      %v1865 = vadd.f32 %v1497, %v1771
      %v1866 = vadd.f32 %v1502, %v1776
      %v1867 = vadd.f32 %v1505, %v1779
      %v1868 = vadd.f32 %v1510, %v1784
      %v1869 = vadd.f32 %v1513, %v1787
      %v1870 = vadd.f32 %v1518, %v1792
      %v1871 = vadd.f32 %v1521, %v1795
      %v1872 = vadd.f32 %v1526, %v1800
      %v1873 = vadd.f32 %v1529, %v1803
      %v1874 = vadd.f32 %v1534, %v1808
      %v1875 = vadd.f32 %v1537, %v1811
      %v1876 = vadd.f32 %v1542, %v1816
      %v1877 = vadd.f32 %v1545, %v1819
      %v1878 = vadd.f32 %v1550, %v1824
      %v1879 = vadd.f32 %v1553, %v1827
      %v1880 = vadd.f32 %v1558, %v1832
      %v1881 = vadd.f32 %v1561, %v1835
      %v1882 = vadd.f32 %v1566, %v1840
      %v1883 = vadd.f32 %v1569, %v1843
      %v1884 = vadd.f32 %v1574, %v1848
      %v1885 = vadd.f32 %v1577, %v1851
      %s1886 = scalar_lea.vmem [#allocation2], 24
      %v1887 = vld [vmem:[%s1886] sm:$0xff]
      %v1888 = vld [vmem:[%s1886 + $0x8] sm:$0xff]
      %v1889 = vld [vmem:[%s1886 + $0x18] sm:$0xff]
      %v1890 = vld [vmem:[%s1886 + $0x20] sm:$0xff]
      %v1891 = vld [vmem:[%s1886 + $0x30] sm:$0xff]
      %v1892 = vld [vmem:[%s1886 + $0x38] sm:$0xff]
      %v1893 = vld [vmem:[%s1886 + $0x48] sm:$0xff]
      %v1894 = vld [vmem:[%s1886 + $0x50] sm:$0xff]
      %v1895 = vld [vmem:[%s1886 + $0x60] sm:$0xff]
      %v1896 = vld [vmem:[%s1886 + $0x68] sm:$0xff]
      %v1897 = vld [vmem:[%s1886 + $0x78] sm:$0xff]
      %v1898 = vld [vmem:[%s1886 + $0x80] sm:$0xff]
      %v1899 = vld [vmem:[%s1886 + $0x90] sm:$0xff]
      %v1900 = vld [vmem:[%s1886 + $0x98] sm:$0xff]
      %v1901 = vld [vmem:[%s1886 + $0xa8] sm:$0xff]
      %v1902 = vld [vmem:[%s1886 + $0xb0] sm:$0xff]
      %v1903 = vld [vmem:[%s1886 + $0xc0] sm:$0xff]
      %v1904 = vld [vmem:[%s1886 + $0xc8] sm:$0xff]
      %v1905 = vld [vmem:[%s1886 + $0xd8] sm:$0xff]
      %v1906 = vld [vmem:[%s1886 + $0xe0] sm:$0xff]
      %v1907 = vld [vmem:[%s1886 + $0xf0] sm:$0xff]
      %v1908 = vld [vmem:[%s1886 + $0xf8] sm:$0xff]
      %v1909 = vld [vmem:[%s1886 + $0x108] sm:$0xff]
      %v1910 = vld [vmem:[%s1886 + $0x110] sm:$0xff]
      %v1911 = vld [vmem:[%s1886 + $0x120] sm:$0xff]
      %v1912 = vld [vmem:[%s1886 + $0x128] sm:$0xff]
      %v1913 = vld [vmem:[%s1886 + $0x138] sm:$0xff]
      %v1914 = vld [vmem:[%s1886 + $0x140] sm:$0xff]
      %v1915 = vld [vmem:[%s1886 + $0x150] sm:$0xff]
      %v1916 = vld [vmem:[%s1886 + $0x158] sm:$0xff]
      %v1917 = vld [vmem:[%s1886 + $0x168] sm:$0xff]
      %v1918 = vld [vmem:[%s1886 + $0x170] sm:$0xff]
      %v1919 = vpack.c.bf16 %v1888, %v1887
      %v1920 = vpack.c.bf16 %v1890, %v1889
      %v1921 = vpack.c.bf16 %v1892, %v1891
      %v1922 = vpack.c.bf16 %v1894, %v1893
      %v1923 = vpack.c.bf16 %v1896, %v1895
      %v1924 = vpack.c.bf16 %v1898, %v1897
      %v1925 = vpack.c.bf16 %v1900, %v1899
      %v1926 = vpack.c.bf16 %v1902, %v1901
      %v1927 = vpack.c.bf16 %v1904, %v1903
      %v1928 = vpack.c.bf16 %v1906, %v1905
      %v1929 = vpack.c.bf16 %v1908, %v1907
      %v1930 = vpack.c.bf16 %v1910, %v1909
      %v1931 = vpack.c.bf16 %v1912, %v1911
      %v1932 = vpack.c.bf16 %v1914, %v1913
      %v1933 = vpack.c.bf16 %v1916, %v1915
      %v1934 = vpack.c.bf16 %v1918, %v1917
      %s1935 = scalar_lea.vmem %s8, 192
      %v1936 = vld [vmem:[%s1935] sm:$0xf]
      %v1937 = vld [vmem:[%s1935 + $0x4] sm:$0xf]
      %v1938 = vld [vmem:[%s1935 + $0x8] sm:$0xf]
      %v1939 = vld [vmem:[%s1935 + $0xc] sm:$0xf]
      %v1940 = vld [vmem:[%s1935 + $0x10] sm:$0xf]
      %v1941 = vld [vmem:[%s1935 + $0x14] sm:$0xf]
      %v1942 = vld [vmem:[%s1935 + $0x18] sm:$0xf]
      %v1943 = vld [vmem:[%s1935 + $0x1c] sm:$0xf]
      %v1944 = vld [vmem:[%s1935 + $0x20] sm:$0xf]
      %v1945 = vld [vmem:[%s1935 + $0x24] sm:$0xf]
      %v1946 = vld [vmem:[%s1935 + $0x28] sm:$0xf]
      %v1947 = vld [vmem:[%s1935 + $0x2c] sm:$0xf]
      %v1948 = vld [vmem:[%s1935 + $0x30] sm:$0xf]
      %v1949 = vld [vmem:[%s1935 + $0x34] sm:$0xf]
      %v1950 = vld [vmem:[%s1935 + $0x38] sm:$0xf]
      %v1951 = vld [vmem:[%s1935 + $0x3c] sm:$0xf]
      %v1968 = vunpack.c.l.b16 %v1936
      %v1969 = vunpack.c.l.b16 %v1937
      %v1970 = vunpack.c.l.b16 %v1938
      %v1971 = vunpack.c.l.b16 %v1939
      %v1972 = vunpack.c.l.b16 %v1940
      %v1973 = vunpack.c.l.b16 %v1941
      %v1974 = vunpack.c.l.b16 %v1942
      %v1975 = vunpack.c.l.b16 %v1943
      %v1976 = vunpack.c.l.b16 %v1944
      %v1977 = vunpack.c.l.b16 %v1945
      %v1978 = vunpack.c.l.b16 %v1946
      %v1979 = vunpack.c.l.b16 %v1947
      %v1980 = vunpack.c.l.b16 %v1948
      %v1981 = vunpack.c.l.b16 %v1949
      %v1982 = vunpack.c.l.b16 %v1950
      %v1983 = vunpack.c.l.b16 %v1951
      %v1984 = vpack.c.b16 %v1969, %v1968
      %v1985 = vpack.c.b16 %v1971, %v1970
      %v1986 = vpack.c.b16 %v1973, %v1972
      %v1987 = vpack.c.b16 %v1975, %v1974
      %v1988 = vpack.c.b16 %v1977, %v1976
      %v1989 = vpack.c.b16 %v1979, %v1978
      %v1990 = vpack.c.b16 %v1981, %v1980
      %v1991 = vpack.c.b16 %v1983, %v1982
      %2000 = vmatprep.subr.bf16.mxu0 0
      %2001 = vmatpush1.bf16.msra.mxu0 %v1991
      %2002 = vmatprep.subr.bf16.mxu0 0
      %2003 = vmatpush1.bf16.msra.mxu0 %v1990
      %2004 = vmatprep.subr.bf16.mxu0 0
      %2005 = vmatpush1.bf16.msra.mxu0 %v1989
      %2006 = vmatprep.subr.bf16.mxu0 0
      %2007 = vmatpush1.bf16.msra.mxu0 %v1988
      %2008 = vmatprep.subr.bf16.mxu0 0
      %2009 = vmatpush1.bf16.msra.mxu0 %v1987
      %2010 = vmatprep.subr.bf16.mxu0 0
      %2011 = vmatpush1.bf16.msra.mxu0 %v1986
      %2012 = vmatprep.subr.bf16.mxu0 0
      %2013 = vmatpush1.bf16.msra.mxu0 %v1985
      %2014 = vmatprep.subr.bf16.mxu0 0
      %2015 = vmatpush1.bf16.msra.mxu0 %v1984
      %2016 = vmatprep.subr.bf16.mxu0 0
      %2017 = vmatpush2.bf16.msra.mxu0 0
      %2018 = vmatprep.subr.bf16.mxu0 0
      %2019 = vmatpush2.bf16.msra.mxu0 0
      %2020 = vmatprep.subr.bf16.mxu0 0
      %2021 = vmatpush2.bf16.msra.mxu0 0
      %2022 = vmatprep.subr.bf16.mxu0 0
      %2023 = vmatpush2.bf16.msra.mxu0 0
      %2024 = vmatprep.subr.bf16.mxu0 0
      %2025 = vmatpush2.bf16.msra.mxu0 0
      %2026 = vmatprep.subr.bf16.mxu0 0
      %2027 = vmatpush2.bf16.msra.mxu0 0
      %2028 = vmatprep.subr.bf16.mxu0 0
      %2029 = vmatpush2.bf16.msra.mxu0 0
      %2030 = vmatprep.subr.bf16.mxu0 0
      %2031 = vmatpush2.bf16.msra.mxu0 0
      %2032 = vmatprep.mubr.bf16.mxu0 0
      %2033 = vmatmul.mubr.bf16.gmra.mxu0 %v1919
      %v2034 = vpop.f32.mrf.mxu0
      %v2035 = vadd.f32 0.0, %v2034
      %v2036 = vpop.f32.mrf.mxu0
      %v2037 = vpop.f32.mrf.mxu0
      %v2038 = vadd.f32 0.0, %v2037
      %v2039 = vpop.f32.mrf.mxu0
      %2040 = vmatprep.mubr.bf16.mxu0 0
      %2041 = vmatmul.mubr.bf16.gmra.mxu0 %v1920
      %v2042 = vpop.f32.mrf.mxu0
      %v2043 = vadd.f32 0.0, %v2042
      %v2044 = vpop.f32.mrf.mxu0
      %v2045 = vpop.f32.mrf.mxu0
      %v2046 = vadd.f32 0.0, %v2045
      %v2047 = vpop.f32.mrf.mxu0
      %2048 = vmatprep.mubr.bf16.mxu0 0
      %2049 = vmatmul.mubr.bf16.gmra.mxu0 %v1921
      %v2050 = vpop.f32.mrf.mxu0
      %v2051 = vadd.f32 0.0, %v2050
      %v2052 = vpop.f32.mrf.mxu0
      %v2053 = vpop.f32.mrf.mxu0
      %v2054 = vadd.f32 0.0, %v2053
      %v2055 = vpop.f32.mrf.mxu0
      %2056 = vmatprep.mubr.bf16.mxu0 0
      %2057 = vmatmul.mubr.bf16.gmra.mxu0 %v1922
      %v2058 = vpop.f32.mrf.mxu0
      %v2059 = vadd.f32 0.0, %v2058
      %v2060 = vpop.f32.mrf.mxu0
      %v2061 = vpop.f32.mrf.mxu0
      %v2062 = vadd.f32 0.0, %v2061
      %v2063 = vpop.f32.mrf.mxu0
      %2064 = vmatprep.mubr.bf16.mxu0 0
      %2065 = vmatmul.mubr.bf16.gmra.mxu0 %v1923
      %v2066 = vpop.f32.mrf.mxu0
      %v2067 = vadd.f32 0.0, %v2066
      %v2068 = vpop.f32.mrf.mxu0
      %v2069 = vpop.f32.mrf.mxu0
      %v2070 = vadd.f32 0.0, %v2069
      %v2071 = vpop.f32.mrf.mxu0
      %2072 = vmatprep.mubr.bf16.mxu0 0
      %2073 = vmatmul.mubr.bf16.gmra.mxu0 %v1924
      %v2074 = vpop.f32.mrf.mxu0
      %v2075 = vadd.f32 0.0, %v2074
      %v2076 = vpop.f32.mrf.mxu0
      %v2077 = vpop.f32.mrf.mxu0
      %v2078 = vadd.f32 0.0, %v2077
      %v2079 = vpop.f32.mrf.mxu0
      %2080 = vmatprep.mubr.bf16.mxu0 0
      %2081 = vmatmul.mubr.bf16.gmra.mxu0 %v1925
      %v2082 = vpop.f32.mrf.mxu0
      %v2083 = vadd.f32 0.0, %v2082
      %v2084 = vpop.f32.mrf.mxu0
      %v2085 = vpop.f32.mrf.mxu0
      %v2086 = vadd.f32 0.0, %v2085
      %v2087 = vpop.f32.mrf.mxu0
      %2088 = vmatprep.mubr.bf16.mxu0 0
      %2089 = vmatmul.mubr.bf16.gmra.mxu0 %v1926
      %v2090 = vpop.f32.mrf.mxu0
      %v2091 = vadd.f32 0.0, %v2090
      %v2092 = vpop.f32.mrf.mxu0
      %v2093 = vpop.f32.mrf.mxu0
      %v2094 = vadd.f32 0.0, %v2093
      %v2095 = vpop.f32.mrf.mxu0
      %2096 = vmatprep.mubr.bf16.mxu0 0
      %2097 = vmatmul.mubr.bf16.gmra.mxu0 %v1927
      %v2098 = vpop.f32.mrf.mxu0
      %v2099 = vadd.f32 0.0, %v2098
      %v2100 = vpop.f32.mrf.mxu0
      %v2101 = vpop.f32.mrf.mxu0
      %v2102 = vadd.f32 0.0, %v2101
      %v2103 = vpop.f32.mrf.mxu0
      %2104 = vmatprep.mubr.bf16.mxu0 0
      %2105 = vmatmul.mubr.bf16.gmra.mxu0 %v1928
      %v2106 = vpop.f32.mrf.mxu0
      %v2107 = vadd.f32 0.0, %v2106
      %v2108 = vpop.f32.mrf.mxu0
      %v2109 = vpop.f32.mrf.mxu0
      %v2110 = vadd.f32 0.0, %v2109
      %v2111 = vpop.f32.mrf.mxu0
      %2112 = vmatprep.mubr.bf16.mxu0 0
      %2113 = vmatmul.mubr.bf16.gmra.mxu0 %v1929
      %v2114 = vpop.f32.mrf.mxu0
      %v2115 = vadd.f32 0.0, %v2114
      %v2116 = vpop.f32.mrf.mxu0
      %v2117 = vpop.f32.mrf.mxu0
      %v2118 = vadd.f32 0.0, %v2117
      %v2119 = vpop.f32.mrf.mxu0
      %2120 = vmatprep.mubr.bf16.mxu0 0
      %2121 = vmatmul.mubr.bf16.gmra.mxu0 %v1930
      %v2122 = vpop.f32.mrf.mxu0
      %v2123 = vadd.f32 0.0, %v2122
      %v2124 = vpop.f32.mrf.mxu0
      %v2125 = vpop.f32.mrf.mxu0
      %v2126 = vadd.f32 0.0, %v2125
      %v2127 = vpop.f32.mrf.mxu0
      %2128 = vmatprep.mubr.bf16.mxu0 0
      %2129 = vmatmul.mubr.bf16.gmra.mxu0 %v1931
      %v2130 = vpop.f32.mrf.mxu0
      %v2131 = vadd.f32 0.0, %v2130
      %v2132 = vpop.f32.mrf.mxu0
      %v2133 = vpop.f32.mrf.mxu0
      %v2134 = vadd.f32 0.0, %v2133
      %v2135 = vpop.f32.mrf.mxu0
      %2136 = vmatprep.mubr.bf16.mxu0 0
      %2137 = vmatmul.mubr.bf16.gmra.mxu0 %v1932
      %v2138 = vpop.f32.mrf.mxu0
      %v2139 = vadd.f32 0.0, %v2138
      %v2140 = vpop.f32.mrf.mxu0
      %v2141 = vpop.f32.mrf.mxu0
      %v2142 = vadd.f32 0.0, %v2141
      %v2143 = vpop.f32.mrf.mxu0
      %2144 = vmatprep.mubr.bf16.mxu0 0
      %2145 = vmatmul.mubr.bf16.gmra.mxu0 %v1933
      %v2146 = vpop.f32.mrf.mxu0
      %v2147 = vadd.f32 0.0, %v2146
      %v2148 = vpop.f32.mrf.mxu0
      %v2149 = vpop.f32.mrf.mxu0
      %v2150 = vadd.f32 0.0, %v2149
      %v2151 = vpop.f32.mrf.mxu0
      %2152 = vmatprep.mubr.bf16.mxu0 0
      %2153 = vmatmul.mubr.bf16.gmra.mxu0 %v1934
      %v2154 = vpop.f32.mrf.mxu0
      %v2155 = vadd.f32 0.0, %v2154
      %v2156 = vpop.f32.mrf.mxu0
      %v2157 = vpop.f32.mrf.mxu0
      %v2158 = vadd.f32 0.0, %v2157
      %v2159 = vpop.f32.mrf.mxu0
      %2160 = vdwg.mxu0
      %v2161 = vadd.f32 %v1854, %v2035
      %v2162 = vadd.f32 %v1855, %v2038
      %v2163 = vadd.f32 %v1856, %v2043
      %v2164 = vadd.f32 %v1857, %v2046
      %v2165 = vadd.f32 %v1858, %v2051
      %v2166 = vadd.f32 %v1859, %v2054
      %v2167 = vadd.f32 %v1860, %v2059
      %v2168 = vadd.f32 %v1861, %v2062
      %v2169 = vadd.f32 %v1862, %v2067
      %v2170 = vadd.f32 %v1863, %v2070
      %v2171 = vadd.f32 %v1864, %v2075
      %v2172 = vadd.f32 %v1865, %v2078
      %v2173 = vadd.f32 %v1866, %v2083
      %v2174 = vadd.f32 %v1867, %v2086
      %v2175 = vadd.f32 %v1868, %v2091
      %v2176 = vadd.f32 %v1869, %v2094
      %v2177 = vadd.f32 %v1870, %v2099
      %v2178 = vadd.f32 %v1871, %v2102
      %v2179 = vadd.f32 %v1872, %v2107
      %v2180 = vadd.f32 %v1873, %v2110
      %v2181 = vadd.f32 %v1874, %v2115
      %v2182 = vadd.f32 %v1875, %v2118
      %v2183 = vadd.f32 %v1876, %v2123
      %v2184 = vadd.f32 %v1877, %v2126
      %v2185 = vadd.f32 %v1878, %v2131
      %v2186 = vadd.f32 %v1879, %v2134
      %v2187 = vadd.f32 %v1880, %v2139
      %v2188 = vadd.f32 %v1881, %v2142
      %v2189 = vadd.f32 %v1882, %v2147
      %v2190 = vadd.f32 %v1883, %v2150
      %v2191 = vadd.f32 %v1884, %v2155
      %v2192 = vadd.f32 %v1885, %v2158
      %v2193 = vld [vmem:[%s1886 + $0x1] sm:$0xff]
      %v2194 = vld [vmem:[%s1886 + $0x9] sm:$0xff]
      %v2195 = vld [vmem:[%s1886 + $0x19] sm:$0xff]
      %v2196 = vld [vmem:[%s1886 + $0x21] sm:$0xff]
      %v2197 = vld [vmem:[%s1886 + $0x31] sm:$0xff]
      %v2198 = vld [vmem:[%s1886 + $0x39] sm:$0xff]
      %v2199 = vld [vmem:[%s1886 + $0x49] sm:$0xff]
      %v2200 = vld [vmem:[%s1886 + $0x51] sm:$0xff]
      %v2201 = vld [vmem:[%s1886 + $0x61] sm:$0xff]
      %v2202 = vld [vmem:[%s1886 + $0x69] sm:$0xff]
      %v2203 = vld [vmem:[%s1886 + $0x79] sm:$0xff]
      %v2204 = vld [vmem:[%s1886 + $0x81] sm:$0xff]
      %v2205 = vld [vmem:[%s1886 + $0x91] sm:$0xff]
      %v2206 = vld [vmem:[%s1886 + $0x99] sm:$0xff]
      %v2207 = vld [vmem:[%s1886 + $0xa9] sm:$0xff]
      %v2208 = vld [vmem:[%s1886 + $0xb1] sm:$0xff]
      %v2209 = vld [vmem:[%s1886 + $0xc1] sm:$0xff]
      %v2210 = vld [vmem:[%s1886 + $0xc9] sm:$0xff]
      %v2211 = vld [vmem:[%s1886 + $0xd9] sm:$0xff]
      %v2212 = vld [vmem:[%s1886 + $0xe1] sm:$0xff]
      %v2213 = vld [vmem:[%s1886 + $0xf1] sm:$0xff]
      %v2214 = vld [vmem:[%s1886 + $0xf9] sm:$0xff]
      %v2215 = vld [vmem:[%s1886 + $0x109] sm:$0xff]
      %v2216 = vld [vmem:[%s1886 + $0x111] sm:$0xff]
      %v2217 = vld [vmem:[%s1886 + $0x121] sm:$0xff]
      %v2218 = vld [vmem:[%s1886 + $0x129] sm:$0xff]
      %v2219 = vld [vmem:[%s1886 + $0x139] sm:$0xff]
      %v2220 = vld [vmem:[%s1886 + $0x141] sm:$0xff]
      %v2221 = vld [vmem:[%s1886 + $0x151] sm:$0xff]
      %v2222 = vld [vmem:[%s1886 + $0x159] sm:$0xff]
      %v2223 = vld [vmem:[%s1886 + $0x169] sm:$0xff]
      %v2224 = vld [vmem:[%s1886 + $0x171] sm:$0xff]
      %v2225 = vpack.c.bf16 %v2194, %v2193
      %v2226 = vpack.c.bf16 %v2196, %v2195
      %v2227 = vpack.c.bf16 %v2198, %v2197
      %v2228 = vpack.c.bf16 %v2200, %v2199
      %v2229 = vpack.c.bf16 %v2202, %v2201
      %v2230 = vpack.c.bf16 %v2204, %v2203
      %v2231 = vpack.c.bf16 %v2206, %v2205
      %v2232 = vpack.c.bf16 %v2208, %v2207
      %v2233 = vpack.c.bf16 %v2210, %v2209
      %v2234 = vpack.c.bf16 %v2212, %v2211
      %v2235 = vpack.c.bf16 %v2214, %v2213
      %v2236 = vpack.c.bf16 %v2216, %v2215
      %v2237 = vpack.c.bf16 %v2218, %v2217
      %v2238 = vpack.c.bf16 %v2220, %v2219
      %v2239 = vpack.c.bf16 %v2222, %v2221
      %v2240 = vpack.c.bf16 %v2224, %v2223
      %s2241 = scalar_lea.vmem %s8, 256
      %v2242 = vld [vmem:[%s2241] sm:$0xf]
      %v2243 = vld [vmem:[%s2241 + $0x4] sm:$0xf]
      %v2244 = vld [vmem:[%s2241 + $0x8] sm:$0xf]
      %v2245 = vld [vmem:[%s2241 + $0xc] sm:$0xf]
      %v2246 = vld [vmem:[%s2241 + $0x10] sm:$0xf]
      %v2247 = vld [vmem:[%s2241 + $0x14] sm:$0xf]
      %v2248 = vld [vmem:[%s2241 + $0x18] sm:$0xf]
      %v2249 = vld [vmem:[%s2241 + $0x1c] sm:$0xf]
      %v2250 = vld [vmem:[%s2241 + $0x20] sm:$0xf]
      %v2251 = vld [vmem:[%s2241 + $0x24] sm:$0xf]
      %v2252 = vld [vmem:[%s2241 + $0x28] sm:$0xf]
      %v2253 = vld [vmem:[%s2241 + $0x2c] sm:$0xf]
      %v2254 = vld [vmem:[%s2241 + $0x30] sm:$0xf]
      %v2255 = vld [vmem:[%s2241 + $0x34] sm:$0xf]
      %v2256 = vld [vmem:[%s2241 + $0x38] sm:$0xf]
      %v2257 = vld [vmem:[%s2241 + $0x3c] sm:$0xf]
      %v2274 = vunpack.c.l.b16 %v2242
      %v2275 = vunpack.c.l.b16 %v2243
      %v2276 = vunpack.c.l.b16 %v2244
      %v2277 = vunpack.c.l.b16 %v2245
      %v2278 = vunpack.c.l.b16 %v2246
      %v2279 = vunpack.c.l.b16 %v2247
      %v2280 = vunpack.c.l.b16 %v2248
      %v2281 = vunpack.c.l.b16 %v2249
      %v2282 = vunpack.c.l.b16 %v2250
      %v2283 = vunpack.c.l.b16 %v2251
      %v2284 = vunpack.c.l.b16 %v2252
      %v2285 = vunpack.c.l.b16 %v2253
      %v2286 = vunpack.c.l.b16 %v2254
      %v2287 = vunpack.c.l.b16 %v2255
      %v2288 = vunpack.c.l.b16 %v2256
      %v2289 = vunpack.c.l.b16 %v2257
      %v2290 = vpack.c.b16 %v2275, %v2274
      %v2291 = vpack.c.b16 %v2277, %v2276
      %v2292 = vpack.c.b16 %v2279, %v2278
      %v2293 = vpack.c.b16 %v2281, %v2280
      %v2294 = vpack.c.b16 %v2283, %v2282
      %v2295 = vpack.c.b16 %v2285, %v2284
      %v2296 = vpack.c.b16 %v2287, %v2286
      %v2297 = vpack.c.b16 %v2289, %v2288
      %2306 = vmatprep.subr.bf16.mxu0 0
      %2307 = vmatpush1.bf16.msra.mxu0 %v2297
      %2308 = vmatprep.subr.bf16.mxu0 0
      %2309 = vmatpush1.bf16.msra.mxu0 %v2296
      %2310 = vmatprep.subr.bf16.mxu0 0
      %2311 = vmatpush1.bf16.msra.mxu0 %v2295
      %2312 = vmatprep.subr.bf16.mxu0 0
      %2313 = vmatpush1.bf16.msra.mxu0 %v2294
      %2314 = vmatprep.subr.bf16.mxu0 0
      %2315 = vmatpush1.bf16.msra.mxu0 %v2293
      %2316 = vmatprep.subr.bf16.mxu0 0
      %2317 = vmatpush1.bf16.msra.mxu0 %v2292
      %2318 = vmatprep.subr.bf16.mxu0 0
      %2319 = vmatpush1.bf16.msra.mxu0 %v2291
      %2320 = vmatprep.subr.bf16.mxu0 0
      %2321 = vmatpush1.bf16.msra.mxu0 %v2290
      %2322 = vmatprep.subr.bf16.mxu0 0
      %2323 = vmatpush2.bf16.msra.mxu0 0
      %2324 = vmatprep.subr.bf16.mxu0 0
      %2325 = vmatpush2.bf16.msra.mxu0 0
      %2326 = vmatprep.subr.bf16.mxu0 0
      %2327 = vmatpush2.bf16.msra.mxu0 0
      %2328 = vmatprep.subr.bf16.mxu0 0
      %2329 = vmatpush2.bf16.msra.mxu0 0
      %2330 = vmatprep.subr.bf16.mxu0 0
      %2331 = vmatpush2.bf16.msra.mxu0 0
      %2332 = vmatprep.subr.bf16.mxu0 0
      %2333 = vmatpush2.bf16.msra.mxu0 0
      %2334 = vmatprep.subr.bf16.mxu0 0
      %2335 = vmatpush2.bf16.msra.mxu0 0
      %2336 = vmatprep.subr.bf16.mxu0 0
      %2337 = vmatpush2.bf16.msra.mxu0 0
      %2338 = vmatprep.mubr.bf16.mxu0 0
      %2339 = vmatmul.mubr.bf16.gmra.mxu0 %v2225
      %v2340 = vpop.f32.mrf.mxu0
      %v2341 = vadd.f32 0.0, %v2340
      %v2342 = vpop.f32.mrf.mxu0
      %v2343 = vpop.f32.mrf.mxu0
      %v2344 = vadd.f32 0.0, %v2343
      %v2345 = vpop.f32.mrf.mxu0
      %2346 = vmatprep.mubr.bf16.mxu0 0
      %2347 = vmatmul.mubr.bf16.gmra.mxu0 %v2226
      %v2348 = vpop.f32.mrf.mxu0
      %v2349 = vadd.f32 0.0, %v2348
      %v2350 = vpop.f32.mrf.mxu0
      %v2351 = vpop.f32.mrf.mxu0
      %v2352 = vadd.f32 0.0, %v2351
      %v2353 = vpop.f32.mrf.mxu0
      %2354 = vmatprep.mubr.bf16.mxu0 0
      %2355 = vmatmul.mubr.bf16.gmra.mxu0 %v2227
      %v2356 = vpop.f32.mrf.mxu0
      %v2357 = vadd.f32 0.0, %v2356
      %v2358 = vpop.f32.mrf.mxu0
      %v2359 = vpop.f32.mrf.mxu0
      %v2360 = vadd.f32 0.0, %v2359
      %v2361 = vpop.f32.mrf.mxu0
      %2362 = vmatprep.mubr.bf16.mxu0 0
      %2363 = vmatmul.mubr.bf16.gmra.mxu0 %v2228
      %v2364 = vpop.f32.mrf.mxu0
      %v2365 = vadd.f32 0.0, %v2364
      %v2366 = vpop.f32.mrf.mxu0
      %v2367 = vpop.f32.mrf.mxu0
      %v2368 = vadd.f32 0.0, %v2367
      %v2369 = vpop.f32.mrf.mxu0
      %2370 = vmatprep.mubr.bf16.mxu0 0
      %2371 = vmatmul.mubr.bf16.gmra.mxu0 %v2229
      %v2372 = vpop.f32.mrf.mxu0
      %v2373 = vadd.f32 0.0, %v2372
      %v2374 = vpop.f32.mrf.mxu0
      %v2375 = vpop.f32.mrf.mxu0
      %v2376 = vadd.f32 0.0, %v2375
      %v2377 = vpop.f32.mrf.mxu0
      %2378 = vmatprep.mubr.bf16.mxu0 0
      %2379 = vmatmul.mubr.bf16.gmra.mxu0 %v2230
      %v2380 = vpop.f32.mrf.mxu0
      %v2381 = vadd.f32 0.0, %v2380
      %v2382 = vpop.f32.mrf.mxu0
      %v2383 = vpop.f32.mrf.mxu0
      %v2384 = vadd.f32 0.0, %v2383
      %v2385 = vpop.f32.mrf.mxu0
      %2386 = vmatprep.mubr.bf16.mxu0 0
      %2387 = vmatmul.mubr.bf16.gmra.mxu0 %v2231
      %v2388 = vpop.f32.mrf.mxu0
      %v2389 = vadd.f32 0.0, %v2388
      %v2390 = vpop.f32.mrf.mxu0
      %v2391 = vpop.f32.mrf.mxu0
      %v2392 = vadd.f32 0.0, %v2391
      %v2393 = vpop.f32.mrf.mxu0
      %2394 = vmatprep.mubr.bf16.mxu0 0
      %2395 = vmatmul.mubr.bf16.gmra.mxu0 %v2232
      %v2396 = vpop.f32.mrf.mxu0
      %v2397 = vadd.f32 0.0, %v2396
      %v2398 = vpop.f32.mrf.mxu0
      %v2399 = vpop.f32.mrf.mxu0
      %v2400 = vadd.f32 0.0, %v2399
      %v2401 = vpop.f32.mrf.mxu0
      %2402 = vmatprep.mubr.bf16.mxu0 0
      %2403 = vmatmul.mubr.bf16.gmra.mxu0 %v2233
      %v2404 = vpop.f32.mrf.mxu0
      %v2405 = vadd.f32 0.0, %v2404
      %v2406 = vpop.f32.mrf.mxu0
      %v2407 = vpop.f32.mrf.mxu0
      %v2408 = vadd.f32 0.0, %v2407
      %v2409 = vpop.f32.mrf.mxu0
      %2410 = vmatprep.mubr.bf16.mxu0 0
      %2411 = vmatmul.mubr.bf16.gmra.mxu0 %v2234
      %v2412 = vpop.f32.mrf.mxu0
      %v2413 = vadd.f32 0.0, %v2412
      %v2414 = vpop.f32.mrf.mxu0
      %v2415 = vpop.f32.mrf.mxu0
      %v2416 = vadd.f32 0.0, %v2415
      %v2417 = vpop.f32.mrf.mxu0
      %2418 = vmatprep.mubr.bf16.mxu0 0
      %2419 = vmatmul.mubr.bf16.gmra.mxu0 %v2235
      %v2420 = vpop.f32.mrf.mxu0
      %v2421 = vadd.f32 0.0, %v2420
      %v2422 = vpop.f32.mrf.mxu0
      %v2423 = vpop.f32.mrf.mxu0
      %v2424 = vadd.f32 0.0, %v2423
      %v2425 = vpop.f32.mrf.mxu0
      %2426 = vmatprep.mubr.bf16.mxu0 0
      %2427 = vmatmul.mubr.bf16.gmra.mxu0 %v2236
      %v2428 = vpop.f32.mrf.mxu0
      %v2429 = vadd.f32 0.0, %v2428
      %v2430 = vpop.f32.mrf.mxu0
      %v2431 = vpop.f32.mrf.mxu0
      %v2432 = vadd.f32 0.0, %v2431
      %v2433 = vpop.f32.mrf.mxu0
      %2434 = vmatprep.mubr.bf16.mxu0 0
      %2435 = vmatmul.mubr.bf16.gmra.mxu0 %v2237
      %v2436 = vpop.f32.mrf.mxu0
      %v2437 = vadd.f32 0.0, %v2436
      %v2438 = vpop.f32.mrf.mxu0
      %v2439 = vpop.f32.mrf.mxu0
      %v2440 = vadd.f32 0.0, %v2439
      %v2441 = vpop.f32.mrf.mxu0
      %2442 = vmatprep.mubr.bf16.mxu0 0
      %2443 = vmatmul.mubr.bf16.gmra.mxu0 %v2238
      %v2444 = vpop.f32.mrf.mxu0
      %v2445 = vadd.f32 0.0, %v2444
      %v2446 = vpop.f32.mrf.mxu0
      %v2447 = vpop.f32.mrf.mxu0
      %v2448 = vadd.f32 0.0, %v2447
      %v2449 = vpop.f32.mrf.mxu0
      %2450 = vmatprep.mubr.bf16.mxu0 0
      %2451 = vmatmul.mubr.bf16.gmra.mxu0 %v2239
      %v2452 = vpop.f32.mrf.mxu0
      %v2453 = vadd.f32 0.0, %v2452
      %v2454 = vpop.f32.mrf.mxu0
      %v2455 = vpop.f32.mrf.mxu0
      %v2456 = vadd.f32 0.0, %v2455
      %v2457 = vpop.f32.mrf.mxu0
      %2458 = vmatprep.mubr.bf16.mxu0 0
      %2459 = vmatmul.mubr.bf16.gmra.mxu0 %v2240
      %v2460 = vpop.f32.mrf.mxu0
      %v2461 = vadd.f32 0.0, %v2460
      %v2462 = vpop.f32.mrf.mxu0
      %v2463 = vpop.f32.mrf.mxu0
      %v2464 = vadd.f32 0.0, %v2463
      %v2465 = vpop.f32.mrf.mxu0
      %2466 = vdwg.mxu0
      %v2467 = vadd.f32 %v2161, %v2341
      %v2468 = vadd.f32 %v2162, %v2344
      %v2469 = vadd.f32 %v2163, %v2349
      %v2470 = vadd.f32 %v2164, %v2352
      %v2471 = vadd.f32 %v2165, %v2357
      %v2472 = vadd.f32 %v2166, %v2360
      %v2473 = vadd.f32 %v2167, %v2365
      %v2474 = vadd.f32 %v2168, %v2368
      %v2475 = vadd.f32 %v2169, %v2373
      %v2476 = vadd.f32 %v2170, %v2376
      %v2477 = vadd.f32 %v2171, %v2381
      %v2478 = vadd.f32 %v2172, %v2384
      %v2479 = vadd.f32 %v2173, %v2389
      %v2480 = vadd.f32 %v2174, %v2392
      %v2481 = vadd.f32 %v2175, %v2397
      %v2482 = vadd.f32 %v2176, %v2400
      %v2483 = vadd.f32 %v2177, %v2405
      %v2484 = vadd.f32 %v2178, %v2408
      %v2485 = vadd.f32 %v2179, %v2413
      %v2486 = vadd.f32 %v2180, %v2416
      %v2487 = vadd.f32 %v2181, %v2421
      %v2488 = vadd.f32 %v2182, %v2424
      %v2489 = vadd.f32 %v2183, %v2429
      %v2490 = vadd.f32 %v2184, %v2432
      %v2491 = vadd.f32 %v2185, %v2437
      %v2492 = vadd.f32 %v2186, %v2440
      %v2493 = vadd.f32 %v2187, %v2445
      %v2494 = vadd.f32 %v2188, %v2448
      %v2495 = vadd.f32 %v2189, %v2453
      %v2496 = vadd.f32 %v2190, %v2456
      %v2497 = vadd.f32 %v2191, %v2461
      %v2498 = vadd.f32 %v2192, %v2464
      %v2499 = vld [vmem:[%s1886 + $0x2] sm:$0xff]
      %v2500 = vld [vmem:[%s1886 + $0xa] sm:$0xff]
      %v2501 = vld [vmem:[%s1886 + $0x1a] sm:$0xff]
      %v2502 = vld [vmem:[%s1886 + $0x22] sm:$0xff]
      %v2503 = vld [vmem:[%s1886 + $0x32] sm:$0xff]
      %v2504 = vld [vmem:[%s1886 + $0x3a] sm:$0xff]
      %v2505 = vld [vmem:[%s1886 + $0x4a] sm:$0xff]
      %v2506 = vld [vmem:[%s1886 + $0x52] sm:$0xff]
      %v2507 = vld [vmem:[%s1886 + $0x62] sm:$0xff]
      %v2508 = vld [vmem:[%s1886 + $0x6a] sm:$0xff]
      %v2509 = vld [vmem:[%s1886 + $0x7a] sm:$0xff]
      %v2510 = vld [vmem:[%s1886 + $0x82] sm:$0xff]
      %v2511 = vld [vmem:[%s1886 + $0x92] sm:$0xff]
      %v2512 = vld [vmem:[%s1886 + $0x9a] sm:$0xff]
      %v2513 = vld [vmem:[%s1886 + $0xaa] sm:$0xff]
      %v2514 = vld [vmem:[%s1886 + $0xb2] sm:$0xff]
      %v2515 = vld [vmem:[%s1886 + $0xc2] sm:$0xff]
      %v2516 = vld [vmem:[%s1886 + $0xca] sm:$0xff]
      %v2517 = vld [vmem:[%s1886 + $0xda] sm:$0xff]
      %v2518 = vld [vmem:[%s1886 + $0xe2] sm:$0xff]
      %v2519 = vld [vmem:[%s1886 + $0xf2] sm:$0xff]
      %v2520 = vld [vmem:[%s1886 + $0xfa] sm:$0xff]
      %v2521 = vld [vmem:[%s1886 + $0x10a] sm:$0xff]
      %v2522 = vld [vmem:[%s1886 + $0x112] sm:$0xff]
      %v2523 = vld [vmem:[%s1886 + $0x122] sm:$0xff]
      %v2524 = vld [vmem:[%s1886 + $0x12a] sm:$0xff]
      %v2525 = vld [vmem:[%s1886 + $0x13a] sm:$0xff]
      %v2526 = vld [vmem:[%s1886 + $0x142] sm:$0xff]
      %v2527 = vld [vmem:[%s1886 + $0x152] sm:$0xff]
      %v2528 = vld [vmem:[%s1886 + $0x15a] sm:$0xff]
      %v2529 = vld [vmem:[%s1886 + $0x16a] sm:$0xff]
      %v2530 = vld [vmem:[%s1886 + $0x172] sm:$0xff]
      %v2531 = vpack.c.bf16 %v2500, %v2499
      %v2532 = vpack.c.bf16 %v2502, %v2501
      %v2533 = vpack.c.bf16 %v2504, %v2503
      %v2534 = vpack.c.bf16 %v2506, %v2505
      %v2535 = vpack.c.bf16 %v2508, %v2507
      %v2536 = vpack.c.bf16 %v2510, %v2509
      %v2537 = vpack.c.bf16 %v2512, %v2511
      %v2538 = vpack.c.bf16 %v2514, %v2513
      %v2539 = vpack.c.bf16 %v2516, %v2515
      %v2540 = vpack.c.bf16 %v2518, %v2517
      %v2541 = vpack.c.bf16 %v2520, %v2519
      %v2542 = vpack.c.bf16 %v2522, %v2521
      %v2543 = vpack.c.bf16 %v2524, %v2523
      %v2544 = vpack.c.bf16 %v2526, %v2525
      %v2545 = vpack.c.bf16 %v2528, %v2527
      %v2546 = vpack.c.bf16 %v2530, %v2529
      %s2547 = scalar_lea.vmem %s8, 320
      %v2548 = vld [vmem:[%s2547] sm:$0xf]
      %v2549 = vld [vmem:[%s2547 + $0x4] sm:$0xf]
      %v2550 = vld [vmem:[%s2547 + $0x8] sm:$0xf]
      %v2551 = vld [vmem:[%s2547 + $0xc] sm:$0xf]
      %v2552 = vld [vmem:[%s2547 + $0x10] sm:$0xf]
      %v2553 = vld [vmem:[%s2547 + $0x14] sm:$0xf]
      %v2554 = vld [vmem:[%s2547 + $0x18] sm:$0xf]
      %v2555 = vld [vmem:[%s2547 + $0x1c] sm:$0xf]
      %v2556 = vld [vmem:[%s2547 + $0x20] sm:$0xf]
      %v2557 = vld [vmem:[%s2547 + $0x24] sm:$0xf]
      %v2558 = vld [vmem:[%s2547 + $0x28] sm:$0xf]
      %v2559 = vld [vmem:[%s2547 + $0x2c] sm:$0xf]
      %v2560 = vld [vmem:[%s2547 + $0x30] sm:$0xf]
      %v2561 = vld [vmem:[%s2547 + $0x34] sm:$0xf]
      %v2562 = vld [vmem:[%s2547 + $0x38] sm:$0xf]
      %v2563 = vld [vmem:[%s2547 + $0x3c] sm:$0xf]
      %v2580 = vunpack.c.l.b16 %v2548
      %v2581 = vunpack.c.l.b16 %v2549
      %v2582 = vunpack.c.l.b16 %v2550
      %v2583 = vunpack.c.l.b16 %v2551
      %v2584 = vunpack.c.l.b16 %v2552
      %v2585 = vunpack.c.l.b16 %v2553
      %v2586 = vunpack.c.l.b16 %v2554
      %v2587 = vunpack.c.l.b16 %v2555
      %v2588 = vunpack.c.l.b16 %v2556
      %v2589 = vunpack.c.l.b16 %v2557
      %v2590 = vunpack.c.l.b16 %v2558
      %v2591 = vunpack.c.l.b16 %v2559
      %v2592 = vunpack.c.l.b16 %v2560
      %v2593 = vunpack.c.l.b16 %v2561
      %v2594 = vunpack.c.l.b16 %v2562
      %v2595 = vunpack.c.l.b16 %v2563
      %v2596 = vpack.c.b16 %v2581, %v2580
      %v2597 = vpack.c.b16 %v2583, %v2582
      %v2598 = vpack.c.b16 %v2585, %v2584
      %v2599 = vpack.c.b16 %v2587, %v2586
      %v2600 = vpack.c.b16 %v2589, %v2588
      %v2601 = vpack.c.b16 %v2591, %v2590
      %v2602 = vpack.c.b16 %v2593, %v2592
      %v2603 = vpack.c.b16 %v2595, %v2594
      %2612 = vmatprep.subr.bf16.mxu0 0
      %2613 = vmatpush1.bf16.msra.mxu0 %v2603
      %2614 = vmatprep.subr.bf16.mxu0 0
      %2615 = vmatpush1.bf16.msra.mxu0 %v2602
      %2616 = vmatprep.subr.bf16.mxu0 0
      %2617 = vmatpush1.bf16.msra.mxu0 %v2601
      %2618 = vmatprep.subr.bf16.mxu0 0
      %2619 = vmatpush1.bf16.msra.mxu0 %v2600
      %2620 = vmatprep.subr.bf16.mxu0 0
      %2621 = vmatpush1.bf16.msra.mxu0 %v2599
      %2622 = vmatprep.subr.bf16.mxu0 0
      %2623 = vmatpush1.bf16.msra.mxu0 %v2598
      %2624 = vmatprep.subr.bf16.mxu0 0
      %2625 = vmatpush1.bf16.msra.mxu0 %v2597
      %2626 = vmatprep.subr.bf16.mxu0 0
      %2627 = vmatpush1.bf16.msra.mxu0 %v2596
      %2628 = vmatprep.subr.bf16.mxu0 0
      %2629 = vmatpush2.bf16.msra.mxu0 0
      %2630 = vmatprep.subr.bf16.mxu0 0
      %2631 = vmatpush2.bf16.msra.mxu0 0
      %2632 = vmatprep.subr.bf16.mxu0 0
      %2633 = vmatpush2.bf16.msra.mxu0 0
      %2634 = vmatprep.subr.bf16.mxu0 0
      %2635 = vmatpush2.bf16.msra.mxu0 0
      %2636 = vmatprep.subr.bf16.mxu0 0
      %2637 = vmatpush2.bf16.msra.mxu0 0
      %2638 = vmatprep.subr.bf16.mxu0 0
      %2639 = vmatpush2.bf16.msra.mxu0 0
      %2640 = vmatprep.subr.bf16.mxu0 0
      %2641 = vmatpush2.bf16.msra.mxu0 0
      %2642 = vmatprep.subr.bf16.mxu0 0
      %2643 = vmatpush2.bf16.msra.mxu0 0
      %2644 = vmatprep.mubr.bf16.mxu0 0
      %2645 = vmatmul.mubr.bf16.gmra.mxu0 %v2531
      %v2646 = vpop.f32.mrf.mxu0
      %v2647 = vadd.f32 0.0, %v2646
      %v2648 = vpop.f32.mrf.mxu0
      %v2649 = vpop.f32.mrf.mxu0
      %v2650 = vadd.f32 0.0, %v2649
      %v2651 = vpop.f32.mrf.mxu0
      %2652 = vmatprep.mubr.bf16.mxu0 0
      %2653 = vmatmul.mubr.bf16.gmra.mxu0 %v2532
      %v2654 = vpop.f32.mrf.mxu0
      %v2655 = vadd.f32 0.0, %v2654
      %v2656 = vpop.f32.mrf.mxu0
      %v2657 = vpop.f32.mrf.mxu0
      %v2658 = vadd.f32 0.0, %v2657
      %v2659 = vpop.f32.mrf.mxu0
      %2660 = vmatprep.mubr.bf16.mxu0 0
      %2661 = vmatmul.mubr.bf16.gmra.mxu0 %v2533
      %v2662 = vpop.f32.mrf.mxu0
      %v2663 = vadd.f32 0.0, %v2662
      %v2664 = vpop.f32.mrf.mxu0
      %v2665 = vpop.f32.mrf.mxu0
      %v2666 = vadd.f32 0.0, %v2665
      %v2667 = vpop.f32.mrf.mxu0
      %2668 = vmatprep.mubr.bf16.mxu0 0
      %2669 = vmatmul.mubr.bf16.gmra.mxu0 %v2534
      %v2670 = vpop.f32.mrf.mxu0
      %v2671 = vadd.f32 0.0, %v2670
      %v2672 = vpop.f32.mrf.mxu0
      %v2673 = vpop.f32.mrf.mxu0
      %v2674 = vadd.f32 0.0, %v2673
      %v2675 = vpop.f32.mrf.mxu0
      %2676 = vmatprep.mubr.bf16.mxu0 0
      %2677 = vmatmul.mubr.bf16.gmra.mxu0 %v2535
      %v2678 = vpop.f32.mrf.mxu0
      %v2679 = vadd.f32 0.0, %v2678
      %v2680 = vpop.f32.mrf.mxu0
      %v2681 = vpop.f32.mrf.mxu0
      %v2682 = vadd.f32 0.0, %v2681
      %v2683 = vpop.f32.mrf.mxu0
      %2684 = vmatprep.mubr.bf16.mxu0 0
      %2685 = vmatmul.mubr.bf16.gmra.mxu0 %v2536
      %v2686 = vpop.f32.mrf.mxu0
      %v2687 = vadd.f32 0.0, %v2686
      %v2688 = vpop.f32.mrf.mxu0
      %v2689 = vpop.f32.mrf.mxu0
      %v2690 = vadd.f32 0.0, %v2689
      %v2691 = vpop.f32.mrf.mxu0
      %2692 = vmatprep.mubr.bf16.mxu0 0
      %2693 = vmatmul.mubr.bf16.gmra.mxu0 %v2537
      %v2694 = vpop.f32.mrf.mxu0
      %v2695 = vadd.f32 0.0, %v2694
      %v2696 = vpop.f32.mrf.mxu0
      %v2697 = vpop.f32.mrf.mxu0
      %v2698 = vadd.f32 0.0, %v2697
      %v2699 = vpop.f32.mrf.mxu0
      %2700 = vmatprep.mubr.bf16.mxu0 0
      %2701 = vmatmul.mubr.bf16.gmra.mxu0 %v2538
      %v2702 = vpop.f32.mrf.mxu0
      %v2703 = vadd.f32 0.0, %v2702
      %v2704 = vpop.f32.mrf.mxu0
      %v2705 = vpop.f32.mrf.mxu0
      %v2706 = vadd.f32 0.0, %v2705
      %v2707 = vpop.f32.mrf.mxu0
      %2708 = vmatprep.mubr.bf16.mxu0 0
      %2709 = vmatmul.mubr.bf16.gmra.mxu0 %v2539
      %v2710 = vpop.f32.mrf.mxu0
      %v2711 = vadd.f32 0.0, %v2710
      %v2712 = vpop.f32.mrf.mxu0
      %v2713 = vpop.f32.mrf.mxu0
      %v2714 = vadd.f32 0.0, %v2713
      %v2715 = vpop.f32.mrf.mxu0
      %2716 = vmatprep.mubr.bf16.mxu0 0
      %2717 = vmatmul.mubr.bf16.gmra.mxu0 %v2540
      %v2718 = vpop.f32.mrf.mxu0
      %v2719 = vadd.f32 0.0, %v2718
      %v2720 = vpop.f32.mrf.mxu0
      %v2721 = vpop.f32.mrf.mxu0
      %v2722 = vadd.f32 0.0, %v2721
      %v2723 = vpop.f32.mrf.mxu0
      %2724 = vmatprep.mubr.bf16.mxu0 0
      %2725 = vmatmul.mubr.bf16.gmra.mxu0 %v2541
      %v2726 = vpop.f32.mrf.mxu0
      %v2727 = vadd.f32 0.0, %v2726
      %v2728 = vpop.f32.mrf.mxu0
      %v2729 = vpop.f32.mrf.mxu0
      %v2730 = vadd.f32 0.0, %v2729
      %v2731 = vpop.f32.mrf.mxu0
      %2732 = vmatprep.mubr.bf16.mxu0 0
      %2733 = vmatmul.mubr.bf16.gmra.mxu0 %v2542
      %v2734 = vpop.f32.mrf.mxu0
      %v2735 = vadd.f32 0.0, %v2734
      %v2736 = vpop.f32.mrf.mxu0
      %v2737 = vpop.f32.mrf.mxu0
      %v2738 = vadd.f32 0.0, %v2737
      %v2739 = vpop.f32.mrf.mxu0
      %2740 = vmatprep.mubr.bf16.mxu0 0
      %2741 = vmatmul.mubr.bf16.gmra.mxu0 %v2543
      %v2742 = vpop.f32.mrf.mxu0
      %v2743 = vadd.f32 0.0, %v2742
      %v2744 = vpop.f32.mrf.mxu0
      %v2745 = vpop.f32.mrf.mxu0
      %v2746 = vadd.f32 0.0, %v2745
      %v2747 = vpop.f32.mrf.mxu0
      %2748 = vmatprep.mubr.bf16.mxu0 0
      %2749 = vmatmul.mubr.bf16.gmra.mxu0 %v2544
      %v2750 = vpop.f32.mrf.mxu0
      %v2751 = vadd.f32 0.0, %v2750
      %v2752 = vpop.f32.mrf.mxu0
      %v2753 = vpop.f32.mrf.mxu0
      %v2754 = vadd.f32 0.0, %v2753
      %v2755 = vpop.f32.mrf.mxu0
      %2756 = vmatprep.mubr.bf16.mxu0 0
      %2757 = vmatmul.mubr.bf16.gmra.mxu0 %v2545
      %v2758 = vpop.f32.mrf.mxu0
      %v2759 = vadd.f32 0.0, %v2758
      %v2760 = vpop.f32.mrf.mxu0
      %v2761 = vpop.f32.mrf.mxu0
      %v2762 = vadd.f32 0.0, %v2761
      %v2763 = vpop.f32.mrf.mxu0
      %2764 = vmatprep.mubr.bf16.mxu0 0
      %2765 = vmatmul.mubr.bf16.gmra.mxu0 %v2546
      %v2766 = vpop.f32.mrf.mxu0
      %v2767 = vadd.f32 0.0, %v2766
      %v2768 = vpop.f32.mrf.mxu0
      %v2769 = vpop.f32.mrf.mxu0
      %v2770 = vadd.f32 0.0, %v2769
      %v2771 = vpop.f32.mrf.mxu0
      %2772 = vdwg.mxu0
      %v2773 = vadd.f32 %v2467, %v2647
      %v2774 = vadd.f32 %v2468, %v2650
      %v2775 = vadd.f32 %v2469, %v2655
      %v2776 = vadd.f32 %v2470, %v2658
      %v2777 = vadd.f32 %v2471, %v2663
      %v2778 = vadd.f32 %v2472, %v2666
      %v2779 = vadd.f32 %v2473, %v2671
      %v2780 = vadd.f32 %v2474, %v2674
      %v2781 = vadd.f32 %v2475, %v2679
      %v2782 = vadd.f32 %v2476, %v2682
      %v2783 = vadd.f32 %v2477, %v2687
      %v2784 = vadd.f32 %v2478, %v2690
      %v2785 = vadd.f32 %v2479, %v2695
      %v2786 = vadd.f32 %v2480, %v2698
      %v2787 = vadd.f32 %v2481, %v2703
      %v2788 = vadd.f32 %v2482, %v2706
      %v2789 = vadd.f32 %v2483, %v2711
      %v2790 = vadd.f32 %v2484, %v2714
      %v2791 = vadd.f32 %v2485, %v2719
      %v2792 = vadd.f32 %v2486, %v2722
      %v2793 = vadd.f32 %v2487, %v2727
      %v2794 = vadd.f32 %v2488, %v2730
      %v2795 = vadd.f32 %v2489, %v2735
      %v2796 = vadd.f32 %v2490, %v2738
      %v2797 = vadd.f32 %v2491, %v2743
      %v2798 = vadd.f32 %v2492, %v2746
      %v2799 = vadd.f32 %v2493, %v2751
      %v2800 = vadd.f32 %v2494, %v2754
      %v2801 = vadd.f32 %v2495, %v2759
      %v2802 = vadd.f32 %v2496, %v2762
      %v2803 = vadd.f32 %v2497, %v2767
      %v2804 = vadd.f32 %v2498, %v2770
      %s2805 = scalar_lea.vmem [#allocation2], 48
      %v2806 = vld [vmem:[%s2805] sm:$0xff]
      %v2807 = vld [vmem:[%s2805 + $0x8] sm:$0xff]
      %v2808 = vld [vmem:[%s2805 + $0x18] sm:$0xff]
      %v2809 = vld [vmem:[%s2805 + $0x20] sm:$0xff]
      %v2810 = vld [vmem:[%s2805 + $0x30] sm:$0xff]
      %v2811 = vld [vmem:[%s2805 + $0x38] sm:$0xff]
      %v2812 = vld [vmem:[%s2805 + $0x48] sm:$0xff]
      %v2813 = vld [vmem:[%s2805 + $0x50] sm:$0xff]
      %v2814 = vld [vmem:[%s2805 + $0x60] sm:$0xff]
      %v2815 = vld [vmem:[%s2805 + $0x68] sm:$0xff]
      %v2816 = vld [vmem:[%s2805 + $0x78] sm:$0xff]
      %v2817 = vld [vmem:[%s2805 + $0x80] sm:$0xff]
      %v2818 = vld [vmem:[%s2805 + $0x90] sm:$0xff]
      %v2819 = vld [vmem:[%s2805 + $0x98] sm:$0xff]
      %v2820 = vld [vmem:[%s2805 + $0xa8] sm:$0xff]
      %v2821 = vld [vmem:[%s2805 + $0xb0] sm:$0xff]
      %v2822 = vld [vmem:[%s2805 + $0xc0] sm:$0xff]
      %v2823 = vld [vmem:[%s2805 + $0xc8] sm:$0xff]
      %v2824 = vld [vmem:[%s2805 + $0xd8] sm:$0xff]
      %v2825 = vld [vmem:[%s2805 + $0xe0] sm:$0xff]
      %v2826 = vld [vmem:[%s2805 + $0xf0] sm:$0xff]
      %v2827 = vld [vmem:[%s2805 + $0xf8] sm:$0xff]
      %v2828 = vld [vmem:[%s2805 + $0x108] sm:$0xff]
      %v2829 = vld [vmem:[%s2805 + $0x110] sm:$0xff]
      %v2830 = vld [vmem:[%s2805 + $0x120] sm:$0xff]
      %v2831 = vld [vmem:[%s2805 + $0x128] sm:$0xff]
      %v2832 = vld [vmem:[%s2805 + $0x138] sm:$0xff]
      %v2833 = vld [vmem:[%s2805 + $0x140] sm:$0xff]
      %v2834 = vld [vmem:[%s2805 + $0x150] sm:$0xff]
      %v2835 = vld [vmem:[%s2805 + $0x158] sm:$0xff]
      %v2836 = vld [vmem:[%s2805 + $0x168] sm:$0xff]
      %v2837 = vld [vmem:[%s2805 + $0x170] sm:$0xff]
      %v2838 = vpack.c.bf16 %v2807, %v2806
      %v2839 = vpack.c.bf16 %v2809, %v2808
      %v2840 = vpack.c.bf16 %v2811, %v2810
      %v2841 = vpack.c.bf16 %v2813, %v2812
      %v2842 = vpack.c.bf16 %v2815, %v2814
      %v2843 = vpack.c.bf16 %v2817, %v2816
      %v2844 = vpack.c.bf16 %v2819, %v2818
      %v2845 = vpack.c.bf16 %v2821, %v2820
      %v2846 = vpack.c.bf16 %v2823, %v2822
      %v2847 = vpack.c.bf16 %v2825, %v2824
      %v2848 = vpack.c.bf16 %v2827, %v2826
      %v2849 = vpack.c.bf16 %v2829, %v2828
      %v2850 = vpack.c.bf16 %v2831, %v2830
      %v2851 = vpack.c.bf16 %v2833, %v2832
      %v2852 = vpack.c.bf16 %v2835, %v2834
      %v2853 = vpack.c.bf16 %v2837, %v2836
      %s2854 = scalar_lea.vmem %s8, 384
      %v2855 = vld [vmem:[%s2854] sm:$0xf]
      %v2856 = vld [vmem:[%s2854 + $0x4] sm:$0xf]
      %v2857 = vld [vmem:[%s2854 + $0x8] sm:$0xf]
      %v2858 = vld [vmem:[%s2854 + $0xc] sm:$0xf]
      %v2859 = vld [vmem:[%s2854 + $0x10] sm:$0xf]
      %v2860 = vld [vmem:[%s2854 + $0x14] sm:$0xf]
      %v2861 = vld [vmem:[%s2854 + $0x18] sm:$0xf]
      %v2862 = vld [vmem:[%s2854 + $0x1c] sm:$0xf]
      %v2863 = vld [vmem:[%s2854 + $0x20] sm:$0xf]
      %v2864 = vld [vmem:[%s2854 + $0x24] sm:$0xf]
      %v2865 = vld [vmem:[%s2854 + $0x28] sm:$0xf]
      %v2866 = vld [vmem:[%s2854 + $0x2c] sm:$0xf]
      %v2867 = vld [vmem:[%s2854 + $0x30] sm:$0xf]
      %v2868 = vld [vmem:[%s2854 + $0x34] sm:$0xf]
      %v2869 = vld [vmem:[%s2854 + $0x38] sm:$0xf]
      %v2870 = vld [vmem:[%s2854 + $0x3c] sm:$0xf]
      %v2887 = vunpack.c.l.b16 %v2855
      %v2888 = vunpack.c.l.b16 %v2856
      %v2889 = vunpack.c.l.b16 %v2857
      %v2890 = vunpack.c.l.b16 %v2858
      %v2891 = vunpack.c.l.b16 %v2859
      %v2892 = vunpack.c.l.b16 %v2860
      %v2893 = vunpack.c.l.b16 %v2861
      %v2894 = vunpack.c.l.b16 %v2862
      %v2895 = vunpack.c.l.b16 %v2863
      %v2896 = vunpack.c.l.b16 %v2864
      %v2897 = vunpack.c.l.b16 %v2865
      %v2898 = vunpack.c.l.b16 %v2866
      %v2899 = vunpack.c.l.b16 %v2867
      %v2900 = vunpack.c.l.b16 %v2868
      %v2901 = vunpack.c.l.b16 %v2869
      %v2902 = vunpack.c.l.b16 %v2870
      %v2903 = vpack.c.b16 %v2888, %v2887
      %v2904 = vpack.c.b16 %v2890, %v2889
      %v2905 = vpack.c.b16 %v2892, %v2891
      %v2906 = vpack.c.b16 %v2894, %v2893
      %v2907 = vpack.c.b16 %v2896, %v2895
      %v2908 = vpack.c.b16 %v2898, %v2897
      %v2909 = vpack.c.b16 %v2900, %v2899
      %v2910 = vpack.c.b16 %v2902, %v2901
      %2919 = vmatprep.subr.bf16.mxu0 0
      %2920 = vmatpush1.bf16.msra.mxu0 %v2910
      %2921 = vmatprep.subr.bf16.mxu0 0
      %2922 = vmatpush1.bf16.msra.mxu0 %v2909
      %2923 = vmatprep.subr.bf16.mxu0 0
      %2924 = vmatpush1.bf16.msra.mxu0 %v2908
      %2925 = vmatprep.subr.bf16.mxu0 0
      %2926 = vmatpush1.bf16.msra.mxu0 %v2907
      %2927 = vmatprep.subr.bf16.mxu0 0
      %2928 = vmatpush1.bf16.msra.mxu0 %v2906
      %2929 = vmatprep.subr.bf16.mxu0 0
      %2930 = vmatpush1.bf16.msra.mxu0 %v2905
      %2931 = vmatprep.subr.bf16.mxu0 0
      %2932 = vmatpush1.bf16.msra.mxu0 %v2904
      %2933 = vmatprep.subr.bf16.mxu0 0
      %2934 = vmatpush1.bf16.msra.mxu0 %v2903
      %2935 = vmatprep.subr.bf16.mxu0 0
      %2936 = vmatpush2.bf16.msra.mxu0 0
      %2937 = vmatprep.subr.bf16.mxu0 0
      %2938 = vmatpush2.bf16.msra.mxu0 0
      %2939 = vmatprep.subr.bf16.mxu0 0
      %2940 = vmatpush2.bf16.msra.mxu0 0
      %2941 = vmatprep.subr.bf16.mxu0 0
      %2942 = vmatpush2.bf16.msra.mxu0 0
      %2943 = vmatprep.subr.bf16.mxu0 0
      %2944 = vmatpush2.bf16.msra.mxu0 0
      %2945 = vmatprep.subr.bf16.mxu0 0
      %2946 = vmatpush2.bf16.msra.mxu0 0
      %2947 = vmatprep.subr.bf16.mxu0 0
      %2948 = vmatpush2.bf16.msra.mxu0 0
      %2949 = vmatprep.subr.bf16.mxu0 0
      %2950 = vmatpush2.bf16.msra.mxu0 0
      %2951 = vmatprep.mubr.bf16.mxu0 0
      %2952 = vmatmul.mubr.bf16.gmra.mxu0 %v2838
      %v2953 = vpop.f32.mrf.mxu0
      %v2954 = vadd.f32 0.0, %v2953
      %v2955 = vpop.f32.mrf.mxu0
      %v2956 = vpop.f32.mrf.mxu0
      %v2957 = vadd.f32 0.0, %v2956
      %v2958 = vpop.f32.mrf.mxu0
      %2959 = vmatprep.mubr.bf16.mxu0 0
      %2960 = vmatmul.mubr.bf16.gmra.mxu0 %v2839
      %v2961 = vpop.f32.mrf.mxu0
      %v2962 = vadd.f32 0.0, %v2961
      %v2963 = vpop.f32.mrf.mxu0
      %v2964 = vpop.f32.mrf.mxu0
      %v2965 = vadd.f32 0.0, %v2964
      %v2966 = vpop.f32.mrf.mxu0
      %2967 = vmatprep.mubr.bf16.mxu0 0
      %2968 = vmatmul.mubr.bf16.gmra.mxu0 %v2840
      %v2969 = vpop.f32.mrf.mxu0
      %v2970 = vadd.f32 0.0, %v2969
      %v2971 = vpop.f32.mrf.mxu0
      %v2972 = vpop.f32.mrf.mxu0
      %v2973 = vadd.f32 0.0, %v2972
      %v2974 = vpop.f32.mrf.mxu0
      %2975 = vmatprep.mubr.bf16.mxu0 0
      %2976 = vmatmul.mubr.bf16.gmra.mxu0 %v2841
      %v2977 = vpop.f32.mrf.mxu0
      %v2978 = vadd.f32 0.0, %v2977
      %v2979 = vpop.f32.mrf.mxu0
      %v2980 = vpop.f32.mrf.mxu0
      %v2981 = vadd.f32 0.0, %v2980
      %v2982 = vpop.f32.mrf.mxu0
      %2983 = vmatprep.mubr.bf16.mxu0 0
      %2984 = vmatmul.mubr.bf16.gmra.mxu0 %v2842
      %v2985 = vpop.f32.mrf.mxu0
      %v2986 = vadd.f32 0.0, %v2985
      %v2987 = vpop.f32.mrf.mxu0
      %v2988 = vpop.f32.mrf.mxu0
      %v2989 = vadd.f32 0.0, %v2988
      %v2990 = vpop.f32.mrf.mxu0
      %2991 = vmatprep.mubr.bf16.mxu0 0
      %2992 = vmatmul.mubr.bf16.gmra.mxu0 %v2843
      %v2993 = vpop.f32.mrf.mxu0
      %v2994 = vadd.f32 0.0, %v2993
      %v2995 = vpop.f32.mrf.mxu0
      %v2996 = vpop.f32.mrf.mxu0
      %v2997 = vadd.f32 0.0, %v2996
      %v2998 = vpop.f32.mrf.mxu0
      %2999 = vmatprep.mubr.bf16.mxu0 0
      %3000 = vmatmul.mubr.bf16.gmra.mxu0 %v2844
      %v3001 = vpop.f32.mrf.mxu0
      %v3002 = vadd.f32 0.0, %v3001
      %v3003 = vpop.f32.mrf.mxu0
      %v3004 = vpop.f32.mrf.mxu0
      %v3005 = vadd.f32 0.0, %v3004
      %v3006 = vpop.f32.mrf.mxu0
      %3007 = vmatprep.mubr.bf16.mxu0 0
      %3008 = vmatmul.mubr.bf16.gmra.mxu0 %v2845
      %v3009 = vpop.f32.mrf.mxu0
      %v3010 = vadd.f32 0.0, %v3009
      %v3011 = vpop.f32.mrf.mxu0
      %v3012 = vpop.f32.mrf.mxu0
      %v3013 = vadd.f32 0.0, %v3012
      %v3014 = vpop.f32.mrf.mxu0
      %3015 = vmatprep.mubr.bf16.mxu0 0
      %3016 = vmatmul.mubr.bf16.gmra.mxu0 %v2846
      %v3017 = vpop.f32.mrf.mxu0
      %v3018 = vadd.f32 0.0, %v3017
      %v3019 = vpop.f32.mrf.mxu0
      %v3020 = vpop.f32.mrf.mxu0
      %v3021 = vadd.f32 0.0, %v3020
      %v3022 = vpop.f32.mrf.mxu0
      %3023 = vmatprep.mubr.bf16.mxu0 0
      %3024 = vmatmul.mubr.bf16.gmra.mxu0 %v2847
      %v3025 = vpop.f32.mrf.mxu0
      %v3026 = vadd.f32 0.0, %v3025
      %v3027 = vpop.f32.mrf.mxu0
      %v3028 = vpop.f32.mrf.mxu0
      %v3029 = vadd.f32 0.0, %v3028
      %v3030 = vpop.f32.mrf.mxu0
      %3031 = vmatprep.mubr.bf16.mxu0 0
      %3032 = vmatmul.mubr.bf16.gmra.mxu0 %v2848
      %v3033 = vpop.f32.mrf.mxu0
      %v3034 = vadd.f32 0.0, %v3033
      %v3035 = vpop.f32.mrf.mxu0
      %v3036 = vpop.f32.mrf.mxu0
      %v3037 = vadd.f32 0.0, %v3036
      %v3038 = vpop.f32.mrf.mxu0
      %3039 = vmatprep.mubr.bf16.mxu0 0
      %3040 = vmatmul.mubr.bf16.gmra.mxu0 %v2849
      %v3041 = vpop.f32.mrf.mxu0
      %v3042 = vadd.f32 0.0, %v3041
      %v3043 = vpop.f32.mrf.mxu0
      %v3044 = vpop.f32.mrf.mxu0
      %v3045 = vadd.f32 0.0, %v3044
      %v3046 = vpop.f32.mrf.mxu0
      %3047 = vmatprep.mubr.bf16.mxu0 0
      %3048 = vmatmul.mubr.bf16.gmra.mxu0 %v2850
      %v3049 = vpop.f32.mrf.mxu0
      %v3050 = vadd.f32 0.0, %v3049
      %v3051 = vpop.f32.mrf.mxu0
      %v3052 = vpop.f32.mrf.mxu0
      %v3053 = vadd.f32 0.0, %v3052
      %v3054 = vpop.f32.mrf.mxu0
      %3055 = vmatprep.mubr.bf16.mxu0 0
      %3056 = vmatmul.mubr.bf16.gmra.mxu0 %v2851
      %v3057 = vpop.f32.mrf.mxu0
      %v3058 = vadd.f32 0.0, %v3057
      %v3059 = vpop.f32.mrf.mxu0
      %v3060 = vpop.f32.mrf.mxu0
      %v3061 = vadd.f32 0.0, %v3060
      %v3062 = vpop.f32.mrf.mxu0
      %3063 = vmatprep.mubr.bf16.mxu0 0
      %3064 = vmatmul.mubr.bf16.gmra.mxu0 %v2852
      %v3065 = vpop.f32.mrf.mxu0
      %v3066 = vadd.f32 0.0, %v3065
      %v3067 = vpop.f32.mrf.mxu0
      %v3068 = vpop.f32.mrf.mxu0
      %v3069 = vadd.f32 0.0, %v3068
      %v3070 = vpop.f32.mrf.mxu0
      %3071 = vmatprep.mubr.bf16.mxu0 0
      %3072 = vmatmul.mubr.bf16.gmra.mxu0 %v2853
      %v3073 = vpop.f32.mrf.mxu0
      %v3074 = vadd.f32 0.0, %v3073
      %v3075 = vpop.f32.mrf.mxu0
      %v3076 = vpop.f32.mrf.mxu0
      %v3077 = vadd.f32 0.0, %v3076
      %v3078 = vpop.f32.mrf.mxu0
      %3079 = vdwg.mxu0
      %v3080 = vadd.f32 %v2773, %v2954
      %v3081 = vadd.f32 %v2774, %v2957
      %v3082 = vadd.f32 %v2775, %v2962
      %v3083 = vadd.f32 %v2776, %v2965
      %v3084 = vadd.f32 %v2777, %v2970
      %v3085 = vadd.f32 %v2778, %v2973
      %v3086 = vadd.f32 %v2779, %v2978
      %v3087 = vadd.f32 %v2780, %v2981
      %v3088 = vadd.f32 %v2781, %v2986
      %v3089 = vadd.f32 %v2782, %v2989
      %v3090 = vadd.f32 %v2783, %v2994
      %v3091 = vadd.f32 %v2784, %v2997
      %v3092 = vadd.f32 %v2785, %v3002
      %v3093 = vadd.f32 %v2786, %v3005
      %v3094 = vadd.f32 %v2787, %v3010
      %v3095 = vadd.f32 %v2788, %v3013
      %v3096 = vadd.f32 %v2789, %v3018
      %v3097 = vadd.f32 %v2790, %v3021
      %v3098 = vadd.f32 %v2791, %v3026
      %v3099 = vadd.f32 %v2792, %v3029
      %v3100 = vadd.f32 %v2793, %v3034
      %v3101 = vadd.f32 %v2794, %v3037
      %v3102 = vadd.f32 %v2795, %v3042
      %v3103 = vadd.f32 %v2796, %v3045
      %v3104 = vadd.f32 %v2797, %v3050
      %v3105 = vadd.f32 %v2798, %v3053
      %v3106 = vadd.f32 %v2799, %v3058
      %v3107 = vadd.f32 %v2800, %v3061
      %v3108 = vadd.f32 %v2801, %v3066
      %v3109 = vadd.f32 %v2802, %v3069
      %v3110 = vadd.f32 %v2803, %v3074
      %v3111 = vadd.f32 %v2804, %v3077
      %v3112 = vld [vmem:[%s2805 + $0x1] sm:$0xff]
      %v3113 = vld [vmem:[%s2805 + $0x9] sm:$0xff]
      %v3114 = vld [vmem:[%s2805 + $0x19] sm:$0xff]
      %v3115 = vld [vmem:[%s2805 + $0x21] sm:$0xff]
      %v3116 = vld [vmem:[%s2805 + $0x31] sm:$0xff]
      %v3117 = vld [vmem:[%s2805 + $0x39] sm:$0xff]
      %v3118 = vld [vmem:[%s2805 + $0x49] sm:$0xff]
      %v3119 = vld [vmem:[%s2805 + $0x51] sm:$0xff]
      %v3120 = vld [vmem:[%s2805 + $0x61] sm:$0xff]
      %v3121 = vld [vmem:[%s2805 + $0x69] sm:$0xff]
      %v3122 = vld [vmem:[%s2805 + $0x79] sm:$0xff]
      %v3123 = vld [vmem:[%s2805 + $0x81] sm:$0xff]
      %v3124 = vld [vmem:[%s2805 + $0x91] sm:$0xff]
      %v3125 = vld [vmem:[%s2805 + $0x99] sm:$0xff]
      %v3126 = vld [vmem:[%s2805 + $0xa9] sm:$0xff]
      %v3127 = vld [vmem:[%s2805 + $0xb1] sm:$0xff]
      %v3128 = vld [vmem:[%s2805 + $0xc1] sm:$0xff]
      %v3129 = vld [vmem:[%s2805 + $0xc9] sm:$0xff]
      %v3130 = vld [vmem:[%s2805 + $0xd9] sm:$0xff]
      %v3131 = vld [vmem:[%s2805 + $0xe1] sm:$0xff]
      %v3132 = vld [vmem:[%s2805 + $0xf1] sm:$0xff]
      %v3133 = vld [vmem:[%s2805 + $0xf9] sm:$0xff]
      %v3134 = vld [vmem:[%s2805 + $0x109] sm:$0xff]
      %v3135 = vld [vmem:[%s2805 + $0x111] sm:$0xff]
      %v3136 = vld [vmem:[%s2805 + $0x121] sm:$0xff]
      %v3137 = vld [vmem:[%s2805 + $0x129] sm:$0xff]
      %v3138 = vld [vmem:[%s2805 + $0x139] sm:$0xff]
      %v3139 = vld [vmem:[%s2805 + $0x141] sm:$0xff]
      %v3140 = vld [vmem:[%s2805 + $0x151] sm:$0xff]
      %v3141 = vld [vmem:[%s2805 + $0x159] sm:$0xff]
      %v3142 = vld [vmem:[%s2805 + $0x169] sm:$0xff]
      %v3143 = vld [vmem:[%s2805 + $0x171] sm:$0xff]
      %v3144 = vpack.c.bf16 %v3113, %v3112
      %v3145 = vpack.c.bf16 %v3115, %v3114
      %v3146 = vpack.c.bf16 %v3117, %v3116
      %v3147 = vpack.c.bf16 %v3119, %v3118
      %v3148 = vpack.c.bf16 %v3121, %v3120
      %v3149 = vpack.c.bf16 %v3123, %v3122
      %v3150 = vpack.c.bf16 %v3125, %v3124
      %v3151 = vpack.c.bf16 %v3127, %v3126
      %v3152 = vpack.c.bf16 %v3129, %v3128
      %v3153 = vpack.c.bf16 %v3131, %v3130
      %v3154 = vpack.c.bf16 %v3133, %v3132
      %v3155 = vpack.c.bf16 %v3135, %v3134
      %v3156 = vpack.c.bf16 %v3137, %v3136
      %v3157 = vpack.c.bf16 %v3139, %v3138
      %v3158 = vpack.c.bf16 %v3141, %v3140
      %v3159 = vpack.c.bf16 %v3143, %v3142
      %s3160 = scalar_lea.vmem %s8, 448
      %v3161 = vld [vmem:[%s3160] sm:$0xf]
      %v3162 = vld [vmem:[%s3160 + $0x4] sm:$0xf]
      %v3163 = vld [vmem:[%s3160 + $0x8] sm:$0xf]
      %v3164 = vld [vmem:[%s3160 + $0xc] sm:$0xf]
      %v3165 = vld [vmem:[%s3160 + $0x10] sm:$0xf]
      %v3166 = vld [vmem:[%s3160 + $0x14] sm:$0xf]
      %v3167 = vld [vmem:[%s3160 + $0x18] sm:$0xf]
      %v3168 = vld [vmem:[%s3160 + $0x1c] sm:$0xf]
      %v3169 = vld [vmem:[%s3160 + $0x20] sm:$0xf]
      %v3170 = vld [vmem:[%s3160 + $0x24] sm:$0xf]
      %v3171 = vld [vmem:[%s3160 + $0x28] sm:$0xf]
      %v3172 = vld [vmem:[%s3160 + $0x2c] sm:$0xf]
      %v3173 = vld [vmem:[%s3160 + $0x30] sm:$0xf]
      %v3174 = vld [vmem:[%s3160 + $0x34] sm:$0xf]
      %v3175 = vld [vmem:[%s3160 + $0x38] sm:$0xf]
      %v3176 = vld [vmem:[%s3160 + $0x3c] sm:$0xf]
      %v3193 = vunpack.c.l.b16 %v3161
      %v3194 = vunpack.c.l.b16 %v3162
      %v3195 = vunpack.c.l.b16 %v3163
      %v3196 = vunpack.c.l.b16 %v3164
      %v3197 = vunpack.c.l.b16 %v3165
      %v3198 = vunpack.c.l.b16 %v3166
      %v3199 = vunpack.c.l.b16 %v3167
      %v3200 = vunpack.c.l.b16 %v3168
      %v3201 = vunpack.c.l.b16 %v3169
      %v3202 = vunpack.c.l.b16 %v3170
      %v3203 = vunpack.c.l.b16 %v3171
      %v3204 = vunpack.c.l.b16 %v3172
      %v3205 = vunpack.c.l.b16 %v3173
      %v3206 = vunpack.c.l.b16 %v3174
      %v3207 = vunpack.c.l.b16 %v3175
      %v3208 = vunpack.c.l.b16 %v3176
      %v3209 = vpack.c.b16 %v3194, %v3193
      %v3210 = vpack.c.b16 %v3196, %v3195
      %v3211 = vpack.c.b16 %v3198, %v3197
      %v3212 = vpack.c.b16 %v3200, %v3199
      %v3213 = vpack.c.b16 %v3202, %v3201
      %v3214 = vpack.c.b16 %v3204, %v3203
      %v3215 = vpack.c.b16 %v3206, %v3205
      %v3216 = vpack.c.b16 %v3208, %v3207
      %3225 = vmatprep.subr.bf16.mxu0 0
      %3226 = vmatpush1.bf16.msra.mxu0 %v3216
      %3227 = vmatprep.subr.bf16.mxu0 0
      %3228 = vmatpush1.bf16.msra.mxu0 %v3215
      %3229 = vmatprep.subr.bf16.mxu0 0
      %3230 = vmatpush1.bf16.msra.mxu0 %v3214
      %3231 = vmatprep.subr.bf16.mxu0 0
      %3232 = vmatpush1.bf16.msra.mxu0 %v3213
      %3233 = vmatprep.subr.bf16.mxu0 0
      %3234 = vmatpush1.bf16.msra.mxu0 %v3212
      %3235 = vmatprep.subr.bf16.mxu0 0
      %3236 = vmatpush1.bf16.msra.mxu0 %v3211
      %3237 = vmatprep.subr.bf16.mxu0 0
      %3238 = vmatpush1.bf16.msra.mxu0 %v3210
      %3239 = vmatprep.subr.bf16.mxu0 0
      %3240 = vmatpush1.bf16.msra.mxu0 %v3209
      %3241 = vmatprep.subr.bf16.mxu0 0
      %3242 = vmatpush2.bf16.msra.mxu0 0
      %3243 = vmatprep.subr.bf16.mxu0 0
      %3244 = vmatpush2.bf16.msra.mxu0 0
      %3245 = vmatprep.subr.bf16.mxu0 0
      %3246 = vmatpush2.bf16.msra.mxu0 0
      %3247 = vmatprep.subr.bf16.mxu0 0
      %3248 = vmatpush2.bf16.msra.mxu0 0
      %3249 = vmatprep.subr.bf16.mxu0 0
      %3250 = vmatpush2.bf16.msra.mxu0 0
      %3251 = vmatprep.subr.bf16.mxu0 0
      %3252 = vmatpush2.bf16.msra.mxu0 0
      %3253 = vmatprep.subr.bf16.mxu0 0
      %3254 = vmatpush2.bf16.msra.mxu0 0
      %3255 = vmatprep.subr.bf16.mxu0 0
      %3256 = vmatpush2.bf16.msra.mxu0 0
      %3257 = vmatprep.mubr.bf16.mxu0 0
      %3258 = vmatmul.mubr.bf16.gmra.mxu0 %v3144
      %v3259 = vpop.f32.mrf.mxu0
      %v3260 = vadd.f32 0.0, %v3259
      %v3261 = vpop.f32.mrf.mxu0
      %v3262 = vpop.f32.mrf.mxu0
      %v3263 = vadd.f32 0.0, %v3262
      %v3264 = vpop.f32.mrf.mxu0
      %3265 = vmatprep.mubr.bf16.mxu0 0
      %3266 = vmatmul.mubr.bf16.gmra.mxu0 %v3145
      %v3267 = vpop.f32.mrf.mxu0
      %v3268 = vadd.f32 0.0, %v3267
      %v3269 = vpop.f32.mrf.mxu0
      %v3270 = vpop.f32.mrf.mxu0
      %v3271 = vadd.f32 0.0, %v3270
      %v3272 = vpop.f32.mrf.mxu0
      %3273 = vmatprep.mubr.bf16.mxu0 0
      %3274 = vmatmul.mubr.bf16.gmra.mxu0 %v3146
      %v3275 = vpop.f32.mrf.mxu0
      %v3276 = vadd.f32 0.0, %v3275
      %v3277 = vpop.f32.mrf.mxu0
      %v3278 = vpop.f32.mrf.mxu0
      %v3279 = vadd.f32 0.0, %v3278
      %v3280 = vpop.f32.mrf.mxu0
      %3281 = vmatprep.mubr.bf16.mxu0 0
      %3282 = vmatmul.mubr.bf16.gmra.mxu0 %v3147
      %v3283 = vpop.f32.mrf.mxu0
      %v3284 = vadd.f32 0.0, %v3283
      %v3285 = vpop.f32.mrf.mxu0
      %v3286 = vpop.f32.mrf.mxu0
      %v3287 = vadd.f32 0.0, %v3286
      %v3288 = vpop.f32.mrf.mxu0
      %3289 = vmatprep.mubr.bf16.mxu0 0
      %3290 = vmatmul.mubr.bf16.gmra.mxu0 %v3148
      %v3291 = vpop.f32.mrf.mxu0
      %v3292 = vadd.f32 0.0, %v3291
      %v3293 = vpop.f32.mrf.mxu0
      %v3294 = vpop.f32.mrf.mxu0
      %v3295 = vadd.f32 0.0, %v3294
      %v3296 = vpop.f32.mrf.mxu0
      %3297 = vmatprep.mubr.bf16.mxu0 0
      %3298 = vmatmul.mubr.bf16.gmra.mxu0 %v3149
      %v3299 = vpop.f32.mrf.mxu0
      %v3300 = vadd.f32 0.0, %v3299
      %v3301 = vpop.f32.mrf.mxu0
      %v3302 = vpop.f32.mrf.mxu0
      %v3303 = vadd.f32 0.0, %v3302
      %v3304 = vpop.f32.mrf.mxu0
      %3305 = vmatprep.mubr.bf16.mxu0 0
      %3306 = vmatmul.mubr.bf16.gmra.mxu0 %v3150
      %v3307 = vpop.f32.mrf.mxu0
      %v3308 = vadd.f32 0.0, %v3307
      %v3309 = vpop.f32.mrf.mxu0
      %v3310 = vpop.f32.mrf.mxu0
      %v3311 = vadd.f32 0.0, %v3310
      %v3312 = vpop.f32.mrf.mxu0
      %3313 = vmatprep.mubr.bf16.mxu0 0
      %3314 = vmatmul.mubr.bf16.gmra.mxu0 %v3151
      %v3315 = vpop.f32.mrf.mxu0
      %v3316 = vadd.f32 0.0, %v3315
      %v3317 = vpop.f32.mrf.mxu0
      %v3318 = vpop.f32.mrf.mxu0
      %v3319 = vadd.f32 0.0, %v3318
      %v3320 = vpop.f32.mrf.mxu0
      %3321 = vmatprep.mubr.bf16.mxu0 0
      %3322 = vmatmul.mubr.bf16.gmra.mxu0 %v3152
      %v3323 = vpop.f32.mrf.mxu0
      %v3324 = vadd.f32 0.0, %v3323
      %v3325 = vpop.f32.mrf.mxu0
      %v3326 = vpop.f32.mrf.mxu0
      %v3327 = vadd.f32 0.0, %v3326
      %v3328 = vpop.f32.mrf.mxu0
      %3329 = vmatprep.mubr.bf16.mxu0 0
      %3330 = vmatmul.mubr.bf16.gmra.mxu0 %v3153
      %v3331 = vpop.f32.mrf.mxu0
      %v3332 = vadd.f32 0.0, %v3331
      %v3333 = vpop.f32.mrf.mxu0
      %v3334 = vpop.f32.mrf.mxu0
      %v3335 = vadd.f32 0.0, %v3334
      %v3336 = vpop.f32.mrf.mxu0
      %3337 = vmatprep.mubr.bf16.mxu0 0
      %3338 = vmatmul.mubr.bf16.gmra.mxu0 %v3154
      %v3339 = vpop.f32.mrf.mxu0
      %v3340 = vadd.f32 0.0, %v3339
      %v3341 = vpop.f32.mrf.mxu0
      %v3342 = vpop.f32.mrf.mxu0
      %v3343 = vadd.f32 0.0, %v3342
      %v3344 = vpop.f32.mrf.mxu0
      %3345 = vmatprep.mubr.bf16.mxu0 0
      %3346 = vmatmul.mubr.bf16.gmra.mxu0 %v3155
      %v3347 = vpop.f32.mrf.mxu0
      %v3348 = vadd.f32 0.0, %v3347
      %v3349 = vpop.f32.mrf.mxu0
      %v3350 = vpop.f32.mrf.mxu0
      %v3351 = vadd.f32 0.0, %v3350
      %v3352 = vpop.f32.mrf.mxu0
      %3353 = vmatprep.mubr.bf16.mxu0 0
      %3354 = vmatmul.mubr.bf16.gmra.mxu0 %v3156
      %v3355 = vpop.f32.mrf.mxu0
      %v3356 = vadd.f32 0.0, %v3355
      %v3357 = vpop.f32.mrf.mxu0
      %v3358 = vpop.f32.mrf.mxu0
      %v3359 = vadd.f32 0.0, %v3358
      %v3360 = vpop.f32.mrf.mxu0
      %3361 = vmatprep.mubr.bf16.mxu0 0
      %3362 = vmatmul.mubr.bf16.gmra.mxu0 %v3157
      %v3363 = vpop.f32.mrf.mxu0
      %v3364 = vadd.f32 0.0, %v3363
      %v3365 = vpop.f32.mrf.mxu0
      %v3366 = vpop.f32.mrf.mxu0
      %v3367 = vadd.f32 0.0, %v3366
      %v3368 = vpop.f32.mrf.mxu0
      %3369 = vmatprep.mubr.bf16.mxu0 0
      %3370 = vmatmul.mubr.bf16.gmra.mxu0 %v3158
      %v3371 = vpop.f32.mrf.mxu0
      %v3372 = vadd.f32 0.0, %v3371
      %v3373 = vpop.f32.mrf.mxu0
      %v3374 = vpop.f32.mrf.mxu0
      %v3375 = vadd.f32 0.0, %v3374
      %v3376 = vpop.f32.mrf.mxu0
      %3377 = vmatprep.mubr.bf16.mxu0 0
      %3378 = vmatmul.mubr.bf16.gmra.mxu0 %v3159
      %v3379 = vpop.f32.mrf.mxu0
      %v3380 = vadd.f32 0.0, %v3379
      %v3381 = vpop.f32.mrf.mxu0
      %v3382 = vpop.f32.mrf.mxu0
      %v3383 = vadd.f32 0.0, %v3382
      %v3384 = vpop.f32.mrf.mxu0
      %3385 = vdwg.mxu0
      %v3386 = vadd.f32 %v3080, %v3260
      %v3387 = vadd.f32 %v3081, %v3263
      %v3388 = vadd.f32 %v3082, %v3268
      %v3389 = vadd.f32 %v3083, %v3271
      %v3390 = vadd.f32 %v3084, %v3276
      %v3391 = vadd.f32 %v3085, %v3279
      %v3392 = vadd.f32 %v3086, %v3284
      %v3393 = vadd.f32 %v3087, %v3287
      %v3394 = vadd.f32 %v3088, %v3292
      %v3395 = vadd.f32 %v3089, %v3295
      %v3396 = vadd.f32 %v3090, %v3300
      %v3397 = vadd.f32 %v3091, %v3303
      %v3398 = vadd.f32 %v3092, %v3308
      %v3399 = vadd.f32 %v3093, %v3311
      %v3400 = vadd.f32 %v3094, %v3316
      %v3401 = vadd.f32 %v3095, %v3319
      %v3402 = vadd.f32 %v3096, %v3324
      %v3403 = vadd.f32 %v3097, %v3327
      %v3404 = vadd.f32 %v3098, %v3332
      %v3405 = vadd.f32 %v3099, %v3335
      %v3406 = vadd.f32 %v3100, %v3340
      %v3407 = vadd.f32 %v3101, %v3343
      %v3408 = vadd.f32 %v3102, %v3348
      %v3409 = vadd.f32 %v3103, %v3351
      %v3410 = vadd.f32 %v3104, %v3356
      %v3411 = vadd.f32 %v3105, %v3359
      %v3412 = vadd.f32 %v3106, %v3364
      %v3413 = vadd.f32 %v3107, %v3367
      %v3414 = vadd.f32 %v3108, %v3372
      %v3415 = vadd.f32 %v3109, %v3375
      %v3416 = vadd.f32 %v3110, %v3380
      %v3417 = vadd.f32 %v3111, %v3383
      %v3418 = vld [vmem:[%s2805 + $0x2] sm:$0xff]
      %v3419 = vld [vmem:[%s2805 + $0xa] sm:$0xff]
      %v3420 = vld [vmem:[%s2805 + $0x1a] sm:$0xff]
      %v3421 = vld [vmem:[%s2805 + $0x22] sm:$0xff]
      %v3422 = vld [vmem:[%s2805 + $0x32] sm:$0xff]
      %v3423 = vld [vmem:[%s2805 + $0x3a] sm:$0xff]
      %v3424 = vld [vmem:[%s2805 + $0x4a] sm:$0xff]
      %v3425 = vld [vmem:[%s2805 + $0x52] sm:$0xff]
      %v3426 = vld [vmem:[%s2805 + $0x62] sm:$0xff]
      %v3427 = vld [vmem:[%s2805 + $0x6a] sm:$0xff]
      %v3428 = vld [vmem:[%s2805 + $0x7a] sm:$0xff]
      %v3429 = vld [vmem:[%s2805 + $0x82] sm:$0xff]
      %v3430 = vld [vmem:[%s2805 + $0x92] sm:$0xff]
      %v3431 = vld [vmem:[%s2805 + $0x9a] sm:$0xff]
      %v3432 = vld [vmem:[%s2805 + $0xaa] sm:$0xff]
      %v3433 = vld [vmem:[%s2805 + $0xb2] sm:$0xff]
      %v3434 = vld [vmem:[%s2805 + $0xc2] sm:$0xff]
      %v3435 = vld [vmem:[%s2805 + $0xca] sm:$0xff]
      %v3436 = vld [vmem:[%s2805 + $0xda] sm:$0xff]
      %v3437 = vld [vmem:[%s2805 + $0xe2] sm:$0xff]
      %v3438 = vld [vmem:[%s2805 + $0xf2] sm:$0xff]
      %v3439 = vld [vmem:[%s2805 + $0xfa] sm:$0xff]
      %v3440 = vld [vmem:[%s2805 + $0x10a] sm:$0xff]
      %v3441 = vld [vmem:[%s2805 + $0x112] sm:$0xff]
      %v3442 = vld [vmem:[%s2805 + $0x122] sm:$0xff]
      %v3443 = vld [vmem:[%s2805 + $0x12a] sm:$0xff]
      %v3444 = vld [vmem:[%s2805 + $0x13a] sm:$0xff]
      %v3445 = vld [vmem:[%s2805 + $0x142] sm:$0xff]
      %v3446 = vld [vmem:[%s2805 + $0x152] sm:$0xff]
      %v3447 = vld [vmem:[%s2805 + $0x15a] sm:$0xff]
      %v3448 = vld [vmem:[%s2805 + $0x16a] sm:$0xff]
      %v3449 = vld [vmem:[%s2805 + $0x172] sm:$0xff]
      %v3450 = vpack.c.bf16 %v3419, %v3418
      %v3451 = vpack.c.bf16 %v3421, %v3420
      %v3452 = vpack.c.bf16 %v3423, %v3422
      %v3453 = vpack.c.bf16 %v3425, %v3424
      %v3454 = vpack.c.bf16 %v3427, %v3426
      %v3455 = vpack.c.bf16 %v3429, %v3428
      %v3456 = vpack.c.bf16 %v3431, %v3430
      %v3457 = vpack.c.bf16 %v3433, %v3432
      %v3458 = vpack.c.bf16 %v3435, %v3434
      %v3459 = vpack.c.bf16 %v3437, %v3436
      %v3460 = vpack.c.bf16 %v3439, %v3438
      %v3461 = vpack.c.bf16 %v3441, %v3440
      %v3462 = vpack.c.bf16 %v3443, %v3442
      %v3463 = vpack.c.bf16 %v3445, %v3444
      %v3464 = vpack.c.bf16 %v3447, %v3446
      %v3465 = vpack.c.bf16 %v3449, %v3448
      %s3466 = scalar_lea.vmem %s8, 512
      %v3467 = vld [vmem:[%s3466] sm:$0xf]
      %v3468 = vld [vmem:[%s3466 + $0x4] sm:$0xf]
      %v3469 = vld [vmem:[%s3466 + $0x8] sm:$0xf]
      %v3470 = vld [vmem:[%s3466 + $0xc] sm:$0xf]
      %v3471 = vld [vmem:[%s3466 + $0x10] sm:$0xf]
      %v3472 = vld [vmem:[%s3466 + $0x14] sm:$0xf]
      %v3473 = vld [vmem:[%s3466 + $0x18] sm:$0xf]
      %v3474 = vld [vmem:[%s3466 + $0x1c] sm:$0xf]
      %v3475 = vld [vmem:[%s3466 + $0x20] sm:$0xf]
      %v3476 = vld [vmem:[%s3466 + $0x24] sm:$0xf]
      %v3477 = vld [vmem:[%s3466 + $0x28] sm:$0xf]
      %v3478 = vld [vmem:[%s3466 + $0x2c] sm:$0xf]
      %v3479 = vld [vmem:[%s3466 + $0x30] sm:$0xf]
      %v3480 = vld [vmem:[%s3466 + $0x34] sm:$0xf]
      %v3481 = vld [vmem:[%s3466 + $0x38] sm:$0xf]
      %v3482 = vld [vmem:[%s3466 + $0x3c] sm:$0xf]
      %v3499 = vunpack.c.l.b16 %v3467
      %v3500 = vunpack.c.l.b16 %v3468
      %v3501 = vunpack.c.l.b16 %v3469
      %v3502 = vunpack.c.l.b16 %v3470
      %v3503 = vunpack.c.l.b16 %v3471
      %v3504 = vunpack.c.l.b16 %v3472
      %v3505 = vunpack.c.l.b16 %v3473
      %v3506 = vunpack.c.l.b16 %v3474
      %v3507 = vunpack.c.l.b16 %v3475
      %v3508 = vunpack.c.l.b16 %v3476
      %v3509 = vunpack.c.l.b16 %v3477
      %v3510 = vunpack.c.l.b16 %v3478
      %v3511 = vunpack.c.l.b16 %v3479
      %v3512 = vunpack.c.l.b16 %v3480
      %v3513 = vunpack.c.l.b16 %v3481
      %v3514 = vunpack.c.l.b16 %v3482
      %v3515 = vpack.c.b16 %v3500, %v3499
      %v3516 = vpack.c.b16 %v3502, %v3501
      %v3517 = vpack.c.b16 %v3504, %v3503
      %v3518 = vpack.c.b16 %v3506, %v3505
      %v3519 = vpack.c.b16 %v3508, %v3507
      %v3520 = vpack.c.b16 %v3510, %v3509
      %v3521 = vpack.c.b16 %v3512, %v3511
      %v3522 = vpack.c.b16 %v3514, %v3513
      %3531 = vmatprep.subr.bf16.mxu0 0
      %3532 = vmatpush1.bf16.msra.mxu0 %v3522
      %3533 = vmatprep.subr.bf16.mxu0 0
      %3534 = vmatpush1.bf16.msra.mxu0 %v3521
      %3535 = vmatprep.subr.bf16.mxu0 0
      %3536 = vmatpush1.bf16.msra.mxu0 %v3520
      %3537 = vmatprep.subr.bf16.mxu0 0
      %3538 = vmatpush1.bf16.msra.mxu0 %v3519
      %3539 = vmatprep.subr.bf16.mxu0 0
      %3540 = vmatpush1.bf16.msra.mxu0 %v3518
      %3541 = vmatprep.subr.bf16.mxu0 0
      %3542 = vmatpush1.bf16.msra.mxu0 %v3517
      %3543 = vmatprep.subr.bf16.mxu0 0
      %3544 = vmatpush1.bf16.msra.mxu0 %v3516
      %3545 = vmatprep.subr.bf16.mxu0 0
      %3546 = vmatpush1.bf16.msra.mxu0 %v3515
      %3547 = vmatprep.subr.bf16.mxu0 0
      %3548 = vmatpush2.bf16.msra.mxu0 0
      %3549 = vmatprep.subr.bf16.mxu0 0
      %3550 = vmatpush2.bf16.msra.mxu0 0
      %3551 = vmatprep.subr.bf16.mxu0 0
      %3552 = vmatpush2.bf16.msra.mxu0 0
      %3553 = vmatprep.subr.bf16.mxu0 0
      %3554 = vmatpush2.bf16.msra.mxu0 0
      %3555 = vmatprep.subr.bf16.mxu0 0
      %3556 = vmatpush2.bf16.msra.mxu0 0
      %3557 = vmatprep.subr.bf16.mxu0 0
      %3558 = vmatpush2.bf16.msra.mxu0 0
      %3559 = vmatprep.subr.bf16.mxu0 0
      %3560 = vmatpush2.bf16.msra.mxu0 0
      %3561 = vmatprep.subr.bf16.mxu0 0
      %3562 = vmatpush2.bf16.msra.mxu0 0
      %3563 = vmatprep.mubr.bf16.mxu0 0
      %3564 = vmatmul.mubr.bf16.gmra.mxu0 %v3450
      %v3565 = vpop.f32.mrf.mxu0
      %v3566 = vadd.f32 0.0, %v3565
      %v3567 = vpop.f32.mrf.mxu0
      %v3568 = vpop.f32.mrf.mxu0
      %v3569 = vadd.f32 0.0, %v3568
      %v3570 = vpop.f32.mrf.mxu0
      %3571 = vmatprep.mubr.bf16.mxu0 0
      %3572 = vmatmul.mubr.bf16.gmra.mxu0 %v3451
      %v3573 = vpop.f32.mrf.mxu0
      %v3574 = vadd.f32 0.0, %v3573
      %v3575 = vpop.f32.mrf.mxu0
      %v3576 = vpop.f32.mrf.mxu0
      %v3577 = vadd.f32 0.0, %v3576
      %v3578 = vpop.f32.mrf.mxu0
      %3579 = vmatprep.mubr.bf16.mxu0 0
      %3580 = vmatmul.mubr.bf16.gmra.mxu0 %v3452
      %v3581 = vpop.f32.mrf.mxu0
      %v3582 = vadd.f32 0.0, %v3581
      %v3583 = vpop.f32.mrf.mxu0
      %v3584 = vpop.f32.mrf.mxu0
      %v3585 = vadd.f32 0.0, %v3584
      %v3586 = vpop.f32.mrf.mxu0
      %3587 = vmatprep.mubr.bf16.mxu0 0
      %3588 = vmatmul.mubr.bf16.gmra.mxu0 %v3453
      %v3589 = vpop.f32.mrf.mxu0
      %v3590 = vadd.f32 0.0, %v3589
      %v3591 = vpop.f32.mrf.mxu0
      %v3592 = vpop.f32.mrf.mxu0
      %v3593 = vadd.f32 0.0, %v3592
      %v3594 = vpop.f32.mrf.mxu0
      %3595 = vmatprep.mubr.bf16.mxu0 0
      %3596 = vmatmul.mubr.bf16.gmra.mxu0 %v3454
      %v3597 = vpop.f32.mrf.mxu0
      %v3598 = vadd.f32 0.0, %v3597
      %v3599 = vpop.f32.mrf.mxu0
      %v3600 = vpop.f32.mrf.mxu0
      %v3601 = vadd.f32 0.0, %v3600
      %v3602 = vpop.f32.mrf.mxu0
      %3603 = vmatprep.mubr.bf16.mxu0 0
      %3604 = vmatmul.mubr.bf16.gmra.mxu0 %v3455
      %v3605 = vpop.f32.mrf.mxu0
      %v3606 = vadd.f32 0.0, %v3605
      %v3607 = vpop.f32.mrf.mxu0
      %v3608 = vpop.f32.mrf.mxu0
      %v3609 = vadd.f32 0.0, %v3608
      %v3610 = vpop.f32.mrf.mxu0
      %3611 = vmatprep.mubr.bf16.mxu0 0
      %3612 = vmatmul.mubr.bf16.gmra.mxu0 %v3456
      %v3613 = vpop.f32.mrf.mxu0
      %v3614 = vadd.f32 0.0, %v3613
      %v3615 = vpop.f32.mrf.mxu0
      %v3616 = vpop.f32.mrf.mxu0
      %v3617 = vadd.f32 0.0, %v3616
      %v3618 = vpop.f32.mrf.mxu0
      %3619 = vmatprep.mubr.bf16.mxu0 0
      %3620 = vmatmul.mubr.bf16.gmra.mxu0 %v3457
      %v3621 = vpop.f32.mrf.mxu0
      %v3622 = vadd.f32 0.0, %v3621
      %v3623 = vpop.f32.mrf.mxu0
      %v3624 = vpop.f32.mrf.mxu0
      %v3625 = vadd.f32 0.0, %v3624
      %v3626 = vpop.f32.mrf.mxu0
      %3627 = vmatprep.mubr.bf16.mxu0 0
      %3628 = vmatmul.mubr.bf16.gmra.mxu0 %v3458
      %v3629 = vpop.f32.mrf.mxu0
      %v3630 = vadd.f32 0.0, %v3629
      %v3631 = vpop.f32.mrf.mxu0
      %v3632 = vpop.f32.mrf.mxu0
      %v3633 = vadd.f32 0.0, %v3632
      %v3634 = vpop.f32.mrf.mxu0
      %3635 = vmatprep.mubr.bf16.mxu0 0
      %3636 = vmatmul.mubr.bf16.gmra.mxu0 %v3459
      %v3637 = vpop.f32.mrf.mxu0
      %v3638 = vadd.f32 0.0, %v3637
      %v3639 = vpop.f32.mrf.mxu0
      %v3640 = vpop.f32.mrf.mxu0
      %v3641 = vadd.f32 0.0, %v3640
      %v3642 = vpop.f32.mrf.mxu0
      %3643 = vmatprep.mubr.bf16.mxu0 0
      %3644 = vmatmul.mubr.bf16.gmra.mxu0 %v3460
      %v3645 = vpop.f32.mrf.mxu0
      %v3646 = vadd.f32 0.0, %v3645
      %v3647 = vpop.f32.mrf.mxu0
      %v3648 = vpop.f32.mrf.mxu0
      %v3649 = vadd.f32 0.0, %v3648
      %v3650 = vpop.f32.mrf.mxu0
      %3651 = vmatprep.mubr.bf16.mxu0 0
      %3652 = vmatmul.mubr.bf16.gmra.mxu0 %v3461
      %v3653 = vpop.f32.mrf.mxu0
      %v3654 = vadd.f32 0.0, %v3653
      %v3655 = vpop.f32.mrf.mxu0
      %v3656 = vpop.f32.mrf.mxu0
      %v3657 = vadd.f32 0.0, %v3656
      %v3658 = vpop.f32.mrf.mxu0
      %3659 = vmatprep.mubr.bf16.mxu0 0
      %3660 = vmatmul.mubr.bf16.gmra.mxu0 %v3462
      %v3661 = vpop.f32.mrf.mxu0
      %v3662 = vadd.f32 0.0, %v3661
      %v3663 = vpop.f32.mrf.mxu0
      %v3664 = vpop.f32.mrf.mxu0
      %v3665 = vadd.f32 0.0, %v3664
      %v3666 = vpop.f32.mrf.mxu0
      %3667 = vmatprep.mubr.bf16.mxu0 0
      %3668 = vmatmul.mubr.bf16.gmra.mxu0 %v3463
      %v3669 = vpop.f32.mrf.mxu0
      %v3670 = vadd.f32 0.0, %v3669
      %v3671 = vpop.f32.mrf.mxu0
      %v3672 = vpop.f32.mrf.mxu0
      %v3673 = vadd.f32 0.0, %v3672
      %v3674 = vpop.f32.mrf.mxu0
      %3675 = vmatprep.mubr.bf16.mxu0 0
      %3676 = vmatmul.mubr.bf16.gmra.mxu0 %v3464
      %v3677 = vpop.f32.mrf.mxu0
      %v3678 = vadd.f32 0.0, %v3677
      %v3679 = vpop.f32.mrf.mxu0
      %v3680 = vpop.f32.mrf.mxu0
      %v3681 = vadd.f32 0.0, %v3680
      %v3682 = vpop.f32.mrf.mxu0
      %3683 = vmatprep.mubr.bf16.mxu0 0
      %3684 = vmatmul.mubr.bf16.gmra.mxu0 %v3465
      %v3685 = vpop.f32.mrf.mxu0
      %v3686 = vadd.f32 0.0, %v3685
      %v3687 = vpop.f32.mrf.mxu0
      %v3688 = vpop.f32.mrf.mxu0
      %v3689 = vadd.f32 0.0, %v3688
      %v3690 = vpop.f32.mrf.mxu0
      %3691 = vdwg.mxu0
      %v3692 = vadd.f32 %v3386, %v3566
      %v3693 = vadd.f32 %v3387, %v3569
      %v3694 = vadd.f32 %v3388, %v3574
      %v3695 = vadd.f32 %v3389, %v3577
      %v3696 = vadd.f32 %v3390, %v3582
      %v3697 = vadd.f32 %v3391, %v3585
      %v3698 = vadd.f32 %v3392, %v3590
      %v3699 = vadd.f32 %v3393, %v3593
      %v3700 = vadd.f32 %v3394, %v3598
      %v3701 = vadd.f32 %v3395, %v3601
      %v3702 = vadd.f32 %v3396, %v3606
      %v3703 = vadd.f32 %v3397, %v3609
      %v3704 = vadd.f32 %v3398, %v3614
      %v3705 = vadd.f32 %v3399, %v3617
      %v3706 = vadd.f32 %v3400, %v3622
      %v3707 = vadd.f32 %v3401, %v3625
      %v3708 = vadd.f32 %v3402, %v3630
      %v3709 = vadd.f32 %v3403, %v3633
      %v3710 = vadd.f32 %v3404, %v3638
      %v3711 = vadd.f32 %v3405, %v3641
      %v3712 = vadd.f32 %v3406, %v3646
      %v3713 = vadd.f32 %v3407, %v3649
      %v3714 = vadd.f32 %v3408, %v3654
      %v3715 = vadd.f32 %v3409, %v3657
      %v3716 = vadd.f32 %v3410, %v3662
      %v3717 = vadd.f32 %v3411, %v3665
      %v3718 = vadd.f32 %v3412, %v3670
      %v3719 = vadd.f32 %v3413, %v3673
      %v3720 = vadd.f32 %v3414, %v3678
      %v3721 = vadd.f32 %v3415, %v3681
      %v3722 = vadd.f32 %v3416, %v3686
      %v3723 = vadd.f32 %v3417, %v3689
      %v3724 = vld [vmem:[%s7 + $0x2] sm:$0x1]
      %v3725 = vlaneseq
      %v3726 = vshrl.u32 %v3725, 7
      %v3727 = vsub.s32 0, %v3726
      %v3728 = vrot.slane %v3724, %v3727
      %v3729 = vadd.f32 %v3692, %v3728
      %v3730 = vadd.f32 %v3693, %v3728
      %v3731 = vadd.f32 %v3694, %v3728
      %v3732 = vadd.f32 %v3695, %v3728
      %v3733 = vadd.f32 %v3696, %v3728
      %v3734 = vadd.f32 %v3697, %v3728
      %v3735 = vadd.f32 %v3698, %v3728
      %v3736 = vadd.f32 %v3699, %v3728
      %v3737 = vadd.f32 %v3700, %v3728
      %v3738 = vadd.f32 %v3701, %v3728
      %v3739 = vadd.f32 %v3702, %v3728
      %v3740 = vadd.f32 %v3703, %v3728
      %v3741 = vadd.f32 %v3704, %v3728
      %v3742 = vadd.f32 %v3705, %v3728
      %v3743 = vadd.f32 %v3706, %v3728
      %v3744 = vadd.f32 %v3707, %v3728
      %v3745 = vadd.f32 %v3708, %v3728
      %v3746 = vadd.f32 %v3709, %v3728
      %v3747 = vadd.f32 %v3710, %v3728
      %v3748 = vadd.f32 %v3711, %v3728
      %v3749 = vadd.f32 %v3712, %v3728
      %v3750 = vadd.f32 %v3713, %v3728
      %v3751 = vadd.f32 %v3714, %v3728
      %v3752 = vadd.f32 %v3715, %v3728
      %v3753 = vadd.f32 %v3716, %v3728
      %v3754 = vadd.f32 %v3717, %v3728
      %v3755 = vadd.f32 %v3718, %v3728
      %v3756 = vadd.f32 %v3719, %v3728
      %v3757 = vadd.f32 %v3720, %v3728
      %v3758 = vadd.f32 %v3721, %v3728
      %v3759 = vadd.f32 %v3722, %v3728
      %v3760 = vadd.f32 %v3723, %v3728
      %s3761 = scalar_lea.vmem %s4, %s22
      %v3762 = vld [vmem:[%s3761] sm:$0x1]
      %v3763 = vld [vmem:[%s5] sm:$0xff]
      %v3764 = vld [vmem:[%s5 + $0x8] sm:$0xff]
      %v3765 = vld [vmem:[%s5 + $0x10] sm:$0xff]
      %v3766 = vld [vmem:[%s5 + $0x18] sm:$0xff]
      %v3767 = vld [vmem:[%s7] sm:$0x1]
      %vm3768 = vcmask 261120
      %v3770 = vsel %vm3768, %v3762, 0
      %3772 = vmatprep.subr.mxu0 0.0
      %3773 = vmatpush1.msra.mxu0 0.0
      %3774 = vmatprep.subr.mxu0 0.0
      %3775 = vmatpush1.msra.mxu0 0.0
      %3776 = vmatprep.subr.mxu0 0.0
      %3777 = vmatpush1.msra.mxu0 0.0
      %3778 = vmatprep.subr.mxu0 0.0
      %3779 = vmatpush1.msra.mxu0 0.0
      %3780 = vmatprep.subr.mxu0 0.0
      %3781 = vmatpush1.msra.mxu0 0.0
      %3782 = vmatprep.subr.mxu0 0.0
      %3783 = vmatpush1.msra.mxu0 0.0
      %3784 = vmatprep.subr.mxu0 0.0
      %3785 = vmatpush1.msra.mxu0 0.0
      %3786 = vmatprep.subr.mxu0 0.0
      %3787 = vmatpush1.msra.mxu0 0.0
      %3788 = vmatprep.subr.mxu0 0.0
      %3789 = vmatpush1.msra.mxu0 0.0
      %3790 = vmatprep.subr.mxu0 0.0
      %3791 = vmatpush1.msra.mxu0 0.0
      %3792 = vmatprep.subr.mxu0 0.0
      %3793 = vmatpush1.msra.mxu0 0.0
      %3794 = vmatprep.subr.mxu0 0.0
      %3795 = vmatpush1.msra.mxu0 0.0
      %3796 = vmatprep.subr.mxu0 0.0
      %3797 = vmatpush1.msra.mxu0 %v3766
      %3798 = vmatprep.subr.mxu0 0.0
      %3799 = vmatpush1.msra.mxu0 %v3765
      %3800 = vmatprep.subr.mxu0 0.0
      %3801 = vmatpush1.msra.mxu0 %v3764
      %3802 = vmatprep.subr.mxu0 0.0
      %3803 = vmatpush1.msra.mxu0 %v3763
      %3804 = vmatprep.subr.mxu0 0.0
      %3805 = vmatpush2.msra.mxu0 0.0
      %3806 = vmatprep.subr.mxu0 0.0
      %3807 = vmatpush2.msra.mxu0 0.0
      %3808 = vmatprep.subr.mxu0 0.0
      %3809 = vmatpush2.msra.mxu0 0.0
      %3810 = vmatprep.subr.mxu0 0.0
      %3811 = vmatpush2.msra.mxu0 0.0
      %3812 = vmatprep.subr.mxu0 0.0
      %3813 = vmatpush2.msra.mxu0 0.0
      %3814 = vmatprep.subr.mxu0 0.0
      %3815 = vmatpush2.msra.mxu0 0.0
      %3816 = vmatprep.subr.mxu0 0.0
      %3817 = vmatpush2.msra.mxu0 0.0
      %3818 = vmatprep.subr.mxu0 0.0
      %3819 = vmatpush2.msra.mxu0 0.0
      %3820 = vmatprep.subr.mxu0 0.0
      %3821 = vmatpush2.msra.mxu0 0.0
      %3822 = vmatprep.subr.mxu0 0.0
      %3823 = vmatpush2.msra.mxu0 0.0
      %3824 = vmatprep.subr.mxu0 0.0
      %3825 = vmatpush2.msra.mxu0 0.0
      %3826 = vmatprep.subr.mxu0 0.0
      %3827 = vmatpush2.msra.mxu0 0.0
      %3828 = vmatprep.subr.mxu0 0.0
      %3829 = vmatpush2.msra.mxu0 0.0
      %3830 = vmatprep.subr.mxu0 0.0
      %3831 = vmatpush2.msra.mxu0 0.0
      %3832 = vmatprep.subr.mxu0 0.0
      %3833 = vmatpush2.msra.mxu0 0.0
      %3834 = vmatprep.subr.mxu0 0.0
      %3835 = vmatpush2.msra.mxu0 0.0
      %3836 = vmatprep.mubr.f32.mxu0 0.0
      %3837 = vmatmul.mubr.f32.gmra.mxu0 %v3770
      %v3838 = vpop.f32.mrf.mxu0
      %v3839 = vadd.f32 %v3767, %v3838
      %v3840 = vpop.f32.mrf.mxu0
      %3841 = vdwg.mxu0
      %v3842 = vld [vmem:[%s6] sm:$0xff]
      %v3843 = vld [vmem:[%s6 + $0x8] sm:$0xff]
      %v3844 = vld [vmem:[%s6 + $0x10] sm:$0xff]
      %v3845 = vld [vmem:[%s6 + $0x18] sm:$0xff]
      %v3846 = vld [vmem:[%s7 + $0x1] sm:$0x1]
      %3847 = vmatprep.subr.mxu0 0.0
      %3848 = vmatpush1.msra.mxu0 0.0
      %3849 = vmatprep.subr.mxu0 0.0
      %3850 = vmatpush1.msra.mxu0 0.0
      %3851 = vmatprep.subr.mxu0 0.0
      %3852 = vmatpush1.msra.mxu0 0.0
      %3853 = vmatprep.subr.mxu0 0.0
      %3854 = vmatpush1.msra.mxu0 0.0
      %3855 = vmatprep.subr.mxu0 0.0
      %3856 = vmatpush1.msra.mxu0 0.0
      %3857 = vmatprep.subr.mxu0 0.0
      %3858 = vmatpush1.msra.mxu0 0.0
      %3859 = vmatprep.subr.mxu0 0.0
      %3860 = vmatpush1.msra.mxu0 0.0
      %3861 = vmatprep.subr.mxu0 0.0
      %3862 = vmatpush1.msra.mxu0 0.0
      %3863 = vmatprep.subr.mxu0 0.0
      %3864 = vmatpush1.msra.mxu0 0.0
      %3865 = vmatprep.subr.mxu0 0.0
      %3866 = vmatpush1.msra.mxu0 0.0
      %3867 = vmatprep.subr.mxu0 0.0
      %3868 = vmatpush1.msra.mxu0 0.0
      %3869 = vmatprep.subr.mxu0 0.0
      %3870 = vmatpush1.msra.mxu0 0.0
      %3871 = vmatprep.subr.mxu0 0.0
      %3872 = vmatpush1.msra.mxu0 %v3845
      %3873 = vmatprep.subr.mxu0 0.0
      %3874 = vmatpush1.msra.mxu0 %v3844
      %3875 = vmatprep.subr.mxu0 0.0
      %3876 = vmatpush1.msra.mxu0 %v3843
      %3877 = vmatprep.subr.mxu0 0.0
      %3878 = vmatpush1.msra.mxu0 %v3842
      %3879 = vmatprep.subr.mxu0 0.0
      %3880 = vmatpush2.msra.mxu0 0.0
      %3881 = vmatprep.subr.mxu0 0.0
      %3882 = vmatpush2.msra.mxu0 0.0
      %3883 = vmatprep.subr.mxu0 0.0
      %3884 = vmatpush2.msra.mxu0 0.0
      %3885 = vmatprep.subr.mxu0 0.0
      %3886 = vmatpush2.msra.mxu0 0.0
      %3887 = vmatprep.subr.mxu0 0.0
      %3888 = vmatpush2.msra.mxu0 0.0
      %3889 = vmatprep.subr.mxu0 0.0
      %3890 = vmatpush2.msra.mxu0 0.0
      %3891 = vmatprep.subr.mxu0 0.0
      %3892 = vmatpush2.msra.mxu0 0.0
      %3893 = vmatprep.subr.mxu0 0.0
      %3894 = vmatpush2.msra.mxu0 0.0
      %3895 = vmatprep.subr.mxu0 0.0
      %3896 = vmatpush2.msra.mxu0 0.0
      %3897 = vmatprep.subr.mxu0 0.0
      %3898 = vmatpush2.msra.mxu0 0.0
      %3899 = vmatprep.subr.mxu0 0.0
      %3900 = vmatpush2.msra.mxu0 0.0
      %3901 = vmatprep.subr.mxu0 0.0
      %3902 = vmatpush2.msra.mxu0 0.0
      %3903 = vmatprep.subr.mxu0 0.0
      %3904 = vmatpush2.msra.mxu0 0.0
      %3905 = vmatprep.subr.mxu0 0.0
      %3906 = vmatpush2.msra.mxu0 0.0
      %3907 = vmatprep.subr.mxu0 0.0
      %3908 = vmatpush2.msra.mxu0 0.0
      %3909 = vmatprep.subr.mxu0 0.0
      %3910 = vmatpush2.msra.mxu0 0.0
      %3911 = vmatprep.mubr.f32.mxu0 0.0
      %3912 = vmatmul.mubr.f32.gmra.mxu0 %v3770
      %v3913 = vpop.f32.mrf.mxu0
      %v3914 = vadd.f32 %v3846, %v3913
      %v3915 = vpop.f32.mrf.mxu0
      %3916 = vdwg.mxu0
      %v3917 = vlaneseq
      %v3918 = vshrl.u32 %v3917, 7
      %v3919 = vsub.s32 0, %v3918
      %v3920 = vrot.slane %v3839, %v3919
      %v3921 = vmul.f32 %v3729, %v3920
      %v3922 = vmul.f32 %v3730, %v3920
      %v3923 = vmul.f32 %v3731, %v3920
      %v3924 = vmul.f32 %v3732, %v3920
      %v3925 = vmul.f32 %v3733, %v3920
      %v3926 = vmul.f32 %v3734, %v3920
      %v3927 = vmul.f32 %v3735, %v3920
      %v3928 = vmul.f32 %v3736, %v3920
      %v3929 = vmul.f32 %v3737, %v3920
      %v3930 = vmul.f32 %v3738, %v3920
      %v3931 = vmul.f32 %v3739, %v3920
      %v3932 = vmul.f32 %v3740, %v3920
      %v3933 = vmul.f32 %v3741, %v3920
      %v3934 = vmul.f32 %v3742, %v3920
      %v3935 = vmul.f32 %v3743, %v3920
      %v3936 = vmul.f32 %v3744, %v3920
      %v3937 = vmul.f32 %v3745, %v3920
      %v3938 = vmul.f32 %v3746, %v3920
      %v3939 = vmul.f32 %v3747, %v3920
      %v3940 = vmul.f32 %v3748, %v3920
      %v3941 = vmul.f32 %v3749, %v3920
      %v3942 = vmul.f32 %v3750, %v3920
      %v3943 = vmul.f32 %v3751, %v3920
      %v3944 = vmul.f32 %v3752, %v3920
      %v3945 = vmul.f32 %v3753, %v3920
      %v3946 = vmul.f32 %v3754, %v3920
      %v3947 = vmul.f32 %v3755, %v3920
      %v3948 = vmul.f32 %v3756, %v3920
      %v3949 = vmul.f32 %v3757, %v3920
      %v3950 = vmul.f32 %v3758, %v3920
      %v3951 = vmul.f32 %v3759, %v3920
      %v3952 = vmul.f32 %v3760, %v3920
      %v3953 = vlaneseq
      %v3954 = vshrl.u32 %v3953, 7
      %v3955 = vsub.s32 0, %v3954
      %v3956 = vrot.slane %v3914, %v3955
      %v3957 = vadd.f32 %v3921, %v3956
      %v3958 = vadd.f32 %v3922, %v3956
      %v3959 = vadd.f32 %v3923, %v3956
      %v3960 = vadd.f32 %v3924, %v3956
      %v3961 = vadd.f32 %v3925, %v3956
      %v3962 = vadd.f32 %v3926, %v3956
      %v3963 = vadd.f32 %v3927, %v3956
      %v3964 = vadd.f32 %v3928, %v3956
      %v3965 = vadd.f32 %v3929, %v3956
      %v3966 = vadd.f32 %v3930, %v3956
      %v3967 = vadd.f32 %v3931, %v3956
      %v3968 = vadd.f32 %v3932, %v3956
      %v3969 = vadd.f32 %v3933, %v3956
      %v3970 = vadd.f32 %v3934, %v3956
      %v3971 = vadd.f32 %v3935, %v3956
      %v3972 = vadd.f32 %v3936, %v3956
      %v3973 = vadd.f32 %v3937, %v3956
      %v3974 = vadd.f32 %v3938, %v3956
      %v3975 = vadd.f32 %v3939, %v3956
      %v3976 = vadd.f32 %v3940, %v3956
      %v3977 = vadd.f32 %v3941, %v3956
      %v3978 = vadd.f32 %v3942, %v3956
      %v3979 = vadd.f32 %v3943, %v3956
      %v3980 = vadd.f32 %v3944, %v3956
      %v3981 = vadd.f32 %v3945, %v3956
      %v3982 = vadd.f32 %v3946, %v3956
      %v3983 = vadd.f32 %v3947, %v3956
      %v3984 = vadd.f32 %v3948, %v3956
      %v3985 = vadd.f32 %v3949, %v3956
      %v3986 = vadd.f32 %v3950, %v3956
      %v3987 = vadd.f32 %v3951, %v3956
      %v3988 = vadd.f32 %v3952, %v3956
      %3989 = vst [vmem:[%s357] sm:$0xff] %v3957
      %3990 = vst [vmem:[%s357 + $0x8] sm:$0xff] %v3958
      %3991 = vst [vmem:[%s357 + $0x10] sm:$0xff] %v3959
      %3992 = vst [vmem:[%s357 + $0x18] sm:$0xff] %v3960
      %3993 = vst [vmem:[%s357 + $0x20] sm:$0xff] %v3961
      %3994 = vst [vmem:[%s357 + $0x28] sm:$0xff] %v3962
      %3995 = vst [vmem:[%s357 + $0x30] sm:$0xff] %v3963
      %3996 = vst [vmem:[%s357 + $0x38] sm:$0xff] %v3964
      %3997 = vst [vmem:[%s357 + $0x40] sm:$0xff] %v3965
      %3998 = vst [vmem:[%s357 + $0x48] sm:$0xff] %v3966
      %3999 = vst [vmem:[%s357 + $0x50] sm:$0xff] %v3967
      %4000 = vst [vmem:[%s357 + $0x58] sm:$0xff] %v3968
      %4001 = vst [vmem:[%s357 + $0x60] sm:$0xff] %v3969
      %4002 = vst [vmem:[%s357 + $0x68] sm:$0xff] %v3970
      %4003 = vst [vmem:[%s357 + $0x70] sm:$0xff] %v3971
      %4004 = vst [vmem:[%s357 + $0x78] sm:$0xff] %v3972
      %4005 = vst [vmem:[%s357 + $0x80] sm:$0xff] %v3973
      %4006 = vst [vmem:[%s357 + $0x88] sm:$0xff] %v3974
      %4007 = vst [vmem:[%s357 + $0x90] sm:$0xff] %v3975
      %4008 = vst [vmem:[%s357 + $0x98] sm:$0xff] %v3976
      %4009 = vst [vmem:[%s357 + $0xa0] sm:$0xff] %v3977
      %4010 = vst [vmem:[%s357 + $0xa8] sm:$0xff] %v3978
      %4011 = vst [vmem:[%s357 + $0xb0] sm:$0xff] %v3979
      %4012 = vst [vmem:[%s357 + $0xb8] sm:$0xff] %v3980
      %4013 = vst [vmem:[%s357 + $0xc0] sm:$0xff] %v3981
      %4014 = vst [vmem:[%s357 + $0xc8] sm:$0xff] %v3982
      %4015 = vst [vmem:[%s357 + $0xd0] sm:$0xff] %v3983
      %4016 = vst [vmem:[%s357 + $0xd8] sm:$0xff] %v3984
      %4017 = vst [vmem:[%s357 + $0xe0] sm:$0xff] %v3985
      %4018 = vst [vmem:[%s357 + $0xe8] sm:$0xff] %v3986
      %4019 = vst [vmem:[%s357 + $0xf0] sm:$0xff] %v3987
      %4020 = vst [vmem:[%s357 + $0xf8] sm:$0xff] %v3988
      %v4021 = vld [vmem:[%s10] sm:$0x3]
      %v4022 = vadd.f32 %v3957, %v3958
      %v4023 = vadd.f32 %v4022, %v3959
      %v4024 = vadd.f32 %v4023, %v3960
      %v4025 = vadd.f32 %v4024, %v3961
      %v4026 = vadd.f32 %v4025, %v3962
      %v4027 = vadd.f32 %v4026, %v3963
      %v4028 = vadd.f32 %v4027, %v3964
      %v4029 = vadd.f32 %v4028, %v3965
      %v4030 = vadd.f32 %v4029, %v3966
      %v4031 = vadd.f32 %v4030, %v3967
      %v4032 = vadd.f32 %v4031, %v3968
      %v4033 = vadd.f32 %v4032, %v3969
      %v4034 = vadd.f32 %v4033, %v3970
      %v4035 = vadd.f32 %v4034, %v3971
      %v4036 = vadd.f32 %v4035, %v3972
      %v4037 = vadd.f32 %v4036, %v3973
      %v4038 = vadd.f32 %v4037, %v3974
      %v4039 = vadd.f32 %v4038, %v3975
      %v4040 = vadd.f32 %v4039, %v3976
      %v4041 = vadd.f32 %v4040, %v3977
      %v4042 = vadd.f32 %v4041, %v3978
      %v4043 = vadd.f32 %v4042, %v3979
      %v4044 = vadd.f32 %v4043, %v3980
      %v4045 = vadd.f32 %v4044, %v3981
      %v4046 = vadd.f32 %v4045, %v3982
      %v4047 = vadd.f32 %v4046, %v3983
      %v4048 = vadd.f32 %v4047, %v3984
      %v4049 = vadd.f32 %v4048, %v3985
      %v4050 = vadd.f32 %v4049, %v3986
      %v4051 = vadd.f32 %v4050, %v3987
      %v4052 = vadd.f32 %v4051, %v3988
      %v4053 = vrot.slane %v4052, 4
      %v4054 = vadd.f32 %v4052, %v4053
      %v4055 = vrot.slane %v4054, 2
      %v4056 = vadd.f32 %v4054, %v4055
      %v4057 = vrot.slane %v4056, 1
      %v4058 = vadd.f32 %v4056, %v4057
      %v4059 = vmul.f32 %v3957, %v3957
      %v4060 = vmul.f32 %v3958, %v3958
      %v4061 = vmul.f32 %v3959, %v3959
      %v4062 = vmul.f32 %v3960, %v3960
      %v4063 = vmul.f32 %v3961, %v3961
      %v4064 = vmul.f32 %v3962, %v3962
      %v4065 = vmul.f32 %v3963, %v3963
      %v4066 = vmul.f32 %v3964, %v3964
      %v4067 = vmul.f32 %v3965, %v3965
      %v4068 = vmul.f32 %v3966, %v3966
      %v4069 = vmul.f32 %v3967, %v3967
      %v4070 = vmul.f32 %v3968, %v3968
      %v4071 = vmul.f32 %v3969, %v3969
      %v4072 = vmul.f32 %v3970, %v3970
      %v4073 = vmul.f32 %v3971, %v3971
      %v4074 = vmul.f32 %v3972, %v3972
      %v4075 = vmul.f32 %v3973, %v3973
      %v4076 = vmul.f32 %v3974, %v3974
      %v4077 = vmul.f32 %v3975, %v3975
      %v4078 = vmul.f32 %v3976, %v3976
      %v4079 = vmul.f32 %v3977, %v3977
      %v4080 = vmul.f32 %v3978, %v3978
      %v4081 = vmul.f32 %v3979, %v3979
      %v4082 = vmul.f32 %v3980, %v3980
      %v4083 = vmul.f32 %v3981, %v3981
      %v4084 = vmul.f32 %v3982, %v3982
      %v4085 = vmul.f32 %v3983, %v3983
      %v4086 = vmul.f32 %v3984, %v3984
      %v4087 = vmul.f32 %v3985, %v3985
      %v4088 = vmul.f32 %v3986, %v3986
      %v4089 = vmul.f32 %v3987, %v3987
      %v4090 = vmul.f32 %v3988, %v3988
      %v4091 = vadd.f32 %v4059, %v4060
      %v4092 = vadd.f32 %v4091, %v4061
      %v4093 = vadd.f32 %v4092, %v4062
      %v4094 = vadd.f32 %v4093, %v4063
      %v4095 = vadd.f32 %v4094, %v4064
      %v4096 = vadd.f32 %v4095, %v4065
      %v4097 = vadd.f32 %v4096, %v4066
      %v4098 = vadd.f32 %v4097, %v4067
      %v4099 = vadd.f32 %v4098, %v4068
      %v4100 = vadd.f32 %v4099, %v4069
      %v4101 = vadd.f32 %v4100, %v4070
      %v4102 = vadd.f32 %v4101, %v4071
      %v4103 = vadd.f32 %v4102, %v4072
      %v4104 = vadd.f32 %v4103, %v4073
      %v4105 = vadd.f32 %v4104, %v4074
      %v4106 = vadd.f32 %v4105, %v4075
      %v4107 = vadd.f32 %v4106, %v4076
      %v4108 = vadd.f32 %v4107, %v4077
      %v4109 = vadd.f32 %v4108, %v4078
      %v4110 = vadd.f32 %v4109, %v4079
      %v4111 = vadd.f32 %v4110, %v4080
      %v4112 = vadd.f32 %v4111, %v4081
      %v4113 = vadd.f32 %v4112, %v4082
      %v4114 = vadd.f32 %v4113, %v4083
      %v4115 = vadd.f32 %v4114, %v4084
      %v4116 = vadd.f32 %v4115, %v4085
      %v4117 = vadd.f32 %v4116, %v4086
      %v4118 = vadd.f32 %v4117, %v4087
      %v4119 = vadd.f32 %v4118, %v4088
      %v4120 = vadd.f32 %v4119, %v4089
      %v4121 = vadd.f32 %v4120, %v4090
      %v4122 = vrot.slane %v4121, 4
      %v4123 = vadd.f32 %v4121, %v4122
      %v4124 = vrot.slane %v4123, 2
      %v4125 = vadd.f32 %v4123, %v4124
      %v4126 = vrot.slane %v4125, 1
      %v4127 = vadd.f32 %v4125, %v4126
      %vm4128 = vcmask 1040384
      %v4129 = vsel %vm4128, %v4058, %v4127
      %v4130 = vadd.f32 %v4021, %v4129
      %4131 = vst [vmem:[%s10] sm:$0x3] %v4130
      %p4132 = scmp.lt.s32.totalorder %s22, 1
      %s4133 = scalar_select %p4132, %s22, 1
      %s4134 = smul.addr %s4133, 32
      %s4135 = smul.addr %s4134, 8
      %s4136 = scalar_lea.vmem %s9, %s4135
      // Predicated region
      $region61: #{expert_controller_film.4} parent=55 // pred_check
        %p4137 = pneg %p234
      $region62: #{expert_controller_film.4} parent=55 // pred_check_branch
        %4139 = sbr.rel (%p4137) target = $region64
      $region63: #{expert_controller_film.4} parent=55 // pred_region
        _
      $region64: #{expert_controller_film.4} parent=55 // pred_fallthru
        _
      // Predicated region
      $region65: #{expert_controller_film.4} parent=55 // pred_check
        %p4140 = pneg %p255
      $region66: #{expert_controller_film.4} parent=55 // pred_check_branch
        %4142 = sbr.rel (%p4140) target = $region68
      $region67: #{expert_controller_film.4} parent=55 // pred_region
        _
      $region68: #{expert_controller_film.4} parent=55 // pred_fallthru
        _
      // Predicated region
      $region69: #{expert_controller_film.4} parent=55 // pred_check
        %p4143 = pneg %p255
      $region70: #{expert_controller_film.4} parent=55 // pred_check_branch
        %4145 = sbr.rel (%p4143) target = $region72
      $region71: #{expert_controller_film.4} parent=55 // pred_region
        _
      $region72: #{expert_controller_film.4} parent=55 // pred_fallthru
        _
    $region56: #{expert_controller_film.4} parent=5 // pred_fallthru
      _
    %p4146 = scmp.le.s32.totalorder 2, %s17
    // Predicated region
    $region73: #{expert_controller_film.4} parent=5 // pred_check
      %p4147 = pneg %p4146
    $region74: #{expert_controller_film.4} parent=5 // pred_check_branch
      %4149 = sbr.rel (%p4147) target = $region76
    $region75: #{expert_controller_film.4} parent=5 // pred_region
      %s4150 = ssub.s32 %s17, 2
      // Predicated region
      $region77: #{expert_controller_film.4} parent=75 // pred_check
        %p4151 = pneg %p240
      $region78: #{expert_controller_film.4} parent=75 // pred_check_branch
        %4153 = sbr.rel (%p4151) target = $region80
      $region79: #{expert_controller_film.4} parent=75 // pred_region
        %p4154 = scmp.lt.s32.totalorder %s23, 1
        %s4155 = scalar_select %p4154, %s23, 1
        %s4156 = smul.addr %s4155, 32
        %s4157 = smul.addr %s4156, 8
        %s4158 = scalar_lea.vmem %s9, %s4157
      $region80: #{expert_controller_film.4} parent=75 // pred_fallthru
        _
    $region76: #{expert_controller_film.4} parent=5 // pred_fallthru
      _
  $region6: #{expert_controller_film.4} parent=0 // loop_footer
    %s21 = sadd.s32 1, %s17
  $region7: #{expert_controller_film.4} parent=0 // loop_footer_branch
    %16 = sbr.rel target = $region3
  $region8: #{expert_controller_film.4} parent=0 // loop_exit
    _

</llo_original>
